<compile_context>
chip_gen: v7x
topology: tpu7x:2x2x1
jax: 0.10.0
libtpu: 0.0.40
codegen_flags: <defaults>
</compile_context>

<pallas_src>
import jax
import jax.numpy as jnp
from jax.experimental import pallas as pl
from jax.experimental.pallas import tpu as pltpu

_BN_EPS = 1e-5


# ---------------------------------------------------------------------------
# Fused BasicBlock kernel (stride=1, identity shortcut)
# ---------------------------------------------------------------------------
def _make_fused_block_kernel(H, W, C):
    HW = H * W
    halo = 2 * W            # zero rows above/below the image in the halo buffers
    HX = HW + 4 * W         # halo buffer rows

    def kernel(x_ref, w1_ref, w2_ref, sb_ref, mask_ref, out_ref, x_sc, h1_sc):
        # x_ref : (1, HW, C) f32   flattened NHWC image (row-major pixels)
        # w1/w2 : (9, C, C)  bf16  per-tap (Cin, Cout) conv matrices
        # sb    : (4, C)     f32   rows = [scale1, bias1, scale2, bias2]
        # mask  : (HW, 2)    f32   column-wrap masks for dx = -1 / +1 taps
        # out   : (1, HW, C) f32
        # x_sc / h1_sc : (HX, C) f32  zero-halo VMEM buffers
        x = x_ref[0]

        # place the image inside a zero halo (vertical conv padding)
        x_sc[...] = jnp.zeros_like(x_sc)
        x_sc[halo:halo + HW, :] = x

        mask_l = mask_ref[:, 0:1]
        mask_r = mask_ref[:, 1:2]

        def conv3x3(src_sc, w_ref):
            # in-kernel im2col: 9 accumulating dots over row-shifted halo slices
            acc = jnp.zeros((HW, C), jnp.float32)
            for t in range(9):
                dy, dx = t // 3 - 1, t % 3 - 1
                start = halo + dy * W + dx
                lhs = src_sc[start:start + HW, :]
                if dx == -1:
                    lhs = lhs * mask_l          # left-edge wrap -> zero padding
                elif dx == 1:
                    lhs = lhs * mask_r          # right-edge wrap -> zero padding
                acc = acc + jnp.dot(lhs.astype(jnp.bfloat16), w_ref[t],
                                    preferred_element_type=jnp.float32)
            return acc

        # conv1 -> bn1 (folded) -> relu   (Dropout2d(p=0.05) is identity at inference)
        h1 = conv3x3(x_sc, w1_ref)
        h1 = jnp.maximum(h1 * sb_ref[0:1, :] + sb_ref[1:2, :], 0.0)
        h1_sc[...] = jnp.zeros_like(h1_sc)      # zero halo for conv2's padding
        h1_sc[halo:halo + HW, :] = h1

        # conv2 -> bn2 (folded) -> + identity shortcut -> relu
        h2 = conv3x3(h1_sc, w2_ref)
        h2 = h2 * sb_ref[2:3, :] + sb_ref[3:4, :] + x
        out_ref[0] = jnp.maximum(h2, 0.0)

    return kernel


def _fused_basic_block(x_nhwc, conv1_w, conv2_w, s1, b1, s2, b2):
    """Fused conv1->bn1->relu->conv2->bn2->(+x)->relu, one pallas_call over images."""
    N, H, W, C = x_nhwc.shape
    HW = H * W
    HX = HW + 4 * W

    x_flat = x_nhwc.reshape(N, HW, C).astype(jnp.float32)

    # (Cout, Cin, KH, KW) -> (KH, KW, Cin, Cout) -> (9, Cin, Cout), bf16 for the MXU
    w1 = jnp.transpose(conv1_w, (2, 3, 1, 0)).reshape(9, C, C).astype(jnp.bfloat16)
    w2 = jnp.transpose(conv2_w, (2, 3, 1, 0)).reshape(9, C, C).astype(jnp.bfloat16)
    sb = jnp.stack([s1, b1, s2, b2], axis=0).astype(jnp.float32)          # (4, C)

    # column-wrap masks for the flattened-row layout (dx = -1 / +1 taps)
    col = jnp.arange(HW, dtype=jnp.int32) % W
    mask = jnp.stack([col != 0, col != W - 1], axis=1).astype(jnp.float32)  # (HW, 2)

    out_flat = pl.pallas_call(
        _make_fused_block_kernel(H, W, C),
        out_shape=jax.ShapeDtypeStruct((N, HW, C), jnp.float32),
        grid_spec=pltpu.PrefetchScalarGridSpec(
            num_scalar_prefetch=0,
            grid=(N,),
            in_specs=[
                pl.BlockSpec((1, HW, C), lambda n: (n, 0, 0)),   # activations
                pl.BlockSpec((9, C, C), lambda n: (0, 0, 0)),    # conv1 taps
                pl.BlockSpec((9, C, C), lambda n: (0, 0, 0)),    # conv2 taps
                pl.BlockSpec((4, C), lambda n: (0, 0)),          # folded BN scale/bias
                pl.BlockSpec((HW, 2), lambda n: (0, 0)),         # wrap masks
            ],
            out_specs=pl.BlockSpec((1, HW, C), lambda n: (n, 0, 0)),
            scratch_shapes=[pltpu.VMEM((HX, C), jnp.float32),    # x halo buffer
                            pltpu.VMEM((HX, C), jnp.float32)],   # conv1 activation
        ),
        compiler_params=pltpu.CompilerParams(
            dimension_semantics=("parallel",)),
    )(x_flat, w1, w2, sb, mask)
    return out_flat.reshape(N, H, W, C)


# ---------------------------------------------------------------------------
# Glue: BN folding, flop bookkeeping, NCHW boundary
# ---------------------------------------------------------------------------
def _fold_bn(gamma, beta, mean, var):
    s = gamma / jnp.sqrt(var + _BN_EPS)
    return s, beta - mean * s


def basic_block_forward(x_nchw, pruned_flops_in, total_flops_in, p, stride=1,
                        option="A"):
    """Mirrors BasicBlock.forward([x, pruned_flops, total_flops]) (inference mode)."""
    x = jnp.transpose(x_nchw, (0, 2, 3, 1))                      # NCHW -> NHWC
    N, H, W, in_planes = x.shape
    planes = p["conv1_w"].shape[0]

    if stride != 1 or in_planes != planes:
        # TODO(synk): downsample blocks (stride != 1 with option 'A' pad shortcut, or
        # option 'B' 1x1-conv shortcut) are not implemented in the fused kernel.
        raise NotImplementedError(
            "fused BasicBlock kernel covers stride=1 identity-shortcut blocks only")

    s1, b1 = _fold_bn(p["bn1_gamma"], p["bn1_beta"], p["bn1_mean"], p["bn1_var"])
    s2, b2 = _fold_bn(p["bn2_gamma"], p["bn2_beta"], p["bn2_mean"], p["bn2_var"])
    out_nhwc = _fused_basic_block(x, p["conv1_w"], p["conv2_w"], s1, b1, s2, b2)
    out_nchw = jnp.transpose(out_nhwc, (0, 3, 1, 2))

    # ---- flop bookkeeping (same arithmetic as the PyTorch module) ----
    # NOTE: int32 accounting like the original test; may overflow for much larger
    # layers/images.
    Ho, Wo = H, W                                                # stride == 1
    total1 = int(p["conv1_w"].size)
    actual1 = jnp.sum(p["conv1_w"].reshape(-1) == 0).astype(jnp.int32)
    pruned_flops = actual1 * (Ho * Wo) + pruned_flops_in
    total_flops = jnp.int32(total1 * Ho * Wo) + total_flops_in
    total_flops = total_flops + jnp.int32(planes * Ho * Wo)      # bn1

    total2 = int(p["conv2_w"].size)
    actual2 = jnp.sum(p["conv2_w"].reshape(-1) == 0).astype(jnp.int32)
    pruned_flops = pruned_flops + actual2 * (Ho * Wo)
    total_flops = total_flops + jnp.int32(total2 * Ho * Wo)
    total_flops = total_flops + jnp.int32(planes * Ho * Wo)      # bn2

    return [out_nchw, pruned_flops, total_flops]


# ---------------------------------------------------------------------------
# Pure-JAX fp32 reference (for correctness check)
# ---------------------------------------------------------------------------
def _ref_forward(x_nchw, p, stride=1):
    def bn(y, g, b, m, v):
        return ((y - m[None, :, None, None]) /
                jnp.sqrt(v[None, :, None, None] + _BN_EPS)
                * g[None, :, None, None] + b[None, :, None, None])

    dn = ("NCHW", "OIHW", "NCHW")
    out = jax.lax.conv_general_dilated(x_nchw, p["conv1_w"], (stride, stride),
                                       ((1, 1), (1, 1)), dimension_numbers=dn)
    out = jax.nn.relu(bn(out, p["bn1_gamma"], p["bn1_beta"], p["bn1_mean"],
                         p["bn1_var"]))
    out = jax.lax.conv_general_dilated(out, p["conv2_w"], (1, 1),
                                       ((1, 1), (1, 1)), dimension_numbers=dn)
    out = bn(out, p["bn2_gamma"], p["bn2_beta"], p["bn2_mean"], p["bn2_var"])
    return jax.nn.relu(out + x_nchw)                             # identity shortcut


if __name__ == "__main__":
    key = jax.random.PRNGKey(0)
    ks = jax.random.split(key, 12)

    N, C, H, W = 2, 4, 16, 16                                    # in_planes = planes
    planes, stride = C, 1

    x = jax.random.normal(ks[0], (N, C, H, W), jnp.float32)

    conv1_w = jax.random.normal(ks[1], (planes, C, 3, 3), jnp.float32) * 0.2
    conv1_w = conv1_w * (jnp.abs(conv1_w) > 0.05)                # exact zeros (pruned)
    conv2_w = jax.random.normal(ks[2], (planes, planes, 3, 3), jnp.float32) * 0.2
    conv2_w = conv2_w * (jnp.abs(conv2_w) > 0.05)

    params = dict(
        conv1_w=conv1_w,
        bn1_gamma=1.0 + 0.1 * jax.random.normal(ks[3], (planes,), jnp.float32),
        bn1_beta=0.1 * jax.random.normal(ks[4], (planes,), jnp.float32),
        bn1_mean=0.1 * jax.random.normal(ks[5], (planes,), jnp.float32),
        bn1_var=jax.random.uniform(ks[6], (planes,), jnp.float32, 0.5, 1.5),
        conv2_w=conv2_w,
        bn2_gamma=1.0 + 0.1 * jax.random.normal(ks[7], (planes,), jnp.float32),
        bn2_beta=0.1 * jax.random.normal(ks[8], (planes,), jnp.float32),
        bn2_mean=0.1 * jax.random.normal(ks[9], (planes,), jnp.float32),
        bn2_var=jax.random.uniform(ks[10], (planes,), jnp.float32, 0.5, 1.5),
    )

    pruned_in = jnp.int32(0)
    total_in = jnp.int32(0)

    out, pruned, total = basic_block_forward(x, pruned_in, total_in, params,
                                             stride=stride, option="A")
    out = jax.block_until_ready(out)
    pruned = jax.block_until_ready(pruned)
    total = jax.block_until_ready(total)

    # correctness vs fp32 reference (bf16 MXU operands -> loosened tolerance)
    ref = _ref_forward(x, params, stride=stride)
    assert out.shape == (N, planes, H, W)
    max_err = float(jnp.max(jnp.abs(out - ref)))
    assert max_err < 1e-1, f"mismatch vs reference: max abs err {max_err}"

    # flop bookkeeping check (same arithmetic as the PyTorch module)
    exp_pruned = int((conv1_w == 0).sum()) * H * W + int((conv2_w == 0).sum()) * H * W
    exp_total = (conv1_w.size * H * W + planes * H * W
                 + conv2_w.size * H * W + planes * H * W)
    assert int(pruned) == exp_pruned and int(total) == exp_total

    print("KERNEL_OK")
</pallas_src>

<mosaic_0001>
module attributes {stable_mosaic.version = 11 : i64} {
  func.func @kernel(%arg0: i32, %arg1: memref<1x256x4xf32, #tpu.memory_space<vmem>>, %arg2: memref<9x4x4xbf16, #tpu.memory_space<vmem>>, %arg3: memref<9x4x4xbf16, #tpu.memory_space<vmem>>, %arg4: memref<4x4xf32, #tpu.memory_space<vmem>>, %arg5: memref<256x2xf32, #tpu.memory_space<vmem>>, %arg6: memref<1x256x4xf32, #tpu.memory_space<vmem>>, %arg7: memref<320x4xf32, #tpu.memory_space<vmem>>, %arg8: memref<320x4xf32, #tpu.memory_space<vmem>>) attributes {dimension_semantics = [#tpu.dimension_semantics<parallel>], iteration_bounds = array<i64: 2>, scalar_prefetch = 0 : i64, scratch_operands = 2 : i64, tpu.core_type = #tpu.core_type<tc>, window_params = [{transform_indices = @transform_0, window_bounds = array<i64: 1, 256, 4>}, {pipeline_mode = #tpu.pipeline_mode<synchronous>, transform_indices = @transform_1, window_bounds = array<i64: 9, 4, 4>}, {pipeline_mode = #tpu.pipeline_mode<synchronous>, transform_indices = @transform_2, window_bounds = array<i64: 9, 4, 4>}, {pipeline_mode = #tpu.pipeline_mode<synchronous>, transform_indices = @transform_3, window_bounds = array<i64: 4, 4>}, {pipeline_mode = #tpu.pipeline_mode<synchronous>, transform_indices = @transform_4, window_bounds = array<i64: 256, 2>}, {transform_indices = @transform_5, window_bounds = array<i64: 1, 256, 4>}]} {
    %c0 = arith.constant 0 : index
    %c0_0 = arith.constant 0 : index
    %c0_1 = arith.constant 0 : index
    %0 = vector.load %arg1[%c0, %c0_0, %c0_1] : memref<1x256x4xf32, #tpu.memory_space<vmem>>, vector<1x256x4xf32>
    %1 = vector.shape_cast %0 : vector<1x256x4xf32> to vector<256x4xf32>
    %cst = arith.constant 0.000000e+00 : f32
    %2 = vector.broadcast %cst : f32 to vector<320x4xf32>
    %c0_2 = arith.constant 0 : index
    %c0_3 = arith.constant 0 : index
    %3 = vector.load %arg7[%c0_2, %c0_3] : memref<320x4xf32, #tpu.memory_space<vmem>>, vector<320x4xf32>
    tpu.vector_store %arg7[%c0_2, %c0_3], %2 {strides = array<i32>} : memref<320x4xf32, #tpu.memory_space<vmem>>, vector<320x4xf32>,
    %c32 = arith.constant 32 : index
    %c0_4 = arith.constant 0 : index
    %4 = vector.load %arg7[%c32, %c0_4] : memref<320x4xf32, #tpu.memory_space<vmem>>, vector<256x4xf32>
    tpu.vector_store %arg7[%c32, %c0_4], %1 {strides = array<i32>} : memref<320x4xf32, #tpu.memory_space<vmem>>, vector<256x4xf32>,
    %c0_5 = arith.constant 0 : index
    %c0_6 = arith.constant 0 : index
    %5 = vector.load %arg5[%c0_5, %c0_6] : memref<256x2xf32, #tpu.memory_space<vmem>>, vector<256x1xf32>
    %c0_7 = arith.constant 0 : index
    %c1 = arith.constant 1 : index
    %6 = vector.load %arg5[%c0_7, %c1] : memref<256x2xf32, #tpu.memory_space<vmem>>, vector<256x1xf32>
    %cst_8 = arith.constant 0.000000e+00 : f32
    %7 = vector.broadcast %cst_8 : f32 to vector<256x4xf32>
    %c15 = arith.constant 15 : index
    %c0_9 = arith.constant 0 : index
    %8 = vector.load %arg7[%c15, %c0_9] : memref<320x4xf32, #tpu.memory_space<vmem>>, vector<256x4xf32>
    %9 = vector.broadcast %5 : vector<256x1xf32> to vector<256x4xf32>
    %10 = arith.mulf %8, %9 : vector<256x4xf32>
    %11 = arith.truncf %10 : vector<256x4xf32> to vector<256x4xbf16>
    %c0_10 = arith.constant 0 : index
    %c0_11 = arith.constant 0 : index
    %c0_12 = arith.constant 0 : index
    %12 = vector.load %arg2[%c0_10, %c0_11, %c0_12] : memref<9x4x4xbf16, #tpu.memory_space<vmem>>, vector<1x4x4xbf16>
    %13 = vector.shape_cast %12 : vector<1x4x4xbf16> to vector<4x4xbf16>
    %cst_13 = arith.constant dense<0.000000e+00> : vector<256x4xf32>
    %14 = tpu.matmul %11, %13, %cst_13 {dimension_numbers = #tpu.dot_dimension_numbers<[1], [0], [0], [1], [0, 0, 1, 1], [], []>} : vector<256x4xbf16>, vector<4x4xbf16>, vector<256x4xf32> -> vector<256x4xf32>
    %15 = arith.addf %7, %14 : vector<256x4xf32>
    %c16 = arith.constant 16 : index
    %c0_14 = arith.constant 0 : index
    %16 = vector.load %arg7[%c16, %c0_14] : memref<320x4xf32, #tpu.memory_space<vmem>>, vector<256x4xf32>
    %17 = arith.truncf %16 : vector<256x4xf32> to vector<256x4xbf16>
    %c1_15 = arith.constant 1 : index
    %c0_16 = arith.constant 0 : index
    %c0_17 = arith.constant 0 : index
    %18 = vector.load %arg2[%c1_15, %c0_16, %c0_17] : memref<9x4x4xbf16, #tpu.memory_space<vmem>>, vector<1x4x4xbf16>
    %19 = vector.shape_cast %18 : vector<1x4x4xbf16> to vector<4x4xbf16>
    %cst_18 = arith.constant dense<0.000000e+00> : vector<256x4xf32>
    %20 = tpu.matmul %17, %19, %cst_18 {dimension_numbers = #tpu.dot_dimension_numbers<[1], [0], [0], [1], [0, 0, 1, 1], [], []>} : vector<256x4xbf16>, vector<4x4xbf16>, vector<256x4xf32> -> vector<256x4xf32>
    %21 = arith.addf %15, %20 : vector<256x4xf32>
    %c17 = arith.constant 17 : index
    %c0_19 = arith.constant 0 : index
    %22 = vector.load %arg7[%c17, %c0_19] : memref<320x4xf32, #tpu.memory_space<vmem>>, vector<256x4xf32>
    %23 = vector.broadcast %6 : vector<256x1xf32> to vector<256x4xf32>
    %24 = arith.mulf %22, %23 : vector<256x4xf32>
    %25 = arith.truncf %24 : vector<256x4xf32> to vector<256x4xbf16>
    %c2 = arith.constant 2 : index
    %c0_20 = arith.constant 0 : index
    %c0_21 = arith.constant 0 : index
    %26 = vector.load %arg2[%c2, %c0_20, %c0_21] : memref<9x4x4xbf16, #tpu.memory_space<vmem>>, vector<1x4x4xbf16>
    %27 = vector.shape_cast %26 : vector<1x4x4xbf16> to vector<4x4xbf16>
    %cst_22 = arith.constant dense<0.000000e+00> : vector<256x4xf32>
    %28 = tpu.matmul %25, %27, %cst_22 {dimension_numbers = #tpu.dot_dimension_numbers<[1], [0], [0], [1], [0, 0, 1, 1], [], []>} : vector<256x4xbf16>, vector<4x4xbf16>, vector<256x4xf32> -> vector<256x4xf32>
    %29 = arith.addf %21, %28 : vector<256x4xf32>
    %c31 = arith.constant 31 : index
    %c0_23 = arith.constant 0 : index
    %30 = vector.load %arg7[%c31, %c0_23] : memref<320x4xf32, #tpu.memory_space<vmem>>, vector<256x4xf32>
    %31 = vector.broadcast %5 : vector<256x1xf32> to vector<256x4xf32>
    %32 = arith.mulf %30, %31 : vector<256x4xf32>
    %33 = arith.truncf %32 : vector<256x4xf32> to vector<256x4xbf16>
    %c3 = arith.constant 3 : index
    %c0_24 = arith.constant 0 : index
    %c0_25 = arith.constant 0 : index
    %34 = vector.load %arg2[%c3, %c0_24, %c0_25] : memref<9x4x4xbf16, #tpu.memory_space<vmem>>, vector<1x4x4xbf16>
    %35 = vector.shape_cast %34 : vector<1x4x4xbf16> to vector<4x4xbf16>
    %cst_26 = arith.constant dense<0.000000e+00> : vector<256x4xf32>
    %36 = tpu.matmul %33, %35, %cst_26 {dimension_numbers = #tpu.dot_dimension_numbers<[1], [0], [0], [1], [0, 0, 1, 1], [], []>} : vector<256x4xbf16>, vector<4x4xbf16>, vector<256x4xf32> -> vector<256x4xf32>
    %37 = arith.addf %29, %36 : vector<256x4xf32>
    %c32_27 = arith.constant 32 : index
    %c0_28 = arith.constant 0 : index
    %38 = vector.load %arg7[%c32_27, %c0_28] : memref<320x4xf32, #tpu.memory_space<vmem>>, vector<256x4xf32>
    %39 = arith.truncf %38 : vector<256x4xf32> to vector<256x4xbf16>
    %c4 = arith.constant 4 : index
    %c0_29 = arith.constant 0 : index
    %c0_30 = arith.constant 0 : index
    %40 = vector.load %arg2[%c4, %c0_29, %c0_30] : memref<9x4x4xbf16, #tpu.memory_space<vmem>>, vector<1x4x4xbf16>
    %41 = vector.shape_cast %40 : vector<1x4x4xbf16> to vector<4x4xbf16>
    %cst_31 = arith.constant dense<0.000000e+00> : vector<256x4xf32>
    %42 = tpu.matmul %39, %41, %cst_31 {dimension_numbers = #tpu.dot_dimension_numbers<[1], [0], [0], [1], [0, 0, 1, 1], [], []>} : vector<256x4xbf16>, vector<4x4xbf16>, vector<256x4xf32> -> vector<256x4xf32>
    %43 = arith.addf %37, %42 : vector<256x4xf32>
    %c33 = arith.constant 33 : index
    %c0_32 = arith.constant 0 : index
    %44 = vector.load %arg7[%c33, %c0_32] : memref<320x4xf32, #tpu.memory_space<vmem>>, vector<256x4xf32>
    %45 = vector.broadcast %6 : vector<256x1xf32> to vector<256x4xf32>
    %46 = arith.mulf %44, %45 : vector<256x4xf32>
    %47 = arith.truncf %46 : vector<256x4xf32> to vector<256x4xbf16>
    %c5 = arith.constant 5 : index
    %c0_33 = arith.constant 0 : index
    %c0_34 = arith.constant 0 : index
    %48 = vector.load %arg2[%c5, %c0_33, %c0_34] : memref<9x4x4xbf16, #tpu.memory_space<vmem>>, vector<1x4x4xbf16>
    %49 = vector.shape_cast %48 : vector<1x4x4xbf16> to vector<4x4xbf16>
    %cst_35 = arith.constant dense<0.000000e+00> : vector<256x4xf32>
    %50 = tpu.matmul %47, %49, %cst_35 {dimension_numbers = #tpu.dot_dimension_numbers<[1], [0], [0], [1], [0, 0, 1, 1], [], []>} : vector<256x4xbf16>, vector<4x4xbf16>, vector<256x4xf32> -> vector<256x4xf32>
    %51 = arith.addf %43, %50 : vector<256x4xf32>
    %c47 = arith.constant 47 : index
    %c0_36 = arith.constant 0 : index
    %52 = vector.load %arg7[%c47, %c0_36] : memref<320x4xf32, #tpu.memory_space<vmem>>, vector<256x4xf32>
    %53 = vector.broadcast %5 : vector<256x1xf32> to vector<256x4xf32>
    %54 = arith.mulf %52, %53 : vector<256x4xf32>
    %55 = arith.truncf %54 : vector<256x4xf32> to vector<256x4xbf16>
    %c6 = arith.constant 6 : index
    %c0_37 = arith.constant 0 : index
    %c0_38 = arith.constant 0 : index
    %56 = vector.load %arg2[%c6, %c0_37, %c0_38] : memref<9x4x4xbf16, #tpu.memory_space<vmem>>, vector<1x4x4xbf16>
    %57 = vector.shape_cast %56 : vector<1x4x4xbf16> to vector<4x4xbf16>
    %cst_39 = arith.constant dense<0.000000e+00> : vector<256x4xf32>
    %58 = tpu.matmul %55, %57, %cst_39 {dimension_numbers = #tpu.dot_dimension_numbers<[1], [0], [0], [1], [0, 0, 1, 1], [], []>} : vector<256x4xbf16>, vector<4x4xbf16>, vector<256x4xf32> -> vector<256x4xf32>
    %59 = arith.addf %51, %58 : vector<256x4xf32>
    %c48 = arith.constant 48 : index
    %c0_40 = arith.constant 0 : index
    %60 = vector.load %arg7[%c48, %c0_40] : memref<320x4xf32, #tpu.memory_space<vmem>>, vector<256x4xf32>
    %61 = arith.truncf %60 : vector<256x4xf32> to vector<256x4xbf16>
    %c7 = arith.constant 7 : index
    %c0_41 = arith.constant 0 : index
    %c0_42 = arith.constant 0 : index
    %62 = vector.load %arg2[%c7, %c0_41, %c0_42] : memref<9x4x4xbf16, #tpu.memory_space<vmem>>, vector<1x4x4xbf16>
    %63 = vector.shape_cast %62 : vector<1x4x4xbf16> to vector<4x4xbf16>
    %cst_43 = arith.constant dense<0.000000e+00> : vector<256x4xf32>
    %64 = tpu.matmul %61, %63, %cst_43 {dimension_numbers = #tpu.dot_dimension_numbers<[1], [0], [0], [1], [0, 0, 1, 1], [], []>} : vector<256x4xbf16>, vector<4x4xbf16>, vector<256x4xf32> -> vector<256x4xf32>
    %65 = arith.addf %59, %64 : vector<256x4xf32>
    %c49 = arith.constant 49 : index
    %c0_44 = arith.constant 0 : index
    %66 = vector.load %arg7[%c49, %c0_44] : memref<320x4xf32, #tpu.memory_space<vmem>>, vector<256x4xf32>
    %67 = vector.broadcast %6 : vector<256x1xf32> to vector<256x4xf32>
    %68 = arith.mulf %66, %67 : vector<256x4xf32>
    %69 = arith.truncf %68 : vector<256x4xf32> to vector<256x4xbf16>
    %c8 = arith.constant 8 : index
    %c0_45 = arith.constant 0 : index
    %c0_46 = arith.constant 0 : index
    %70 = vector.load %arg2[%c8, %c0_45, %c0_46] : memref<9x4x4xbf16, #tpu.memory_space<vmem>>, vector<1x4x4xbf16>
    %71 = vector.shape_cast %70 : vector<1x4x4xbf16> to vector<4x4xbf16>
    %cst_47 = arith.constant dense<0.000000e+00> : vector<256x4xf32>
    %72 = tpu.matmul %69, %71, %cst_47 {dimension_numbers = #tpu.dot_dimension_numbers<[1], [0], [0], [1], [0, 0, 1, 1], [], []>} : vector<256x4xbf16>, vector<4x4xbf16>, vector<256x4xf32> -> vector<256x4xf32>
    %73 = arith.addf %65, %72 : vector<256x4xf32>
    %c0_48 = arith.constant 0 : index
    %c0_49 = arith.constant 0 : index
    %74 = vector.load %arg4[%c0_48, %c0_49] : memref<4x4xf32, #tpu.memory_space<vmem>>, vector<1x4xf32>
    %75 = vector.broadcast %74 : vector<1x4xf32> to vector<256x4xf32>
    %76 = arith.mulf %73, %75 : vector<256x4xf32>
    %c1_50 = arith.constant 1 : index
    %c0_51 = arith.constant 0 : index
    %77 = vector.load %arg4[%c1_50, %c0_51] : memref<4x4xf32, #tpu.memory_space<vmem>>, vector<1x4xf32>
    %78 = vector.broadcast %77 : vector<1x4xf32> to vector<256x4xf32>
    %79 = arith.addf %76, %78 : vector<256x4xf32>
    %cst_52 = arith.constant 0.000000e+00 : f32
    %80 = vector.broadcast %cst_52 : f32 to vector<256x4xf32>
    %81 = arith.maximumf %79, %80 : vector<256x4xf32>
    %cst_53 = arith.constant 0.000000e+00 : f32
    %82 = vector.broadcast %cst_53 : f32 to vector<320x4xf32>
    %c0_54 = arith.constant 0 : index
    %c0_55 = arith.constant 0 : index
    %83 = vector.load %arg8[%c0_54, %c0_55] : memref<320x4xf32, #tpu.memory_space<vmem>>, vector<320x4xf32>
    tpu.vector_store %arg8[%c0_54, %c0_55], %82 {strides = array<i32>} : memref<320x4xf32, #tpu.memory_space<vmem>>, vector<320x4xf32>,
    %c32_56 = arith.constant 32 : index
    %c0_57 = arith.constant 0 : index
    %84 = vector.load %arg8[%c32_56, %c0_57] : memref<320x4xf32, #tpu.memory_space<vmem>>, vector<256x4xf32>
    tpu.vector_store %arg8[%c32_56, %c0_57], %81 {strides = array<i32>} : memref<320x4xf32, #tpu.memory_space<vmem>>, vector<256x4xf32>,
    %cst_58 = arith.constant 0.000000e+00 : f32
    %85 = vector.broadcast %cst_58 : f32 to vector<256x4xf32>
    %c15_59 = arith.constant 15 : index
    %c0_60 = arith.constant 0 : index
    %86 = vector.load %arg8[%c15_59, %c0_60] : memref<320x4xf32, #tpu.memory_space<vmem>>, vector<256x4xf32>
    %87 = vector.broadcast %5 : vector<256x1xf32> to vector<256x4xf32>
    %88 = arith.mulf %86, %87 : vector<256x4xf32>
    %89 = arith.truncf %88 : vector<256x4xf32> to vector<256x4xbf16>
    %c0_61 = arith.constant 0 : index
    %c0_62 = arith.constant 0 : index
    %c0_63 = arith.constant 0 : index
    %90 = vector.load %arg3[%c0_61, %c0_62, %c0_63] : memref<9x4x4xbf16, #tpu.memory_space<vmem>>, vector<1x4x4xbf16>
    %91 = vector.shape_cast %90 : vector<1x4x4xbf16> to vector<4x4xbf16>
    %cst_64 = arith.constant dense<0.000000e+00> : vector<256x4xf32>
    %92 = tpu.matmul %89, %91, %cst_64 {dimension_numbers = #tpu.dot_dimension_numbers<[1], [0], [0], [1], [0, 0, 1, 1], [], []>} : vector<256x4xbf16>, vector<4x4xbf16>, vector<256x4xf32> -> vector<256x4xf32>
    %93 = arith.addf %85, %92 : vector<256x4xf32>
    %c16_65 = arith.constant 16 : index
    %c0_66 = arith.constant 0 : index
    %94 = vector.load %arg8[%c16_65, %c0_66] : memref<320x4xf32, #tpu.memory_space<vmem>>, vector<256x4xf32>
    %95 = arith.truncf %94 : vector<256x4xf32> to vector<256x4xbf16>
    %c1_67 = arith.constant 1 : index
    %c0_68 = arith.constant 0 : index
    %c0_69 = arith.constant 0 : index
    %96 = vector.load %arg3[%c1_67, %c0_68, %c0_69] : memref<9x4x4xbf16, #tpu.memory_space<vmem>>, vector<1x4x4xbf16>
    %97 = vector.shape_cast %96 : vector<1x4x4xbf16> to vector<4x4xbf16>
    %cst_70 = arith.constant dense<0.000000e+00> : vector<256x4xf32>
    %98 = tpu.matmul %95, %97, %cst_70 {dimension_numbers = #tpu.dot_dimension_numbers<[1], [0], [0], [1], [0, 0, 1, 1], [], []>} : vector<256x4xbf16>, vector<4x4xbf16>, vector<256x4xf32> -> vector<256x4xf32>
    %99 = arith.addf %93, %98 : vector<256x4xf32>
    %c17_71 = arith.constant 17 : index
    %c0_72 = arith.constant 0 : index
    %100 = vector.load %arg8[%c17_71, %c0_72] : memref<320x4xf32, #tpu.memory_space<vmem>>, vector<256x4xf32>
    %101 = vector.broadcast %6 : vector<256x1xf32> to vector<256x4xf32>
    %102 = arith.mulf %100, %101 : vector<256x4xf32>
    %103 = arith.truncf %102 : vector<256x4xf32> to vector<256x4xbf16>
    %c2_73 = arith.constant 2 : index
    %c0_74 = arith.constant 0 : index
    %c0_75 = arith.constant 0 : index
    %104 = vector.load %arg3[%c2_73, %c0_74, %c0_75] : memref<9x4x4xbf16, #tpu.memory_space<vmem>>, vector<1x4x4xbf16>
    %105 = vector.shape_cast %104 : vector<1x4x4xbf16> to vector<4x4xbf16>
    %cst_76 = arith.constant dense<0.000000e+00> : vector<256x4xf32>
    %106 = tpu.matmul %103, %105, %cst_76 {dimension_numbers = #tpu.dot_dimension_numbers<[1], [0], [0], [1], [0, 0, 1, 1], [], []>} : vector<256x4xbf16>, vector<4x4xbf16>, vector<256x4xf32> -> vector<256x4xf32>
    %107 = arith.addf %99, %106 : vector<256x4xf32>
    %c31_77 = arith.constant 31 : index
    %c0_78 = arith.constant 0 : index
    %108 = vector.load %arg8[%c31_77, %c0_78] : memref<320x4xf32, #tpu.memory_space<vmem>>, vector<256x4xf32>
    %109 = vector.broadcast %5 : vector<256x1xf32> to vector<256x4xf32>
    %110 = arith.mulf %108, %109 : vector<256x4xf32>
    %111 = arith.truncf %110 : vector<256x4xf32> to vector<256x4xbf16>
    %c3_79 = arith.constant 3 : index
    %c0_80 = arith.constant 0 : index
    %c0_81 = arith.constant 0 : index
    %112 = vector.load %arg3[%c3_79, %c0_80, %c0_81] : memref<9x4x4xbf16, #tpu.memory_space<vmem>>, vector<1x4x4xbf16>
    %113 = vector.shape_cast %112 : vector<1x4x4xbf16> to vector<4x4xbf16>
    %cst_82 = arith.constant dense<0.000000e+00> : vector<256x4xf32>
    %114 = tpu.matmul %111, %113, %cst_82 {dimension_numbers = #tpu.dot_dimension_numbers<[1], [0], [0], [1], [0, 0, 1, 1], [], []>} : vector<256x4xbf16>, vector<4x4xbf16>, vector<256x4xf32> -> vector<256x4xf32>
    %115 = arith.addf %107, %114 : vector<256x4xf32>
    %c32_83 = arith.constant 32 : index
    %c0_84 = arith.constant 0 : index
    %116 = vector.load %arg8[%c32_83, %c0_84] : memref<320x4xf32, #tpu.memory_space<vmem>>, vector<256x4xf32>
    %117 = arith.truncf %116 : vector<256x4xf32> to vector<256x4xbf16>
    %c4_85 = arith.constant 4 : index
    %c0_86 = arith.constant 0 : index
    %c0_87 = arith.constant 0 : index
    %118 = vector.load %arg3[%c4_85, %c0_86, %c0_87] : memref<9x4x4xbf16, #tpu.memory_space<vmem>>, vector<1x4x4xbf16>
    %119 = vector.shape_cast %118 : vector<1x4x4xbf16> to vector<4x4xbf16>
    %cst_88 = arith.constant dense<0.000000e+00> : vector<256x4xf32>
    %120 = tpu.matmul %117, %119, %cst_88 {dimension_numbers = #tpu.dot_dimension_numbers<[1], [0], [0], [1], [0, 0, 1, 1], [], []>} : vector<256x4xbf16>, vector<4x4xbf16>, vector<256x4xf32> -> vector<256x4xf32>
    %121 = arith.addf %115, %120 : vector<256x4xf32>
    %c33_89 = arith.constant 33 : index
    %c0_90 = arith.constant 0 : index
    %122 = vector.load %arg8[%c33_89, %c0_90] : memref<320x4xf32, #tpu.memory_space<vmem>>, vector<256x4xf32>
    %123 = vector.broadcast %6 : vector<256x1xf32> to vector<256x4xf32>
    %124 = arith.mulf %122, %123 : vector<256x4xf32>
    %125 = arith.truncf %124 : vector<256x4xf32> to vector<256x4xbf16>
    %c5_91 = arith.constant 5 : index
    %c0_92 = arith.constant 0 : index
    %c0_93 = arith.constant 0 : index
    %126 = vector.load %arg3[%c5_91, %c0_92, %c0_93] : memref<9x4x4xbf16, #tpu.memory_space<vmem>>, vector<1x4x4xbf16>
    %127 = vector.shape_cast %126 : vector<1x4x4xbf16> to vector<4x4xbf16>
    %cst_94 = arith.constant dense<0.000000e+00> : vector<256x4xf32>
    %128 = tpu.matmul %125, %127, %cst_94 {dimension_numbers = #tpu.dot_dimension_numbers<[1], [0], [0], [1], [0, 0, 1, 1], [], []>} : vector<256x4xbf16>, vector<4x4xbf16>, vector<256x4xf32> -> vector<256x4xf32>
    %129 = arith.addf %121, %128 : vector<256x4xf32>
    %c47_95 = arith.constant 47 : index
    %c0_96 = arith.constant 0 : index
    %130 = vector.load %arg8[%c47_95, %c0_96] : memref<320x4xf32, #tpu.memory_space<vmem>>, vector<256x4xf32>
    %131 = vector.broadcast %5 : vector<256x1xf32> to vector<256x4xf32>
    %132 = arith.mulf %130, %131 : vector<256x4xf32>
    %133 = arith.truncf %132 : vector<256x4xf32> to vector<256x4xbf16>
    %c6_97 = arith.constant 6 : index
    %c0_98 = arith.constant 0 : index
    %c0_99 = arith.constant 0 : index
    %134 = vector.load %arg3[%c6_97, %c0_98, %c0_99] : memref<9x4x4xbf16, #tpu.memory_space<vmem>>, vector<1x4x4xbf16>
    %135 = vector.shape_cast %134 : vector<1x4x4xbf16> to vector<4x4xbf16>
    %cst_100 = arith.constant dense<0.000000e+00> : vector<256x4xf32>
    %136 = tpu.matmul %133, %135, %cst_100 {dimension_numbers = #tpu.dot_dimension_numbers<[1], [0], [0], [1], [0, 0, 1, 1], [], []>} : vector<256x4xbf16>, vector<4x4xbf16>, vector<256x4xf32> -> vector<256x4xf32>
    %137 = arith.addf %129, %136 : vector<256x4xf32>
    %c48_101 = arith.constant 48 : index
    %c0_102 = arith.constant 0 : index
    %138 = vector.load %arg8[%c48_101, %c0_102] : memref<320x4xf32, #tpu.memory_space<vmem>>, vector<256x4xf32>
    %139 = arith.truncf %138 : vector<256x4xf32> to vector<256x4xbf16>
    %c7_103 = arith.constant 7 : index
    %c0_104 = arith.constant 0 : index
    %c0_105 = arith.constant 0 : index
    %140 = vector.load %arg3[%c7_103, %c0_104, %c0_105] : memref<9x4x4xbf16, #tpu.memory_space<vmem>>, vector<1x4x4xbf16>
    %141 = vector.shape_cast %140 : vector<1x4x4xbf16> to vector<4x4xbf16>
    %cst_106 = arith.constant dense<0.000000e+00> : vector<256x4xf32>
    %142 = tpu.matmul %139, %141, %cst_106 {dimension_numbers = #tpu.dot_dimension_numbers<[1], [0], [0], [1], [0, 0, 1, 1], [], []>} : vector<256x4xbf16>, vector<4x4xbf16>, vector<256x4xf32> -> vector<256x4xf32>
    %143 = arith.addf %137, %142 : vector<256x4xf32>
    %c49_107 = arith.constant 49 : index
    %c0_108 = arith.constant 0 : index
    %144 = vector.load %arg8[%c49_107, %c0_108] : memref<320x4xf32, #tpu.memory_space<vmem>>, vector<256x4xf32>
    %145 = vector.broadcast %6 : vector<256x1xf32> to vector<256x4xf32>
    %146 = arith.mulf %144, %145 : vector<256x4xf32>
    %147 = arith.truncf %146 : vector<256x4xf32> to vector<256x4xbf16>
    %c8_109 = arith.constant 8 : index
    %c0_110 = arith.constant 0 : index
    %c0_111 = arith.constant 0 : index
    %148 = vector.load %arg3[%c8_109, %c0_110, %c0_111] : memref<9x4x4xbf16, #tpu.memory_space<vmem>>, vector<1x4x4xbf16>
    %149 = vector.shape_cast %148 : vector<1x4x4xbf16> to vector<4x4xbf16>
    %cst_112 = arith.constant dense<0.000000e+00> : vector<256x4xf32>
    %150 = tpu.matmul %147, %149, %cst_112 {dimension_numbers = #tpu.dot_dimension_numbers<[1], [0], [0], [1], [0, 0, 1, 1], [], []>} : vector<256x4xbf16>, vector<4x4xbf16>, vector<256x4xf32> -> vector<256x4xf32>
    %151 = arith.addf %143, %150 : vector<256x4xf32>
    %c2_113 = arith.constant 2 : index
    %c0_114 = arith.constant 0 : index
    %152 = vector.load %arg4[%c2_113, %c0_114] : memref<4x4xf32, #tpu.memory_space<vmem>>, vector<1x4xf32>
    %153 = vector.broadcast %152 : vector<1x4xf32> to vector<256x4xf32>
    %154 = arith.mulf %151, %153 : vector<256x4xf32>
    %c3_115 = arith.constant 3 : index
    %c0_116 = arith.constant 0 : index
    %155 = vector.load %arg4[%c3_115, %c0_116] : memref<4x4xf32, #tpu.memory_space<vmem>>, vector<1x4xf32>
    %156 = vector.broadcast %155 : vector<1x4xf32> to vector<256x4xf32>
    %157 = arith.addf %154, %156 : vector<256x4xf32>
    %158 = arith.addf %157, %1 : vector<256x4xf32>
    %cst_117 = arith.constant 0.000000e+00 : f32
    %159 = vector.broadcast %cst_117 : f32 to vector<256x4xf32>
    %160 = arith.maximumf %158, %159 : vector<256x4xf32>
    %c0_118 = arith.constant 0 : index
    %c0_119 = arith.constant 0 : index
    %c0_120 = arith.constant 0 : index
    %161 = vector.load %arg6[%c0_118, %c0_119, %c0_120] : memref<1x256x4xf32, #tpu.memory_space<vmem>>, vector<1x256x4xf32>
    %162 = vector.shape_cast %161 : vector<1x256x4xf32> to vector<256x4xf32>
    %163 = vector.shape_cast %160 : vector<256x4xf32> to vector<1x256x4xf32>
    tpu.vector_store %arg6[%c0_118, %c0_119, %c0_120], %163 {strides = array<i32>} : memref<1x256x4xf32, #tpu.memory_space<vmem>>, vector<1x256x4xf32>,
    return
  }
  func.func @transform_0(%arg0: i32) -> (i32, i32, i32) {
    %c0_i32 = arith.constant 0 : i32
    %c0_i32_0 = arith.constant 0 : i32
    %c0_i32_1 = arith.constant 0 : i32
    return %arg0, %c0_i32, %c0_i32_0 : i32, i32, i32
  }
  func.func @transform_1(%arg0: i32) -> (i32, i32, i32) {
    %c0_i32 = arith.constant 0 : i32
    %c0_i32_0 = arith.constant 0 : i32
    %c0_i32_1 = arith.constant 0 : i32
    %c0_i32_2 = arith.constant 0 : i32
    return %c0_i32, %c0_i32_0, %c0_i32_1 : i32, i32, i32
  }
  func.func @transform_2(%arg0: i32) -> (i32, i32, i32) {
    %c0_i32 = arith.constant 0 : i32
    %c0_i32_0 = arith.constant 0 : i32
    %c0_i32_1 = arith.constant 0 : i32
    %c0_i32_2 = arith.constant 0 : i32
    return %c0_i32, %c0_i32_0, %c0_i32_1 : i32, i32, i32
  }
  func.func @transform_3(%arg0: i32) -> (i32, i32) {
    %c0_i32 = arith.constant 0 : i32
    %c0_i32_0 = arith.constant 0 : i32
    %c0_i32_1 = arith.constant 0 : i32
    return %c0_i32, %c0_i32_0 : i32, i32
  }
  func.func @transform_4(%arg0: i32) -> (i32, i32) {
    %c0_i32 = arith.constant 0 : i32
    %c0_i32_0 = arith.constant 0 : i32
    %c0_i32_1 = arith.constant 0 : i32
    return %c0_i32, %c0_i32_0 : i32, i32
  }
  func.func @transform_5(%arg0: i32) -> (i32, i32, i32) {
    %c0_i32 = arith.constant 0 : i32
    %c0_i32_0 = arith.constant 0 : i32
    %c0_i32_1 = arith.constant 0 : i32
    return %arg0, %c0_i32, %c0_i32_0 : i32, i32, i32
  }
}

</mosaic_0001>

<llo_original>
// kernel: tpu_custom_call.1
$region0: #{tpu_custom_call.1}
  #allocation0 [shape = 'u32[]', space=smem, size = 0x4, offset = 0x4, fixed_abs, tag = 'smem constant byte address 0x4 - core index']
  #allocation1 [shape = 'u32[144,128]{1,0:T(1,128)}', space=vmem, size = 0x12000, scoped, tag = 'internal scratch']
  #allocation2 [shape = 'f32[320,4]{1,0:T(8,128)}', space=vmem, size = 0x28000, scoped, tag = 'scratch operand']
  #allocation3 [shape = 'f32[320,4]{1,0:T(8,128)}', space=vmem, size = 0x28000, scoped, tag = 'scratch operand']
  %s0 = inlined_call_operand.vmem [shape: f32[2,256,4], index: 0, kind: input, shape index: {}]
  %s1 = inlined_call_operand.vmem [shape: bf16[9,4,4], index: 1, kind: input, shape index: {}]
  %s2 = inlined_call_operand.vmem [shape: bf16[9,4,4], index: 2, kind: input, shape index: {}]
  %s3 = inlined_call_operand.vmem [shape: f32[4,4], index: 3, kind: input, shape index: {}]
  %s4 = inlined_call_operand.vmem [shape: f32[256,2], index: 4, kind: input, shape index: {}]
  %s5 = inlined_call_operand.vmem [shape: f32[2,256,4], index: 5, kind: output, shape index: {}]
  %s6 = sld [smem:[#allocation0]]
  $region53: #{tpu_custom_call.1} parent=0
    _
  %s8 = ssub.s32 1, %s6
  %s9 = scalar_select 0, %s8, %s6
  loop: start=0, step=1, limit=4
  $region2: #{tpu_custom_call.1} parent=0 // loop_pre_header
    _
  $region3: #{tpu_custom_call.1} parent=0 // loop_header
    %s11 = sphi 0, %s15
    %p12 = scmp.ge.s32.totalorder %s11, 4
    %s21 = sphi 0, %s23
    %s24 = sphi 0, %s21
    %s25 = sphi 0, %s24
    %s41 = sphi 0, %s25
    %s45 = sphi 0, %s45
    %s47 = sphi 0, %s45
    %s48 = sphi 0, %s47
    %s62 = sphi 0, %s48
    %s66 = sphi 0, %s66
    %s68 = sphi 0, %s66
    %s69 = sphi 0, %s68
    %s83 = sphi 0, %s69
    %s87 = sphi 0, %s87
    %s89 = sphi 0, %s87
    %s90 = sphi 0, %s89
    %s104 = sphi 0, %s90
    %s108 = sphi 0, %s108
    %s110 = sphi 0, %s108
    %s111 = sphi 0, %s110
    %s125 = sphi 0, %s111
    %s131 = sphi 0, %s133
    %s134 = sphi 0, %s131
    %s135 = sphi 0, %s134
    %s151 = sphi 0, %s135
  $region4: #{tpu_custom_call.1} parent=0 // loop_header_branch
    %14 = sbr.rel (%p12) target = $region8
  $region5: #{tpu_custom_call.1} parent=0 // loop_body
    %s16 = ssub.s32 %s11, 1
    %s17 = ssub.s32 %s11, 2
    %s18 = sadd.s32 %s11, 1
    %s19 = ssub.s32 %s11, %s18
    %p20 = scmp.eq.s32.totalorder %s19, 0
    %s22 = sadd.s32 %s21, 1
    %s23 = scalar_select %p20, %s21, %s22
    %p26 = pneg %p20
    %p27 = scmp.eq.s32.totalorder %s11, 1
    %p28 = por %p26, %p27
    %p29 = scmp.ne.s32.totalorder %s21, %s24
    %p30 = scmp.eq.s32.totalorder %s11, 0
    %p31 = por %p29, %p30
    %p32 = scmp.ne.s32.totalorder %s21, %s24
    %p33 = scmp.eq.s32.totalorder %s16, 1
    %p34 = por %p32, %p33
    %p35 = scmp.ne.s32.totalorder %s24, %s25
    %p36 = scmp.eq.s32.totalorder %s16, 0
    %p37 = por %p35, %p36
    %p38 = scmp.ne.s32.totalorder %s24, %s25
    %p39 = scmp.eq.s32.totalorder %s17, 1
    %p40 = por %p38, %p39
    %p42 = scmp.ne.s32.totalorder %s25, %s41
    %p43 = scmp.eq.s32.totalorder %s17, 0
    %p44 = por %p42, %p43
    %s46 = sadd.s32 %s45, 1
    %p49 = scmp.eq.s32.totalorder %s11, 1
    %p50 = scmp.ne.s32.totalorder %s45, %s47
    %p51 = scmp.eq.s32.totalorder %s11, 0
    %p52 = por %p50, %p51
    %p53 = scmp.ne.s32.totalorder %s45, %s47
    %p54 = scmp.eq.s32.totalorder %s16, 1
    %p55 = por %p53, %p54
    %p56 = scmp.ne.s32.totalorder %s47, %s48
    %p57 = scmp.eq.s32.totalorder %s16, 0
    %p58 = por %p56, %p57
    %p59 = scmp.ne.s32.totalorder %s47, %s48
    %p60 = scmp.eq.s32.totalorder %s17, 1
    %p61 = por %p59, %p60
    %p63 = scmp.ne.s32.totalorder %s48, %s62
    %p64 = scmp.eq.s32.totalorder %s17, 0
    %p65 = por %p63, %p64
    %s67 = sadd.s32 %s66, 1
    %p70 = scmp.eq.s32.totalorder %s11, 1
    %p71 = scmp.ne.s32.totalorder %s66, %s68
    %p72 = scmp.eq.s32.totalorder %s11, 0
    %p73 = por %p71, %p72
    %p74 = scmp.ne.s32.totalorder %s66, %s68
    %p75 = scmp.eq.s32.totalorder %s16, 1
    %p76 = por %p74, %p75
    %p77 = scmp.ne.s32.totalorder %s68, %s69
    %p78 = scmp.eq.s32.totalorder %s16, 0
    %p79 = por %p77, %p78
    %p80 = scmp.ne.s32.totalorder %s68, %s69
    %p81 = scmp.eq.s32.totalorder %s17, 1
    %p82 = por %p80, %p81
    %p84 = scmp.ne.s32.totalorder %s69, %s83
    %p85 = scmp.eq.s32.totalorder %s17, 0
    %p86 = por %p84, %p85
    %s88 = sadd.s32 %s87, 1
    %p91 = scmp.eq.s32.totalorder %s11, 1
    %p92 = scmp.ne.s32.totalorder %s87, %s89
    %p93 = scmp.eq.s32.totalorder %s11, 0
    %p94 = por %p92, %p93
    %p95 = scmp.ne.s32.totalorder %s87, %s89
    %p96 = scmp.eq.s32.totalorder %s16, 1
    %p97 = por %p95, %p96
    %p98 = scmp.ne.s32.totalorder %s89, %s90
    %p99 = scmp.eq.s32.totalorder %s16, 0
    %p100 = por %p98, %p99
    %p101 = scmp.ne.s32.totalorder %s89, %s90
    %p102 = scmp.eq.s32.totalorder %s17, 1
    %p103 = por %p101, %p102
    %p105 = scmp.ne.s32.totalorder %s90, %s104
    %p106 = scmp.eq.s32.totalorder %s17, 0
    %p107 = por %p105, %p106
    %s109 = sadd.s32 %s108, 1
    %p112 = scmp.eq.s32.totalorder %s11, 1
    %p113 = scmp.ne.s32.totalorder %s108, %s110
    %p114 = scmp.eq.s32.totalorder %s11, 0
    %p115 = por %p113, %p114
    %p116 = scmp.ne.s32.totalorder %s108, %s110
    %p117 = scmp.eq.s32.totalorder %s16, 1
    %p118 = por %p116, %p117
    %p119 = scmp.ne.s32.totalorder %s110, %s111
    %p120 = scmp.eq.s32.totalorder %s16, 0
    %p121 = por %p119, %p120
    %p122 = scmp.ne.s32.totalorder %s110, %s111
    %p123 = scmp.eq.s32.totalorder %s17, 1
    %p124 = por %p122, %p123
    %p126 = scmp.ne.s32.totalorder %s111, %s125
    %p127 = scmp.eq.s32.totalorder %s17, 0
    %p128 = por %p126, %p127
    %s129 = ssub.s32 %s11, %s18
    %p130 = scmp.eq.s32.totalorder %s129, 0
    %s132 = sadd.s32 %s131, 1
    %s133 = scalar_select %p130, %s131, %s132
    %p136 = pneg %p130
    %p137 = scmp.eq.s32.totalorder %s11, 1
    %p138 = por %p136, %p137
    %p139 = scmp.ne.s32.totalorder %s131, %s134
    %p140 = scmp.eq.s32.totalorder %s11, 0
    %p141 = por %p139, %p140
    %p142 = scmp.ne.s32.totalorder %s131, %s134
    %p143 = scmp.eq.s32.totalorder %s16, 1
    %p144 = por %p142, %p143
    %p145 = scmp.ne.s32.totalorder %s134, %s135
    %p146 = scmp.eq.s32.totalorder %s16, 0
    %p147 = por %p145, %p146
    %p148 = scmp.ne.s32.totalorder %s134, %s135
    %p149 = scmp.eq.s32.totalorder %s17, 1
    %p150 = por %p148, %p149
    %p152 = scmp.ne.s32.totalorder %s135, %s151
    %p153 = scmp.eq.s32.totalorder %s17, 0
    %p154 = por %p152, %p153
    %p155 = scmp.le.s32.totalorder 1, %s11
    %p156 = scmp.lt.s32.totalorder %s11, 3
    %p157 = pnand %p155, %p156
    %p158 = pneg %p157
    // Predicated region
    $region9: #{tpu_custom_call.1} parent=5 // pred_check
      _
    $region10: #{tpu_custom_call.1} parent=5 // pred_check_branch
      %160 = sbr.rel (%p157) target = $region12
    $region11: #{tpu_custom_call.1} parent=5 // pred_region
      %s161 = ssub.s32 %s11, 1
      // Predicated region
      $region13: #{tpu_custom_call.1} parent=11 // pred_check
        %p162 = pneg %p58
      $region14: #{tpu_custom_call.1} parent=11 // pred_check_branch
        %164 = sbr.rel (%p162) target = $region16
      $region15: #{tpu_custom_call.1} parent=11 // pred_region
        _
      $region16: #{tpu_custom_call.1} parent=11 // pred_fallthru
        _
      // Predicated region
      $region17: #{tpu_custom_call.1} parent=11 // pred_check
        %p165 = pneg %p79
      $region18: #{tpu_custom_call.1} parent=11 // pred_check_branch
        %167 = sbr.rel (%p165) target = $region20
      $region19: #{tpu_custom_call.1} parent=11 // pred_region
        _
      $region20: #{tpu_custom_call.1} parent=11 // pred_fallthru
        _
      // Predicated region
      $region21: #{tpu_custom_call.1} parent=11 // pred_check
        %p168 = pneg %p100
      $region22: #{tpu_custom_call.1} parent=11 // pred_check_branch
        %170 = sbr.rel (%p168) target = $region24
      $region23: #{tpu_custom_call.1} parent=11 // pred_region
        _
      $region24: #{tpu_custom_call.1} parent=11 // pred_fallthru
        _
      // Predicated region
      $region25: #{tpu_custom_call.1} parent=11 // pred_check
        %p171 = pneg %p121
      $region26: #{tpu_custom_call.1} parent=11 // pred_check_branch
        %173 = sbr.rel (%p171) target = $region28
      $region27: #{tpu_custom_call.1} parent=11 // pred_region
        _
      $region28: #{tpu_custom_call.1} parent=11 // pred_fallthru
        _
    $region12: #{tpu_custom_call.1} parent=5 // pred_fallthru
      _
    %p174 = scmp.lt.s32.totalorder %s11, 2
    // Predicated region
    $region29: #{tpu_custom_call.1} parent=5 // pred_check
      %p175 = pneg %p174
    $region30: #{tpu_custom_call.1} parent=5 // pred_check_branch
      %177 = sbr.rel (%p175) target = $region32
    $region31: #{tpu_custom_call.1} parent=5 // pred_region
      // Predicated region
      $region33: #{tpu_custom_call.1} parent=31 // pred_check
        %p178 = pneg %p31
      $region34: #{tpu_custom_call.1} parent=31 // pred_check_branch
        %180 = sbr.rel (%p178) target = $region36
      $region35: #{tpu_custom_call.1} parent=31 // pred_region
        %p181 = scmp.lt.s32.totalorder %s11, 1
        %s182 = scalar_select %p181, %s11, 1
        %s183 = smul.addr %s182, 32
        %s184 = smul.addr %s183, 8
        %s185 = scalar_lea.vmem %s0, %s184
      $region36: #{tpu_custom_call.1} parent=31 // pred_fallthru
        _
    $region32: #{tpu_custom_call.1} parent=5 // pred_fallthru
      _
    %p186 = scmp.le.s32.totalorder 1, %s11
    %p187 = scmp.lt.s32.totalorder %s11, 3
    %p188 = pnand %p186, %p187
    %p189 = pneg %p188
    // Predicated region
    $region37: #{tpu_custom_call.1} parent=5 // pred_check
      _
    $region38: #{tpu_custom_call.1} parent=5 // pred_check_branch
      %191 = sbr.rel (%p188) target = $region40
    $region39: #{tpu_custom_call.1} parent=5 // pred_region
      %s192 = ssub.s32 %s11, 1
      %p193 = scmp.lt.s32.totalorder %s16, 1
      %s194 = scalar_select %p193, %s16, 1
      %s195 = smul.addr %s194, 32
      %s196 = smul.addr %s195, 8
      %s197 = scalar_lea.vmem %s0, %s196
      %p198 = pneg %p37
      %p199 = pneg %p34
      %p200 = pneg %p58
      %p201 = pneg %p55
      %p202 = pneg %p79
      %p203 = pneg %p76
      %p204 = pneg %p100
      %p205 = pneg %p97
      %p206 = pneg %p121
      %p207 = pneg %p118
      %p208 = pneg %p147
      %p209 = pneg %p144
      %p210 = scmp.lt.s32.totalorder %s16, 1
      %s211 = scalar_select %p210, %s16, 1
      %s212 = smul.addr %s211, 32
      %s213 = smul.addr %s212, 8
      %s214 = scalar_lea.vmem %s5, %s213
      %p215 = scmp.lt.s32.totalorder %s16, 1
      %s216 = scalar_select %p215, %s16, 1
      %s217 = smul.addr %s216, 32
      %s218 = smul.addr %s217, 8
      %s219 = scalar_lea.vmem %s0, %s218
      %p220 = scmp.lt.s32.totalorder %s16, 1
      %s221 = scalar_select %p220, %s16, 1
      %s222 = smul.addr %s221, 32
      %s223 = smul.addr %s222, 8
      %s224 = scalar_lea.vmem %s5, %s223
      %v226 = vld [vmem:[%s219] sm:$0xff]
      %v227 = vld [vmem:[%s219 + $0x8] sm:$0xff]
      %v228 = vld [vmem:[%s219 + $0x10] sm:$0xff]
      %v229 = vld [vmem:[%s219 + $0x18] sm:$0xff]
      %v230 = vld [vmem:[%s219 + $0x20] sm:$0xff]
      %v231 = vld [vmem:[%s219 + $0x28] sm:$0xff]
      %v232 = vld [vmem:[%s219 + $0x30] sm:$0xff]
      %v233 = vld [vmem:[%s219 + $0x38] sm:$0xff]
      %v234 = vld [vmem:[%s219 + $0x40] sm:$0xff]
      %v235 = vld [vmem:[%s219 + $0x48] sm:$0xff]
      %v236 = vld [vmem:[%s219 + $0x50] sm:$0xff]
      %v237 = vld [vmem:[%s219 + $0x58] sm:$0xff]
      %v238 = vld [vmem:[%s219 + $0x60] sm:$0xff]
      %v239 = vld [vmem:[%s219 + $0x68] sm:$0xff]
      %v240 = vld [vmem:[%s219 + $0x70] sm:$0xff]
      %v241 = vld [vmem:[%s219 + $0x78] sm:$0xff]
      %v242 = vld [vmem:[%s219 + $0x80] sm:$0xff]
      %v243 = vld [vmem:[%s219 + $0x88] sm:$0xff]
      %v244 = vld [vmem:[%s219 + $0x90] sm:$0xff]
      %v245 = vld [vmem:[%s219 + $0x98] sm:$0xff]
      %v246 = vld [vmem:[%s219 + $0xa0] sm:$0xff]
      %v247 = vld [vmem:[%s219 + $0xa8] sm:$0xff]
      %v248 = vld [vmem:[%s219 + $0xb0] sm:$0xff]
      %v249 = vld [vmem:[%s219 + $0xb8] sm:$0xff]
      %v250 = vld [vmem:[%s219 + $0xc0] sm:$0xff]
      %v251 = vld [vmem:[%s219 + $0xc8] sm:$0xff]
      %v252 = vld [vmem:[%s219 + $0xd0] sm:$0xff]
      %v253 = vld [vmem:[%s219 + $0xd8] sm:$0xff]
      %v254 = vld [vmem:[%s219 + $0xe0] sm:$0xff]
      %v255 = vld [vmem:[%s219 + $0xe8] sm:$0xff]
      %v256 = vld [vmem:[%s219 + $0xf0] sm:$0xff]
      %v257 = vld [vmem:[%s219 + $0xf8] sm:$0xff]
      %vm258 = vcmask 31744
      %259 = vst.msk [vmem:[#allocation2] sm:$0xff] %vm258, 0.0
      %260 = vst.msk [vmem:[#allocation2 + $0x8] sm:$0xff] %vm258, 0.0
      %261 = vst.msk [vmem:[#allocation2 + $0x10] sm:$0xff] %vm258, 0.0
      %262 = vst.msk [vmem:[#allocation2 + $0x18] sm:$0xff] %vm258, 0.0
      %263 = vst.msk [vmem:[#allocation2 + $0x20] sm:$0xff] %vm258, 0.0
      %264 = vst.msk [vmem:[#allocation2 + $0x28] sm:$0xff] %vm258, 0.0
      %265 = vst.msk [vmem:[#allocation2 + $0x30] sm:$0xff] %vm258, 0.0
      %266 = vst.msk [vmem:[#allocation2 + $0x38] sm:$0xff] %vm258, 0.0
      %267 = vst.msk [vmem:[#allocation2 + $0x40] sm:$0xff] %vm258, 0.0
      %268 = vst.msk [vmem:[#allocation2 + $0x48] sm:$0xff] %vm258, 0.0
      %269 = vst.msk [vmem:[#allocation2 + $0x50] sm:$0xff] %vm258, 0.0
      %270 = vst.msk [vmem:[#allocation2 + $0x58] sm:$0xff] %vm258, 0.0
      %271 = vst.msk [vmem:[#allocation2 + $0x60] sm:$0xff] %vm258, 0.0
      %272 = vst.msk [vmem:[#allocation2 + $0x68] sm:$0xff] %vm258, 0.0
      %273 = vst.msk [vmem:[#allocation2 + $0x70] sm:$0xff] %vm258, 0.0
      %274 = vst.msk [vmem:[#allocation2 + $0x78] sm:$0xff] %vm258, 0.0
      %275 = vst.msk [vmem:[#allocation2 + $0x80] sm:$0xff] %vm258, 0.0
      %276 = vst.msk [vmem:[#allocation2 + $0x88] sm:$0xff] %vm258, 0.0
      %277 = vst.msk [vmem:[#allocation2 + $0x90] sm:$0xff] %vm258, 0.0
      %278 = vst.msk [vmem:[#allocation2 + $0x98] sm:$0xff] %vm258, 0.0
      %279 = vst.msk [vmem:[#allocation2 + $0xa0] sm:$0xff] %vm258, 0.0
      %280 = vst.msk [vmem:[#allocation2 + $0xa8] sm:$0xff] %vm258, 0.0
      %281 = vst.msk [vmem:[#allocation2 + $0xb0] sm:$0xff] %vm258, 0.0
      %282 = vst.msk [vmem:[#allocation2 + $0xb8] sm:$0xff] %vm258, 0.0
      %283 = vst.msk [vmem:[#allocation2 + $0xc0] sm:$0xff] %vm258, 0.0
      %284 = vst.msk [vmem:[#allocation2 + $0xc8] sm:$0xff] %vm258, 0.0
      %285 = vst.msk [vmem:[#allocation2 + $0xd0] sm:$0xff] %vm258, 0.0
      %286 = vst.msk [vmem:[#allocation2 + $0xd8] sm:$0xff] %vm258, 0.0
      %287 = vst.msk [vmem:[#allocation2 + $0xe0] sm:$0xff] %vm258, 0.0
      %288 = vst.msk [vmem:[#allocation2 + $0xe8] sm:$0xff] %vm258, 0.0
      %289 = vst.msk [vmem:[#allocation2 + $0xf0] sm:$0xff] %vm258, 0.0
      %290 = vst.msk [vmem:[#allocation2 + $0xf8] sm:$0xff] %vm258, 0.0
      %291 = vst.msk [vmem:[#allocation2 + $0x100] sm:$0xff] %vm258, 0.0
      %292 = vst.msk [vmem:[#allocation2 + $0x108] sm:$0xff] %vm258, 0.0
      %293 = vst.msk [vmem:[#allocation2 + $0x110] sm:$0xff] %vm258, 0.0
      %294 = vst.msk [vmem:[#allocation2 + $0x118] sm:$0xff] %vm258, 0.0
      %295 = vst.msk [vmem:[#allocation2 + $0x120] sm:$0xff] %vm258, 0.0
      %296 = vst.msk [vmem:[#allocation2 + $0x128] sm:$0xff] %vm258, 0.0
      %297 = vst.msk [vmem:[#allocation2 + $0x130] sm:$0xff] %vm258, 0.0
      %298 = vst.msk [vmem:[#allocation2 + $0x138] sm:$0xff] %vm258, 0.0
      %299 = vst.msk [vmem:[#allocation2 + $0x20] sm:$0xff] %vm258, %v226
      %300 = vst.msk [vmem:[#allocation2 + $0x28] sm:$0xff] %vm258, %v227
      %301 = vst.msk [vmem:[#allocation2 + $0x30] sm:$0xff] %vm258, %v228
      %302 = vst.msk [vmem:[#allocation2 + $0x38] sm:$0xff] %vm258, %v229
      %303 = vst.msk [vmem:[#allocation2 + $0x40] sm:$0xff] %vm258, %v230
      %304 = vst.msk [vmem:[#allocation2 + $0x48] sm:$0xff] %vm258, %v231
      %305 = vst.msk [vmem:[#allocation2 + $0x50] sm:$0xff] %vm258, %v232
      %306 = vst.msk [vmem:[#allocation2 + $0x58] sm:$0xff] %vm258, %v233
      %307 = vst.msk [vmem:[#allocation2 + $0x60] sm:$0xff] %vm258, %v234
      %308 = vst.msk [vmem:[#allocation2 + $0x68] sm:$0xff] %vm258, %v235
      %309 = vst.msk [vmem:[#allocation2 + $0x70] sm:$0xff] %vm258, %v236
      %310 = vst.msk [vmem:[#allocation2 + $0x78] sm:$0xff] %vm258, %v237
      %311 = vst.msk [vmem:[#allocation2 + $0x80] sm:$0xff] %vm258, %v238
      %312 = vst.msk [vmem:[#allocation2 + $0x88] sm:$0xff] %vm258, %v239
      %313 = vst.msk [vmem:[#allocation2 + $0x90] sm:$0xff] %vm258, %v240
      %314 = vst.msk [vmem:[#allocation2 + $0x98] sm:$0xff] %vm258, %v241
      %315 = vst.msk [vmem:[#allocation2 + $0xa0] sm:$0xff] %vm258, %v242
      %316 = vst.msk [vmem:[#allocation2 + $0xa8] sm:$0xff] %vm258, %v243
      %317 = vst.msk [vmem:[#allocation2 + $0xb0] sm:$0xff] %vm258, %v244
      %318 = vst.msk [vmem:[#allocation2 + $0xb8] sm:$0xff] %vm258, %v245
      %319 = vst.msk [vmem:[#allocation2 + $0xc0] sm:$0xff] %vm258, %v246
      %320 = vst.msk [vmem:[#allocation2 + $0xc8] sm:$0xff] %vm258, %v247
      %321 = vst.msk [vmem:[#allocation2 + $0xd0] sm:$0xff] %vm258, %v248
      %322 = vst.msk [vmem:[#allocation2 + $0xd8] sm:$0xff] %vm258, %v249
      %323 = vst.msk [vmem:[#allocation2 + $0xe0] sm:$0xff] %vm258, %v250
      %324 = vst.msk [vmem:[#allocation2 + $0xe8] sm:$0xff] %vm258, %v251
      %325 = vst.msk [vmem:[#allocation2 + $0xf0] sm:$0xff] %vm258, %v252
      %326 = vst.msk [vmem:[#allocation2 + $0xf8] sm:$0xff] %vm258, %v253
      %327 = vst.msk [vmem:[#allocation2 + $0x100] sm:$0xff] %vm258, %v254
      %328 = vst.msk [vmem:[#allocation2 + $0x108] sm:$0xff] %vm258, %v255
      %329 = vst.msk [vmem:[#allocation2 + $0x110] sm:$0xff] %vm258, %v256
      %330 = vst.msk [vmem:[#allocation2 + $0x118] sm:$0xff] %vm258, %v257
      %v331 = vld [vmem:[%s4] sm:$0xff]
      %v332 = vld [vmem:[%s4 + $0x8] sm:$0xff]
      %v333 = vld [vmem:[%s4 + $0x10] sm:$0xff]
      %v334 = vld [vmem:[%s4 + $0x18] sm:$0xff]
      %v335 = vld [vmem:[%s4 + $0x20] sm:$0xff]
      %v336 = vld [vmem:[%s4 + $0x28] sm:$0xff]
      %v337 = vld [vmem:[%s4 + $0x30] sm:$0xff]
      %v338 = vld [vmem:[%s4 + $0x38] sm:$0xff]
      %v339 = vld [vmem:[%s4 + $0x40] sm:$0xff]
      %v340 = vld [vmem:[%s4 + $0x48] sm:$0xff]
      %v341 = vld [vmem:[%s4 + $0x50] sm:$0xff]
      %v342 = vld [vmem:[%s4 + $0x58] sm:$0xff]
      %v343 = vld [vmem:[%s4 + $0x60] sm:$0xff]
      %v344 = vld [vmem:[%s4 + $0x68] sm:$0xff]
      %v345 = vld [vmem:[%s4 + $0x70] sm:$0xff]
      %v346 = vld [vmem:[%s4 + $0x78] sm:$0xff]
      %v347 = vld [vmem:[%s4 + $0x80] sm:$0xff]
      %v348 = vld [vmem:[%s4 + $0x88] sm:$0xff]
      %v349 = vld [vmem:[%s4 + $0x90] sm:$0xff]
      %v350 = vld [vmem:[%s4 + $0x98] sm:$0xff]
      %v351 = vld [vmem:[%s4 + $0xa0] sm:$0xff]
      %v352 = vld [vmem:[%s4 + $0xa8] sm:$0xff]
      %v353 = vld [vmem:[%s4 + $0xb0] sm:$0xff]
      %v354 = vld [vmem:[%s4 + $0xb8] sm:$0xff]
      %v355 = vld [vmem:[%s4 + $0xc0] sm:$0xff]
      %v356 = vld [vmem:[%s4 + $0xc8] sm:$0xff]
      %v357 = vld [vmem:[%s4 + $0xd0] sm:$0xff]
      %v358 = vld [vmem:[%s4 + $0xd8] sm:$0xff]
      %v359 = vld [vmem:[%s4 + $0xe0] sm:$0xff]
      %v360 = vld [vmem:[%s4 + $0xe8] sm:$0xff]
      %v361 = vld [vmem:[%s4 + $0xf0] sm:$0xff]
      %v362 = vld [vmem:[%s4 + $0xf8] sm:$0xff]
      %v363 = vld [vmem:[#allocation2 + $0xf] sm:$0xff]
      %v364 = vld [vmem:[#allocation2 + $0x17] sm:$0xff]
      %v365 = vld [vmem:[#allocation2 + $0x1f] sm:$0xff]
      %v366 = vld [vmem:[#allocation2 + $0x27] sm:$0xff]
      %v367 = vld [vmem:[#allocation2 + $0x2f] sm:$0xff]
      %v368 = vld [vmem:[#allocation2 + $0x37] sm:$0xff]
      %v369 = vld [vmem:[#allocation2 + $0x3f] sm:$0xff]
      %v370 = vld [vmem:[#allocation2 + $0x47] sm:$0xff]
      %v371 = vld [vmem:[#allocation2 + $0x4f] sm:$0xff]
      %v372 = vld [vmem:[#allocation2 + $0x57] sm:$0xff]
      %v373 = vld [vmem:[#allocation2 + $0x5f] sm:$0xff]
      %v374 = vld [vmem:[#allocation2 + $0x67] sm:$0xff]
      %v375 = vld [vmem:[#allocation2 + $0x6f] sm:$0xff]
      %v376 = vld [vmem:[#allocation2 + $0x77] sm:$0xff]
      %v377 = vld [vmem:[#allocation2 + $0x7f] sm:$0xff]
      %v378 = vld [vmem:[#allocation2 + $0x87] sm:$0xff]
      %v379 = vld [vmem:[#allocation2 + $0x8f] sm:$0xff]
      %v380 = vld [vmem:[#allocation2 + $0x97] sm:$0xff]
      %v381 = vld [vmem:[#allocation2 + $0x9f] sm:$0xff]
      %v382 = vld [vmem:[#allocation2 + $0xa7] sm:$0xff]
      %v383 = vld [vmem:[#allocation2 + $0xaf] sm:$0xff]
      %v384 = vld [vmem:[#allocation2 + $0xb7] sm:$0xff]
      %v385 = vld [vmem:[#allocation2 + $0xbf] sm:$0xff]
      %v386 = vld [vmem:[#allocation2 + $0xc7] sm:$0xff]
      %v387 = vld [vmem:[#allocation2 + $0xcf] sm:$0xff]
      %v388 = vld [vmem:[#allocation2 + $0xd7] sm:$0xff]
      %v389 = vld [vmem:[#allocation2 + $0xdf] sm:$0xff]
      %v390 = vld [vmem:[#allocation2 + $0xe7] sm:$0xff]
      %v391 = vld [vmem:[#allocation2 + $0xef] sm:$0xff]
      %v392 = vld [vmem:[#allocation2 + $0xf7] sm:$0xff]
      %v393 = vld [vmem:[#allocation2 + $0xff] sm:$0xff]
      %v394 = vld [vmem:[#allocation2 + $0x107] sm:$0xff]
      %396 = vset.pattern.permute.xlu0 0
      %397 = vperm.xlu0 %396, %v331
      %v398 = vpop.permute.xlu0 %397
      %401 = vset.pattern.permute.xlu0 0
      %402 = vperm.xlu0 %401, %v332
      %v403 = vpop.permute.xlu0 %402
      %406 = vset.pattern.permute.xlu0 0
      %407 = vperm.xlu0 %406, %v333
      %v408 = vpop.permute.xlu0 %407
      %411 = vset.pattern.permute.xlu0 0
      %412 = vperm.xlu0 %411, %v334
      %v413 = vpop.permute.xlu0 %412
      %416 = vset.pattern.permute.xlu0 0
      %417 = vperm.xlu0 %416, %v335
      %v418 = vpop.permute.xlu0 %417
      %421 = vset.pattern.permute.xlu0 0
      %422 = vperm.xlu0 %421, %v336
      %v423 = vpop.permute.xlu0 %422
      %426 = vset.pattern.permute.xlu0 0
      %427 = vperm.xlu0 %426, %v337
      %v428 = vpop.permute.xlu0 %427
      %431 = vset.pattern.permute.xlu0 0
      %432 = vperm.xlu0 %431, %v338
      %v433 = vpop.permute.xlu0 %432
      %436 = vset.pattern.permute.xlu0 0
      %437 = vperm.xlu0 %436, %v339
      %v438 = vpop.permute.xlu0 %437
      %441 = vset.pattern.permute.xlu0 0
      %442 = vperm.xlu0 %441, %v340
      %v443 = vpop.permute.xlu0 %442
      %446 = vset.pattern.permute.xlu0 0
      %447 = vperm.xlu0 %446, %v341
      %v448 = vpop.permute.xlu0 %447
      %451 = vset.pattern.permute.xlu0 0
      %452 = vperm.xlu0 %451, %v342
      %v453 = vpop.permute.xlu0 %452
      %456 = vset.pattern.permute.xlu0 0
      %457 = vperm.xlu0 %456, %v343
      %v458 = vpop.permute.xlu0 %457
      %461 = vset.pattern.permute.xlu0 0
      %462 = vperm.xlu0 %461, %v344
      %v463 = vpop.permute.xlu0 %462
      %466 = vset.pattern.permute.xlu0 0
      %467 = vperm.xlu0 %466, %v345
      %v468 = vpop.permute.xlu0 %467
      %471 = vset.pattern.permute.xlu0 0
      %472 = vperm.xlu0 %471, %v346
      %v473 = vpop.permute.xlu0 %472
      %476 = vset.pattern.permute.xlu0 0
      %477 = vperm.xlu0 %476, %v347
      %v478 = vpop.permute.xlu0 %477
      %481 = vset.pattern.permute.xlu0 0
      %482 = vperm.xlu0 %481, %v348
      %v483 = vpop.permute.xlu0 %482
      %486 = vset.pattern.permute.xlu0 0
      %487 = vperm.xlu0 %486, %v349
      %v488 = vpop.permute.xlu0 %487
      %491 = vset.pattern.permute.xlu0 0
      %492 = vperm.xlu0 %491, %v350
      %v493 = vpop.permute.xlu0 %492
      %496 = vset.pattern.permute.xlu0 0
      %497 = vperm.xlu0 %496, %v351
      %v498 = vpop.permute.xlu0 %497
      %501 = vset.pattern.permute.xlu0 0
      %502 = vperm.xlu0 %501, %v352
      %v503 = vpop.permute.xlu0 %502
      %506 = vset.pattern.permute.xlu0 0
      %507 = vperm.xlu0 %506, %v353
      %v508 = vpop.permute.xlu0 %507
      %511 = vset.pattern.permute.xlu0 0
      %512 = vperm.xlu0 %511, %v354
      %v513 = vpop.permute.xlu0 %512
      %516 = vset.pattern.permute.xlu0 0
      %517 = vperm.xlu0 %516, %v355
      %v518 = vpop.permute.xlu0 %517
      %521 = vset.pattern.permute.xlu0 0
      %522 = vperm.xlu0 %521, %v356
      %v523 = vpop.permute.xlu0 %522
      %526 = vset.pattern.permute.xlu0 0
      %527 = vperm.xlu0 %526, %v357
      %v528 = vpop.permute.xlu0 %527
      %531 = vset.pattern.permute.xlu0 0
      %532 = vperm.xlu0 %531, %v358
      %v533 = vpop.permute.xlu0 %532
      %536 = vset.pattern.permute.xlu0 0
      %537 = vperm.xlu0 %536, %v359
      %v538 = vpop.permute.xlu0 %537
      %541 = vset.pattern.permute.xlu0 0
      %542 = vperm.xlu0 %541, %v360
      %v543 = vpop.permute.xlu0 %542
      %546 = vset.pattern.permute.xlu0 0
      %547 = vperm.xlu0 %546, %v361
      %v548 = vpop.permute.xlu0 %547
      %551 = vset.pattern.permute.xlu0 0
      %552 = vperm.xlu0 %551, %v362
      %v553 = vpop.permute.xlu0 %552
      %v555 = vmul.f32 %v363, %v398
      %v556 = vmul.f32 %v364, %v403
      %v557 = vmul.f32 %v365, %v408
      %v558 = vmul.f32 %v366, %v413
      %v559 = vmul.f32 %v367, %v418
      %v560 = vmul.f32 %v368, %v423
      %v561 = vmul.f32 %v369, %v428
      %v562 = vmul.f32 %v370, %v433
      %v563 = vmul.f32 %v371, %v438
      %v564 = vmul.f32 %v372, %v443
      %v565 = vmul.f32 %v373, %v448
      %v566 = vmul.f32 %v374, %v453
      %v567 = vmul.f32 %v375, %v458
      %v568 = vmul.f32 %v376, %v463
      %v569 = vmul.f32 %v377, %v468
      %v570 = vmul.f32 %v378, %v473
      %v571 = vmul.f32 %v379, %v478
      %v572 = vmul.f32 %v380, %v483
      %v573 = vmul.f32 %v381, %v488
      %v574 = vmul.f32 %v382, %v493
      %v575 = vmul.f32 %v383, %v498
      %v576 = vmul.f32 %v384, %v503
      %v577 = vmul.f32 %v385, %v508
      %v578 = vmul.f32 %v386, %v513
      %v579 = vmul.f32 %v387, %v518
      %v580 = vmul.f32 %v388, %v523
      %v581 = vmul.f32 %v389, %v528
      %v582 = vmul.f32 %v390, %v533
      %v583 = vmul.f32 %v391, %v538
      %v584 = vmul.f32 %v392, %v543
      %v585 = vmul.f32 %v393, %v548
      %v586 = vmul.f32 %v394, %v553
      %v587 = vpack.c.bf16 %v556, %v555
      %v588 = vpack.c.bf16 %v558, %v557
      %v589 = vpack.c.bf16 %v560, %v559
      %v590 = vpack.c.bf16 %v562, %v561
      %v591 = vpack.c.bf16 %v564, %v563
      %v592 = vpack.c.bf16 %v566, %v565
      %v593 = vpack.c.bf16 %v568, %v567
      %v594 = vpack.c.bf16 %v570, %v569
      %v595 = vpack.c.bf16 %v572, %v571
      %v596 = vpack.c.bf16 %v574, %v573
      %v597 = vpack.c.bf16 %v576, %v575
      %v598 = vpack.c.bf16 %v578, %v577
      %v599 = vpack.c.bf16 %v580, %v579
      %v600 = vpack.c.bf16 %v582, %v581
      %v601 = vpack.c.bf16 %v584, %v583
      %v602 = vpack.c.bf16 %v586, %v585
      %v603 = vld [vmem:[%s1] sm:$0x3]
      %v604 = vld [vmem:[#allocation2 + $0x10] sm:$0xff]
      %v605 = vld [vmem:[#allocation2 + $0x18] sm:$0xff]
      %v606 = vld [vmem:[#allocation2 + $0x20] sm:$0xff]
      %v607 = vld [vmem:[#allocation2 + $0x28] sm:$0xff]
      %v608 = vld [vmem:[#allocation2 + $0x30] sm:$0xff]
      %v609 = vld [vmem:[#allocation2 + $0x38] sm:$0xff]
      %v610 = vld [vmem:[#allocation2 + $0x40] sm:$0xff]
      %v611 = vld [vmem:[#allocation2 + $0x48] sm:$0xff]
      %v612 = vld [vmem:[#allocation2 + $0x50] sm:$0xff]
      %v613 = vld [vmem:[#allocation2 + $0x58] sm:$0xff]
      %v614 = vld [vmem:[#allocation2 + $0x60] sm:$0xff]
      %v615 = vld [vmem:[#allocation2 + $0x68] sm:$0xff]
      %v616 = vld [vmem:[#allocation2 + $0x70] sm:$0xff]
      %v617 = vld [vmem:[#allocation2 + $0x78] sm:$0xff]
      %v618 = vld [vmem:[#allocation2 + $0x80] sm:$0xff]
      %v619 = vld [vmem:[#allocation2 + $0x88] sm:$0xff]
      %v620 = vld [vmem:[#allocation2 + $0x90] sm:$0xff]
      %v621 = vld [vmem:[#allocation2 + $0x98] sm:$0xff]
      %v622 = vld [vmem:[#allocation2 + $0xa0] sm:$0xff]
      %v623 = vld [vmem:[#allocation2 + $0xa8] sm:$0xff]
      %v624 = vld [vmem:[#allocation2 + $0xb0] sm:$0xff]
      %v625 = vld [vmem:[#allocation2 + $0xb8] sm:$0xff]
      %v626 = vld [vmem:[#allocation2 + $0xc0] sm:$0xff]
      %v627 = vld [vmem:[#allocation2 + $0xc8] sm:$0xff]
      %v628 = vld [vmem:[#allocation2 + $0xd0] sm:$0xff]
      %v629 = vld [vmem:[#allocation2 + $0xd8] sm:$0xff]
      %v630 = vld [vmem:[#allocation2 + $0xe0] sm:$0xff]
      %v631 = vld [vmem:[#allocation2 + $0xe8] sm:$0xff]
      %v632 = vld [vmem:[#allocation2 + $0xf0] sm:$0xff]
      %v633 = vld [vmem:[#allocation2 + $0xf8] sm:$0xff]
      %v634 = vld [vmem:[#allocation2 + $0x100] sm:$0xff]
      %v635 = vld [vmem:[#allocation2 + $0x108] sm:$0xff]
      %v636 = vpack.c.bf16 %v605, %v604
      %v637 = vpack.c.bf16 %v607, %v606
      %v638 = vpack.c.bf16 %v609, %v608
      %v639 = vpack.c.bf16 %v611, %v610
      %v640 = vpack.c.bf16 %v613, %v612
      %v641 = vpack.c.bf16 %v615, %v614
      %v642 = vpack.c.bf16 %v617, %v616
      %v643 = vpack.c.bf16 %v619, %v618
      %v644 = vpack.c.bf16 %v621, %v620
      %v645 = vpack.c.bf16 %v623, %v622
      %v646 = vpack.c.bf16 %v625, %v624
      %v647 = vpack.c.bf16 %v627, %v626
      %v648 = vpack.c.bf16 %v629, %v628
      %v649 = vpack.c.bf16 %v631, %v630
      %v650 = vpack.c.bf16 %v633, %v632
      %v651 = vpack.c.bf16 %v635, %v634
      %s652 = scalar_lea.vmem %s1, 2
      %v653 = vld [vmem:[%s652] sm:$0x3]
      %v655 = vsel %vm258, %v636, 0
      %v658 = vsel %vm258, %v637, 0
      %v661 = vsel %vm258, %v638, 0
      %v664 = vsel %vm258, %v639, 0
      %v667 = vsel %vm258, %v640, 0
      %v670 = vsel %vm258, %v641, 0
      %v673 = vsel %vm258, %v642, 0
      %v676 = vsel %vm258, %v643, 0
      %v679 = vsel %vm258, %v644, 0
      %v682 = vsel %vm258, %v645, 0
      %v685 = vsel %vm258, %v646, 0
      %v688 = vsel %vm258, %v647, 0
      %v691 = vsel %vm258, %v648, 0
      %v694 = vsel %vm258, %v649, 0
      %v697 = vsel %vm258, %v650, 0
      %v700 = vsel %vm258, %v651, 0
      %vm702 = vcmask 1041408
      %v704 = vsel %vm702, %v653, 0
      %706 = vmatprep.subr.bf16.mxu0 0
      %707 = vmatpush1.bf16.msra.mxu0 %v704
      %708 = vmatprep.subr.bf16.mxu0 0
      %709 = vmatpush1.bf16.msra.mxu0 0
      %710 = vmatprep.subr.bf16.mxu0 0
      %711 = vmatpush1.bf16.msra.mxu0 0
      %712 = vmatprep.subr.bf16.mxu0 0
      %713 = vmatpush1.bf16.msra.mxu0 0
      %714 = vmatprep.subr.bf16.mxu0 0
      %715 = vmatpush1.bf16.msra.mxu0 0
      %716 = vmatprep.subr.bf16.mxu0 0
      %717 = vmatpush1.bf16.msra.mxu0 0
      %718 = vmatprep.subr.bf16.mxu0 0
      %719 = vmatpush1.bf16.msra.mxu0 0
      %720 = vmatprep.subr.bf16.mxu0 0
      %721 = vmatpush1.bf16.msra.mxu0 0
      %722 = vmatprep.subr.bf16.mxu0 0
      %723 = vmatpush1.bf16.msra.mxu0 0
      %724 = vmatprep.subr.bf16.mxu0 0
      %725 = vmatpush1.bf16.msra.mxu0 0
      %726 = vmatprep.subr.bf16.mxu0 0
      %727 = vmatpush1.bf16.msra.mxu0 0
      %728 = vmatprep.subr.bf16.mxu0 0
      %729 = vmatpush1.bf16.msra.mxu0 0
      %730 = vmatprep.subr.bf16.mxu0 0
      %731 = vmatpush1.bf16.msra.mxu0 0
      %732 = vmatprep.subr.bf16.mxu0 0
      %733 = vmatpush1.bf16.msra.mxu0 0
      %734 = vmatprep.subr.bf16.mxu0 0
      %735 = vmatpush1.bf16.msra.mxu0 0
      %736 = vmatprep.subr.bf16.mxu0 0
      %737 = vmatpush1.bf16.msra.mxu0 0
      %738 = vmatprep.mubr.bf16.mxu0 0
      %739 = vmatmul.mubr.bf16.gmra.mrb[0].mxu0 %v655
      %v740 = vpop.f32.mrb[0].mxu0
      %v741 = vadd.f32 0.0, %v740
      %v742 = vpop.f32.mrb[0].mxu0
      %v743 = vpop.f32.mrb[0].mxu0
      %v744 = vadd.f32 0.0, %v743
      %v745 = vpop.f32.mrb[0].mxu0
      %746 = vmatprep.mubr.bf16.mxu0 0
      %747 = vmatmul.mubr.bf16.gmra.mrb[0].mxu0 %v658
      %v748 = vpop.f32.mrb[0].mxu0
      %v749 = vadd.f32 0.0, %v748
      %v750 = vpop.f32.mrb[0].mxu0
      %v751 = vpop.f32.mrb[0].mxu0
      %v752 = vadd.f32 0.0, %v751
      %v753 = vpop.f32.mrb[0].mxu0
      %754 = vmatprep.mubr.bf16.mxu0 0
      %755 = vmatmul.mubr.bf16.gmra.mrb[0].mxu0 %v661
      %v756 = vpop.f32.mrb[0].mxu0
      %v757 = vadd.f32 0.0, %v756
      %v758 = vpop.f32.mrb[0].mxu0
      %v759 = vpop.f32.mrb[0].mxu0
      %v760 = vadd.f32 0.0, %v759
      %v761 = vpop.f32.mrb[0].mxu0
      %762 = vmatprep.mubr.bf16.mxu0 0
      %763 = vmatmul.mubr.bf16.gmra.mrb[0].mxu0 %v664
      %v764 = vpop.f32.mrb[0].mxu0
      %v765 = vadd.f32 0.0, %v764
      %v766 = vpop.f32.mrb[0].mxu0
      %v767 = vpop.f32.mrb[0].mxu0
      %v768 = vadd.f32 0.0, %v767
      %v769 = vpop.f32.mrb[0].mxu0
      %770 = vmatprep.mubr.bf16.mxu0 0
      %771 = vmatmul.mubr.bf16.gmra.mrb[0].mxu0 %v667
      %v772 = vpop.f32.mrb[0].mxu0
      %v773 = vadd.f32 0.0, %v772
      %v774 = vpop.f32.mrb[0].mxu0
      %v775 = vpop.f32.mrb[0].mxu0
      %v776 = vadd.f32 0.0, %v775
      %v777 = vpop.f32.mrb[0].mxu0
      %778 = vmatprep.mubr.bf16.mxu0 0
      %779 = vmatmul.mubr.bf16.gmra.mrb[0].mxu0 %v670
      %v780 = vpop.f32.mrb[0].mxu0
      %v781 = vadd.f32 0.0, %v780
      %v782 = vpop.f32.mrb[0].mxu0
      %v783 = vpop.f32.mrb[0].mxu0
      %v784 = vadd.f32 0.0, %v783
      %v785 = vpop.f32.mrb[0].mxu0
      %786 = vmatprep.mubr.bf16.mxu0 0
      %787 = vmatmul.mubr.bf16.gmra.mrb[0].mxu0 %v673
      %v788 = vpop.f32.mrb[0].mxu0
      %v789 = vadd.f32 0.0, %v788
      %v790 = vpop.f32.mrb[0].mxu0
      %v791 = vpop.f32.mrb[0].mxu0
      %v792 = vadd.f32 0.0, %v791
      %v793 = vpop.f32.mrb[0].mxu0
      %794 = vmatprep.mubr.bf16.mxu0 0
      %795 = vmatmul.mubr.bf16.gmra.mrb[0].mxu0 %v676
      %v796 = vpop.f32.mrb[0].mxu0
      %v797 = vadd.f32 0.0, %v796
      %v798 = vpop.f32.mrb[0].mxu0
      %v799 = vpop.f32.mrb[0].mxu0
      %v800 = vadd.f32 0.0, %v799
      %v801 = vpop.f32.mrb[0].mxu0
      %802 = vmatprep.mubr.bf16.mxu0 0
      %803 = vmatmul.mubr.bf16.gmra.mrb[0].mxu0 %v679
      %v804 = vpop.f32.mrb[0].mxu0
      %v805 = vadd.f32 0.0, %v804
      %v806 = vpop.f32.mrb[0].mxu0
      %v807 = vpop.f32.mrb[0].mxu0
      %v808 = vadd.f32 0.0, %v807
      %v809 = vpop.f32.mrb[0].mxu0
      %810 = vmatprep.mubr.bf16.mxu0 0
      %811 = vmatmul.mubr.bf16.gmra.mrb[0].mxu0 %v682
      %v812 = vpop.f32.mrb[0].mxu0
      %v813 = vadd.f32 0.0, %v812
      %v814 = vpop.f32.mrb[0].mxu0
      %v815 = vpop.f32.mrb[0].mxu0
      %v816 = vadd.f32 0.0, %v815
      %v817 = vpop.f32.mrb[0].mxu0
      %818 = vmatprep.mubr.bf16.mxu0 0
      %819 = vmatmul.mubr.bf16.gmra.mrb[0].mxu0 %v685
      %v820 = vpop.f32.mrb[0].mxu0
      %v821 = vadd.f32 0.0, %v820
      %v822 = vpop.f32.mrb[0].mxu0
      %v823 = vpop.f32.mrb[0].mxu0
      %v824 = vadd.f32 0.0, %v823
      %v825 = vpop.f32.mrb[0].mxu0
      %826 = vmatprep.mubr.bf16.mxu0 0
      %827 = vmatmul.mubr.bf16.gmra.mrb[0].mxu0 %v688
      %v828 = vpop.f32.mrb[0].mxu0
      %v829 = vadd.f32 0.0, %v828
      %v830 = vpop.f32.mrb[0].mxu0
      %v831 = vpop.f32.mrb[0].mxu0
      %v832 = vadd.f32 0.0, %v831
      %v833 = vpop.f32.mrb[0].mxu0
      %834 = vmatprep.mubr.bf16.mxu0 0
      %835 = vmatmul.mubr.bf16.gmra.mrb[0].mxu0 %v691
      %v836 = vpop.f32.mrb[0].mxu0
      %v837 = vadd.f32 0.0, %v836
      %v838 = vpop.f32.mrb[0].mxu0
      %v839 = vpop.f32.mrb[0].mxu0
      %v840 = vadd.f32 0.0, %v839
      %v841 = vpop.f32.mrb[0].mxu0
      %842 = vmatprep.mubr.bf16.mxu0 0
      %843 = vmatmul.mubr.bf16.gmra.mrb[0].mxu0 %v694
      %v844 = vpop.f32.mrb[0].mxu0
      %v845 = vadd.f32 0.0, %v844
      %v846 = vpop.f32.mrb[0].mxu0
      %v847 = vpop.f32.mrb[0].mxu0
      %v848 = vadd.f32 0.0, %v847
      %v849 = vpop.f32.mrb[0].mxu0
      %850 = vmatprep.mubr.bf16.mxu0 0
      %851 = vmatmul.mubr.bf16.gmra.mrb[0].mxu0 %v697
      %v852 = vpop.f32.mrb[0].mxu0
      %v853 = vadd.f32 0.0, %v852
      %v854 = vpop.f32.mrb[0].mxu0
      %v855 = vpop.f32.mrb[0].mxu0
      %v856 = vadd.f32 0.0, %v855
      %v857 = vpop.f32.mrb[0].mxu0
      %858 = vmatprep.mubr.bf16.mxu0 0
      %859 = vmatmul.mubr.bf16.gmra.mrb[0].mxu0 %v700
      %v860 = vpop.f32.mrb[0].mxu0
      %v861 = vadd.f32 0.0, %v860
      %v862 = vpop.f32.mrb[0].mxu0
      %v863 = vpop.f32.mrb[0].mxu0
      %v864 = vadd.f32 0.0, %v863
      %v865 = vpop.f32.mrb[0].mxu0
      %866 = vdwg.mxu0
      %v868 = vsel %vm258, %v587, 0
      %v871 = vsel %vm258, %v588, 0
      %v874 = vsel %vm258, %v589, 0
      %v877 = vsel %vm258, %v590, 0
      %v880 = vsel %vm258, %v591, 0
      %v883 = vsel %vm258, %v592, 0
      %v886 = vsel %vm258, %v593, 0
      %v889 = vsel %vm258, %v594, 0
      %v892 = vsel %vm258, %v595, 0
      %v895 = vsel %vm258, %v596, 0
      %v898 = vsel %vm258, %v597, 0
      %v901 = vsel %vm258, %v598, 0
      %v904 = vsel %vm258, %v599, 0
      %v907 = vsel %vm258, %v600, 0
      %v910 = vsel %vm258, %v601, 0
      %v913 = vsel %vm258, %v602, 0
      %v916 = vsel %vm702, %v603, 0
      %918 = vmatprep.subr.bf16.mxu0 0
      %919 = vmatpush1.bf16.msra.mxu0 %v916
      %920 = vmatprep.subr.bf16.mxu0 0
      %921 = vmatpush1.bf16.msra.mxu0 0
      %922 = vmatprep.subr.bf16.mxu0 0
      %923 = vmatpush1.bf16.msra.mxu0 0
      %924 = vmatprep.subr.bf16.mxu0 0
      %925 = vmatpush1.bf16.msra.mxu0 0
      %926 = vmatprep.subr.bf16.mxu0 0
      %927 = vmatpush1.bf16.msra.mxu0 0
      %928 = vmatprep.subr.bf16.mxu0 0
      %929 = vmatpush1.bf16.msra.mxu0 0
      %930 = vmatprep.subr.bf16.mxu0 0
      %931 = vmatpush1.bf16.msra.mxu0 0
      %932 = vmatprep.subr.bf16.mxu0 0
      %933 = vmatpush1.bf16.msra.mxu0 0
      %934 = vmatprep.subr.bf16.mxu0 0
      %935 = vmatpush1.bf16.msra.mxu0 0
      %936 = vmatprep.subr.bf16.mxu0 0
      %937 = vmatpush1.bf16.msra.mxu0 0
      %938 = vmatprep.subr.bf16.mxu0 0
      %939 = vmatpush1.bf16.msra.mxu0 0
      %940 = vmatprep.subr.bf16.mxu0 0
      %941 = vmatpush1.bf16.msra.mxu0 0
      %942 = vmatprep.subr.bf16.mxu0 0
      %943 = vmatpush1.bf16.msra.mxu0 0
      %944 = vmatprep.subr.bf16.mxu0 0
      %945 = vmatpush1.bf16.msra.mxu0 0
      %946 = vmatprep.subr.bf16.mxu0 0
      %947 = vmatpush1.bf16.msra.mxu0 0
      %948 = vmatprep.subr.bf16.mxu0 0
      %949 = vmatpush1.bf16.msra.mxu0 0
      %950 = vmatprep.mubr.bf16.mxu0 0
      %951 = vmatmul.mubr.bf16.gmra.mrb[0].mxu0 %v868
      %v952 = vpop.f32.mrb[0].mxu0
      %v953 = vadd.f32 %v741, %v952
      %v954 = vpop.f32.mrb[0].mxu0
      %v955 = vpop.f32.mrb[0].mxu0
      %v956 = vadd.f32 %v744, %v955
      %v957 = vpop.f32.mrb[0].mxu0
      %958 = vmatprep.mubr.bf16.mxu0 0
      %959 = vmatmul.mubr.bf16.gmra.mrb[0].mxu0 %v871
      %v960 = vpop.f32.mrb[0].mxu0
      %v961 = vadd.f32 %v749, %v960
      %v962 = vpop.f32.mrb[0].mxu0
      %v963 = vpop.f32.mrb[0].mxu0
      %v964 = vadd.f32 %v752, %v963
      %v965 = vpop.f32.mrb[0].mxu0
      %966 = vmatprep.mubr.bf16.mxu0 0
      %967 = vmatmul.mubr.bf16.gmra.mrb[0].mxu0 %v874
      %v968 = vpop.f32.mrb[0].mxu0
      %v969 = vadd.f32 %v757, %v968
      %v970 = vpop.f32.mrb[0].mxu0
      %v971 = vpop.f32.mrb[0].mxu0
      %v972 = vadd.f32 %v760, %v971
      %v973 = vpop.f32.mrb[0].mxu0
      %974 = vmatprep.mubr.bf16.mxu0 0
      %975 = vmatmul.mubr.bf16.gmra.mrb[0].mxu0 %v877
      %v976 = vpop.f32.mrb[0].mxu0
      %v977 = vadd.f32 %v765, %v976
      %v978 = vpop.f32.mrb[0].mxu0
      %v979 = vpop.f32.mrb[0].mxu0
      %v980 = vadd.f32 %v768, %v979
      %v981 = vpop.f32.mrb[0].mxu0
      %982 = vmatprep.mubr.bf16.mxu0 0
      %983 = vmatmul.mubr.bf16.gmra.mrb[0].mxu0 %v880
      %v984 = vpop.f32.mrb[0].mxu0
      %v985 = vadd.f32 %v773, %v984
      %v986 = vpop.f32.mrb[0].mxu0
      %v987 = vpop.f32.mrb[0].mxu0
      %v988 = vadd.f32 %v776, %v987
      %v989 = vpop.f32.mrb[0].mxu0
      %990 = vmatprep.mubr.bf16.mxu0 0
      %991 = vmatmul.mubr.bf16.gmra.mrb[0].mxu0 %v883
      %v992 = vpop.f32.mrb[0].mxu0
      %v993 = vadd.f32 %v781, %v992
      %v994 = vpop.f32.mrb[0].mxu0
      %v995 = vpop.f32.mrb[0].mxu0
      %v996 = vadd.f32 %v784, %v995
      %v997 = vpop.f32.mrb[0].mxu0
      %998 = vmatprep.mubr.bf16.mxu0 0
      %999 = vmatmul.mubr.bf16.gmra.mrb[0].mxu0 %v886
      %v1000 = vpop.f32.mrb[0].mxu0
      %v1001 = vadd.f32 %v789, %v1000
      %v1002 = vpop.f32.mrb[0].mxu0
      %v1003 = vpop.f32.mrb[0].mxu0
      %v1004 = vadd.f32 %v792, %v1003
      %v1005 = vpop.f32.mrb[0].mxu0
      %1006 = vmatprep.mubr.bf16.mxu0 0
      %1007 = vmatmul.mubr.bf16.gmra.mrb[0].mxu0 %v889
      %v1008 = vpop.f32.mrb[0].mxu0
      %v1009 = vadd.f32 %v797, %v1008
      %v1010 = vpop.f32.mrb[0].mxu0
      %v1011 = vpop.f32.mrb[0].mxu0
      %v1012 = vadd.f32 %v800, %v1011
      %v1013 = vpop.f32.mrb[0].mxu0
      %1014 = vmatprep.mubr.bf16.mxu0 0
      %1015 = vmatmul.mubr.bf16.gmra.mrb[0].mxu0 %v892
      %v1016 = vpop.f32.mrb[0].mxu0
      %v1017 = vadd.f32 %v805, %v1016
      %v1018 = vpop.f32.mrb[0].mxu0
      %v1019 = vpop.f32.mrb[0].mxu0
      %v1020 = vadd.f32 %v808, %v1019
      %v1021 = vpop.f32.mrb[0].mxu0
      %1022 = vmatprep.mubr.bf16.mxu0 0
      %1023 = vmatmul.mubr.bf16.gmra.mrb[0].mxu0 %v895
      %v1024 = vpop.f32.mrb[0].mxu0
      %v1025 = vadd.f32 %v813, %v1024
      %v1026 = vpop.f32.mrb[0].mxu0
      %v1027 = vpop.f32.mrb[0].mxu0
      %v1028 = vadd.f32 %v816, %v1027
      %v1029 = vpop.f32.mrb[0].mxu0
      %1030 = vmatprep.mubr.bf16.mxu0 0
      %1031 = vmatmul.mubr.bf16.gmra.mrb[0].mxu0 %v898
      %v1032 = vpop.f32.mrb[0].mxu0
      %v1033 = vadd.f32 %v821, %v1032
      %v1034 = vpop.f32.mrb[0].mxu0
      %v1035 = vpop.f32.mrb[0].mxu0
      %v1036 = vadd.f32 %v824, %v1035
      %v1037 = vpop.f32.mrb[0].mxu0
      %1038 = vmatprep.mubr.bf16.mxu0 0
      %1039 = vmatmul.mubr.bf16.gmra.mrb[0].mxu0 %v901
      %v1040 = vpop.f32.mrb[0].mxu0
      %v1041 = vadd.f32 %v829, %v1040
      %v1042 = vpop.f32.mrb[0].mxu0
      %v1043 = vpop.f32.mrb[0].mxu0
      %v1044 = vadd.f32 %v832, %v1043
      %v1045 = vpop.f32.mrb[0].mxu0
      %1046 = vmatprep.mubr.bf16.mxu0 0
      %1047 = vmatmul.mubr.bf16.gmra.mrb[0].mxu0 %v904
      %v1048 = vpop.f32.mrb[0].mxu0
      %v1049 = vadd.f32 %v837, %v1048
      %v1050 = vpop.f32.mrb[0].mxu0
      %v1051 = vpop.f32.mrb[0].mxu0
      %v1052 = vadd.f32 %v840, %v1051
      %v1053 = vpop.f32.mrb[0].mxu0
      %1054 = vmatprep.mubr.bf16.mxu0 0
      %1055 = vmatmul.mubr.bf16.gmra.mrb[0].mxu0 %v907
      %v1056 = vpop.f32.mrb[0].mxu0
      %v1057 = vadd.f32 %v845, %v1056
      %v1058 = vpop.f32.mrb[0].mxu0
      %v1059 = vpop.f32.mrb[0].mxu0
      %v1060 = vadd.f32 %v848, %v1059
      %v1061 = vpop.f32.mrb[0].mxu0
      %1062 = vmatprep.mubr.bf16.mxu0 0
      %1063 = vmatmul.mubr.bf16.gmra.mrb[0].mxu0 %v910
      %v1064 = vpop.f32.mrb[0].mxu0
      %v1065 = vadd.f32 %v853, %v1064
      %v1066 = vpop.f32.mrb[0].mxu0
      %v1067 = vpop.f32.mrb[0].mxu0
      %v1068 = vadd.f32 %v856, %v1067
      %v1069 = vpop.f32.mrb[0].mxu0
      %1070 = vmatprep.mubr.bf16.mxu0 0
      %1071 = vmatmul.mubr.bf16.gmra.mrb[0].mxu0 %v913
      %v1072 = vpop.f32.mrb[0].mxu0
      %v1073 = vadd.f32 %v861, %v1072
      %v1074 = vpop.f32.mrb[0].mxu0
      %v1075 = vpop.f32.mrb[0].mxu0
      %v1076 = vadd.f32 %v864, %v1075
      %v1077 = vpop.f32.mrb[0].mxu0
      %1078 = vdwg.mxu0
      %v1079 = vld [vmem:[#allocation2 + $0x11] sm:$0xff]
      %v1080 = vld [vmem:[#allocation2 + $0x19] sm:$0xff]
      %v1081 = vld [vmem:[#allocation2 + $0x21] sm:$0xff]
      %v1082 = vld [vmem:[#allocation2 + $0x29] sm:$0xff]
      %v1083 = vld [vmem:[#allocation2 + $0x31] sm:$0xff]
      %v1084 = vld [vmem:[#allocation2 + $0x39] sm:$0xff]
      %v1085 = vld [vmem:[#allocation2 + $0x41] sm:$0xff]
      %v1086 = vld [vmem:[#allocation2 + $0x49] sm:$0xff]
      %v1087 = vld [vmem:[#allocation2 + $0x51] sm:$0xff]
      %v1088 = vld [vmem:[#allocation2 + $0x59] sm:$0xff]
      %v1089 = vld [vmem:[#allocation2 + $0x61] sm:$0xff]
      %v1090 = vld [vmem:[#allocation2 + $0x69] sm:$0xff]
      %v1091 = vld [vmem:[#allocation2 + $0x71] sm:$0xff]
      %v1092 = vld [vmem:[#allocation2 + $0x79] sm:$0xff]
      %v1093 = vld [vmem:[#allocation2 + $0x81] sm:$0xff]
      %v1094 = vld [vmem:[#allocation2 + $0x89] sm:$0xff]
      %v1095 = vld [vmem:[#allocation2 + $0x91] sm:$0xff]
      %v1096 = vld [vmem:[#allocation2 + $0x99] sm:$0xff]
      %v1097 = vld [vmem:[#allocation2 + $0xa1] sm:$0xff]
      %v1098 = vld [vmem:[#allocation2 + $0xa9] sm:$0xff]
      %v1099 = vld [vmem:[#allocation2 + $0xb1] sm:$0xff]
      %v1100 = vld [vmem:[#allocation2 + $0xb9] sm:$0xff]
      %v1101 = vld [vmem:[#allocation2 + $0xc1] sm:$0xff]
      %v1102 = vld [vmem:[#allocation2 + $0xc9] sm:$0xff]
      %v1103 = vld [vmem:[#allocation2 + $0xd1] sm:$0xff]
      %v1104 = vld [vmem:[#allocation2 + $0xd9] sm:$0xff]
      %v1105 = vld [vmem:[#allocation2 + $0xe1] sm:$0xff]
      %v1106 = vld [vmem:[#allocation2 + $0xe9] sm:$0xff]
      %v1107 = vld [vmem:[#allocation2 + $0xf1] sm:$0xff]
      %v1108 = vld [vmem:[#allocation2 + $0xf9] sm:$0xff]
      %v1109 = vld [vmem:[#allocation2 + $0x101] sm:$0xff]
      %v1110 = vld [vmem:[#allocation2 + $0x109] sm:$0xff]
      %1111 = vset.pattern.permute.xlu0 1
      %1112 = vperm.xlu0 %1111, %v331
      %v1113 = vpop.permute.xlu0 %1112
      %1115 = vset.pattern.permute.xlu0 1
      %1116 = vperm.xlu0 %1115, %v332
      %v1117 = vpop.permute.xlu0 %1116
      %1119 = vset.pattern.permute.xlu0 1
      %1120 = vperm.xlu0 %1119, %v333
      %v1121 = vpop.permute.xlu0 %1120
      %1123 = vset.pattern.permute.xlu0 1
      %1124 = vperm.xlu0 %1123, %v334
      %v1125 = vpop.permute.xlu0 %1124
      %1127 = vset.pattern.permute.xlu0 1
      %1128 = vperm.xlu0 %1127, %v335
      %v1129 = vpop.permute.xlu0 %1128
      %1131 = vset.pattern.permute.xlu0 1
      %1132 = vperm.xlu0 %1131, %v336
      %v1133 = vpop.permute.xlu0 %1132
      %1135 = vset.pattern.permute.xlu0 1
      %1136 = vperm.xlu0 %1135, %v337
      %v1137 = vpop.permute.xlu0 %1136
      %1139 = vset.pattern.permute.xlu0 1
      %1140 = vperm.xlu0 %1139, %v338
      %v1141 = vpop.permute.xlu0 %1140
      %1143 = vset.pattern.permute.xlu0 1
      %1144 = vperm.xlu0 %1143, %v339
      %v1145 = vpop.permute.xlu0 %1144
      %1147 = vset.pattern.permute.xlu0 1
      %1148 = vperm.xlu0 %1147, %v340
      %v1149 = vpop.permute.xlu0 %1148
      %1151 = vset.pattern.permute.xlu0 1
      %1152 = vperm.xlu0 %1151, %v341
      %v1153 = vpop.permute.xlu0 %1152
      %1155 = vset.pattern.permute.xlu0 1
      %1156 = vperm.xlu0 %1155, %v342
      %v1157 = vpop.permute.xlu0 %1156
      %1159 = vset.pattern.permute.xlu0 1
      %1160 = vperm.xlu0 %1159, %v343
      %v1161 = vpop.permute.xlu0 %1160
      %1163 = vset.pattern.permute.xlu0 1
      %1164 = vperm.xlu0 %1163, %v344
      %v1165 = vpop.permute.xlu0 %1164
      %1167 = vset.pattern.permute.xlu0 1
      %1168 = vperm.xlu0 %1167, %v345
      %v1169 = vpop.permute.xlu0 %1168
      %1171 = vset.pattern.permute.xlu0 1
      %1172 = vperm.xlu0 %1171, %v346
      %v1173 = vpop.permute.xlu0 %1172
      %1175 = vset.pattern.permute.xlu0 1
      %1176 = vperm.xlu0 %1175, %v347
      %v1177 = vpop.permute.xlu0 %1176
      %1179 = vset.pattern.permute.xlu0 1
      %1180 = vperm.xlu0 %1179, %v348
      %v1181 = vpop.permute.xlu0 %1180
      %1183 = vset.pattern.permute.xlu0 1
      %1184 = vperm.xlu0 %1183, %v349
      %v1185 = vpop.permute.xlu0 %1184
      %1187 = vset.pattern.permute.xlu0 1
      %1188 = vperm.xlu0 %1187, %v350
      %v1189 = vpop.permute.xlu0 %1188
      %1191 = vset.pattern.permute.xlu0 1
      %1192 = vperm.xlu0 %1191, %v351
      %v1193 = vpop.permute.xlu0 %1192
      %1195 = vset.pattern.permute.xlu0 1
      %1196 = vperm.xlu0 %1195, %v352
      %v1197 = vpop.permute.xlu0 %1196
      %1199 = vset.pattern.permute.xlu0 1
      %1200 = vperm.xlu0 %1199, %v353
      %v1201 = vpop.permute.xlu0 %1200
      %1203 = vset.pattern.permute.xlu0 1
      %1204 = vperm.xlu0 %1203, %v354
      %v1205 = vpop.permute.xlu0 %1204
      %1207 = vset.pattern.permute.xlu0 1
      %1208 = vperm.xlu0 %1207, %v355
      %v1209 = vpop.permute.xlu0 %1208
      %1211 = vset.pattern.permute.xlu0 1
      %1212 = vperm.xlu0 %1211, %v356
      %v1213 = vpop.permute.xlu0 %1212
      %1215 = vset.pattern.permute.xlu0 1
      %1216 = vperm.xlu0 %1215, %v357
      %v1217 = vpop.permute.xlu0 %1216
      %1219 = vset.pattern.permute.xlu0 1
      %1220 = vperm.xlu0 %1219, %v358
      %v1221 = vpop.permute.xlu0 %1220
      %1223 = vset.pattern.permute.xlu0 1
      %1224 = vperm.xlu0 %1223, %v359
      %v1225 = vpop.permute.xlu0 %1224
      %1227 = vset.pattern.permute.xlu0 1
      %1228 = vperm.xlu0 %1227, %v360
      %v1229 = vpop.permute.xlu0 %1228
      %1231 = vset.pattern.permute.xlu0 1
      %1232 = vperm.xlu0 %1231, %v361
      %v1233 = vpop.permute.xlu0 %1232
      %1235 = vset.pattern.permute.xlu0 1
      %1236 = vperm.xlu0 %1235, %v362
      %v1237 = vpop.permute.xlu0 %1236
      %v1239 = vmul.f32 %v1079, %v1113
      %v1240 = vmul.f32 %v1080, %v1117
      %v1241 = vmul.f32 %v1081, %v1121
      %v1242 = vmul.f32 %v1082, %v1125
      %v1243 = vmul.f32 %v1083, %v1129
      %v1244 = vmul.f32 %v1084, %v1133
      %v1245 = vmul.f32 %v1085, %v1137
      %v1246 = vmul.f32 %v1086, %v1141
      %v1247 = vmul.f32 %v1087, %v1145
      %v1248 = vmul.f32 %v1088, %v1149
      %v1249 = vmul.f32 %v1089, %v1153
      %v1250 = vmul.f32 %v1090, %v1157
      %v1251 = vmul.f32 %v1091, %v1161
      %v1252 = vmul.f32 %v1092, %v1165
      %v1253 = vmul.f32 %v1093, %v1169
      %v1254 = vmul.f32 %v1094, %v1173
      %v1255 = vmul.f32 %v1095, %v1177
      %v1256 = vmul.f32 %v1096, %v1181
      %v1257 = vmul.f32 %v1097, %v1185
      %v1258 = vmul.f32 %v1098, %v1189
      %v1259 = vmul.f32 %v1099, %v1193
      %v1260 = vmul.f32 %v1100, %v1197
      %v1261 = vmul.f32 %v1101, %v1201
      %v1262 = vmul.f32 %v1102, %v1205
      %v1263 = vmul.f32 %v1103, %v1209
      %v1264 = vmul.f32 %v1104, %v1213
      %v1265 = vmul.f32 %v1105, %v1217
      %v1266 = vmul.f32 %v1106, %v1221
      %v1267 = vmul.f32 %v1107, %v1225
      %v1268 = vmul.f32 %v1108, %v1229
      %v1269 = vmul.f32 %v1109, %v1233
      %v1270 = vmul.f32 %v1110, %v1237
      %v1271 = vpack.c.bf16 %v1240, %v1239
      %v1272 = vpack.c.bf16 %v1242, %v1241
      %v1273 = vpack.c.bf16 %v1244, %v1243
      %v1274 = vpack.c.bf16 %v1246, %v1245
      %v1275 = vpack.c.bf16 %v1248, %v1247
      %v1276 = vpack.c.bf16 %v1250, %v1249
      %v1277 = vpack.c.bf16 %v1252, %v1251
      %v1278 = vpack.c.bf16 %v1254, %v1253
      %v1279 = vpack.c.bf16 %v1256, %v1255
      %v1280 = vpack.c.bf16 %v1258, %v1257
      %v1281 = vpack.c.bf16 %v1260, %v1259
      %v1282 = vpack.c.bf16 %v1262, %v1261
      %v1283 = vpack.c.bf16 %v1264, %v1263
      %v1284 = vpack.c.bf16 %v1266, %v1265
      %v1285 = vpack.c.bf16 %v1268, %v1267
      %v1286 = vpack.c.bf16 %v1270, %v1269
      %s1287 = scalar_lea.vmem %s1, 4
      %v1288 = vld [vmem:[%s1287] sm:$0x3]
      %v1290 = vsel %vm258, %v1271, 0
      %v1293 = vsel %vm258, %v1272, 0
      %v1296 = vsel %vm258, %v1273, 0
      %v1299 = vsel %vm258, %v1274, 0
      %v1302 = vsel %vm258, %v1275, 0
      %v1305 = vsel %vm258, %v1276, 0
      %v1308 = vsel %vm258, %v1277, 0
      %v1311 = vsel %vm258, %v1278, 0
      %v1314 = vsel %vm258, %v1279, 0
      %v1317 = vsel %vm258, %v1280, 0
      %v1320 = vsel %vm258, %v1281, 0
      %v1323 = vsel %vm258, %v1282, 0
      %v1326 = vsel %vm258, %v1283, 0
      %v1329 = vsel %vm258, %v1284, 0
      %v1332 = vsel %vm258, %v1285, 0
      %v1335 = vsel %vm258, %v1286, 0
      %v1338 = vsel %vm702, %v1288, 0
      %1340 = vmatprep.subr.bf16.mxu0 0
      %1341 = vmatpush1.bf16.msra.mxu0 %v1338
      %1342 = vmatprep.subr.bf16.mxu0 0
      %1343 = vmatpush1.bf16.msra.mxu0 0
      %1344 = vmatprep.subr.bf16.mxu0 0
      %1345 = vmatpush1.bf16.msra.mxu0 0
      %1346 = vmatprep.subr.bf16.mxu0 0
      %1347 = vmatpush1.bf16.msra.mxu0 0
      %1348 = vmatprep.subr.bf16.mxu0 0
      %1349 = vmatpush1.bf16.msra.mxu0 0
      %1350 = vmatprep.subr.bf16.mxu0 0
      %1351 = vmatpush1.bf16.msra.mxu0 0
      %1352 = vmatprep.subr.bf16.mxu0 0
      %1353 = vmatpush1.bf16.msra.mxu0 0
      %1354 = vmatprep.subr.bf16.mxu0 0
      %1355 = vmatpush1.bf16.msra.mxu0 0
      %1356 = vmatprep.subr.bf16.mxu0 0
      %1357 = vmatpush1.bf16.msra.mxu0 0
      %1358 = vmatprep.subr.bf16.mxu0 0
      %1359 = vmatpush1.bf16.msra.mxu0 0
      %1360 = vmatprep.subr.bf16.mxu0 0
      %1361 = vmatpush1.bf16.msra.mxu0 0
      %1362 = vmatprep.subr.bf16.mxu0 0
      %1363 = vmatpush1.bf16.msra.mxu0 0
      %1364 = vmatprep.subr.bf16.mxu0 0
      %1365 = vmatpush1.bf16.msra.mxu0 0
      %1366 = vmatprep.subr.bf16.mxu0 0
      %1367 = vmatpush1.bf16.msra.mxu0 0
      %1368 = vmatprep.subr.bf16.mxu0 0
      %1369 = vmatpush1.bf16.msra.mxu0 0
      %1370 = vmatprep.subr.bf16.mxu0 0
      %1371 = vmatpush1.bf16.msra.mxu0 0
      %1372 = vmatprep.mubr.bf16.mxu0 0
      %1373 = vmatmul.mubr.bf16.gmra.mrb[0].mxu0 %v1290
      %v1374 = vpop.f32.mrb[0].mxu0
      %v1375 = vadd.f32 0.0, %v1374
      %v1376 = vpop.f32.mrb[0].mxu0
      %v1377 = vpop.f32.mrb[0].mxu0
      %v1378 = vadd.f32 0.0, %v1377
      %v1379 = vpop.f32.mrb[0].mxu0
      %1380 = vmatprep.mubr.bf16.mxu0 0
      %1381 = vmatmul.mubr.bf16.gmra.mrb[0].mxu0 %v1293
      %v1382 = vpop.f32.mrb[0].mxu0
      %v1383 = vadd.f32 0.0, %v1382
      %v1384 = vpop.f32.mrb[0].mxu0
      %v1385 = vpop.f32.mrb[0].mxu0
      %v1386 = vadd.f32 0.0, %v1385
      %v1387 = vpop.f32.mrb[0].mxu0
      %1388 = vmatprep.mubr.bf16.mxu0 0
      %1389 = vmatmul.mubr.bf16.gmra.mrb[0].mxu0 %v1296
      %v1390 = vpop.f32.mrb[0].mxu0
      %v1391 = vadd.f32 0.0, %v1390
      %v1392 = vpop.f32.mrb[0].mxu0
      %v1393 = vpop.f32.mrb[0].mxu0
      %v1394 = vadd.f32 0.0, %v1393
      %v1395 = vpop.f32.mrb[0].mxu0
      %1396 = vmatprep.mubr.bf16.mxu0 0
      %1397 = vmatmul.mubr.bf16.gmra.mrb[0].mxu0 %v1299
      %v1398 = vpop.f32.mrb[0].mxu0
      %v1399 = vadd.f32 0.0, %v1398
      %v1400 = vpop.f32.mrb[0].mxu0
      %v1401 = vpop.f32.mrb[0].mxu0
      %v1402 = vadd.f32 0.0, %v1401
      %v1403 = vpop.f32.mrb[0].mxu0
      %1404 = vmatprep.mubr.bf16.mxu0 0
      %1405 = vmatmul.mubr.bf16.gmra.mrb[0].mxu0 %v1302
      %v1406 = vpop.f32.mrb[0].mxu0
      %v1407 = vadd.f32 0.0, %v1406
      %v1408 = vpop.f32.mrb[0].mxu0
      %v1409 = vpop.f32.mrb[0].mxu0
      %v1410 = vadd.f32 0.0, %v1409
      %v1411 = vpop.f32.mrb[0].mxu0
      %1412 = vmatprep.mubr.bf16.mxu0 0
      %1413 = vmatmul.mubr.bf16.gmra.mrb[0].mxu0 %v1305
      %v1414 = vpop.f32.mrb[0].mxu0
      %v1415 = vadd.f32 0.0, %v1414
      %v1416 = vpop.f32.mrb[0].mxu0
      %v1417 = vpop.f32.mrb[0].mxu0
      %v1418 = vadd.f32 0.0, %v1417
      %v1419 = vpop.f32.mrb[0].mxu0
      %1420 = vmatprep.mubr.bf16.mxu0 0
      %1421 = vmatmul.mubr.bf16.gmra.mrb[0].mxu0 %v1308
      %v1422 = vpop.f32.mrb[0].mxu0
      %v1423 = vadd.f32 0.0, %v1422
      %v1424 = vpop.f32.mrb[0].mxu0
      %v1425 = vpop.f32.mrb[0].mxu0
      %v1426 = vadd.f32 0.0, %v1425
      %v1427 = vpop.f32.mrb[0].mxu0
      %1428 = vmatprep.mubr.bf16.mxu0 0
      %1429 = vmatmul.mubr.bf16.gmra.mrb[0].mxu0 %v1311
      %v1430 = vpop.f32.mrb[0].mxu0
      %v1431 = vadd.f32 0.0, %v1430
      %v1432 = vpop.f32.mrb[0].mxu0
      %v1433 = vpop.f32.mrb[0].mxu0
      %v1434 = vadd.f32 0.0, %v1433
      %v1435 = vpop.f32.mrb[0].mxu0
      %1436 = vmatprep.mubr.bf16.mxu0 0
      %1437 = vmatmul.mubr.bf16.gmra.mrb[0].mxu0 %v1314
      %v1438 = vpop.f32.mrb[0].mxu0
      %v1439 = vadd.f32 0.0, %v1438
      %v1440 = vpop.f32.mrb[0].mxu0
      %v1441 = vpop.f32.mrb[0].mxu0
      %v1442 = vadd.f32 0.0, %v1441
      %v1443 = vpop.f32.mrb[0].mxu0
      %1444 = vmatprep.mubr.bf16.mxu0 0
      %1445 = vmatmul.mubr.bf16.gmra.mrb[0].mxu0 %v1317
      %v1446 = vpop.f32.mrb[0].mxu0
      %v1447 = vadd.f32 0.0, %v1446
      %v1448 = vpop.f32.mrb[0].mxu0
      %v1449 = vpop.f32.mrb[0].mxu0
      %v1450 = vadd.f32 0.0, %v1449
      %v1451 = vpop.f32.mrb[0].mxu0
      %1452 = vmatprep.mubr.bf16.mxu0 0
      %1453 = vmatmul.mubr.bf16.gmra.mrb[0].mxu0 %v1320
      %v1454 = vpop.f32.mrb[0].mxu0
      %v1455 = vadd.f32 0.0, %v1454
      %v1456 = vpop.f32.mrb[0].mxu0
      %v1457 = vpop.f32.mrb[0].mxu0
      %v1458 = vadd.f32 0.0, %v1457
      %v1459 = vpop.f32.mrb[0].mxu0
      %1460 = vmatprep.mubr.bf16.mxu0 0
      %1461 = vmatmul.mubr.bf16.gmra.mrb[0].mxu0 %v1323
      %v1462 = vpop.f32.mrb[0].mxu0
      %v1463 = vadd.f32 0.0, %v1462
      %v1464 = vpop.f32.mrb[0].mxu0
      %v1465 = vpop.f32.mrb[0].mxu0
      %v1466 = vadd.f32 0.0, %v1465
      %v1467 = vpop.f32.mrb[0].mxu0
      %1468 = vmatprep.mubr.bf16.mxu0 0
      %1469 = vmatmul.mubr.bf16.gmra.mrb[0].mxu0 %v1326
      %v1470 = vpop.f32.mrb[0].mxu0
      %v1471 = vadd.f32 0.0, %v1470
      %v1472 = vpop.f32.mrb[0].mxu0
      %v1473 = vpop.f32.mrb[0].mxu0
      %v1474 = vadd.f32 0.0, %v1473
      %v1475 = vpop.f32.mrb[0].mxu0
      %1476 = vmatprep.mubr.bf16.mxu0 0
      %1477 = vmatmul.mubr.bf16.gmra.mrb[0].mxu0 %v1329
      %v1478 = vpop.f32.mrb[0].mxu0
      %v1479 = vadd.f32 0.0, %v1478
      %v1480 = vpop.f32.mrb[0].mxu0
      %v1481 = vpop.f32.mrb[0].mxu0
      %v1482 = vadd.f32 0.0, %v1481
      %v1483 = vpop.f32.mrb[0].mxu0
      %1484 = vmatprep.mubr.bf16.mxu0 0
      %1485 = vmatmul.mubr.bf16.gmra.mrb[0].mxu0 %v1332
      %v1486 = vpop.f32.mrb[0].mxu0
      %v1487 = vadd.f32 0.0, %v1486
      %v1488 = vpop.f32.mrb[0].mxu0
      %v1489 = vpop.f32.mrb[0].mxu0
      %v1490 = vadd.f32 0.0, %v1489
      %v1491 = vpop.f32.mrb[0].mxu0
      %1492 = vmatprep.mubr.bf16.mxu0 0
      %1493 = vmatmul.mubr.bf16.gmra.mrb[0].mxu0 %v1335
      %v1494 = vpop.f32.mrb[0].mxu0
      %v1495 = vadd.f32 0.0, %v1494
      %v1496 = vpop.f32.mrb[0].mxu0
      %v1497 = vpop.f32.mrb[0].mxu0
      %v1498 = vadd.f32 0.0, %v1497
      %v1499 = vpop.f32.mrb[0].mxu0
      %1500 = vdwg.mxu0
      %v1501 = vadd.f32 %v953, %v1375
      %v1502 = vadd.f32 %v956, %v1378
      %v1503 = vadd.f32 %v961, %v1383
      %v1504 = vadd.f32 %v964, %v1386
      %v1505 = vadd.f32 %v969, %v1391
      %v1506 = vadd.f32 %v972, %v1394
      %v1507 = vadd.f32 %v977, %v1399
      %v1508 = vadd.f32 %v980, %v1402
      %v1509 = vadd.f32 %v985, %v1407
      %v1510 = vadd.f32 %v988, %v1410
      %v1511 = vadd.f32 %v993, %v1415
      %v1512 = vadd.f32 %v996, %v1418
      %v1513 = vadd.f32 %v1001, %v1423
      %v1514 = vadd.f32 %v1004, %v1426
      %v1515 = vadd.f32 %v1009, %v1431
      %v1516 = vadd.f32 %v1012, %v1434
      %v1517 = vadd.f32 %v1017, %v1439
      %v1518 = vadd.f32 %v1020, %v1442
      %v1519 = vadd.f32 %v1025, %v1447
      %v1520 = vadd.f32 %v1028, %v1450
      %v1521 = vadd.f32 %v1033, %v1455
      %v1522 = vadd.f32 %v1036, %v1458
      %v1523 = vadd.f32 %v1041, %v1463
      %v1524 = vadd.f32 %v1044, %v1466
      %v1525 = vadd.f32 %v1049, %v1471
      %v1526 = vadd.f32 %v1052, %v1474
      %v1527 = vadd.f32 %v1057, %v1479
      %v1528 = vadd.f32 %v1060, %v1482
      %v1529 = vadd.f32 %v1065, %v1487
      %v1530 = vadd.f32 %v1068, %v1490
      %v1531 = vadd.f32 %v1073, %v1495
      %v1532 = vadd.f32 %v1076, %v1498
      %v1533 = vld [vmem:[#allocation2 + $0x1f] sm:$0xff]
      %v1534 = vld [vmem:[#allocation2 + $0x27] sm:$0xff]
      %v1535 = vld [vmem:[#allocation2 + $0x2f] sm:$0xff]
      %v1536 = vld [vmem:[#allocation2 + $0x37] sm:$0xff]
      %v1537 = vld [vmem:[#allocation2 + $0x3f] sm:$0xff]
      %v1538 = vld [vmem:[#allocation2 + $0x47] sm:$0xff]
      %v1539 = vld [vmem:[#allocation2 + $0x4f] sm:$0xff]
      %v1540 = vld [vmem:[#allocation2 + $0x57] sm:$0xff]
      %v1541 = vld [vmem:[#allocation2 + $0x5f] sm:$0xff]
      %v1542 = vld [vmem:[#allocation2 + $0x67] sm:$0xff]
      %v1543 = vld [vmem:[#allocation2 + $0x6f] sm:$0xff]
      %v1544 = vld [vmem:[#allocation2 + $0x77] sm:$0xff]
      %v1545 = vld [vmem:[#allocation2 + $0x7f] sm:$0xff]
      %v1546 = vld [vmem:[#allocation2 + $0x87] sm:$0xff]
      %v1547 = vld [vmem:[#allocation2 + $0x8f] sm:$0xff]
      %v1548 = vld [vmem:[#allocation2 + $0x97] sm:$0xff]
      %v1549 = vld [vmem:[#allocation2 + $0x9f] sm:$0xff]
      %v1550 = vld [vmem:[#allocation2 + $0xa7] sm:$0xff]
      %v1551 = vld [vmem:[#allocation2 + $0xaf] sm:$0xff]
      %v1552 = vld [vmem:[#allocation2 + $0xb7] sm:$0xff]
      %v1553 = vld [vmem:[#allocation2 + $0xbf] sm:$0xff]
      %v1554 = vld [vmem:[#allocation2 + $0xc7] sm:$0xff]
      %v1555 = vld [vmem:[#allocation2 + $0xcf] sm:$0xff]
      %v1556 = vld [vmem:[#allocation2 + $0xd7] sm:$0xff]
      %v1557 = vld [vmem:[#allocation2 + $0xdf] sm:$0xff]
      %v1558 = vld [vmem:[#allocation2 + $0xe7] sm:$0xff]
      %v1559 = vld [vmem:[#allocation2 + $0xef] sm:$0xff]
      %v1560 = vld [vmem:[#allocation2 + $0xf7] sm:$0xff]
      %v1561 = vld [vmem:[#allocation2 + $0xff] sm:$0xff]
      %v1562 = vld [vmem:[#allocation2 + $0x107] sm:$0xff]
      %v1563 = vld [vmem:[#allocation2 + $0x10f] sm:$0xff]
      %v1564 = vld [vmem:[#allocation2 + $0x117] sm:$0xff]
      %v1565 = vmul.f32 %v1533, %v398
      %v1566 = vmul.f32 %v1534, %v403
      %v1567 = vmul.f32 %v1535, %v408
      %v1568 = vmul.f32 %v1536, %v413
      %v1569 = vmul.f32 %v1537, %v418
      %v1570 = vmul.f32 %v1538, %v423
      %v1571 = vmul.f32 %v1539, %v428
      %v1572 = vmul.f32 %v1540, %v433
      %v1573 = vmul.f32 %v1541, %v438
      %v1574 = vmul.f32 %v1542, %v443
      %v1575 = vmul.f32 %v1543, %v448
      %v1576 = vmul.f32 %v1544, %v453
      %v1577 = vmul.f32 %v1545, %v458
      %v1578 = vmul.f32 %v1546, %v463
      %v1579 = vmul.f32 %v1547, %v468
      %v1580 = vmul.f32 %v1548, %v473
      %v1581 = vmul.f32 %v1549, %v478
      %v1582 = vmul.f32 %v1550, %v483
      %v1583 = vmul.f32 %v1551, %v488
      %v1584 = vmul.f32 %v1552, %v493
      %v1585 = vmul.f32 %v1553, %v498
      %v1586 = vmul.f32 %v1554, %v503
      %v1587 = vmul.f32 %v1555, %v508
      %v1588 = vmul.f32 %v1556, %v513
      %v1589 = vmul.f32 %v1557, %v518
      %v1590 = vmul.f32 %v1558, %v523
      %v1591 = vmul.f32 %v1559, %v528
      %v1592 = vmul.f32 %v1560, %v533
      %v1593 = vmul.f32 %v1561, %v538
      %v1594 = vmul.f32 %v1562, %v543
      %v1595 = vmul.f32 %v1563, %v548
      %v1596 = vmul.f32 %v1564, %v553
      %v1597 = vpack.c.bf16 %v1566, %v1565
      %v1598 = vpack.c.bf16 %v1568, %v1567
      %v1599 = vpack.c.bf16 %v1570, %v1569
      %v1600 = vpack.c.bf16 %v1572, %v1571
      %v1601 = vpack.c.bf16 %v1574, %v1573
      %v1602 = vpack.c.bf16 %v1576, %v1575
      %v1603 = vpack.c.bf16 %v1578, %v1577
      %v1604 = vpack.c.bf16 %v1580, %v1579
      %v1605 = vpack.c.bf16 %v1582, %v1581
      %v1606 = vpack.c.bf16 %v1584, %v1583
      %v1607 = vpack.c.bf16 %v1586, %v1585
      %v1608 = vpack.c.bf16 %v1588, %v1587
      %v1609 = vpack.c.bf16 %v1590, %v1589
      %v1610 = vpack.c.bf16 %v1592, %v1591
      %v1611 = vpack.c.bf16 %v1594, %v1593
      %v1612 = vpack.c.bf16 %v1596, %v1595
      %s1613 = scalar_lea.vmem %s1, 6
      %v1614 = vld [vmem:[%s1613] sm:$0x3]
      %v1616 = vsel %vm258, %v1597, 0
      %v1619 = vsel %vm258, %v1598, 0
      %v1622 = vsel %vm258, %v1599, 0
      %v1625 = vsel %vm258, %v1600, 0
      %v1628 = vsel %vm258, %v1601, 0
      %v1631 = vsel %vm258, %v1602, 0
      %v1634 = vsel %vm258, %v1603, 0
      %v1637 = vsel %vm258, %v1604, 0
      %v1640 = vsel %vm258, %v1605, 0
      %v1643 = vsel %vm258, %v1606, 0
      %v1646 = vsel %vm258, %v1607, 0
      %v1649 = vsel %vm258, %v1608, 0
      %v1652 = vsel %vm258, %v1609, 0
      %v1655 = vsel %vm258, %v1610, 0
      %v1658 = vsel %vm258, %v1611, 0
      %v1661 = vsel %vm258, %v1612, 0
      %v1664 = vsel %vm702, %v1614, 0
      %1666 = vmatprep.subr.bf16.mxu0 0
      %1667 = vmatpush1.bf16.msra.mxu0 %v1664
      %1668 = vmatprep.subr.bf16.mxu0 0
      %1669 = vmatpush1.bf16.msra.mxu0 0
      %1670 = vmatprep.subr.bf16.mxu0 0
      %1671 = vmatpush1.bf16.msra.mxu0 0
      %1672 = vmatprep.subr.bf16.mxu0 0
      %1673 = vmatpush1.bf16.msra.mxu0 0
      %1674 = vmatprep.subr.bf16.mxu0 0
      %1675 = vmatpush1.bf16.msra.mxu0 0
      %1676 = vmatprep.subr.bf16.mxu0 0
      %1677 = vmatpush1.bf16.msra.mxu0 0
      %1678 = vmatprep.subr.bf16.mxu0 0
      %1679 = vmatpush1.bf16.msra.mxu0 0
      %1680 = vmatprep.subr.bf16.mxu0 0
      %1681 = vmatpush1.bf16.msra.mxu0 0
      %1682 = vmatprep.subr.bf16.mxu0 0
      %1683 = vmatpush1.bf16.msra.mxu0 0
      %1684 = vmatprep.subr.bf16.mxu0 0
      %1685 = vmatpush1.bf16.msra.mxu0 0
      %1686 = vmatprep.subr.bf16.mxu0 0
      %1687 = vmatpush1.bf16.msra.mxu0 0
      %1688 = vmatprep.subr.bf16.mxu0 0
      %1689 = vmatpush1.bf16.msra.mxu0 0
      %1690 = vmatprep.subr.bf16.mxu0 0
      %1691 = vmatpush1.bf16.msra.mxu0 0
      %1692 = vmatprep.subr.bf16.mxu0 0
      %1693 = vmatpush1.bf16.msra.mxu0 0
      %1694 = vmatprep.subr.bf16.mxu0 0
      %1695 = vmatpush1.bf16.msra.mxu0 0
      %1696 = vmatprep.subr.bf16.mxu0 0
      %1697 = vmatpush1.bf16.msra.mxu0 0
      %1698 = vmatprep.mubr.bf16.mxu0 0
      %1699 = vmatmul.mubr.bf16.gmra.mrb[0].mxu0 %v1616
      %v1700 = vpop.f32.mrb[0].mxu0
      %v1701 = vadd.f32 0.0, %v1700
      %v1702 = vpop.f32.mrb[0].mxu0
      %v1703 = vpop.f32.mrb[0].mxu0
      %v1704 = vadd.f32 0.0, %v1703
      %v1705 = vpop.f32.mrb[0].mxu0
      %1706 = vmatprep.mubr.bf16.mxu0 0
      %1707 = vmatmul.mubr.bf16.gmra.mrb[0].mxu0 %v1619
      %v1708 = vpop.f32.mrb[0].mxu0
      %v1709 = vadd.f32 0.0, %v1708
      %v1710 = vpop.f32.mrb[0].mxu0
      %v1711 = vpop.f32.mrb[0].mxu0
      %v1712 = vadd.f32 0.0, %v1711
      %v1713 = vpop.f32.mrb[0].mxu0
      %1714 = vmatprep.mubr.bf16.mxu0 0
      %1715 = vmatmul.mubr.bf16.gmra.mrb[0].mxu0 %v1622
      %v1716 = vpop.f32.mrb[0].mxu0
      %v1717 = vadd.f32 0.0, %v1716
      %v1718 = vpop.f32.mrb[0].mxu0
      %v1719 = vpop.f32.mrb[0].mxu0
      %v1720 = vadd.f32 0.0, %v1719
      %v1721 = vpop.f32.mrb[0].mxu0
      %1722 = vmatprep.mubr.bf16.mxu0 0
      %1723 = vmatmul.mubr.bf16.gmra.mrb[0].mxu0 %v1625
      %v1724 = vpop.f32.mrb[0].mxu0
      %v1725 = vadd.f32 0.0, %v1724
      %v1726 = vpop.f32.mrb[0].mxu0
      %v1727 = vpop.f32.mrb[0].mxu0
      %v1728 = vadd.f32 0.0, %v1727
      %v1729 = vpop.f32.mrb[0].mxu0
      %1730 = vmatprep.mubr.bf16.mxu0 0
      %1731 = vmatmul.mubr.bf16.gmra.mrb[0].mxu0 %v1628
      %v1732 = vpop.f32.mrb[0].mxu0
      %v1733 = vadd.f32 0.0, %v1732
      %v1734 = vpop.f32.mrb[0].mxu0
      %v1735 = vpop.f32.mrb[0].mxu0
      %v1736 = vadd.f32 0.0, %v1735
      %v1737 = vpop.f32.mrb[0].mxu0
      %1738 = vmatprep.mubr.bf16.mxu0 0
      %1739 = vmatmul.mubr.bf16.gmra.mrb[0].mxu0 %v1631
      %v1740 = vpop.f32.mrb[0].mxu0
      %v1741 = vadd.f32 0.0, %v1740
      %v1742 = vpop.f32.mrb[0].mxu0
      %v1743 = vpop.f32.mrb[0].mxu0
      %v1744 = vadd.f32 0.0, %v1743
      %v1745 = vpop.f32.mrb[0].mxu0
      %1746 = vmatprep.mubr.bf16.mxu0 0
      %1747 = vmatmul.mubr.bf16.gmra.mrb[0].mxu0 %v1634
      %v1748 = vpop.f32.mrb[0].mxu0
      %v1749 = vadd.f32 0.0, %v1748
      %v1750 = vpop.f32.mrb[0].mxu0
      %v1751 = vpop.f32.mrb[0].mxu0
      %v1752 = vadd.f32 0.0, %v1751
      %v1753 = vpop.f32.mrb[0].mxu0
      %1754 = vmatprep.mubr.bf16.mxu0 0
      %1755 = vmatmul.mubr.bf16.gmra.mrb[0].mxu0 %v1637
      %v1756 = vpop.f32.mrb[0].mxu0
      %v1757 = vadd.f32 0.0, %v1756
      %v1758 = vpop.f32.mrb[0].mxu0
      %v1759 = vpop.f32.mrb[0].mxu0
      %v1760 = vadd.f32 0.0, %v1759
      %v1761 = vpop.f32.mrb[0].mxu0
      %1762 = vmatprep.mubr.bf16.mxu0 0
      %1763 = vmatmul.mubr.bf16.gmra.mrb[0].mxu0 %v1640
      %v1764 = vpop.f32.mrb[0].mxu0
      %v1765 = vadd.f32 0.0, %v1764
      %v1766 = vpop.f32.mrb[0].mxu0
      %v1767 = vpop.f32.mrb[0].mxu0
      %v1768 = vadd.f32 0.0, %v1767
      %v1769 = vpop.f32.mrb[0].mxu0
      %1770 = vmatprep.mubr.bf16.mxu0 0
      %1771 = vmatmul.mubr.bf16.gmra.mrb[0].mxu0 %v1643
      %v1772 = vpop.f32.mrb[0].mxu0
      %v1773 = vadd.f32 0.0, %v1772
      %v1774 = vpop.f32.mrb[0].mxu0
      %v1775 = vpop.f32.mrb[0].mxu0
      %v1776 = vadd.f32 0.0, %v1775
      %v1777 = vpop.f32.mrb[0].mxu0
      %1778 = vmatprep.mubr.bf16.mxu0 0
      %1779 = vmatmul.mubr.bf16.gmra.mrb[0].mxu0 %v1646
      %v1780 = vpop.f32.mrb[0].mxu0
      %v1781 = vadd.f32 0.0, %v1780
      %v1782 = vpop.f32.mrb[0].mxu0
      %v1783 = vpop.f32.mrb[0].mxu0
      %v1784 = vadd.f32 0.0, %v1783
      %v1785 = vpop.f32.mrb[0].mxu0
      %1786 = vmatprep.mubr.bf16.mxu0 0
      %1787 = vmatmul.mubr.bf16.gmra.mrb[0].mxu0 %v1649
      %v1788 = vpop.f32.mrb[0].mxu0
      %v1789 = vadd.f32 0.0, %v1788
      %v1790 = vpop.f32.mrb[0].mxu0
      %v1791 = vpop.f32.mrb[0].mxu0
      %v1792 = vadd.f32 0.0, %v1791
      %v1793 = vpop.f32.mrb[0].mxu0
      %1794 = vmatprep.mubr.bf16.mxu0 0
      %1795 = vmatmul.mubr.bf16.gmra.mrb[0].mxu0 %v1652
      %v1796 = vpop.f32.mrb[0].mxu0
      %v1797 = vadd.f32 0.0, %v1796
      %v1798 = vpop.f32.mrb[0].mxu0
      %v1799 = vpop.f32.mrb[0].mxu0
      %v1800 = vadd.f32 0.0, %v1799
      %v1801 = vpop.f32.mrb[0].mxu0
      %1802 = vmatprep.mubr.bf16.mxu0 0
      %1803 = vmatmul.mubr.bf16.gmra.mrb[0].mxu0 %v1655
      %v1804 = vpop.f32.mrb[0].mxu0
      %v1805 = vadd.f32 0.0, %v1804
      %v1806 = vpop.f32.mrb[0].mxu0
      %v1807 = vpop.f32.mrb[0].mxu0
      %v1808 = vadd.f32 0.0, %v1807
      %v1809 = vpop.f32.mrb[0].mxu0
      %1810 = vmatprep.mubr.bf16.mxu0 0
      %1811 = vmatmul.mubr.bf16.gmra.mrb[0].mxu0 %v1658
      %v1812 = vpop.f32.mrb[0].mxu0
      %v1813 = vadd.f32 0.0, %v1812
      %v1814 = vpop.f32.mrb[0].mxu0
      %v1815 = vpop.f32.mrb[0].mxu0
      %v1816 = vadd.f32 0.0, %v1815
      %v1817 = vpop.f32.mrb[0].mxu0
      %1818 = vmatprep.mubr.bf16.mxu0 0
      %1819 = vmatmul.mubr.bf16.gmra.mrb[0].mxu0 %v1661
      %v1820 = vpop.f32.mrb[0].mxu0
      %v1821 = vadd.f32 0.0, %v1820
      %v1822 = vpop.f32.mrb[0].mxu0
      %v1823 = vpop.f32.mrb[0].mxu0
      %v1824 = vadd.f32 0.0, %v1823
      %v1825 = vpop.f32.mrb[0].mxu0
      %1826 = vdwg.mxu0
      %v1827 = vadd.f32 %v1501, %v1701
      %v1828 = vadd.f32 %v1502, %v1704
      %v1829 = vadd.f32 %v1503, %v1709
      %v1830 = vadd.f32 %v1504, %v1712
      %v1831 = vadd.f32 %v1505, %v1717
      %v1832 = vadd.f32 %v1506, %v1720
      %v1833 = vadd.f32 %v1507, %v1725
      %v1834 = vadd.f32 %v1508, %v1728
      %v1835 = vadd.f32 %v1509, %v1733
      %v1836 = vadd.f32 %v1510, %v1736
      %v1837 = vadd.f32 %v1511, %v1741
      %v1838 = vadd.f32 %v1512, %v1744
      %v1839 = vadd.f32 %v1513, %v1749
      %v1840 = vadd.f32 %v1514, %v1752
      %v1841 = vadd.f32 %v1515, %v1757
      %v1842 = vadd.f32 %v1516, %v1760
      %v1843 = vadd.f32 %v1517, %v1765
      %v1844 = vadd.f32 %v1518, %v1768
      %v1845 = vadd.f32 %v1519, %v1773
      %v1846 = vadd.f32 %v1520, %v1776
      %v1847 = vadd.f32 %v1521, %v1781
      %v1848 = vadd.f32 %v1522, %v1784
      %v1849 = vadd.f32 %v1523, %v1789
      %v1850 = vadd.f32 %v1524, %v1792
      %v1851 = vadd.f32 %v1525, %v1797
      %v1852 = vadd.f32 %v1526, %v1800
      %v1853 = vadd.f32 %v1527, %v1805
      %v1854 = vadd.f32 %v1528, %v1808
      %v1855 = vadd.f32 %v1529, %v1813
      %v1856 = vadd.f32 %v1530, %v1816
      %v1857 = vadd.f32 %v1531, %v1821
      %v1858 = vadd.f32 %v1532, %v1824
      %v1859 = vld [vmem:[#allocation2 + $0x20] sm:$0xff]
      %v1860 = vld [vmem:[#allocation2 + $0x28] sm:$0xff]
      %v1861 = vld [vmem:[#allocation2 + $0x30] sm:$0xff]
      %v1862 = vld [vmem:[#allocation2 + $0x38] sm:$0xff]
      %v1863 = vld [vmem:[#allocation2 + $0x40] sm:$0xff]
      %v1864 = vld [vmem:[#allocation2 + $0x48] sm:$0xff]
      %v1865 = vld [vmem:[#allocation2 + $0x50] sm:$0xff]
      %v1866 = vld [vmem:[#allocation2 + $0x58] sm:$0xff]
      %v1867 = vld [vmem:[#allocation2 + $0x60] sm:$0xff]
      %v1868 = vld [vmem:[#allocation2 + $0x68] sm:$0xff]
      %v1869 = vld [vmem:[#allocation2 + $0x70] sm:$0xff]
      %v1870 = vld [vmem:[#allocation2 + $0x78] sm:$0xff]
      %v1871 = vld [vmem:[#allocation2 + $0x80] sm:$0xff]
      %v1872 = vld [vmem:[#allocation2 + $0x88] sm:$0xff]
      %v1873 = vld [vmem:[#allocation2 + $0x90] sm:$0xff]
      %v1874 = vld [vmem:[#allocation2 + $0x98] sm:$0xff]
      %v1875 = vld [vmem:[#allocation2 + $0xa0] sm:$0xff]
      %v1876 = vld [vmem:[#allocation2 + $0xa8] sm:$0xff]
      %v1877 = vld [vmem:[#allocation2 + $0xb0] sm:$0xff]
      %v1878 = vld [vmem:[#allocation2 + $0xb8] sm:$0xff]
      %v1879 = vld [vmem:[#allocation2 + $0xc0] sm:$0xff]
      %v1880 = vld [vmem:[#allocation2 + $0xc8] sm:$0xff]
      %v1881 = vld [vmem:[#allocation2 + $0xd0] sm:$0xff]
      %v1882 = vld [vmem:[#allocation2 + $0xd8] sm:$0xff]
      %v1883 = vld [vmem:[#allocation2 + $0xe0] sm:$0xff]
      %v1884 = vld [vmem:[#allocation2 + $0xe8] sm:$0xff]
      %v1885 = vld [vmem:[#allocation2 + $0xf0] sm:$0xff]
      %v1886 = vld [vmem:[#allocation2 + $0xf8] sm:$0xff]
      %v1887 = vld [vmem:[#allocation2 + $0x100] sm:$0xff]
      %v1888 = vld [vmem:[#allocation2 + $0x108] sm:$0xff]
      %v1889 = vld [vmem:[#allocation2 + $0x110] sm:$0xff]
      %v1890 = vld [vmem:[#allocation2 + $0x118] sm:$0xff]
      %v1891 = vpack.c.bf16 %v1860, %v1859
      %v1892 = vpack.c.bf16 %v1862, %v1861
      %v1893 = vpack.c.bf16 %v1864, %v1863
      %v1894 = vpack.c.bf16 %v1866, %v1865
      %v1895 = vpack.c.bf16 %v1868, %v1867
      %v1896 = vpack.c.bf16 %v1870, %v1869
      %v1897 = vpack.c.bf16 %v1872, %v1871
      %v1898 = vpack.c.bf16 %v1874, %v1873
      %v1899 = vpack.c.bf16 %v1876, %v1875
      %v1900 = vpack.c.bf16 %v1878, %v1877
      %v1901 = vpack.c.bf16 %v1880, %v1879
      %v1902 = vpack.c.bf16 %v1882, %v1881
      %v1903 = vpack.c.bf16 %v1884, %v1883
      %v1904 = vpack.c.bf16 %v1886, %v1885
      %v1905 = vpack.c.bf16 %v1888, %v1887
      %v1906 = vpack.c.bf16 %v1890, %v1889
      %s1907 = scalar_lea.vmem %s1, 8
      %v1908 = vld [vmem:[%s1907] sm:$0x3]
      %v1910 = vsel %vm258, %v1891, 0
      %v1913 = vsel %vm258, %v1892, 0
      %v1916 = vsel %vm258, %v1893, 0
      %v1919 = vsel %vm258, %v1894, 0
      %v1922 = vsel %vm258, %v1895, 0
      %v1925 = vsel %vm258, %v1896, 0
      %v1928 = vsel %vm258, %v1897, 0
      %v1931 = vsel %vm258, %v1898, 0
      %v1934 = vsel %vm258, %v1899, 0
      %v1937 = vsel %vm258, %v1900, 0
      %v1940 = vsel %vm258, %v1901, 0
      %v1943 = vsel %vm258, %v1902, 0
      %v1946 = vsel %vm258, %v1903, 0
      %v1949 = vsel %vm258, %v1904, 0
      %v1952 = vsel %vm258, %v1905, 0
      %v1955 = vsel %vm258, %v1906, 0
      %v1958 = vsel %vm702, %v1908, 0
      %1960 = vmatprep.subr.bf16.mxu0 0
      %1961 = vmatpush1.bf16.msra.mxu0 %v1958
      %1962 = vmatprep.subr.bf16.mxu0 0
      %1963 = vmatpush1.bf16.msra.mxu0 0
      %1964 = vmatprep.subr.bf16.mxu0 0
      %1965 = vmatpush1.bf16.msra.mxu0 0
      %1966 = vmatprep.subr.bf16.mxu0 0
      %1967 = vmatpush1.bf16.msra.mxu0 0
      %1968 = vmatprep.subr.bf16.mxu0 0
      %1969 = vmatpush1.bf16.msra.mxu0 0
      %1970 = vmatprep.subr.bf16.mxu0 0
      %1971 = vmatpush1.bf16.msra.mxu0 0
      %1972 = vmatprep.subr.bf16.mxu0 0
      %1973 = vmatpush1.bf16.msra.mxu0 0
      %1974 = vmatprep.subr.bf16.mxu0 0
      %1975 = vmatpush1.bf16.msra.mxu0 0
      %1976 = vmatprep.subr.bf16.mxu0 0
      %1977 = vmatpush1.bf16.msra.mxu0 0
      %1978 = vmatprep.subr.bf16.mxu0 0
      %1979 = vmatpush1.bf16.msra.mxu0 0
      %1980 = vmatprep.subr.bf16.mxu0 0
      %1981 = vmatpush1.bf16.msra.mxu0 0
      %1982 = vmatprep.subr.bf16.mxu0 0
      %1983 = vmatpush1.bf16.msra.mxu0 0
      %1984 = vmatprep.subr.bf16.mxu0 0
      %1985 = vmatpush1.bf16.msra.mxu0 0
      %1986 = vmatprep.subr.bf16.mxu0 0
      %1987 = vmatpush1.bf16.msra.mxu0 0
      %1988 = vmatprep.subr.bf16.mxu0 0
      %1989 = vmatpush1.bf16.msra.mxu0 0
      %1990 = vmatprep.subr.bf16.mxu0 0
      %1991 = vmatpush1.bf16.msra.mxu0 0
      %1992 = vmatprep.mubr.bf16.mxu0 0
      %1993 = vmatmul.mubr.bf16.gmra.mrb[0].mxu0 %v1910
      %v1994 = vpop.f32.mrb[0].mxu0
      %v1995 = vadd.f32 0.0, %v1994
      %v1996 = vpop.f32.mrb[0].mxu0
      %v1997 = vpop.f32.mrb[0].mxu0
      %v1998 = vadd.f32 0.0, %v1997
      %v1999 = vpop.f32.mrb[0].mxu0
      %2000 = vmatprep.mubr.bf16.mxu0 0
      %2001 = vmatmul.mubr.bf16.gmra.mrb[0].mxu0 %v1913
      %v2002 = vpop.f32.mrb[0].mxu0
      %v2003 = vadd.f32 0.0, %v2002
      %v2004 = vpop.f32.mrb[0].mxu0
      %v2005 = vpop.f32.mrb[0].mxu0
      %v2006 = vadd.f32 0.0, %v2005
      %v2007 = vpop.f32.mrb[0].mxu0
      %2008 = vmatprep.mubr.bf16.mxu0 0
      %2009 = vmatmul.mubr.bf16.gmra.mrb[0].mxu0 %v1916
      %v2010 = vpop.f32.mrb[0].mxu0
      %v2011 = vadd.f32 0.0, %v2010
      %v2012 = vpop.f32.mrb[0].mxu0
      %v2013 = vpop.f32.mrb[0].mxu0
      %v2014 = vadd.f32 0.0, %v2013
      %v2015 = vpop.f32.mrb[0].mxu0
      %2016 = vmatprep.mubr.bf16.mxu0 0
      %2017 = vmatmul.mubr.bf16.gmra.mrb[0].mxu0 %v1919
      %v2018 = vpop.f32.mrb[0].mxu0
      %v2019 = vadd.f32 0.0, %v2018
      %v2020 = vpop.f32.mrb[0].mxu0
      %v2021 = vpop.f32.mrb[0].mxu0
      %v2022 = vadd.f32 0.0, %v2021
      %v2023 = vpop.f32.mrb[0].mxu0
      %2024 = vmatprep.mubr.bf16.mxu0 0
      %2025 = vmatmul.mubr.bf16.gmra.mrb[0].mxu0 %v1922
      %v2026 = vpop.f32.mrb[0].mxu0
      %v2027 = vadd.f32 0.0, %v2026
      %v2028 = vpop.f32.mrb[0].mxu0
      %v2029 = vpop.f32.mrb[0].mxu0
      %v2030 = vadd.f32 0.0, %v2029
      %v2031 = vpop.f32.mrb[0].mxu0
      %2032 = vmatprep.mubr.bf16.mxu0 0
      %2033 = vmatmul.mubr.bf16.gmra.mrb[0].mxu0 %v1925
      %v2034 = vpop.f32.mrb[0].mxu0
      %v2035 = vadd.f32 0.0, %v2034
      %v2036 = vpop.f32.mrb[0].mxu0
      %v2037 = vpop.f32.mrb[0].mxu0
      %v2038 = vadd.f32 0.0, %v2037
      %v2039 = vpop.f32.mrb[0].mxu0
      %2040 = vmatprep.mubr.bf16.mxu0 0
      %2041 = vmatmul.mubr.bf16.gmra.mrb[0].mxu0 %v1928
      %v2042 = vpop.f32.mrb[0].mxu0
      %v2043 = vadd.f32 0.0, %v2042
      %v2044 = vpop.f32.mrb[0].mxu0
      %v2045 = vpop.f32.mrb[0].mxu0
      %v2046 = vadd.f32 0.0, %v2045
      %v2047 = vpop.f32.mrb[0].mxu0
      %2048 = vmatprep.mubr.bf16.mxu0 0
      %2049 = vmatmul.mubr.bf16.gmra.mrb[0].mxu0 %v1931
      %v2050 = vpop.f32.mrb[0].mxu0
      %v2051 = vadd.f32 0.0, %v2050
      %v2052 = vpop.f32.mrb[0].mxu0
      %v2053 = vpop.f32.mrb[0].mxu0
      %v2054 = vadd.f32 0.0, %v2053
      %v2055 = vpop.f32.mrb[0].mxu0
      %2056 = vmatprep.mubr.bf16.mxu0 0
      %2057 = vmatmul.mubr.bf16.gmra.mrb[0].mxu0 %v1934
      %v2058 = vpop.f32.mrb[0].mxu0
      %v2059 = vadd.f32 0.0, %v2058
      %v2060 = vpop.f32.mrb[0].mxu0
      %v2061 = vpop.f32.mrb[0].mxu0
      %v2062 = vadd.f32 0.0, %v2061
      %v2063 = vpop.f32.mrb[0].mxu0
      %2064 = vmatprep.mubr.bf16.mxu0 0
      %2065 = vmatmul.mubr.bf16.gmra.mrb[0].mxu0 %v1937
      %v2066 = vpop.f32.mrb[0].mxu0
      %v2067 = vadd.f32 0.0, %v2066
      %v2068 = vpop.f32.mrb[0].mxu0
      %v2069 = vpop.f32.mrb[0].mxu0
      %v2070 = vadd.f32 0.0, %v2069
      %v2071 = vpop.f32.mrb[0].mxu0
      %2072 = vmatprep.mubr.bf16.mxu0 0
      %2073 = vmatmul.mubr.bf16.gmra.mrb[0].mxu0 %v1940
      %v2074 = vpop.f32.mrb[0].mxu0
      %v2075 = vadd.f32 0.0, %v2074
      %v2076 = vpop.f32.mrb[0].mxu0
      %v2077 = vpop.f32.mrb[0].mxu0
      %v2078 = vadd.f32 0.0, %v2077
      %v2079 = vpop.f32.mrb[0].mxu0
      %2080 = vmatprep.mubr.bf16.mxu0 0
      %2081 = vmatmul.mubr.bf16.gmra.mrb[0].mxu0 %v1943
      %v2082 = vpop.f32.mrb[0].mxu0
      %v2083 = vadd.f32 0.0, %v2082
      %v2084 = vpop.f32.mrb[0].mxu0
      %v2085 = vpop.f32.mrb[0].mxu0
      %v2086 = vadd.f32 0.0, %v2085
      %v2087 = vpop.f32.mrb[0].mxu0
      %2088 = vmatprep.mubr.bf16.mxu0 0
      %2089 = vmatmul.mubr.bf16.gmra.mrb[0].mxu0 %v1946
      %v2090 = vpop.f32.mrb[0].mxu0
      %v2091 = vadd.f32 0.0, %v2090
      %v2092 = vpop.f32.mrb[0].mxu0
      %v2093 = vpop.f32.mrb[0].mxu0
      %v2094 = vadd.f32 0.0, %v2093
      %v2095 = vpop.f32.mrb[0].mxu0
      %2096 = vmatprep.mubr.bf16.mxu0 0
      %2097 = vmatmul.mubr.bf16.gmra.mrb[0].mxu0 %v1949
      %v2098 = vpop.f32.mrb[0].mxu0
      %v2099 = vadd.f32 0.0, %v2098
      %v2100 = vpop.f32.mrb[0].mxu0
      %v2101 = vpop.f32.mrb[0].mxu0
      %v2102 = vadd.f32 0.0, %v2101
      %v2103 = vpop.f32.mrb[0].mxu0
      %2104 = vmatprep.mubr.bf16.mxu0 0
      %2105 = vmatmul.mubr.bf16.gmra.mrb[0].mxu0 %v1952
      %v2106 = vpop.f32.mrb[0].mxu0
      %v2107 = vadd.f32 0.0, %v2106
      %v2108 = vpop.f32.mrb[0].mxu0
      %v2109 = vpop.f32.mrb[0].mxu0
      %v2110 = vadd.f32 0.0, %v2109
      %v2111 = vpop.f32.mrb[0].mxu0
      %2112 = vmatprep.mubr.bf16.mxu0 0
      %2113 = vmatmul.mubr.bf16.gmra.mrb[0].mxu0 %v1955
      %v2114 = vpop.f32.mrb[0].mxu0
      %v2115 = vadd.f32 0.0, %v2114
      %v2116 = vpop.f32.mrb[0].mxu0
      %v2117 = vpop.f32.mrb[0].mxu0
      %v2118 = vadd.f32 0.0, %v2117
      %v2119 = vpop.f32.mrb[0].mxu0
      %2120 = vdwg.mxu0
      %v2121 = vadd.f32 %v1827, %v1995
      %v2122 = vadd.f32 %v1828, %v1998
      %v2123 = vadd.f32 %v1829, %v2003
      %v2124 = vadd.f32 %v1830, %v2006
      %v2125 = vadd.f32 %v1831, %v2011
      %v2126 = vadd.f32 %v1832, %v2014
      %v2127 = vadd.f32 %v1833, %v2019
      %v2128 = vadd.f32 %v1834, %v2022
      %v2129 = vadd.f32 %v1835, %v2027
      %v2130 = vadd.f32 %v1836, %v2030
      %v2131 = vadd.f32 %v1837, %v2035
      %v2132 = vadd.f32 %v1838, %v2038
      %v2133 = vadd.f32 %v1839, %v2043
      %v2134 = vadd.f32 %v1840, %v2046
      %v2135 = vadd.f32 %v1841, %v2051
      %v2136 = vadd.f32 %v1842, %v2054
      %v2137 = vadd.f32 %v1843, %v2059
      %v2138 = vadd.f32 %v1844, %v2062
      %v2139 = vadd.f32 %v1845, %v2067
      %v2140 = vadd.f32 %v1846, %v2070
      %v2141 = vadd.f32 %v1847, %v2075
      %v2142 = vadd.f32 %v1848, %v2078
      %v2143 = vadd.f32 %v1849, %v2083
      %v2144 = vadd.f32 %v1850, %v2086
      %v2145 = vadd.f32 %v1851, %v2091
      %v2146 = vadd.f32 %v1852, %v2094
      %v2147 = vadd.f32 %v1853, %v2099
      %v2148 = vadd.f32 %v1854, %v2102
      %v2149 = vadd.f32 %v1855, %v2107
      %v2150 = vadd.f32 %v1856, %v2110
      %v2151 = vadd.f32 %v1857, %v2115
      %v2152 = vadd.f32 %v1858, %v2118
      %v2153 = vld [vmem:[#allocation2 + $0x21] sm:$0xff]
      %v2154 = vld [vmem:[#allocation2 + $0x29] sm:$0xff]
      %v2155 = vld [vmem:[#allocation2 + $0x31] sm:$0xff]
      %v2156 = vld [vmem:[#allocation2 + $0x39] sm:$0xff]
      %v2157 = vld [vmem:[#allocation2 + $0x41] sm:$0xff]
      %v2158 = vld [vmem:[#allocation2 + $0x49] sm:$0xff]
      %v2159 = vld [vmem:[#allocation2 + $0x51] sm:$0xff]
      %v2160 = vld [vmem:[#allocation2 + $0x59] sm:$0xff]
      %v2161 = vld [vmem:[#allocation2 + $0x61] sm:$0xff]
      %v2162 = vld [vmem:[#allocation2 + $0x69] sm:$0xff]
      %v2163 = vld [vmem:[#allocation2 + $0x71] sm:$0xff]
      %v2164 = vld [vmem:[#allocation2 + $0x79] sm:$0xff]
      %v2165 = vld [vmem:[#allocation2 + $0x81] sm:$0xff]
      %v2166 = vld [vmem:[#allocation2 + $0x89] sm:$0xff]
      %v2167 = vld [vmem:[#allocation2 + $0x91] sm:$0xff]
      %v2168 = vld [vmem:[#allocation2 + $0x99] sm:$0xff]
      %v2169 = vld [vmem:[#allocation2 + $0xa1] sm:$0xff]
      %v2170 = vld [vmem:[#allocation2 + $0xa9] sm:$0xff]
      %v2171 = vld [vmem:[#allocation2 + $0xb1] sm:$0xff]
      %v2172 = vld [vmem:[#allocation2 + $0xb9] sm:$0xff]
      %v2173 = vld [vmem:[#allocation2 + $0xc1] sm:$0xff]
      %v2174 = vld [vmem:[#allocation2 + $0xc9] sm:$0xff]
      %v2175 = vld [vmem:[#allocation2 + $0xd1] sm:$0xff]
      %v2176 = vld [vmem:[#allocation2 + $0xd9] sm:$0xff]
      %v2177 = vld [vmem:[#allocation2 + $0xe1] sm:$0xff]
      %v2178 = vld [vmem:[#allocation2 + $0xe9] sm:$0xff]
      %v2179 = vld [vmem:[#allocation2 + $0xf1] sm:$0xff]
      %v2180 = vld [vmem:[#allocation2 + $0xf9] sm:$0xff]
      %v2181 = vld [vmem:[#allocation2 + $0x101] sm:$0xff]
      %v2182 = vld [vmem:[#allocation2 + $0x109] sm:$0xff]
      %v2183 = vld [vmem:[#allocation2 + $0x111] sm:$0xff]
      %v2184 = vld [vmem:[#allocation2 + $0x119] sm:$0xff]
      %v2185 = vmul.f32 %v2153, %v1113
      %v2186 = vmul.f32 %v2154, %v1117
      %v2187 = vmul.f32 %v2155, %v1121
      %v2188 = vmul.f32 %v2156, %v1125
      %v2189 = vmul.f32 %v2157, %v1129
      %v2190 = vmul.f32 %v2158, %v1133
      %v2191 = vmul.f32 %v2159, %v1137
      %v2192 = vmul.f32 %v2160, %v1141
      %v2193 = vmul.f32 %v2161, %v1145
      %v2194 = vmul.f32 %v2162, %v1149
      %v2195 = vmul.f32 %v2163, %v1153
      %v2196 = vmul.f32 %v2164, %v1157
      %v2197 = vmul.f32 %v2165, %v1161
      %v2198 = vmul.f32 %v2166, %v1165
      %v2199 = vmul.f32 %v2167, %v1169
      %v2200 = vmul.f32 %v2168, %v1173
      %v2201 = vmul.f32 %v2169, %v1177
      %v2202 = vmul.f32 %v2170, %v1181
      %v2203 = vmul.f32 %v2171, %v1185
      %v2204 = vmul.f32 %v2172, %v1189
      %v2205 = vmul.f32 %v2173, %v1193
      %v2206 = vmul.f32 %v2174, %v1197
      %v2207 = vmul.f32 %v2175, %v1201
      %v2208 = vmul.f32 %v2176, %v1205
      %v2209 = vmul.f32 %v2177, %v1209
      %v2210 = vmul.f32 %v2178, %v1213
      %v2211 = vmul.f32 %v2179, %v1217
      %v2212 = vmul.f32 %v2180, %v1221
      %v2213 = vmul.f32 %v2181, %v1225
      %v2214 = vmul.f32 %v2182, %v1229
      %v2215 = vmul.f32 %v2183, %v1233
      %v2216 = vmul.f32 %v2184, %v1237
      %v2217 = vpack.c.bf16 %v2186, %v2185
      %v2218 = vpack.c.bf16 %v2188, %v2187
      %v2219 = vpack.c.bf16 %v2190, %v2189
      %v2220 = vpack.c.bf16 %v2192, %v2191
      %v2221 = vpack.c.bf16 %v2194, %v2193
      %v2222 = vpack.c.bf16 %v2196, %v2195
      %v2223 = vpack.c.bf16 %v2198, %v2197
      %v2224 = vpack.c.bf16 %v2200, %v2199
      %v2225 = vpack.c.bf16 %v2202, %v2201
      %v2226 = vpack.c.bf16 %v2204, %v2203
      %v2227 = vpack.c.bf16 %v2206, %v2205
      %v2228 = vpack.c.bf16 %v2208, %v2207
      %v2229 = vpack.c.bf16 %v2210, %v2209
      %v2230 = vpack.c.bf16 %v2212, %v2211
      %v2231 = vpack.c.bf16 %v2214, %v2213
      %v2232 = vpack.c.bf16 %v2216, %v2215
      %s2233 = scalar_lea.vmem %s1, 10
      %v2234 = vld [vmem:[%s2233] sm:$0x3]
      %v2236 = vsel %vm258, %v2217, 0
      %v2239 = vsel %vm258, %v2218, 0
      %v2242 = vsel %vm258, %v2219, 0
      %v2245 = vsel %vm258, %v2220, 0
      %v2248 = vsel %vm258, %v2221, 0
      %v2251 = vsel %vm258, %v2222, 0
      %v2254 = vsel %vm258, %v2223, 0
      %v2257 = vsel %vm258, %v2224, 0
      %v2260 = vsel %vm258, %v2225, 0
      %v2263 = vsel %vm258, %v2226, 0
      %v2266 = vsel %vm258, %v2227, 0
      %v2269 = vsel %vm258, %v2228, 0
      %v2272 = vsel %vm258, %v2229, 0
      %v2275 = vsel %vm258, %v2230, 0
      %v2278 = vsel %vm258, %v2231, 0
      %v2281 = vsel %vm258, %v2232, 0
      %v2284 = vsel %vm702, %v2234, 0
      %2286 = vmatprep.subr.bf16.mxu0 0
      %2287 = vmatpush1.bf16.msra.mxu0 %v2284
      %2288 = vmatprep.subr.bf16.mxu0 0
      %2289 = vmatpush1.bf16.msra.mxu0 0
      %2290 = vmatprep.subr.bf16.mxu0 0
      %2291 = vmatpush1.bf16.msra.mxu0 0
      %2292 = vmatprep.subr.bf16.mxu0 0
      %2293 = vmatpush1.bf16.msra.mxu0 0
      %2294 = vmatprep.subr.bf16.mxu0 0
      %2295 = vmatpush1.bf16.msra.mxu0 0
      %2296 = vmatprep.subr.bf16.mxu0 0
      %2297 = vmatpush1.bf16.msra.mxu0 0
      %2298 = vmatprep.subr.bf16.mxu0 0
      %2299 = vmatpush1.bf16.msra.mxu0 0
      %2300 = vmatprep.subr.bf16.mxu0 0
      %2301 = vmatpush1.bf16.msra.mxu0 0
      %2302 = vmatprep.subr.bf16.mxu0 0
      %2303 = vmatpush1.bf16.msra.mxu0 0
      %2304 = vmatprep.subr.bf16.mxu0 0
      %2305 = vmatpush1.bf16.msra.mxu0 0
      %2306 = vmatprep.subr.bf16.mxu0 0
      %2307 = vmatpush1.bf16.msra.mxu0 0
      %2308 = vmatprep.subr.bf16.mxu0 0
      %2309 = vmatpush1.bf16.msra.mxu0 0
      %2310 = vmatprep.subr.bf16.mxu0 0
      %2311 = vmatpush1.bf16.msra.mxu0 0
      %2312 = vmatprep.subr.bf16.mxu0 0
      %2313 = vmatpush1.bf16.msra.mxu0 0
      %2314 = vmatprep.subr.bf16.mxu0 0
      %2315 = vmatpush1.bf16.msra.mxu0 0
      %2316 = vmatprep.subr.bf16.mxu0 0
      %2317 = vmatpush1.bf16.msra.mxu0 0
      %2318 = vmatprep.mubr.bf16.mxu0 0
      %2319 = vmatmul.mubr.bf16.gmra.mrb[0].mxu0 %v2236
      %v2320 = vpop.f32.mrb[0].mxu0
      %v2321 = vadd.f32 0.0, %v2320
      %v2322 = vpop.f32.mrb[0].mxu0
      %v2323 = vpop.f32.mrb[0].mxu0
      %v2324 = vadd.f32 0.0, %v2323
      %v2325 = vpop.f32.mrb[0].mxu0
      %2326 = vmatprep.mubr.bf16.mxu0 0
      %2327 = vmatmul.mubr.bf16.gmra.mrb[0].mxu0 %v2239
      %v2328 = vpop.f32.mrb[0].mxu0
      %v2329 = vadd.f32 0.0, %v2328
      %v2330 = vpop.f32.mrb[0].mxu0
      %v2331 = vpop.f32.mrb[0].mxu0
      %v2332 = vadd.f32 0.0, %v2331
      %v2333 = vpop.f32.mrb[0].mxu0
      %2334 = vmatprep.mubr.bf16.mxu0 0
      %2335 = vmatmul.mubr.bf16.gmra.mrb[0].mxu0 %v2242
      %v2336 = vpop.f32.mrb[0].mxu0
      %v2337 = vadd.f32 0.0, %v2336
      %v2338 = vpop.f32.mrb[0].mxu0
      %v2339 = vpop.f32.mrb[0].mxu0
      %v2340 = vadd.f32 0.0, %v2339
      %v2341 = vpop.f32.mrb[0].mxu0
      %2342 = vmatprep.mubr.bf16.mxu0 0
      %2343 = vmatmul.mubr.bf16.gmra.mrb[0].mxu0 %v2245
      %v2344 = vpop.f32.mrb[0].mxu0
      %v2345 = vadd.f32 0.0, %v2344
      %v2346 = vpop.f32.mrb[0].mxu0
      %v2347 = vpop.f32.mrb[0].mxu0
      %v2348 = vadd.f32 0.0, %v2347
      %v2349 = vpop.f32.mrb[0].mxu0
      %2350 = vmatprep.mubr.bf16.mxu0 0
      %2351 = vmatmul.mubr.bf16.gmra.mrb[0].mxu0 %v2248
      %v2352 = vpop.f32.mrb[0].mxu0
      %v2353 = vadd.f32 0.0, %v2352
      %v2354 = vpop.f32.mrb[0].mxu0
      %v2355 = vpop.f32.mrb[0].mxu0
      %v2356 = vadd.f32 0.0, %v2355
      %v2357 = vpop.f32.mrb[0].mxu0
      %2358 = vmatprep.mubr.bf16.mxu0 0
      %2359 = vmatmul.mubr.bf16.gmra.mrb[0].mxu0 %v2251
      %v2360 = vpop.f32.mrb[0].mxu0
      %v2361 = vadd.f32 0.0, %v2360
      %v2362 = vpop.f32.mrb[0].mxu0
      %v2363 = vpop.f32.mrb[0].mxu0
      %v2364 = vadd.f32 0.0, %v2363
      %v2365 = vpop.f32.mrb[0].mxu0
      %2366 = vmatprep.mubr.bf16.mxu0 0
      %2367 = vmatmul.mubr.bf16.gmra.mrb[0].mxu0 %v2254
      %v2368 = vpop.f32.mrb[0].mxu0
      %v2369 = vadd.f32 0.0, %v2368
      %v2370 = vpop.f32.mrb[0].mxu0
      %v2371 = vpop.f32.mrb[0].mxu0
      %v2372 = vadd.f32 0.0, %v2371
      %v2373 = vpop.f32.mrb[0].mxu0
      %2374 = vmatprep.mubr.bf16.mxu0 0
      %2375 = vmatmul.mubr.bf16.gmra.mrb[0].mxu0 %v2257
      %v2376 = vpop.f32.mrb[0].mxu0
      %v2377 = vadd.f32 0.0, %v2376
      %v2378 = vpop.f32.mrb[0].mxu0
      %v2379 = vpop.f32.mrb[0].mxu0
      %v2380 = vadd.f32 0.0, %v2379
      %v2381 = vpop.f32.mrb[0].mxu0
      %2382 = vmatprep.mubr.bf16.mxu0 0
      %2383 = vmatmul.mubr.bf16.gmra.mrb[0].mxu0 %v2260
      %v2384 = vpop.f32.mrb[0].mxu0
      %v2385 = vadd.f32 0.0, %v2384
      %v2386 = vpop.f32.mrb[0].mxu0
      %v2387 = vpop.f32.mrb[0].mxu0
      %v2388 = vadd.f32 0.0, %v2387
      %v2389 = vpop.f32.mrb[0].mxu0
      %2390 = vmatprep.mubr.bf16.mxu0 0
      %2391 = vmatmul.mubr.bf16.gmra.mrb[0].mxu0 %v2263
      %v2392 = vpop.f32.mrb[0].mxu0
      %v2393 = vadd.f32 0.0, %v2392
      %v2394 = vpop.f32.mrb[0].mxu0
      %v2395 = vpop.f32.mrb[0].mxu0
      %v2396 = vadd.f32 0.0, %v2395
      %v2397 = vpop.f32.mrb[0].mxu0
      %2398 = vmatprep.mubr.bf16.mxu0 0
      %2399 = vmatmul.mubr.bf16.gmra.mrb[0].mxu0 %v2266
      %v2400 = vpop.f32.mrb[0].mxu0
      %v2401 = vadd.f32 0.0, %v2400
      %v2402 = vpop.f32.mrb[0].mxu0
      %v2403 = vpop.f32.mrb[0].mxu0
      %v2404 = vadd.f32 0.0, %v2403
      %v2405 = vpop.f32.mrb[0].mxu0
      %2406 = vmatprep.mubr.bf16.mxu0 0
      %2407 = vmatmul.mubr.bf16.gmra.mrb[0].mxu0 %v2269
      %v2408 = vpop.f32.mrb[0].mxu0
      %v2409 = vadd.f32 0.0, %v2408
      %v2410 = vpop.f32.mrb[0].mxu0
      %v2411 = vpop.f32.mrb[0].mxu0
      %v2412 = vadd.f32 0.0, %v2411
      %v2413 = vpop.f32.mrb[0].mxu0
      %2414 = vmatprep.mubr.bf16.mxu0 0
      %2415 = vmatmul.mubr.bf16.gmra.mrb[0].mxu0 %v2272
      %v2416 = vpop.f32.mrb[0].mxu0
      %v2417 = vadd.f32 0.0, %v2416
      %v2418 = vpop.f32.mrb[0].mxu0
      %v2419 = vpop.f32.mrb[0].mxu0
      %v2420 = vadd.f32 0.0, %v2419
      %v2421 = vpop.f32.mrb[0].mxu0
      %2422 = vmatprep.mubr.bf16.mxu0 0
      %2423 = vmatmul.mubr.bf16.gmra.mrb[0].mxu0 %v2275
      %v2424 = vpop.f32.mrb[0].mxu0
      %v2425 = vadd.f32 0.0, %v2424
      %v2426 = vpop.f32.mrb[0].mxu0
      %v2427 = vpop.f32.mrb[0].mxu0
      %v2428 = vadd.f32 0.0, %v2427
      %v2429 = vpop.f32.mrb[0].mxu0
      %2430 = vmatprep.mubr.bf16.mxu0 0
      %2431 = vmatmul.mubr.bf16.gmra.mrb[0].mxu0 %v2278
      %v2432 = vpop.f32.mrb[0].mxu0
      %v2433 = vadd.f32 0.0, %v2432
      %v2434 = vpop.f32.mrb[0].mxu0
      %v2435 = vpop.f32.mrb[0].mxu0
      %v2436 = vadd.f32 0.0, %v2435
      %v2437 = vpop.f32.mrb[0].mxu0
      %2438 = vmatprep.mubr.bf16.mxu0 0
      %2439 = vmatmul.mubr.bf16.gmra.mrb[0].mxu0 %v2281
      %v2440 = vpop.f32.mrb[0].mxu0
      %v2441 = vadd.f32 0.0, %v2440
      %v2442 = vpop.f32.mrb[0].mxu0
      %v2443 = vpop.f32.mrb[0].mxu0
      %v2444 = vadd.f32 0.0, %v2443
      %v2445 = vpop.f32.mrb[0].mxu0
      %2446 = vdwg.mxu0
      %v2447 = vadd.f32 %v2121, %v2321
      %v2448 = vadd.f32 %v2122, %v2324
      %v2449 = vadd.f32 %v2123, %v2329
      %v2450 = vadd.f32 %v2124, %v2332
      %v2451 = vadd.f32 %v2125, %v2337
      %v2452 = vadd.f32 %v2126, %v2340
      %v2453 = vadd.f32 %v2127, %v2345
      %v2454 = vadd.f32 %v2128, %v2348
      %v2455 = vadd.f32 %v2129, %v2353
      %v2456 = vadd.f32 %v2130, %v2356
      %v2457 = vadd.f32 %v2131, %v2361
      %v2458 = vadd.f32 %v2132, %v2364
      %v2459 = vadd.f32 %v2133, %v2369
      %v2460 = vadd.f32 %v2134, %v2372
      %v2461 = vadd.f32 %v2135, %v2377
      %v2462 = vadd.f32 %v2136, %v2380
      %v2463 = vadd.f32 %v2137, %v2385
      %v2464 = vadd.f32 %v2138, %v2388
      %v2465 = vadd.f32 %v2139, %v2393
      %v2466 = vadd.f32 %v2140, %v2396
      %v2467 = vadd.f32 %v2141, %v2401
      %v2468 = vadd.f32 %v2142, %v2404
      %v2469 = vadd.f32 %v2143, %v2409
      %v2470 = vadd.f32 %v2144, %v2412
      %v2471 = vadd.f32 %v2145, %v2417
      %v2472 = vadd.f32 %v2146, %v2420
      %v2473 = vadd.f32 %v2147, %v2425
      %v2474 = vadd.f32 %v2148, %v2428
      %v2475 = vadd.f32 %v2149, %v2433
      %v2476 = vadd.f32 %v2150, %v2436
      %v2477 = vadd.f32 %v2151, %v2441
      %v2478 = vadd.f32 %v2152, %v2444
      %v2479 = vld [vmem:[#allocation2 + $0x2f] sm:$0xff]
      %v2480 = vld [vmem:[#allocation2 + $0x37] sm:$0xff]
      %v2481 = vld [vmem:[#allocation2 + $0x3f] sm:$0xff]
      %v2482 = vld [vmem:[#allocation2 + $0x47] sm:$0xff]
      %v2483 = vld [vmem:[#allocation2 + $0x4f] sm:$0xff]
      %v2484 = vld [vmem:[#allocation2 + $0x57] sm:$0xff]
      %v2485 = vld [vmem:[#allocation2 + $0x5f] sm:$0xff]
      %v2486 = vld [vmem:[#allocation2 + $0x67] sm:$0xff]
      %v2487 = vld [vmem:[#allocation2 + $0x6f] sm:$0xff]
      %v2488 = vld [vmem:[#allocation2 + $0x77] sm:$0xff]
      %v2489 = vld [vmem:[#allocation2 + $0x7f] sm:$0xff]
      %v2490 = vld [vmem:[#allocation2 + $0x87] sm:$0xff]
      %v2491 = vld [vmem:[#allocation2 + $0x8f] sm:$0xff]
      %v2492 = vld [vmem:[#allocation2 + $0x97] sm:$0xff]
      %v2493 = vld [vmem:[#allocation2 + $0x9f] sm:$0xff]
      %v2494 = vld [vmem:[#allocation2 + $0xa7] sm:$0xff]
      %v2495 = vld [vmem:[#allocation2 + $0xaf] sm:$0xff]
      %v2496 = vld [vmem:[#allocation2 + $0xb7] sm:$0xff]
      %v2497 = vld [vmem:[#allocation2 + $0xbf] sm:$0xff]
      %v2498 = vld [vmem:[#allocation2 + $0xc7] sm:$0xff]
      %v2499 = vld [vmem:[#allocation2 + $0xcf] sm:$0xff]
      %v2500 = vld [vmem:[#allocation2 + $0xd7] sm:$0xff]
      %v2501 = vld [vmem:[#allocation2 + $0xdf] sm:$0xff]
      %v2502 = vld [vmem:[#allocation2 + $0xe7] sm:$0xff]
      %v2503 = vld [vmem:[#allocation2 + $0xef] sm:$0xff]
      %v2504 = vld [vmem:[#allocation2 + $0xf7] sm:$0xff]
      %v2505 = vld [vmem:[#allocation2 + $0xff] sm:$0xff]
      %v2506 = vld [vmem:[#allocation2 + $0x107] sm:$0xff]
      %v2507 = vld [vmem:[#allocation2 + $0x10f] sm:$0xff]
      %v2508 = vld [vmem:[#allocation2 + $0x117] sm:$0xff]
      %v2509 = vld [vmem:[#allocation2 + $0x11f] sm:$0xff]
      %v2510 = vld [vmem:[#allocation2 + $0x127] sm:$0xff]
      %v2511 = vmul.f32 %v2479, %v398
      %v2512 = vmul.f32 %v2480, %v403
      %v2513 = vmul.f32 %v2481, %v408
      %v2514 = vmul.f32 %v2482, %v413
      %v2515 = vmul.f32 %v2483, %v418
      %v2516 = vmul.f32 %v2484, %v423
      %v2517 = vmul.f32 %v2485, %v428
      %v2518 = vmul.f32 %v2486, %v433
      %v2519 = vmul.f32 %v2487, %v438
      %v2520 = vmul.f32 %v2488, %v443
      %v2521 = vmul.f32 %v2489, %v448
      %v2522 = vmul.f32 %v2490, %v453
      %v2523 = vmul.f32 %v2491, %v458
      %v2524 = vmul.f32 %v2492, %v463
      %v2525 = vmul.f32 %v2493, %v468
      %v2526 = vmul.f32 %v2494, %v473
      %v2527 = vmul.f32 %v2495, %v478
      %v2528 = vmul.f32 %v2496, %v483
      %v2529 = vmul.f32 %v2497, %v488
      %v2530 = vmul.f32 %v2498, %v493
      %v2531 = vmul.f32 %v2499, %v498
      %v2532 = vmul.f32 %v2500, %v503
      %v2533 = vmul.f32 %v2501, %v508
      %v2534 = vmul.f32 %v2502, %v513
      %v2535 = vmul.f32 %v2503, %v518
      %v2536 = vmul.f32 %v2504, %v523
      %v2537 = vmul.f32 %v2505, %v528
      %v2538 = vmul.f32 %v2506, %v533
      %v2539 = vmul.f32 %v2507, %v538
      %v2540 = vmul.f32 %v2508, %v543
      %v2541 = vmul.f32 %v2509, %v548
      %v2542 = vmul.f32 %v2510, %v553
      %v2543 = vpack.c.bf16 %v2512, %v2511
      %v2544 = vpack.c.bf16 %v2514, %v2513
      %v2545 = vpack.c.bf16 %v2516, %v2515
      %v2546 = vpack.c.bf16 %v2518, %v2517
      %v2547 = vpack.c.bf16 %v2520, %v2519
      %v2548 = vpack.c.bf16 %v2522, %v2521
      %v2549 = vpack.c.bf16 %v2524, %v2523
      %v2550 = vpack.c.bf16 %v2526, %v2525
      %v2551 = vpack.c.bf16 %v2528, %v2527
      %v2552 = vpack.c.bf16 %v2530, %v2529
      %v2553 = vpack.c.bf16 %v2532, %v2531
      %v2554 = vpack.c.bf16 %v2534, %v2533
      %v2555 = vpack.c.bf16 %v2536, %v2535
      %v2556 = vpack.c.bf16 %v2538, %v2537
      %v2557 = vpack.c.bf16 %v2540, %v2539
      %v2558 = vpack.c.bf16 %v2542, %v2541
      %s2559 = scalar_lea.vmem %s1, 12
      %v2560 = vld [vmem:[%s2559] sm:$0x3]
      %v2562 = vsel %vm258, %v2543, 0
      %v2565 = vsel %vm258, %v2544, 0
      %v2568 = vsel %vm258, %v2545, 0
      %v2571 = vsel %vm258, %v2546, 0
      %v2574 = vsel %vm258, %v2547, 0
      %v2577 = vsel %vm258, %v2548, 0
      %v2580 = vsel %vm258, %v2549, 0
      %v2583 = vsel %vm258, %v2550, 0
      %v2586 = vsel %vm258, %v2551, 0
      %v2589 = vsel %vm258, %v2552, 0
      %v2592 = vsel %vm258, %v2553, 0
      %v2595 = vsel %vm258, %v2554, 0
      %v2598 = vsel %vm258, %v2555, 0
      %v2601 = vsel %vm258, %v2556, 0
      %v2604 = vsel %vm258, %v2557, 0
      %v2607 = vsel %vm258, %v2558, 0
      %v2610 = vsel %vm702, %v2560, 0
      %2612 = vmatprep.subr.bf16.mxu0 0
      %2613 = vmatpush1.bf16.msra.mxu0 %v2610
      %2614 = vmatprep.subr.bf16.mxu0 0
      %2615 = vmatpush1.bf16.msra.mxu0 0
      %2616 = vmatprep.subr.bf16.mxu0 0
      %2617 = vmatpush1.bf16.msra.mxu0 0
      %2618 = vmatprep.subr.bf16.mxu0 0
      %2619 = vmatpush1.bf16.msra.mxu0 0
      %2620 = vmatprep.subr.bf16.mxu0 0
      %2621 = vmatpush1.bf16.msra.mxu0 0
      %2622 = vmatprep.subr.bf16.mxu0 0
      %2623 = vmatpush1.bf16.msra.mxu0 0
      %2624 = vmatprep.subr.bf16.mxu0 0
      %2625 = vmatpush1.bf16.msra.mxu0 0
      %2626 = vmatprep.subr.bf16.mxu0 0
      %2627 = vmatpush1.bf16.msra.mxu0 0
      %2628 = vmatprep.subr.bf16.mxu0 0
      %2629 = vmatpush1.bf16.msra.mxu0 0
      %2630 = vmatprep.subr.bf16.mxu0 0
      %2631 = vmatpush1.bf16.msra.mxu0 0
      %2632 = vmatprep.subr.bf16.mxu0 0
      %2633 = vmatpush1.bf16.msra.mxu0 0
      %2634 = vmatprep.subr.bf16.mxu0 0
      %2635 = vmatpush1.bf16.msra.mxu0 0
      %2636 = vmatprep.subr.bf16.mxu0 0
      %2637 = vmatpush1.bf16.msra.mxu0 0
      %2638 = vmatprep.subr.bf16.mxu0 0
      %2639 = vmatpush1.bf16.msra.mxu0 0
      %2640 = vmatprep.subr.bf16.mxu0 0
      %2641 = vmatpush1.bf16.msra.mxu0 0
      %2642 = vmatprep.subr.bf16.mxu0 0
      %2643 = vmatpush1.bf16.msra.mxu0 0
      %2644 = vmatprep.mubr.bf16.mxu0 0
      %2645 = vmatmul.mubr.bf16.gmra.mrb[0].mxu0 %v2562
      %v2646 = vpop.f32.mrb[0].mxu0
      %v2647 = vadd.f32 0.0, %v2646
      %v2648 = vpop.f32.mrb[0].mxu0
      %v2649 = vpop.f32.mrb[0].mxu0
      %v2650 = vadd.f32 0.0, %v2649
      %v2651 = vpop.f32.mrb[0].mxu0
      %2652 = vmatprep.mubr.bf16.mxu0 0
      %2653 = vmatmul.mubr.bf16.gmra.mrb[0].mxu0 %v2565
      %v2654 = vpop.f32.mrb[0].mxu0
      %v2655 = vadd.f32 0.0, %v2654
      %v2656 = vpop.f32.mrb[0].mxu0
      %v2657 = vpop.f32.mrb[0].mxu0
      %v2658 = vadd.f32 0.0, %v2657
      %v2659 = vpop.f32.mrb[0].mxu0
      %2660 = vmatprep.mubr.bf16.mxu0 0
      %2661 = vmatmul.mubr.bf16.gmra.mrb[0].mxu0 %v2568
      %v2662 = vpop.f32.mrb[0].mxu0
      %v2663 = vadd.f32 0.0, %v2662
      %v2664 = vpop.f32.mrb[0].mxu0
      %v2665 = vpop.f32.mrb[0].mxu0
      %v2666 = vadd.f32 0.0, %v2665
      %v2667 = vpop.f32.mrb[0].mxu0
      %2668 = vmatprep.mubr.bf16.mxu0 0
      %2669 = vmatmul.mubr.bf16.gmra.mrb[0].mxu0 %v2571
      %v2670 = vpop.f32.mrb[0].mxu0
      %v2671 = vadd.f32 0.0, %v2670
      %v2672 = vpop.f32.mrb[0].mxu0
      %v2673 = vpop.f32.mrb[0].mxu0
      %v2674 = vadd.f32 0.0, %v2673
      %v2675 = vpop.f32.mrb[0].mxu0
      %2676 = vmatprep.mubr.bf16.mxu0 0
      %2677 = vmatmul.mubr.bf16.gmra.mrb[0].mxu0 %v2574
      %v2678 = vpop.f32.mrb[0].mxu0
      %v2679 = vadd.f32 0.0, %v2678
      %v2680 = vpop.f32.mrb[0].mxu0
      %v2681 = vpop.f32.mrb[0].mxu0
      %v2682 = vadd.f32 0.0, %v2681
      %v2683 = vpop.f32.mrb[0].mxu0
      %2684 = vmatprep.mubr.bf16.mxu0 0
      %2685 = vmatmul.mubr.bf16.gmra.mrb[0].mxu0 %v2577
      %v2686 = vpop.f32.mrb[0].mxu0
      %v2687 = vadd.f32 0.0, %v2686
      %v2688 = vpop.f32.mrb[0].mxu0
      %v2689 = vpop.f32.mrb[0].mxu0
      %v2690 = vadd.f32 0.0, %v2689
      %v2691 = vpop.f32.mrb[0].mxu0
      %2692 = vmatprep.mubr.bf16.mxu0 0
      %2693 = vmatmul.mubr.bf16.gmra.mrb[0].mxu0 %v2580
      %v2694 = vpop.f32.mrb[0].mxu0
      %v2695 = vadd.f32 0.0, %v2694
      %v2696 = vpop.f32.mrb[0].mxu0
      %v2697 = vpop.f32.mrb[0].mxu0
      %v2698 = vadd.f32 0.0, %v2697
      %v2699 = vpop.f32.mrb[0].mxu0
      %2700 = vmatprep.mubr.bf16.mxu0 0
      %2701 = vmatmul.mubr.bf16.gmra.mrb[0].mxu0 %v2583
      %v2702 = vpop.f32.mrb[0].mxu0
      %v2703 = vadd.f32 0.0, %v2702
      %v2704 = vpop.f32.mrb[0].mxu0
      %v2705 = vpop.f32.mrb[0].mxu0
      %v2706 = vadd.f32 0.0, %v2705
      %v2707 = vpop.f32.mrb[0].mxu0
      %2708 = vmatprep.mubr.bf16.mxu0 0
      %2709 = vmatmul.mubr.bf16.gmra.mrb[0].mxu0 %v2586
      %v2710 = vpop.f32.mrb[0].mxu0
      %v2711 = vadd.f32 0.0, %v2710
      %v2712 = vpop.f32.mrb[0].mxu0
      %v2713 = vpop.f32.mrb[0].mxu0
      %v2714 = vadd.f32 0.0, %v2713
      %v2715 = vpop.f32.mrb[0].mxu0
      %2716 = vmatprep.mubr.bf16.mxu0 0
      %2717 = vmatmul.mubr.bf16.gmra.mrb[0].mxu0 %v2589
      %v2718 = vpop.f32.mrb[0].mxu0
      %v2719 = vadd.f32 0.0, %v2718
      %v2720 = vpop.f32.mrb[0].mxu0
      %v2721 = vpop.f32.mrb[0].mxu0
      %v2722 = vadd.f32 0.0, %v2721
      %v2723 = vpop.f32.mrb[0].mxu0
      %2724 = vmatprep.mubr.bf16.mxu0 0
      %2725 = vmatmul.mubr.bf16.gmra.mrb[0].mxu0 %v2592
      %v2726 = vpop.f32.mrb[0].mxu0
      %v2727 = vadd.f32 0.0, %v2726
      %v2728 = vpop.f32.mrb[0].mxu0
      %v2729 = vpop.f32.mrb[0].mxu0
      %v2730 = vadd.f32 0.0, %v2729
      %v2731 = vpop.f32.mrb[0].mxu0
      %2732 = vmatprep.mubr.bf16.mxu0 0
      %2733 = vmatmul.mubr.bf16.gmra.mrb[0].mxu0 %v2595
      %v2734 = vpop.f32.mrb[0].mxu0
      %v2735 = vadd.f32 0.0, %v2734
      %v2736 = vpop.f32.mrb[0].mxu0
      %v2737 = vpop.f32.mrb[0].mxu0
      %v2738 = vadd.f32 0.0, %v2737
      %v2739 = vpop.f32.mrb[0].mxu0
      %2740 = vmatprep.mubr.bf16.mxu0 0
      %2741 = vmatmul.mubr.bf16.gmra.mrb[0].mxu0 %v2598
      %v2742 = vpop.f32.mrb[0].mxu0
      %v2743 = vadd.f32 0.0, %v2742
      %v2744 = vpop.f32.mrb[0].mxu0
      %v2745 = vpop.f32.mrb[0].mxu0
      %v2746 = vadd.f32 0.0, %v2745
      %v2747 = vpop.f32.mrb[0].mxu0
      %2748 = vmatprep.mubr.bf16.mxu0 0
      %2749 = vmatmul.mubr.bf16.gmra.mrb[0].mxu0 %v2601
      %v2750 = vpop.f32.mrb[0].mxu0
      %v2751 = vadd.f32 0.0, %v2750
      %v2752 = vpop.f32.mrb[0].mxu0
      %v2753 = vpop.f32.mrb[0].mxu0
      %v2754 = vadd.f32 0.0, %v2753
      %v2755 = vpop.f32.mrb[0].mxu0
      %2756 = vmatprep.mubr.bf16.mxu0 0
      %2757 = vmatmul.mubr.bf16.gmra.mrb[0].mxu0 %v2604
      %v2758 = vpop.f32.mrb[0].mxu0
      %v2759 = vadd.f32 0.0, %v2758
      %v2760 = vpop.f32.mrb[0].mxu0
      %v2761 = vpop.f32.mrb[0].mxu0
      %v2762 = vadd.f32 0.0, %v2761
      %v2763 = vpop.f32.mrb[0].mxu0
      %2764 = vmatprep.mubr.bf16.mxu0 0
      %2765 = vmatmul.mubr.bf16.gmra.mrb[0].mxu0 %v2607
      %v2766 = vpop.f32.mrb[0].mxu0
      %v2767 = vadd.f32 0.0, %v2766
      %v2768 = vpop.f32.mrb[0].mxu0
      %v2769 = vpop.f32.mrb[0].mxu0
      %v2770 = vadd.f32 0.0, %v2769
      %v2771 = vpop.f32.mrb[0].mxu0
      %2772 = vdwg.mxu0
      %v2773 = vadd.f32 %v2447, %v2647
      %v2774 = vadd.f32 %v2448, %v2650
      %v2775 = vadd.f32 %v2449, %v2655
      %v2776 = vadd.f32 %v2450, %v2658
      %v2777 = vadd.f32 %v2451, %v2663
      %v2778 = vadd.f32 %v2452, %v2666
      %v2779 = vadd.f32 %v2453, %v2671
      %v2780 = vadd.f32 %v2454, %v2674
      %v2781 = vadd.f32 %v2455, %v2679
      %v2782 = vadd.f32 %v2456, %v2682
      %v2783 = vadd.f32 %v2457, %v2687
      %v2784 = vadd.f32 %v2458, %v2690
      %v2785 = vadd.f32 %v2459, %v2695
      %v2786 = vadd.f32 %v2460, %v2698
      %v2787 = vadd.f32 %v2461, %v2703
      %v2788 = vadd.f32 %v2462, %v2706
      %v2789 = vadd.f32 %v2463, %v2711
      %v2790 = vadd.f32 %v2464, %v2714
      %v2791 = vadd.f32 %v2465, %v2719
      %v2792 = vadd.f32 %v2466, %v2722
      %v2793 = vadd.f32 %v2467, %v2727
      %v2794 = vadd.f32 %v2468, %v2730
      %v2795 = vadd.f32 %v2469, %v2735
      %v2796 = vadd.f32 %v2470, %v2738
      %v2797 = vadd.f32 %v2471, %v2743
      %v2798 = vadd.f32 %v2472, %v2746
      %v2799 = vadd.f32 %v2473, %v2751
      %v2800 = vadd.f32 %v2474, %v2754
      %v2801 = vadd.f32 %v2475, %v2759
      %v2802 = vadd.f32 %v2476, %v2762
      %v2803 = vadd.f32 %v2477, %v2767
      %v2804 = vadd.f32 %v2478, %v2770
      %v2805 = vld [vmem:[#allocation2 + $0x30] sm:$0xff]
      %v2806 = vld [vmem:[#allocation2 + $0x38] sm:$0xff]
      %v2807 = vld [vmem:[#allocation2 + $0x40] sm:$0xff]
      %v2808 = vld [vmem:[#allocation2 + $0x48] sm:$0xff]
      %v2809 = vld [vmem:[#allocation2 + $0x50] sm:$0xff]
      %v2810 = vld [vmem:[#allocation2 + $0x58] sm:$0xff]
      %v2811 = vld [vmem:[#allocation2 + $0x60] sm:$0xff]
      %v2812 = vld [vmem:[#allocation2 + $0x68] sm:$0xff]
      %v2813 = vld [vmem:[#allocation2 + $0x70] sm:$0xff]
      %v2814 = vld [vmem:[#allocation2 + $0x78] sm:$0xff]
      %v2815 = vld [vmem:[#allocation2 + $0x80] sm:$0xff]
      %v2816 = vld [vmem:[#allocation2 + $0x88] sm:$0xff]
      %v2817 = vld [vmem:[#allocation2 + $0x90] sm:$0xff]
      %v2818 = vld [vmem:[#allocation2 + $0x98] sm:$0xff]
      %v2819 = vld [vmem:[#allocation2 + $0xa0] sm:$0xff]
      %v2820 = vld [vmem:[#allocation2 + $0xa8] sm:$0xff]
      %v2821 = vld [vmem:[#allocation2 + $0xb0] sm:$0xff]
      %v2822 = vld [vmem:[#allocation2 + $0xb8] sm:$0xff]
      %v2823 = vld [vmem:[#allocation2 + $0xc0] sm:$0xff]
      %v2824 = vld [vmem:[#allocation2 + $0xc8] sm:$0xff]
      %v2825 = vld [vmem:[#allocation2 + $0xd0] sm:$0xff]
      %v2826 = vld [vmem:[#allocation2 + $0xd8] sm:$0xff]
      %v2827 = vld [vmem:[#allocation2 + $0xe0] sm:$0xff]
      %v2828 = vld [vmem:[#allocation2 + $0xe8] sm:$0xff]
      %v2829 = vld [vmem:[#allocation2 + $0xf0] sm:$0xff]
      %v2830 = vld [vmem:[#allocation2 + $0xf8] sm:$0xff]
      %v2831 = vld [vmem:[#allocation2 + $0x100] sm:$0xff]
      %v2832 = vld [vmem:[#allocation2 + $0x108] sm:$0xff]
      %v2833 = vld [vmem:[#allocation2 + $0x110] sm:$0xff]
      %v2834 = vld [vmem:[#allocation2 + $0x118] sm:$0xff]
      %v2835 = vld [vmem:[#allocation2 + $0x120] sm:$0xff]
      %v2836 = vld [vmem:[#allocation2 + $0x128] sm:$0xff]
      %v2837 = vpack.c.bf16 %v2806, %v2805
      %v2838 = vpack.c.bf16 %v2808, %v2807
      %v2839 = vpack.c.bf16 %v2810, %v2809
      %v2840 = vpack.c.bf16 %v2812, %v2811
      %v2841 = vpack.c.bf16 %v2814, %v2813
      %v2842 = vpack.c.bf16 %v2816, %v2815
      %v2843 = vpack.c.bf16 %v2818, %v2817
      %v2844 = vpack.c.bf16 %v2820, %v2819
      %v2845 = vpack.c.bf16 %v2822, %v2821
      %v2846 = vpack.c.bf16 %v2824, %v2823
      %v2847 = vpack.c.bf16 %v2826, %v2825
      %v2848 = vpack.c.bf16 %v2828, %v2827
      %v2849 = vpack.c.bf16 %v2830, %v2829
      %v2850 = vpack.c.bf16 %v2832, %v2831
      %v2851 = vpack.c.bf16 %v2834, %v2833
      %v2852 = vpack.c.bf16 %v2836, %v2835
      %s2853 = scalar_lea.vmem %s1, 14
      %v2854 = vld [vmem:[%s2853] sm:$0x3]
      %v2856 = vsel %vm258, %v2837, 0
      %v2859 = vsel %vm258, %v2838, 0
      %v2862 = vsel %vm258, %v2839, 0
      %v2865 = vsel %vm258, %v2840, 0
      %v2868 = vsel %vm258, %v2841, 0
      %v2871 = vsel %vm258, %v2842, 0
      %v2874 = vsel %vm258, %v2843, 0
      %v2877 = vsel %vm258, %v2844, 0
      %v2880 = vsel %vm258, %v2845, 0
      %v2883 = vsel %vm258, %v2846, 0
      %v2886 = vsel %vm258, %v2847, 0
      %v2889 = vsel %vm258, %v2848, 0
      %v2892 = vsel %vm258, %v2849, 0
      %v2895 = vsel %vm258, %v2850, 0
      %v2898 = vsel %vm258, %v2851, 0
      %v2901 = vsel %vm258, %v2852, 0
      %v2904 = vsel %vm702, %v2854, 0
      %2906 = vmatprep.subr.bf16.mxu0 0
      %2907 = vmatpush1.bf16.msra.mxu0 %v2904
      %2908 = vmatprep.subr.bf16.mxu0 0
      %2909 = vmatpush1.bf16.msra.mxu0 0
      %2910 = vmatprep.subr.bf16.mxu0 0
      %2911 = vmatpush1.bf16.msra.mxu0 0
      %2912 = vmatprep.subr.bf16.mxu0 0
      %2913 = vmatpush1.bf16.msra.mxu0 0
      %2914 = vmatprep.subr.bf16.mxu0 0
      %2915 = vmatpush1.bf16.msra.mxu0 0
      %2916 = vmatprep.subr.bf16.mxu0 0
      %2917 = vmatpush1.bf16.msra.mxu0 0
      %2918 = vmatprep.subr.bf16.mxu0 0
      %2919 = vmatpush1.bf16.msra.mxu0 0
      %2920 = vmatprep.subr.bf16.mxu0 0
      %2921 = vmatpush1.bf16.msra.mxu0 0
      %2922 = vmatprep.subr.bf16.mxu0 0
      %2923 = vmatpush1.bf16.msra.mxu0 0
      %2924 = vmatprep.subr.bf16.mxu0 0
      %2925 = vmatpush1.bf16.msra.mxu0 0
      %2926 = vmatprep.subr.bf16.mxu0 0
      %2927 = vmatpush1.bf16.msra.mxu0 0
      %2928 = vmatprep.subr.bf16.mxu0 0
      %2929 = vmatpush1.bf16.msra.mxu0 0
      %2930 = vmatprep.subr.bf16.mxu0 0
      %2931 = vmatpush1.bf16.msra.mxu0 0
      %2932 = vmatprep.subr.bf16.mxu0 0
      %2933 = vmatpush1.bf16.msra.mxu0 0
      %2934 = vmatprep.subr.bf16.mxu0 0
      %2935 = vmatpush1.bf16.msra.mxu0 0
      %2936 = vmatprep.subr.bf16.mxu0 0
      %2937 = vmatpush1.bf16.msra.mxu0 0
      %2938 = vmatprep.mubr.bf16.mxu0 0
      %2939 = vmatmul.mubr.bf16.gmra.mrb[0].mxu0 %v2856
      %v2940 = vpop.f32.mrb[0].mxu0
      %v2941 = vadd.f32 0.0, %v2940
      %v2942 = vpop.f32.mrb[0].mxu0
      %v2943 = vpop.f32.mrb[0].mxu0
      %v2944 = vadd.f32 0.0, %v2943
      %v2945 = vpop.f32.mrb[0].mxu0
      %2946 = vmatprep.mubr.bf16.mxu0 0
      %2947 = vmatmul.mubr.bf16.gmra.mrb[0].mxu0 %v2859
      %v2948 = vpop.f32.mrb[0].mxu0
      %v2949 = vadd.f32 0.0, %v2948
      %v2950 = vpop.f32.mrb[0].mxu0
      %v2951 = vpop.f32.mrb[0].mxu0
      %v2952 = vadd.f32 0.0, %v2951
      %v2953 = vpop.f32.mrb[0].mxu0
      %2954 = vmatprep.mubr.bf16.mxu0 0
      %2955 = vmatmul.mubr.bf16.gmra.mrb[0].mxu0 %v2862
      %v2956 = vpop.f32.mrb[0].mxu0
      %v2957 = vadd.f32 0.0, %v2956
      %v2958 = vpop.f32.mrb[0].mxu0
      %v2959 = vpop.f32.mrb[0].mxu0
      %v2960 = vadd.f32 0.0, %v2959
      %v2961 = vpop.f32.mrb[0].mxu0
      %2962 = vmatprep.mubr.bf16.mxu0 0
      %2963 = vmatmul.mubr.bf16.gmra.mrb[0].mxu0 %v2865
      %v2964 = vpop.f32.mrb[0].mxu0
      %v2965 = vadd.f32 0.0, %v2964
      %v2966 = vpop.f32.mrb[0].mxu0
      %v2967 = vpop.f32.mrb[0].mxu0
      %v2968 = vadd.f32 0.0, %v2967
      %v2969 = vpop.f32.mrb[0].mxu0
      %2970 = vmatprep.mubr.bf16.mxu0 0
      %2971 = vmatmul.mubr.bf16.gmra.mrb[0].mxu0 %v2868
      %v2972 = vpop.f32.mrb[0].mxu0
      %v2973 = vadd.f32 0.0, %v2972
      %v2974 = vpop.f32.mrb[0].mxu0
      %v2975 = vpop.f32.mrb[0].mxu0
      %v2976 = vadd.f32 0.0, %v2975
      %v2977 = vpop.f32.mrb[0].mxu0
      %2978 = vmatprep.mubr.bf16.mxu0 0
      %2979 = vmatmul.mubr.bf16.gmra.mrb[0].mxu0 %v2871
      %v2980 = vpop.f32.mrb[0].mxu0
      %v2981 = vadd.f32 0.0, %v2980
      %v2982 = vpop.f32.mrb[0].mxu0
      %v2983 = vpop.f32.mrb[0].mxu0
      %v2984 = vadd.f32 0.0, %v2983
      %v2985 = vpop.f32.mrb[0].mxu0
      %2986 = vmatprep.mubr.bf16.mxu0 0
      %2987 = vmatmul.mubr.bf16.gmra.mrb[0].mxu0 %v2874
      %v2988 = vpop.f32.mrb[0].mxu0
      %v2989 = vadd.f32 0.0, %v2988
      %v2990 = vpop.f32.mrb[0].mxu0
      %v2991 = vpop.f32.mrb[0].mxu0
      %v2992 = vadd.f32 0.0, %v2991
      %v2993 = vpop.f32.mrb[0].mxu0
      %2994 = vmatprep.mubr.bf16.mxu0 0
      %2995 = vmatmul.mubr.bf16.gmra.mrb[0].mxu0 %v2877
      %v2996 = vpop.f32.mrb[0].mxu0
      %v2997 = vadd.f32 0.0, %v2996
      %v2998 = vpop.f32.mrb[0].mxu0
      %v2999 = vpop.f32.mrb[0].mxu0
      %v3000 = vadd.f32 0.0, %v2999
      %v3001 = vpop.f32.mrb[0].mxu0
      %3002 = vmatprep.mubr.bf16.mxu0 0
      %3003 = vmatmul.mubr.bf16.gmra.mrb[0].mxu0 %v2880
      %v3004 = vpop.f32.mrb[0].mxu0
      %v3005 = vadd.f32 0.0, %v3004
      %v3006 = vpop.f32.mrb[0].mxu0
      %v3007 = vpop.f32.mrb[0].mxu0
      %v3008 = vadd.f32 0.0, %v3007
      %v3009 = vpop.f32.mrb[0].mxu0
      %3010 = vmatprep.mubr.bf16.mxu0 0
      %3011 = vmatmul.mubr.bf16.gmra.mrb[0].mxu0 %v2883
      %v3012 = vpop.f32.mrb[0].mxu0
      %v3013 = vadd.f32 0.0, %v3012
      %v3014 = vpop.f32.mrb[0].mxu0
      %v3015 = vpop.f32.mrb[0].mxu0
      %v3016 = vadd.f32 0.0, %v3015
      %v3017 = vpop.f32.mrb[0].mxu0
      %3018 = vmatprep.mubr.bf16.mxu0 0
      %3019 = vmatmul.mubr.bf16.gmra.mrb[0].mxu0 %v2886
      %v3020 = vpop.f32.mrb[0].mxu0
      %v3021 = vadd.f32 0.0, %v3020
      %v3022 = vpop.f32.mrb[0].mxu0
      %v3023 = vpop.f32.mrb[0].mxu0
      %v3024 = vadd.f32 0.0, %v3023
      %v3025 = vpop.f32.mrb[0].mxu0
      %3026 = vmatprep.mubr.bf16.mxu0 0
      %3027 = vmatmul.mubr.bf16.gmra.mrb[0].mxu0 %v2889
      %v3028 = vpop.f32.mrb[0].mxu0
      %v3029 = vadd.f32 0.0, %v3028
      %v3030 = vpop.f32.mrb[0].mxu0
      %v3031 = vpop.f32.mrb[0].mxu0
      %v3032 = vadd.f32 0.0, %v3031
      %v3033 = vpop.f32.mrb[0].mxu0
      %3034 = vmatprep.mubr.bf16.mxu0 0
      %3035 = vmatmul.mubr.bf16.gmra.mrb[0].mxu0 %v2892
      %v3036 = vpop.f32.mrb[0].mxu0
      %v3037 = vadd.f32 0.0, %v3036
      %v3038 = vpop.f32.mrb[0].mxu0
      %v3039 = vpop.f32.mrb[0].mxu0
      %v3040 = vadd.f32 0.0, %v3039
      %v3041 = vpop.f32.mrb[0].mxu0
      %3042 = vmatprep.mubr.bf16.mxu0 0
      %3043 = vmatmul.mubr.bf16.gmra.mrb[0].mxu0 %v2895
      %v3044 = vpop.f32.mrb[0].mxu0
      %v3045 = vadd.f32 0.0, %v3044
      %v3046 = vpop.f32.mrb[0].mxu0
      %v3047 = vpop.f32.mrb[0].mxu0
      %v3048 = vadd.f32 0.0, %v3047
      %v3049 = vpop.f32.mrb[0].mxu0
      %3050 = vmatprep.mubr.bf16.mxu0 0
      %3051 = vmatmul.mubr.bf16.gmra.mrb[0].mxu0 %v2898
      %v3052 = vpop.f32.mrb[0].mxu0
      %v3053 = vadd.f32 0.0, %v3052
      %v3054 = vpop.f32.mrb[0].mxu0
      %v3055 = vpop.f32.mrb[0].mxu0
      %v3056 = vadd.f32 0.0, %v3055
      %v3057 = vpop.f32.mrb[0].mxu0
      %3058 = vmatprep.mubr.bf16.mxu0 0
      %3059 = vmatmul.mubr.bf16.gmra.mrb[0].mxu0 %v2901
      %v3060 = vpop.f32.mrb[0].mxu0
      %v3061 = vadd.f32 0.0, %v3060
      %v3062 = vpop.f32.mrb[0].mxu0
      %v3063 = vpop.f32.mrb[0].mxu0
      %v3064 = vadd.f32 0.0, %v3063
      %v3065 = vpop.f32.mrb[0].mxu0
      %3066 = vdwg.mxu0
      %v3067 = vadd.f32 %v2773, %v2941
      %v3068 = vadd.f32 %v2774, %v2944
      %v3069 = vadd.f32 %v2775, %v2949
      %v3070 = vadd.f32 %v2776, %v2952
      %v3071 = vadd.f32 %v2777, %v2957
      %v3072 = vadd.f32 %v2778, %v2960
      %v3073 = vadd.f32 %v2779, %v2965
      %v3074 = vadd.f32 %v2780, %v2968
      %v3075 = vadd.f32 %v2781, %v2973
      %v3076 = vadd.f32 %v2782, %v2976
      %v3077 = vadd.f32 %v2783, %v2981
      %v3078 = vadd.f32 %v2784, %v2984
      %v3079 = vadd.f32 %v2785, %v2989
      %v3080 = vadd.f32 %v2786, %v2992
      %v3081 = vadd.f32 %v2787, %v2997
      %v3082 = vadd.f32 %v2788, %v3000
      %v3083 = vadd.f32 %v2789, %v3005
      %v3084 = vadd.f32 %v2790, %v3008
      %v3085 = vadd.f32 %v2791, %v3013
      %v3086 = vadd.f32 %v2792, %v3016
      %v3087 = vadd.f32 %v2793, %v3021
      %v3088 = vadd.f32 %v2794, %v3024
      %v3089 = vadd.f32 %v2795, %v3029
      %v3090 = vadd.f32 %v2796, %v3032
      %v3091 = vadd.f32 %v2797, %v3037
      %v3092 = vadd.f32 %v2798, %v3040
      %v3093 = vadd.f32 %v2799, %v3045
      %v3094 = vadd.f32 %v2800, %v3048
      %v3095 = vadd.f32 %v2801, %v3053
      %v3096 = vadd.f32 %v2802, %v3056
      %v3097 = vadd.f32 %v2803, %v3061
      %v3098 = vadd.f32 %v2804, %v3064
      %v3099 = vld [vmem:[#allocation2 + $0x31] sm:$0xff]
      %v3100 = vld [vmem:[#allocation2 + $0x39] sm:$0xff]
      %v3101 = vld [vmem:[#allocation2 + $0x41] sm:$0xff]
      %v3102 = vld [vmem:[#allocation2 + $0x49] sm:$0xff]
      %v3103 = vld [vmem:[#allocation2 + $0x51] sm:$0xff]
      %v3104 = vld [vmem:[#allocation2 + $0x59] sm:$0xff]
      %v3105 = vld [vmem:[#allocation2 + $0x61] sm:$0xff]
      %v3106 = vld [vmem:[#allocation2 + $0x69] sm:$0xff]
      %v3107 = vld [vmem:[#allocation2 + $0x71] sm:$0xff]
      %v3108 = vld [vmem:[#allocation2 + $0x79] sm:$0xff]
      %v3109 = vld [vmem:[#allocation2 + $0x81] sm:$0xff]
      %v3110 = vld [vmem:[#allocation2 + $0x89] sm:$0xff]
      %v3111 = vld [vmem:[#allocation2 + $0x91] sm:$0xff]
      %v3112 = vld [vmem:[#allocation2 + $0x99] sm:$0xff]
      %v3113 = vld [vmem:[#allocation2 + $0xa1] sm:$0xff]
      %v3114 = vld [vmem:[#allocation2 + $0xa9] sm:$0xff]
      %v3115 = vld [vmem:[#allocation2 + $0xb1] sm:$0xff]
      %v3116 = vld [vmem:[#allocation2 + $0xb9] sm:$0xff]
      %v3117 = vld [vmem:[#allocation2 + $0xc1] sm:$0xff]
      %v3118 = vld [vmem:[#allocation2 + $0xc9] sm:$0xff]
      %v3119 = vld [vmem:[#allocation2 + $0xd1] sm:$0xff]
      %v3120 = vld [vmem:[#allocation2 + $0xd9] sm:$0xff]
      %v3121 = vld [vmem:[#allocation2 + $0xe1] sm:$0xff]
      %v3122 = vld [vmem:[#allocation2 + $0xe9] sm:$0xff]
      %v3123 = vld [vmem:[#allocation2 + $0xf1] sm:$0xff]
      %v3124 = vld [vmem:[#allocation2 + $0xf9] sm:$0xff]
      %v3125 = vld [vmem:[#allocation2 + $0x101] sm:$0xff]
      %v3126 = vld [vmem:[#allocation2 + $0x109] sm:$0xff]
      %v3127 = vld [vmem:[#allocation2 + $0x111] sm:$0xff]
      %v3128 = vld [vmem:[#allocation2 + $0x119] sm:$0xff]
      %v3129 = vld [vmem:[#allocation2 + $0x121] sm:$0xff]
      %v3130 = vld [vmem:[#allocation2 + $0x129] sm:$0xff]
      %v3131 = vmul.f32 %v3099, %v1113
      %v3132 = vmul.f32 %v3100, %v1117
      %v3133 = vmul.f32 %v3101, %v1121
      %v3134 = vmul.f32 %v3102, %v1125
      %v3135 = vmul.f32 %v3103, %v1129
      %v3136 = vmul.f32 %v3104, %v1133
      %v3137 = vmul.f32 %v3105, %v1137
      %v3138 = vmul.f32 %v3106, %v1141
      %v3139 = vmul.f32 %v3107, %v1145
      %v3140 = vmul.f32 %v3108, %v1149
      %v3141 = vmul.f32 %v3109, %v1153
      %v3142 = vmul.f32 %v3110, %v1157
      %v3143 = vmul.f32 %v3111, %v1161
      %v3144 = vmul.f32 %v3112, %v1165
      %v3145 = vmul.f32 %v3113, %v1169
      %v3146 = vmul.f32 %v3114, %v1173
      %v3147 = vmul.f32 %v3115, %v1177
      %v3148 = vmul.f32 %v3116, %v1181
      %v3149 = vmul.f32 %v3117, %v1185
      %v3150 = vmul.f32 %v3118, %v1189
      %v3151 = vmul.f32 %v3119, %v1193
      %v3152 = vmul.f32 %v3120, %v1197
      %v3153 = vmul.f32 %v3121, %v1201
      %v3154 = vmul.f32 %v3122, %v1205
      %v3155 = vmul.f32 %v3123, %v1209
      %v3156 = vmul.f32 %v3124, %v1213
      %v3157 = vmul.f32 %v3125, %v1217
      %v3158 = vmul.f32 %v3126, %v1221
      %v3159 = vmul.f32 %v3127, %v1225
      %v3160 = vmul.f32 %v3128, %v1229
      %v3161 = vmul.f32 %v3129, %v1233
      %v3162 = vmul.f32 %v3130, %v1237
      %v3163 = vpack.c.bf16 %v3132, %v3131
      %v3164 = vpack.c.bf16 %v3134, %v3133
      %v3165 = vpack.c.bf16 %v3136, %v3135
      %v3166 = vpack.c.bf16 %v3138, %v3137
      %v3167 = vpack.c.bf16 %v3140, %v3139
      %v3168 = vpack.c.bf16 %v3142, %v3141
      %v3169 = vpack.c.bf16 %v3144, %v3143
      %v3170 = vpack.c.bf16 %v3146, %v3145
      %v3171 = vpack.c.bf16 %v3148, %v3147
      %v3172 = vpack.c.bf16 %v3150, %v3149
      %v3173 = vpack.c.bf16 %v3152, %v3151
      %v3174 = vpack.c.bf16 %v3154, %v3153
      %v3175 = vpack.c.bf16 %v3156, %v3155
      %v3176 = vpack.c.bf16 %v3158, %v3157
      %v3177 = vpack.c.bf16 %v3160, %v3159
      %v3178 = vpack.c.bf16 %v3162, %v3161
      %s3179 = scalar_lea.vmem %s1, 16
      %v3180 = vld [vmem:[%s3179] sm:$0x3]
      %v3182 = vsel %vm258, %v3163, 0
      %v3185 = vsel %vm258, %v3164, 0
      %v3188 = vsel %vm258, %v3165, 0
      %v3191 = vsel %vm258, %v3166, 0
      %v3194 = vsel %vm258, %v3167, 0
      %v3197 = vsel %vm258, %v3168, 0
      %v3200 = vsel %vm258, %v3169, 0
      %v3203 = vsel %vm258, %v3170, 0
      %v3206 = vsel %vm258, %v3171, 0
      %v3209 = vsel %vm258, %v3172, 0
      %v3212 = vsel %vm258, %v3173, 0
      %v3215 = vsel %vm258, %v3174, 0
      %v3218 = vsel %vm258, %v3175, 0
      %v3221 = vsel %vm258, %v3176, 0
      %v3224 = vsel %vm258, %v3177, 0
      %v3227 = vsel %vm258, %v3178, 0
      %v3230 = vsel %vm702, %v3180, 0
      %3232 = vmatprep.subr.bf16.mxu0 0
      %3233 = vmatpush1.bf16.msra.mxu0 %v3230
      %3234 = vmatprep.subr.bf16.mxu0 0
      %3235 = vmatpush1.bf16.msra.mxu0 0
      %3236 = vmatprep.subr.bf16.mxu0 0
      %3237 = vmatpush1.bf16.msra.mxu0 0
      %3238 = vmatprep.subr.bf16.mxu0 0
      %3239 = vmatpush1.bf16.msra.mxu0 0
      %3240 = vmatprep.subr.bf16.mxu0 0
      %3241 = vmatpush1.bf16.msra.mxu0 0
      %3242 = vmatprep.subr.bf16.mxu0 0
      %3243 = vmatpush1.bf16.msra.mxu0 0
      %3244 = vmatprep.subr.bf16.mxu0 0
      %3245 = vmatpush1.bf16.msra.mxu0 0
      %3246 = vmatprep.subr.bf16.mxu0 0
      %3247 = vmatpush1.bf16.msra.mxu0 0
      %3248 = vmatprep.subr.bf16.mxu0 0
      %3249 = vmatpush1.bf16.msra.mxu0 0
      %3250 = vmatprep.subr.bf16.mxu0 0
      %3251 = vmatpush1.bf16.msra.mxu0 0
      %3252 = vmatprep.subr.bf16.mxu0 0
      %3253 = vmatpush1.bf16.msra.mxu0 0
      %3254 = vmatprep.subr.bf16.mxu0 0
      %3255 = vmatpush1.bf16.msra.mxu0 0
      %3256 = vmatprep.subr.bf16.mxu0 0
      %3257 = vmatpush1.bf16.msra.mxu0 0
      %3258 = vmatprep.subr.bf16.mxu0 0
      %3259 = vmatpush1.bf16.msra.mxu0 0
      %3260 = vmatprep.subr.bf16.mxu0 0
      %3261 = vmatpush1.bf16.msra.mxu0 0
      %3262 = vmatprep.subr.bf16.mxu0 0
      %3263 = vmatpush1.bf16.msra.mxu0 0
      %3264 = vmatprep.mubr.bf16.mxu0 0
      %3265 = vmatmul.mubr.bf16.gmra.mrb[0].mxu0 %v3182
      %v3266 = vpop.f32.mrb[0].mxu0
      %v3267 = vadd.f32 0.0, %v3266
      %v3268 = vpop.f32.mrb[0].mxu0
      %v3269 = vpop.f32.mrb[0].mxu0
      %v3270 = vadd.f32 0.0, %v3269
      %v3271 = vpop.f32.mrb[0].mxu0
      %3272 = vmatprep.mubr.bf16.mxu0 0
      %3273 = vmatmul.mubr.bf16.gmra.mrb[0].mxu0 %v3185
      %v3274 = vpop.f32.mrb[0].mxu0
      %v3275 = vadd.f32 0.0, %v3274
      %v3276 = vpop.f32.mrb[0].mxu0
      %v3277 = vpop.f32.mrb[0].mxu0
      %v3278 = vadd.f32 0.0, %v3277
      %v3279 = vpop.f32.mrb[0].mxu0
      %3280 = vmatprep.mubr.bf16.mxu0 0
      %3281 = vmatmul.mubr.bf16.gmra.mrb[0].mxu0 %v3188
      %v3282 = vpop.f32.mrb[0].mxu0
      %v3283 = vadd.f32 0.0, %v3282
      %v3284 = vpop.f32.mrb[0].mxu0
      %v3285 = vpop.f32.mrb[0].mxu0
      %v3286 = vadd.f32 0.0, %v3285
      %v3287 = vpop.f32.mrb[0].mxu0
      %3288 = vmatprep.mubr.bf16.mxu0 0
      %3289 = vmatmul.mubr.bf16.gmra.mrb[0].mxu0 %v3191
      %v3290 = vpop.f32.mrb[0].mxu0
      %v3291 = vadd.f32 0.0, %v3290
      %v3292 = vpop.f32.mrb[0].mxu0
      %v3293 = vpop.f32.mrb[0].mxu0
      %v3294 = vadd.f32 0.0, %v3293
      %v3295 = vpop.f32.mrb[0].mxu0
      %3296 = vmatprep.mubr.bf16.mxu0 0
      %3297 = vmatmul.mubr.bf16.gmra.mrb[0].mxu0 %v3194
      %v3298 = vpop.f32.mrb[0].mxu0
      %v3299 = vadd.f32 0.0, %v3298
      %v3300 = vpop.f32.mrb[0].mxu0
      %v3301 = vpop.f32.mrb[0].mxu0
      %v3302 = vadd.f32 0.0, %v3301
      %v3303 = vpop.f32.mrb[0].mxu0
      %3304 = vmatprep.mubr.bf16.mxu0 0
      %3305 = vmatmul.mubr.bf16.gmra.mrb[0].mxu0 %v3197
      %v3306 = vpop.f32.mrb[0].mxu0
      %v3307 = vadd.f32 0.0, %v3306
      %v3308 = vpop.f32.mrb[0].mxu0
      %v3309 = vpop.f32.mrb[0].mxu0
      %v3310 = vadd.f32 0.0, %v3309
      %v3311 = vpop.f32.mrb[0].mxu0
      %3312 = vmatprep.mubr.bf16.mxu0 0
      %3313 = vmatmul.mubr.bf16.gmra.mrb[0].mxu0 %v3200
      %v3314 = vpop.f32.mrb[0].mxu0
      %v3315 = vadd.f32 0.0, %v3314
      %v3316 = vpop.f32.mrb[0].mxu0
      %v3317 = vpop.f32.mrb[0].mxu0
      %v3318 = vadd.f32 0.0, %v3317
      %v3319 = vpop.f32.mrb[0].mxu0
      %3320 = vmatprep.mubr.bf16.mxu0 0
      %3321 = vmatmul.mubr.bf16.gmra.mrb[0].mxu0 %v3203
      %v3322 = vpop.f32.mrb[0].mxu0
      %v3323 = vadd.f32 0.0, %v3322
      %v3324 = vpop.f32.mrb[0].mxu0
      %v3325 = vpop.f32.mrb[0].mxu0
      %v3326 = vadd.f32 0.0, %v3325
      %v3327 = vpop.f32.mrb[0].mxu0
      %3328 = vmatprep.mubr.bf16.mxu0 0
      %3329 = vmatmul.mubr.bf16.gmra.mrb[0].mxu0 %v3206
      %v3330 = vpop.f32.mrb[0].mxu0
      %v3331 = vadd.f32 0.0, %v3330
      %v3332 = vpop.f32.mrb[0].mxu0
      %v3333 = vpop.f32.mrb[0].mxu0
      %v3334 = vadd.f32 0.0, %v3333
      %v3335 = vpop.f32.mrb[0].mxu0
      %3336 = vmatprep.mubr.bf16.mxu0 0
      %3337 = vmatmul.mubr.bf16.gmra.mrb[0].mxu0 %v3209
      %v3338 = vpop.f32.mrb[0].mxu0
      %v3339 = vadd.f32 0.0, %v3338
      %v3340 = vpop.f32.mrb[0].mxu0
      %v3341 = vpop.f32.mrb[0].mxu0
      %v3342 = vadd.f32 0.0, %v3341
      %v3343 = vpop.f32.mrb[0].mxu0
      %3344 = vmatprep.mubr.bf16.mxu0 0
      %3345 = vmatmul.mubr.bf16.gmra.mrb[0].mxu0 %v3212
      %v3346 = vpop.f32.mrb[0].mxu0
      %v3347 = vadd.f32 0.0, %v3346
      %v3348 = vpop.f32.mrb[0].mxu0
      %v3349 = vpop.f32.mrb[0].mxu0
      %v3350 = vadd.f32 0.0, %v3349
      %v3351 = vpop.f32.mrb[0].mxu0
      %3352 = vmatprep.mubr.bf16.mxu0 0
      %3353 = vmatmul.mubr.bf16.gmra.mrb[0].mxu0 %v3215
      %v3354 = vpop.f32.mrb[0].mxu0
      %v3355 = vadd.f32 0.0, %v3354
      %v3356 = vpop.f32.mrb[0].mxu0
      %v3357 = vpop.f32.mrb[0].mxu0
      %v3358 = vadd.f32 0.0, %v3357
      %v3359 = vpop.f32.mrb[0].mxu0
      %3360 = vmatprep.mubr.bf16.mxu0 0
      %3361 = vmatmul.mubr.bf16.gmra.mrb[0].mxu0 %v3218
      %v3362 = vpop.f32.mrb[0].mxu0
      %v3363 = vadd.f32 0.0, %v3362
      %v3364 = vpop.f32.mrb[0].mxu0
      %v3365 = vpop.f32.mrb[0].mxu0
      %v3366 = vadd.f32 0.0, %v3365
      %v3367 = vpop.f32.mrb[0].mxu0
      %3368 = vmatprep.mubr.bf16.mxu0 0
      %3369 = vmatmul.mubr.bf16.gmra.mrb[0].mxu0 %v3221
      %v3370 = vpop.f32.mrb[0].mxu0
      %v3371 = vadd.f32 0.0, %v3370
      %v3372 = vpop.f32.mrb[0].mxu0
      %v3373 = vpop.f32.mrb[0].mxu0
      %v3374 = vadd.f32 0.0, %v3373
      %v3375 = vpop.f32.mrb[0].mxu0
      %3376 = vmatprep.mubr.bf16.mxu0 0
      %3377 = vmatmul.mubr.bf16.gmra.mrb[0].mxu0 %v3224
      %v3378 = vpop.f32.mrb[0].mxu0
      %v3379 = vadd.f32 0.0, %v3378
      %v3380 = vpop.f32.mrb[0].mxu0
      %v3381 = vpop.f32.mrb[0].mxu0
      %v3382 = vadd.f32 0.0, %v3381
      %v3383 = vpop.f32.mrb[0].mxu0
      %3384 = vmatprep.mubr.bf16.mxu0 0
      %3385 = vmatmul.mubr.bf16.gmra.mrb[0].mxu0 %v3227
      %v3386 = vpop.f32.mrb[0].mxu0
      %v3387 = vadd.f32 0.0, %v3386
      %v3388 = vpop.f32.mrb[0].mxu0
      %v3389 = vpop.f32.mrb[0].mxu0
      %v3390 = vadd.f32 0.0, %v3389
      %v3391 = vpop.f32.mrb[0].mxu0
      %3392 = vdwg.mxu0
      %v3393 = vadd.f32 %v3067, %v3267
      %v3394 = vadd.f32 %v3068, %v3270
      %v3395 = vadd.f32 %v3069, %v3275
      %v3396 = vadd.f32 %v3070, %v3278
      %v3397 = vadd.f32 %v3071, %v3283
      %v3398 = vadd.f32 %v3072, %v3286
      %v3399 = vadd.f32 %v3073, %v3291
      %v3400 = vadd.f32 %v3074, %v3294
      %v3401 = vadd.f32 %v3075, %v3299
      %v3402 = vadd.f32 %v3076, %v3302
      %v3403 = vadd.f32 %v3077, %v3307
      %v3404 = vadd.f32 %v3078, %v3310
      %v3405 = vadd.f32 %v3079, %v3315
      %v3406 = vadd.f32 %v3080, %v3318
      %v3407 = vadd.f32 %v3081, %v3323
      %v3408 = vadd.f32 %v3082, %v3326
      %v3409 = vadd.f32 %v3083, %v3331
      %v3410 = vadd.f32 %v3084, %v3334
      %v3411 = vadd.f32 %v3085, %v3339
      %v3412 = vadd.f32 %v3086, %v3342
      %v3413 = vadd.f32 %v3087, %v3347
      %v3414 = vadd.f32 %v3088, %v3350
      %v3415 = vadd.f32 %v3089, %v3355
      %v3416 = vadd.f32 %v3090, %v3358
      %v3417 = vadd.f32 %v3091, %v3363
      %v3418 = vadd.f32 %v3092, %v3366
      %v3419 = vadd.f32 %v3093, %v3371
      %v3420 = vadd.f32 %v3094, %v3374
      %v3421 = vadd.f32 %v3095, %v3379
      %v3422 = vadd.f32 %v3096, %v3382
      %v3423 = vadd.f32 %v3097, %v3387
      %v3424 = vadd.f32 %v3098, %v3390
      %v3425 = vld [vmem:[%s3] sm:$0x1]
      %v3426 = vlaneseq
      %v3427 = vshrl.u32 %v3426, 7
      %v3428 = vsub.s32 0, %v3427
      %v3429 = vrot.slane %v3425, %v3428
      %v3430 = vmul.f32 %v3393, %v3429
      %v3431 = vmul.f32 %v3394, %v3429
      %v3432 = vmul.f32 %v3395, %v3429
      %v3433 = vmul.f32 %v3396, %v3429
      %v3434 = vmul.f32 %v3397, %v3429
      %v3435 = vmul.f32 %v3398, %v3429
      %v3436 = vmul.f32 %v3399, %v3429
      %v3437 = vmul.f32 %v3400, %v3429
      %v3438 = vmul.f32 %v3401, %v3429
      %v3439 = vmul.f32 %v3402, %v3429
      %v3440 = vmul.f32 %v3403, %v3429
      %v3441 = vmul.f32 %v3404, %v3429
      %v3442 = vmul.f32 %v3405, %v3429
      %v3443 = vmul.f32 %v3406, %v3429
      %v3444 = vmul.f32 %v3407, %v3429
      %v3445 = vmul.f32 %v3408, %v3429
      %v3446 = vmul.f32 %v3409, %v3429
      %v3447 = vmul.f32 %v3410, %v3429
      %v3448 = vmul.f32 %v3411, %v3429
      %v3449 = vmul.f32 %v3412, %v3429
      %v3450 = vmul.f32 %v3413, %v3429
      %v3451 = vmul.f32 %v3414, %v3429
      %v3452 = vmul.f32 %v3415, %v3429
      %v3453 = vmul.f32 %v3416, %v3429
      %v3454 = vmul.f32 %v3417, %v3429
      %v3455 = vmul.f32 %v3418, %v3429
      %v3456 = vmul.f32 %v3419, %v3429
      %v3457 = vmul.f32 %v3420, %v3429
      %v3458 = vmul.f32 %v3421, %v3429
      %v3459 = vmul.f32 %v3422, %v3429
      %v3460 = vmul.f32 %v3423, %v3429
      %v3461 = vmul.f32 %v3424, %v3429
      %v3462 = vld [vmem:[%s3 + $0x1] sm:$0x1]
      %v3463 = vlaneseq
      %v3464 = vshrl.u32 %v3463, 7
      %v3465 = vsub.s32 0, %v3464
      %v3466 = vrot.slane %v3462, %v3465
      %v3467 = vadd.f32 %v3430, %v3466
      %v3468 = vadd.f32 %v3431, %v3466
      %v3469 = vadd.f32 %v3432, %v3466
      %v3470 = vadd.f32 %v3433, %v3466
      %v3471 = vadd.f32 %v3434, %v3466
      %v3472 = vadd.f32 %v3435, %v3466
      %v3473 = vadd.f32 %v3436, %v3466
      %v3474 = vadd.f32 %v3437, %v3466
      %v3475 = vadd.f32 %v3438, %v3466
      %v3476 = vadd.f32 %v3439, %v3466
      %v3477 = vadd.f32 %v3440, %v3466
      %v3478 = vadd.f32 %v3441, %v3466
      %v3479 = vadd.f32 %v3442, %v3466
      %v3480 = vadd.f32 %v3443, %v3466
      %v3481 = vadd.f32 %v3444, %v3466
      %v3482 = vadd.f32 %v3445, %v3466
      %v3483 = vadd.f32 %v3446, %v3466
      %v3484 = vadd.f32 %v3447, %v3466
      %v3485 = vadd.f32 %v3448, %v3466
      %v3486 = vadd.f32 %v3449, %v3466
      %v3487 = vadd.f32 %v3450, %v3466
      %v3488 = vadd.f32 %v3451, %v3466
      %v3489 = vadd.f32 %v3452, %v3466
      %v3490 = vadd.f32 %v3453, %v3466
      %v3491 = vadd.f32 %v3454, %v3466
      %v3492 = vadd.f32 %v3455, %v3466
      %v3493 = vadd.f32 %v3456, %v3466
      %v3494 = vadd.f32 %v3457, %v3466
      %v3495 = vadd.f32 %v3458, %v3466
      %v3496 = vadd.f32 %v3459, %v3466
      %v3497 = vadd.f32 %v3460, %v3466
      %v3498 = vadd.f32 %v3461, %v3466
      %v3499 = vmax.f32 %v3467, 0.0
      %v3500 = vmax.f32 %v3468, 0.0
      %v3501 = vmax.f32 %v3469, 0.0
      %v3502 = vmax.f32 %v3470, 0.0
      %v3503 = vmax.f32 %v3471, 0.0
      %v3504 = vmax.f32 %v3472, 0.0
      %v3505 = vmax.f32 %v3473, 0.0
      %v3506 = vmax.f32 %v3474, 0.0
      %v3507 = vmax.f32 %v3475, 0.0
      %v3508 = vmax.f32 %v3476, 0.0
      %v3509 = vmax.f32 %v3477, 0.0
      %v3510 = vmax.f32 %v3478, 0.0
      %v3511 = vmax.f32 %v3479, 0.0
      %v3512 = vmax.f32 %v3480, 0.0
      %v3513 = vmax.f32 %v3481, 0.0
      %v3514 = vmax.f32 %v3482, 0.0
      %v3515 = vmax.f32 %v3483, 0.0
      %v3516 = vmax.f32 %v3484, 0.0
      %v3517 = vmax.f32 %v3485, 0.0
      %v3518 = vmax.f32 %v3486, 0.0
      %v3519 = vmax.f32 %v3487, 0.0
      %v3520 = vmax.f32 %v3488, 0.0
      %v3521 = vmax.f32 %v3489, 0.0
      %v3522 = vmax.f32 %v3490, 0.0
      %v3523 = vmax.f32 %v3491, 0.0
      %v3524 = vmax.f32 %v3492, 0.0
      %v3525 = vmax.f32 %v3493, 0.0
      %v3526 = vmax.f32 %v3494, 0.0
      %v3527 = vmax.f32 %v3495, 0.0
      %v3528 = vmax.f32 %v3496, 0.0
      %v3529 = vmax.f32 %v3497, 0.0
      %v3530 = vmax.f32 %v3498, 0.0
      %3531 = vst.msk [vmem:[#allocation3] sm:$0xff] %vm258, 0.0
      %3532 = vst.msk [vmem:[#allocation3 + $0x8] sm:$0xff] %vm258, 0.0
      %3533 = vst.msk [vmem:[#allocation3 + $0x10] sm:$0xff] %vm258, 0.0
      %3534 = vst.msk [vmem:[#allocation3 + $0x18] sm:$0xff] %vm258, 0.0
      %3535 = vst.msk [vmem:[#allocation3 + $0x20] sm:$0xff] %vm258, 0.0
      %3536 = vst.msk [vmem:[#allocation3 + $0x28] sm:$0xff] %vm258, 0.0
      %3537 = vst.msk [vmem:[#allocation3 + $0x30] sm:$0xff] %vm258, 0.0
      %3538 = vst.msk [vmem:[#allocation3 + $0x38] sm:$0xff] %vm258, 0.0
      %3539 = vst.msk [vmem:[#allocation3 + $0x40] sm:$0xff] %vm258, 0.0
      %3540 = vst.msk [vmem:[#allocation3 + $0x48] sm:$0xff] %vm258, 0.0
      %3541 = vst.msk [vmem:[#allocation3 + $0x50] sm:$0xff] %vm258, 0.0
      %3542 = vst.msk [vmem:[#allocation3 + $0x58] sm:$0xff] %vm258, 0.0
      %3543 = vst.msk [vmem:[#allocation3 + $0x60] sm:$0xff] %vm258, 0.0
      %3544 = vst.msk [vmem:[#allocation3 + $0x68] sm:$0xff] %vm258, 0.0
      %3545 = vst.msk [vmem:[#allocation3 + $0x70] sm:$0xff] %vm258, 0.0
      %3546 = vst.msk [vmem:[#allocation3 + $0x78] sm:$0xff] %vm258, 0.0
      %3547 = vst.msk [vmem:[#allocation3 + $0x80] sm:$0xff] %vm258, 0.0
      %3548 = vst.msk [vmem:[#allocation3 + $0x88] sm:$0xff] %vm258, 0.0
      %3549 = vst.msk [vmem:[#allocation3 + $0x90] sm:$0xff] %vm258, 0.0
      %3550 = vst.msk [vmem:[#allocation3 + $0x98] sm:$0xff] %vm258, 0.0
      %3551 = vst.msk [vmem:[#allocation3 + $0xa0] sm:$0xff] %vm258, 0.0
      %3552 = vst.msk [vmem:[#allocation3 + $0xa8] sm:$0xff] %vm258, 0.0
      %3553 = vst.msk [vmem:[#allocation3 + $0xb0] sm:$0xff] %vm258, 0.0
      %3554 = vst.msk [vmem:[#allocation3 + $0xb8] sm:$0xff] %vm258, 0.0
      %3555 = vst.msk [vmem:[#allocation3 + $0xc0] sm:$0xff] %vm258, 0.0
      %3556 = vst.msk [vmem:[#allocation3 + $0xc8] sm:$0xff] %vm258, 0.0
      %3557 = vst.msk [vmem:[#allocation3 + $0xd0] sm:$0xff] %vm258, 0.0
      %3558 = vst.msk [vmem:[#allocation3 + $0xd8] sm:$0xff] %vm258, 0.0
      %3559 = vst.msk [vmem:[#allocation3 + $0xe0] sm:$0xff] %vm258, 0.0
      %3560 = vst.msk [vmem:[#allocation3 + $0xe8] sm:$0xff] %vm258, 0.0
      %3561 = vst.msk [vmem:[#allocation3 + $0xf0] sm:$0xff] %vm258, 0.0
      %3562 = vst.msk [vmem:[#allocation3 + $0xf8] sm:$0xff] %vm258, 0.0
      %3563 = vst.msk [vmem:[#allocation3 + $0x100] sm:$0xff] %vm258, 0.0
      %3564 = vst.msk [vmem:[#allocation3 + $0x108] sm:$0xff] %vm258, 0.0
      %3565 = vst.msk [vmem:[#allocation3 + $0x110] sm:$0xff] %vm258, 0.0
      %3566 = vst.msk [vmem:[#allocation3 + $0x118] sm:$0xff] %vm258, 0.0
      %3567 = vst.msk [vmem:[#allocation3 + $0x120] sm:$0xff] %vm258, 0.0
      %3568 = vst.msk [vmem:[#allocation3 + $0x128] sm:$0xff] %vm258, 0.0
      %3569 = vst.msk [vmem:[#allocation3 + $0x130] sm:$0xff] %vm258, 0.0
      %3570 = vst.msk [vmem:[#allocation3 + $0x138] sm:$0xff] %vm258, 0.0
      %3571 = vst.msk [vmem:[#allocation3 + $0x20] sm:$0xff] %vm258, %v3499
      %3572 = vst.msk [vmem:[#allocation3 + $0x28] sm:$0xff] %vm258, %v3500
      %3573 = vst.msk [vmem:[#allocation3 + $0x30] sm:$0xff] %vm258, %v3501
      %3574 = vst.msk [vmem:[#allocation3 + $0x38] sm:$0xff] %vm258, %v3502
      %3575 = vst.msk [vmem:[#allocation3 + $0x40] sm:$0xff] %vm258, %v3503
      %3576 = vst.msk [vmem:[#allocation3 + $0x48] sm:$0xff] %vm258, %v3504
      %3577 = vst.msk [vmem:[#allocation3 + $0x50] sm:$0xff] %vm258, %v3505
      %3578 = vst.msk [vmem:[#allocation3 + $0x58] sm:$0xff] %vm258, %v3506
      %3579 = vst.msk [vmem:[#allocation3 + $0x60] sm:$0xff] %vm258, %v3507
      %3580 = vst.msk [vmem:[#allocation3 + $0x68] sm:$0xff] %vm258, %v3508
      %3581 = vst.msk [vmem:[#allocation3 + $0x70] sm:$0xff] %vm258, %v3509
      %3582 = vst.msk [vmem:[#allocation3 + $0x78] sm:$0xff] %vm258, %v3510
      %3583 = vst.msk [vmem:[#allocation3 + $0x80] sm:$0xff] %vm258, %v3511
      %3584 = vst.msk [vmem:[#allocation3 + $0x88] sm:$0xff] %vm258, %v3512
      %3585 = vst.msk [vmem:[#allocation3 + $0x90] sm:$0xff] %vm258, %v3513
      %3586 = vst.msk [vmem:[#allocation3 + $0x98] sm:$0xff] %vm258, %v3514
      %3587 = vst.msk [vmem:[#allocation3 + $0xa0] sm:$0xff] %vm258, %v3515
      %3588 = vst.msk [vmem:[#allocation3 + $0xa8] sm:$0xff] %vm258, %v3516
      %3589 = vst.msk [vmem:[#allocation3 + $0xb0] sm:$0xff] %vm258, %v3517
      %3590 = vst.msk [vmem:[#allocation3 + $0xb8] sm:$0xff] %vm258, %v3518
      %3591 = vst.msk [vmem:[#allocation3 + $0xc0] sm:$0xff] %vm258, %v3519
      %3592 = vst.msk [vmem:[#allocation3 + $0xc8] sm:$0xff] %vm258, %v3520
      %3593 = vst.msk [vmem:[#allocation3 + $0xd0] sm:$0xff] %vm258, %v3521
      %3594 = vst.msk [vmem:[#allocation3 + $0xd8] sm:$0xff] %vm258, %v3522
      %3595 = vst.msk [vmem:[#allocation3 + $0xe0] sm:$0xff] %vm258, %v3523
      %3596 = vst.msk [vmem:[#allocation3 + $0xe8] sm:$0xff] %vm258, %v3524
      %3597 = vst.msk [vmem:[#allocation3 + $0xf0] sm:$0xff] %vm258, %v3525
      %3598 = vst.msk [vmem:[#allocation3 + $0xf8] sm:$0xff] %vm258, %v3526
      %3599 = vst.msk [vmem:[#allocation3 + $0x100] sm:$0xff] %vm258, %v3527
      %3600 = vst.msk [vmem:[#allocation3 + $0x108] sm:$0xff] %vm258, %v3528
      %3601 = vst.msk [vmem:[#allocation3 + $0x110] sm:$0xff] %vm258, %v3529
      %3602 = vst.msk [vmem:[#allocation3 + $0x118] sm:$0xff] %vm258, %v3530
      %v3603 = vld [vmem:[#allocation3 + $0xf] sm:$0xff]
      %v3604 = vld [vmem:[#allocation3 + $0x17] sm:$0xff]
      %v3605 = vld [vmem:[#allocation3 + $0x1f] sm:$0xff]
      %v3606 = vld [vmem:[#allocation3 + $0x27] sm:$0xff]
      %v3607 = vld [vmem:[#allocation3 + $0x2f] sm:$0xff]
      %v3608 = vld [vmem:[#allocation3 + $0x37] sm:$0xff]
      %v3609 = vld [vmem:[#allocation3 + $0x3f] sm:$0xff]
      %v3610 = vld [vmem:[#allocation3 + $0x47] sm:$0xff]
      %v3611 = vld [vmem:[#allocation3 + $0x4f] sm:$0xff]
      %v3612 = vld [vmem:[#allocation3 + $0x57] sm:$0xff]
      %v3613 = vld [vmem:[#allocation3 + $0x5f] sm:$0xff]
      %v3614 = vld [vmem:[#allocation3 + $0x67] sm:$0xff]
      %v3615 = vld [vmem:[#allocation3 + $0x6f] sm:$0xff]
      %v3616 = vld [vmem:[#allocation3 + $0x77] sm:$0xff]
      %v3617 = vld [vmem:[#allocation3 + $0x7f] sm:$0xff]
      %v3618 = vld [vmem:[#allocation3 + $0x87] sm:$0xff]
      %v3619 = vld [vmem:[#allocation3 + $0x8f] sm:$0xff]
      %v3620 = vld [vmem:[#allocation3 + $0x97] sm:$0xff]
      %v3621 = vld [vmem:[#allocation3 + $0x9f] sm:$0xff]
      %v3622 = vld [vmem:[#allocation3 + $0xa7] sm:$0xff]
      %v3623 = vld [vmem:[#allocation3 + $0xaf] sm:$0xff]
      %v3624 = vld [vmem:[#allocation3 + $0xb7] sm:$0xff]
      %v3625 = vld [vmem:[#allocation3 + $0xbf] sm:$0xff]
      %v3626 = vld [vmem:[#allocation3 + $0xc7] sm:$0xff]
      %v3627 = vld [vmem:[#allocation3 + $0xcf] sm:$0xff]
      %v3628 = vld [vmem:[#allocation3 + $0xd7] sm:$0xff]
      %v3629 = vld [vmem:[#allocation3 + $0xdf] sm:$0xff]
      %v3630 = vld [vmem:[#allocation3 + $0xe7] sm:$0xff]
      %v3631 = vld [vmem:[#allocation3 + $0xef] sm:$0xff]
      %v3632 = vld [vmem:[#allocation3 + $0xf7] sm:$0xff]
      %v3633 = vld [vmem:[#allocation3 + $0xff] sm:$0xff]
      %v3634 = vld [vmem:[#allocation3 + $0x107] sm:$0xff]
      %v3635 = vmul.f32 %v3603, %v398
      %v3636 = vmul.f32 %v3604, %v403
      %v3637 = vmul.f32 %v3605, %v408
      %v3638 = vmul.f32 %v3606, %v413
      %v3639 = vmul.f32 %v3607, %v418
      %v3640 = vmul.f32 %v3608, %v423
      %v3641 = vmul.f32 %v3609, %v428
      %v3642 = vmul.f32 %v3610, %v433
      %v3643 = vmul.f32 %v3611, %v438
      %v3644 = vmul.f32 %v3612, %v443
      %v3645 = vmul.f32 %v3613, %v448
      %v3646 = vmul.f32 %v3614, %v453
      %v3647 = vmul.f32 %v3615, %v458
      %v3648 = vmul.f32 %v3616, %v463
      %v3649 = vmul.f32 %v3617, %v468
      %v3650 = vmul.f32 %v3618, %v473
      %v3651 = vmul.f32 %v3619, %v478
      %v3652 = vmul.f32 %v3620, %v483
      %v3653 = vmul.f32 %v3621, %v488
      %v3654 = vmul.f32 %v3622, %v493
      %v3655 = vmul.f32 %v3623, %v498
      %v3656 = vmul.f32 %v3624, %v503
      %v3657 = vmul.f32 %v3625, %v508
      %v3658 = vmul.f32 %v3626, %v513
      %v3659 = vmul.f32 %v3627, %v518
      %v3660 = vmul.f32 %v3628, %v523
      %v3661 = vmul.f32 %v3629, %v528
      %v3662 = vmul.f32 %v3630, %v533
      %v3663 = vmul.f32 %v3631, %v538
      %v3664 = vmul.f32 %v3632, %v543
      %v3665 = vmul.f32 %v3633, %v548
      %v3666 = vmul.f32 %v3634, %v553
      %v3667 = vpack.c.bf16 %v3636, %v3635
      %v3668 = vpack.c.bf16 %v3638, %v3637
      %v3669 = vpack.c.bf16 %v3640, %v3639
      %v3670 = vpack.c.bf16 %v3642, %v3641
      %v3671 = vpack.c.bf16 %v3644, %v3643
      %v3672 = vpack.c.bf16 %v3646, %v3645
      %v3673 = vpack.c.bf16 %v3648, %v3647
      %v3674 = vpack.c.bf16 %v3650, %v3649
      %v3675 = vpack.c.bf16 %v3652, %v3651
      %v3676 = vpack.c.bf16 %v3654, %v3653
      %v3677 = vpack.c.bf16 %v3656, %v3655
      %v3678 = vpack.c.bf16 %v3658, %v3657
      %v3679 = vpack.c.bf16 %v3660, %v3659
      %v3680 = vpack.c.bf16 %v3662, %v3661
      %v3681 = vpack.c.bf16 %v3664, %v3663
      %v3682 = vpack.c.bf16 %v3666, %v3665
      %v3683 = vld [vmem:[%s2] sm:$0x3]
      %v3684 = vld [vmem:[#allocation3 + $0x10] sm:$0xff]
      %v3685 = vld [vmem:[#allocation3 + $0x18] sm:$0xff]
      %v3686 = vld [vmem:[#allocation3 + $0x20] sm:$0xff]
      %v3687 = vld [vmem:[#allocation3 + $0x28] sm:$0xff]
      %v3688 = vld [vmem:[#allocation3 + $0x30] sm:$0xff]
      %v3689 = vld [vmem:[#allocation3 + $0x38] sm:$0xff]
      %v3690 = vld [vmem:[#allocation3 + $0x40] sm:$0xff]
      %v3691 = vld [vmem:[#allocation3 + $0x48] sm:$0xff]
      %v3692 = vld [vmem:[#allocation3 + $0x50] sm:$0xff]
      %v3693 = vld [vmem:[#allocation3 + $0x58] sm:$0xff]
      %v3694 = vld [vmem:[#allocation3 + $0x60] sm:$0xff]
      %v3695 = vld [vmem:[#allocation3 + $0x68] sm:$0xff]
      %v3696 = vld [vmem:[#allocation3 + $0x70] sm:$0xff]
      %v3697 = vld [vmem:[#allocation3 + $0x78] sm:$0xff]
      %v3698 = vld [vmem:[#allocation3 + $0x80] sm:$0xff]
      %v3699 = vld [vmem:[#allocation3 + $0x88] sm:$0xff]
      %v3700 = vld [vmem:[#allocation3 + $0x90] sm:$0xff]
      %v3701 = vld [vmem:[#allocation3 + $0x98] sm:$0xff]
      %v3702 = vld [vmem:[#allocation3 + $0xa0] sm:$0xff]
      %v3703 = vld [vmem:[#allocation3 + $0xa8] sm:$0xff]
      %v3704 = vld [vmem:[#allocation3 + $0xb0] sm:$0xff]
      %v3705 = vld [vmem:[#allocation3 + $0xb8] sm:$0xff]
      %v3706 = vld [vmem:[#allocation3 + $0xc0] sm:$0xff]
      %v3707 = vld [vmem:[#allocation3 + $0xc8] sm:$0xff]
      %v3708 = vld [vmem:[#allocation3 + $0xd0] sm:$0xff]
      %v3709 = vld [vmem:[#allocation3 + $0xd8] sm:$0xff]
      %v3710 = vld [vmem:[#allocation3 + $0xe0] sm:$0xff]
      %v3711 = vld [vmem:[#allocation3 + $0xe8] sm:$0xff]
      %v3712 = vld [vmem:[#allocation3 + $0xf0] sm:$0xff]
      %v3713 = vld [vmem:[#allocation3 + $0xf8] sm:$0xff]
      %v3714 = vld [vmem:[#allocation3 + $0x100] sm:$0xff]
      %v3715 = vld [vmem:[#allocation3 + $0x108] sm:$0xff]
      %v3716 = vpack.c.bf16 %v3685, %v3684
      %v3717 = vpack.c.bf16 %v3687, %v3686
      %v3718 = vpack.c.bf16 %v3689, %v3688
      %v3719 = vpack.c.bf16 %v3691, %v3690
      %v3720 = vpack.c.bf16 %v3693, %v3692
      %v3721 = vpack.c.bf16 %v3695, %v3694
      %v3722 = vpack.c.bf16 %v3697, %v3696
      %v3723 = vpack.c.bf16 %v3699, %v3698
      %v3724 = vpack.c.bf16 %v3701, %v3700
      %v3725 = vpack.c.bf16 %v3703, %v3702
      %v3726 = vpack.c.bf16 %v3705, %v3704
      %v3727 = vpack.c.bf16 %v3707, %v3706
      %v3728 = vpack.c.bf16 %v3709, %v3708
      %v3729 = vpack.c.bf16 %v3711, %v3710
      %v3730 = vpack.c.bf16 %v3713, %v3712
      %v3731 = vpack.c.bf16 %v3715, %v3714
      %s3732 = scalar_lea.vmem %s2, 2
      %v3733 = vld [vmem:[%s3732] sm:$0x3]
      %v3735 = vsel %vm258, %v3716, 0
      %v3738 = vsel %vm258, %v3717, 0
      %v3741 = vsel %vm258, %v3718, 0
      %v3744 = vsel %vm258, %v3719, 0
      %v3747 = vsel %vm258, %v3720, 0
      %v3750 = vsel %vm258, %v3721, 0
      %v3753 = vsel %vm258, %v3722, 0
      %v3756 = vsel %vm258, %v3723, 0
      %v3759 = vsel %vm258, %v3724, 0
      %v3762 = vsel %vm258, %v3725, 0
      %v3765 = vsel %vm258, %v3726, 0
      %v3768 = vsel %vm258, %v3727, 0
      %v3771 = vsel %vm258, %v3728, 0
      %v3774 = vsel %vm258, %v3729, 0
      %v3777 = vsel %vm258, %v3730, 0
      %v3780 = vsel %vm258, %v3731, 0
      %v3783 = vsel %vm702, %v3733, 0
      %3785 = vmatprep.subr.bf16.mxu0 0
      %3786 = vmatpush1.bf16.msra.mxu0 %v3783
      %3787 = vmatprep.subr.bf16.mxu0 0
      %3788 = vmatpush1.bf16.msra.mxu0 0
      %3789 = vmatprep.subr.bf16.mxu0 0
      %3790 = vmatpush1.bf16.msra.mxu0 0
      %3791 = vmatprep.subr.bf16.mxu0 0
      %3792 = vmatpush1.bf16.msra.mxu0 0
      %3793 = vmatprep.subr.bf16.mxu0 0
      %3794 = vmatpush1.bf16.msra.mxu0 0
      %3795 = vmatprep.subr.bf16.mxu0 0
      %3796 = vmatpush1.bf16.msra.mxu0 0
      %3797 = vmatprep.subr.bf16.mxu0 0
      %3798 = vmatpush1.bf16.msra.mxu0 0
      %3799 = vmatprep.subr.bf16.mxu0 0
      %3800 = vmatpush1.bf16.msra.mxu0 0
      %3801 = vmatprep.subr.bf16.mxu0 0
      %3802 = vmatpush1.bf16.msra.mxu0 0
      %3803 = vmatprep.subr.bf16.mxu0 0
      %3804 = vmatpush1.bf16.msra.mxu0 0
      %3805 = vmatprep.subr.bf16.mxu0 0
      %3806 = vmatpush1.bf16.msra.mxu0 0
      %3807 = vmatprep.subr.bf16.mxu0 0
      %3808 = vmatpush1.bf16.msra.mxu0 0
      %3809 = vmatprep.subr.bf16.mxu0 0
      %3810 = vmatpush1.bf16.msra.mxu0 0
      %3811 = vmatprep.subr.bf16.mxu0 0
      %3812 = vmatpush1.bf16.msra.mxu0 0
      %3813 = vmatprep.subr.bf16.mxu0 0
      %3814 = vmatpush1.bf16.msra.mxu0 0
      %3815 = vmatprep.subr.bf16.mxu0 0
      %3816 = vmatpush1.bf16.msra.mxu0 0
      %3817 = vmatprep.mubr.bf16.mxu0 0
      %3818 = vmatmul.mubr.bf16.gmra.mrb[0].mxu0 %v3735
      %v3819 = vpop.f32.mrb[0].mxu0
      %v3820 = vadd.f32 0.0, %v3819
      %v3821 = vpop.f32.mrb[0].mxu0
      %v3822 = vpop.f32.mrb[0].mxu0
      %v3823 = vadd.f32 0.0, %v3822
      %v3824 = vpop.f32.mrb[0].mxu0
      %3825 = vmatprep.mubr.bf16.mxu0 0
      %3826 = vmatmul.mubr.bf16.gmra.mrb[0].mxu0 %v3738
      %v3827 = vpop.f32.mrb[0].mxu0
      %v3828 = vadd.f32 0.0, %v3827
      %v3829 = vpop.f32.mrb[0].mxu0
      %v3830 = vpop.f32.mrb[0].mxu0
      %v3831 = vadd.f32 0.0, %v3830
      %v3832 = vpop.f32.mrb[0].mxu0
      %3833 = vmatprep.mubr.bf16.mxu0 0
      %3834 = vmatmul.mubr.bf16.gmra.mrb[0].mxu0 %v3741
      %v3835 = vpop.f32.mrb[0].mxu0
      %v3836 = vadd.f32 0.0, %v3835
      %v3837 = vpop.f32.mrb[0].mxu0
      %v3838 = vpop.f32.mrb[0].mxu0
      %v3839 = vadd.f32 0.0, %v3838
      %v3840 = vpop.f32.mrb[0].mxu0
      %3841 = vmatprep.mubr.bf16.mxu0 0
      %3842 = vmatmul.mubr.bf16.gmra.mrb[0].mxu0 %v3744
      %v3843 = vpop.f32.mrb[0].mxu0
      %v3844 = vadd.f32 0.0, %v3843
      %v3845 = vpop.f32.mrb[0].mxu0
      %v3846 = vpop.f32.mrb[0].mxu0
      %v3847 = vadd.f32 0.0, %v3846
      %v3848 = vpop.f32.mrb[0].mxu0
      %3849 = vmatprep.mubr.bf16.mxu0 0
      %3850 = vmatmul.mubr.bf16.gmra.mrb[0].mxu0 %v3747
      %v3851 = vpop.f32.mrb[0].mxu0
      %v3852 = vadd.f32 0.0, %v3851
      %v3853 = vpop.f32.mrb[0].mxu0
      %v3854 = vpop.f32.mrb[0].mxu0
      %v3855 = vadd.f32 0.0, %v3854
      %v3856 = vpop.f32.mrb[0].mxu0
      %3857 = vmatprep.mubr.bf16.mxu0 0
      %3858 = vmatmul.mubr.bf16.gmra.mrb[0].mxu0 %v3750
      %v3859 = vpop.f32.mrb[0].mxu0
      %v3860 = vadd.f32 0.0, %v3859
      %v3861 = vpop.f32.mrb[0].mxu0
      %v3862 = vpop.f32.mrb[0].mxu0
      %v3863 = vadd.f32 0.0, %v3862
      %v3864 = vpop.f32.mrb[0].mxu0
      %3865 = vmatprep.mubr.bf16.mxu0 0
      %3866 = vmatmul.mubr.bf16.gmra.mrb[0].mxu0 %v3753
      %v3867 = vpop.f32.mrb[0].mxu0
      %v3868 = vadd.f32 0.0, %v3867
      %v3869 = vpop.f32.mrb[0].mxu0
      %v3870 = vpop.f32.mrb[0].mxu0
      %v3871 = vadd.f32 0.0, %v3870
      %v3872 = vpop.f32.mrb[0].mxu0
      %3873 = vmatprep.mubr.bf16.mxu0 0
      %3874 = vmatmul.mubr.bf16.gmra.mrb[0].mxu0 %v3756
      %v3875 = vpop.f32.mrb[0].mxu0
      %v3876 = vadd.f32 0.0, %v3875
      %v3877 = vpop.f32.mrb[0].mxu0
      %v3878 = vpop.f32.mrb[0].mxu0
      %v3879 = vadd.f32 0.0, %v3878
      %v3880 = vpop.f32.mrb[0].mxu0
      %3881 = vmatprep.mubr.bf16.mxu0 0
      %3882 = vmatmul.mubr.bf16.gmra.mrb[0].mxu0 %v3759
      %v3883 = vpop.f32.mrb[0].mxu0
      %v3884 = vadd.f32 0.0, %v3883
      %v3885 = vpop.f32.mrb[0].mxu0
      %v3886 = vpop.f32.mrb[0].mxu0
      %v3887 = vadd.f32 0.0, %v3886
      %v3888 = vpop.f32.mrb[0].mxu0
      %3889 = vmatprep.mubr.bf16.mxu0 0
      %3890 = vmatmul.mubr.bf16.gmra.mrb[0].mxu0 %v3762
      %v3891 = vpop.f32.mrb[0].mxu0
      %v3892 = vadd.f32 0.0, %v3891
      %v3893 = vpop.f32.mrb[0].mxu0
      %v3894 = vpop.f32.mrb[0].mxu0
      %v3895 = vadd.f32 0.0, %v3894
      %v3896 = vpop.f32.mrb[0].mxu0
      %3897 = vmatprep.mubr.bf16.mxu0 0
      %3898 = vmatmul.mubr.bf16.gmra.mrb[0].mxu0 %v3765
      %v3899 = vpop.f32.mrb[0].mxu0
      %v3900 = vadd.f32 0.0, %v3899
      %v3901 = vpop.f32.mrb[0].mxu0
      %v3902 = vpop.f32.mrb[0].mxu0
      %v3903 = vadd.f32 0.0, %v3902
      %v3904 = vpop.f32.mrb[0].mxu0
      %3905 = vmatprep.mubr.bf16.mxu0 0
      %3906 = vmatmul.mubr.bf16.gmra.mrb[0].mxu0 %v3768
      %v3907 = vpop.f32.mrb[0].mxu0
      %v3908 = vadd.f32 0.0, %v3907
      %v3909 = vpop.f32.mrb[0].mxu0
      %v3910 = vpop.f32.mrb[0].mxu0
      %v3911 = vadd.f32 0.0, %v3910
      %v3912 = vpop.f32.mrb[0].mxu0
      %3913 = vmatprep.mubr.bf16.mxu0 0
      %3914 = vmatmul.mubr.bf16.gmra.mrb[0].mxu0 %v3771
      %v3915 = vpop.f32.mrb[0].mxu0
      %v3916 = vadd.f32 0.0, %v3915
      %v3917 = vpop.f32.mrb[0].mxu0
      %v3918 = vpop.f32.mrb[0].mxu0
      %v3919 = vadd.f32 0.0, %v3918
      %v3920 = vpop.f32.mrb[0].mxu0
      %3921 = vmatprep.mubr.bf16.mxu0 0
      %3922 = vmatmul.mubr.bf16.gmra.mrb[0].mxu0 %v3774
      %v3923 = vpop.f32.mrb[0].mxu0
      %v3924 = vadd.f32 0.0, %v3923
      %v3925 = vpop.f32.mrb[0].mxu0
      %v3926 = vpop.f32.mrb[0].mxu0
      %v3927 = vadd.f32 0.0, %v3926
      %v3928 = vpop.f32.mrb[0].mxu0
      %3929 = vmatprep.mubr.bf16.mxu0 0
      %3930 = vmatmul.mubr.bf16.gmra.mrb[0].mxu0 %v3777
      %v3931 = vpop.f32.mrb[0].mxu0
      %v3932 = vadd.f32 0.0, %v3931
      %v3933 = vpop.f32.mrb[0].mxu0
      %v3934 = vpop.f32.mrb[0].mxu0
      %v3935 = vadd.f32 0.0, %v3934
      %v3936 = vpop.f32.mrb[0].mxu0
      %3937 = vmatprep.mubr.bf16.mxu0 0
      %3938 = vmatmul.mubr.bf16.gmra.mrb[0].mxu0 %v3780
      %v3939 = vpop.f32.mrb[0].mxu0
      %v3940 = vadd.f32 0.0, %v3939
      %v3941 = vpop.f32.mrb[0].mxu0
      %v3942 = vpop.f32.mrb[0].mxu0
      %v3943 = vadd.f32 0.0, %v3942
      %v3944 = vpop.f32.mrb[0].mxu0
      %3945 = vdwg.mxu0
      %v3947 = vsel %vm258, %v3667, 0
      %v3950 = vsel %vm258, %v3668, 0
      %v3953 = vsel %vm258, %v3669, 0
      %v3956 = vsel %vm258, %v3670, 0
      %v3959 = vsel %vm258, %v3671, 0
      %v3962 = vsel %vm258, %v3672, 0
      %v3965 = vsel %vm258, %v3673, 0
      %v3968 = vsel %vm258, %v3674, 0
      %v3971 = vsel %vm258, %v3675, 0
      %v3974 = vsel %vm258, %v3676, 0
      %v3977 = vsel %vm258, %v3677, 0
      %v3980 = vsel %vm258, %v3678, 0
      %v3983 = vsel %vm258, %v3679, 0
      %v3986 = vsel %vm258, %v3680, 0
      %v3989 = vsel %vm258, %v3681, 0
      %v3992 = vsel %vm258, %v3682, 0
      %v3995 = vsel %vm702, %v3683, 0
      %3997 = vmatprep.subr.bf16.mxu0 0
      %3998 = vmatpush1.bf16.msra.mxu0 %v3995
      %3999 = vmatprep.subr.bf16.mxu0 0
      %4000 = vmatpush1.bf16.msra.mxu0 0
      %4001 = vmatprep.subr.bf16.mxu0 0
      %4002 = vmatpush1.bf16.msra.mxu0 0
      %4003 = vmatprep.subr.bf16.mxu0 0
      %4004 = vmatpush1.bf16.msra.mxu0 0
      %4005 = vmatprep.subr.bf16.mxu0 0
      %4006 = vmatpush1.bf16.msra.mxu0 0
      %4007 = vmatprep.subr.bf16.mxu0 0
      %4008 = vmatpush1.bf16.msra.mxu0 0
      %4009 = vmatprep.subr.bf16.mxu0 0
      %4010 = vmatpush1.bf16.msra.mxu0 0
      %4011 = vmatprep.subr.bf16.mxu0 0
      %4012 = vmatpush1.bf16.msra.mxu0 0
      %4013 = vmatprep.subr.bf16.mxu0 0
      %4014 = vmatpush1.bf16.msra.mxu0 0
      %4015 = vmatprep.subr.bf16.mxu0 0
      %4016 = vmatpush1.bf16.msra.mxu0 0
      %4017 = vmatprep.subr.bf16.mxu0 0
      %4018 = vmatpush1.bf16.msra.mxu0 0
      %4019 = vmatprep.subr.bf16.mxu0 0
      %4020 = vmatpush1.bf16.msra.mxu0 0
      %4021 = vmatprep.subr.bf16.mxu0 0
      %4022 = vmatpush1.bf16.msra.mxu0 0
      %4023 = vmatprep.subr.bf16.mxu0 0
      %4024 = vmatpush1.bf16.msra.mxu0 0
      %4025 = vmatprep.subr.bf16.mxu0 0
      %4026 = vmatpush1.bf16.msra.mxu0 0
      %4027 = vmatprep.subr.bf16.mxu0 0
      %4028 = vmatpush1.bf16.msra.mxu0 0
      %4029 = vmatprep.mubr.bf16.mxu0 0
      %4030 = vmatmul.mubr.bf16.gmra.mrb[0].mxu0 %v3947
      %v4031 = vpop.f32.mrb[0].mxu0
      %v4032 = vadd.f32 %v3820, %v4031
      %v4033 = vpop.f32.mrb[0].mxu0
      %v4034 = vpop.f32.mrb[0].mxu0
      %v4035 = vadd.f32 %v3823, %v4034
      %v4036 = vpop.f32.mrb[0].mxu0
      %4037 = vmatprep.mubr.bf16.mxu0 0
      %4038 = vmatmul.mubr.bf16.gmra.mrb[0].mxu0 %v3950
      %v4039 = vpop.f32.mrb[0].mxu0
      %v4040 = vadd.f32 %v3828, %v4039
      %v4041 = vpop.f32.mrb[0].mxu0
      %v4042 = vpop.f32.mrb[0].mxu0
      %v4043 = vadd.f32 %v3831, %v4042
      %v4044 = vpop.f32.mrb[0].mxu0
      %4045 = vmatprep.mubr.bf16.mxu0 0
      %4046 = vmatmul.mubr.bf16.gmra.mrb[0].mxu0 %v3953
      %v4047 = vpop.f32.mrb[0].mxu0
      %v4048 = vadd.f32 %v3836, %v4047
      %v4049 = vpop.f32.mrb[0].mxu0
      %v4050 = vpop.f32.mrb[0].mxu0
      %v4051 = vadd.f32 %v3839, %v4050
      %v4052 = vpop.f32.mrb[0].mxu0
      %4053 = vmatprep.mubr.bf16.mxu0 0
      %4054 = vmatmul.mubr.bf16.gmra.mrb[0].mxu0 %v3956
      %v4055 = vpop.f32.mrb[0].mxu0
      %v4056 = vadd.f32 %v3844, %v4055
      %v4057 = vpop.f32.mrb[0].mxu0
      %v4058 = vpop.f32.mrb[0].mxu0
      %v4059 = vadd.f32 %v3847, %v4058
      %v4060 = vpop.f32.mrb[0].mxu0
      %4061 = vmatprep.mubr.bf16.mxu0 0
      %4062 = vmatmul.mubr.bf16.gmra.mrb[0].mxu0 %v3959
      %v4063 = vpop.f32.mrb[0].mxu0
      %v4064 = vadd.f32 %v3852, %v4063
      %v4065 = vpop.f32.mrb[0].mxu0
      %v4066 = vpop.f32.mrb[0].mxu0
      %v4067 = vadd.f32 %v3855, %v4066
      %v4068 = vpop.f32.mrb[0].mxu0
      %4069 = vmatprep.mubr.bf16.mxu0 0
      %4070 = vmatmul.mubr.bf16.gmra.mrb[0].mxu0 %v3962
      %v4071 = vpop.f32.mrb[0].mxu0
      %v4072 = vadd.f32 %v3860, %v4071
      %v4073 = vpop.f32.mrb[0].mxu0
      %v4074 = vpop.f32.mrb[0].mxu0
      %v4075 = vadd.f32 %v3863, %v4074
      %v4076 = vpop.f32.mrb[0].mxu0
      %4077 = vmatprep.mubr.bf16.mxu0 0
      %4078 = vmatmul.mubr.bf16.gmra.mrb[0].mxu0 %v3965
      %v4079 = vpop.f32.mrb[0].mxu0
      %v4080 = vadd.f32 %v3868, %v4079
      %v4081 = vpop.f32.mrb[0].mxu0
      %v4082 = vpop.f32.mrb[0].mxu0
      %v4083 = vadd.f32 %v3871, %v4082
      %v4084 = vpop.f32.mrb[0].mxu0
      %4085 = vmatprep.mubr.bf16.mxu0 0
      %4086 = vmatmul.mubr.bf16.gmra.mrb[0].mxu0 %v3968
      %v4087 = vpop.f32.mrb[0].mxu0
      %v4088 = vadd.f32 %v3876, %v4087
      %v4089 = vpop.f32.mrb[0].mxu0
      %v4090 = vpop.f32.mrb[0].mxu0
      %v4091 = vadd.f32 %v3879, %v4090
      %v4092 = vpop.f32.mrb[0].mxu0
      %4093 = vmatprep.mubr.bf16.mxu0 0
      %4094 = vmatmul.mubr.bf16.gmra.mrb[0].mxu0 %v3971
      %v4095 = vpop.f32.mrb[0].mxu0
      %v4096 = vadd.f32 %v3884, %v4095
      %v4097 = vpop.f32.mrb[0].mxu0
      %v4098 = vpop.f32.mrb[0].mxu0
      %v4099 = vadd.f32 %v3887, %v4098
      %v4100 = vpop.f32.mrb[0].mxu0
      %4101 = vmatprep.mubr.bf16.mxu0 0
      %4102 = vmatmul.mubr.bf16.gmra.mrb[0].mxu0 %v3974
      %v4103 = vpop.f32.mrb[0].mxu0
      %v4104 = vadd.f32 %v3892, %v4103
      %v4105 = vpop.f32.mrb[0].mxu0
      %v4106 = vpop.f32.mrb[0].mxu0
      %v4107 = vadd.f32 %v3895, %v4106
      %v4108 = vpop.f32.mrb[0].mxu0
      %4109 = vmatprep.mubr.bf16.mxu0 0
      %4110 = vmatmul.mubr.bf16.gmra.mrb[0].mxu0 %v3977
      %v4111 = vpop.f32.mrb[0].mxu0
      %v4112 = vadd.f32 %v3900, %v4111
      %v4113 = vpop.f32.mrb[0].mxu0
      %v4114 = vpop.f32.mrb[0].mxu0
      %v4115 = vadd.f32 %v3903, %v4114
      %v4116 = vpop.f32.mrb[0].mxu0
      %4117 = vmatprep.mubr.bf16.mxu0 0
      %4118 = vmatmul.mubr.bf16.gmra.mrb[0].mxu0 %v3980
      %v4119 = vpop.f32.mrb[0].mxu0
      %v4120 = vadd.f32 %v3908, %v4119
      %v4121 = vpop.f32.mrb[0].mxu0
      %v4122 = vpop.f32.mrb[0].mxu0
      %v4123 = vadd.f32 %v3911, %v4122
      %v4124 = vpop.f32.mrb[0].mxu0
      %4125 = vmatprep.mubr.bf16.mxu0 0
      %4126 = vmatmul.mubr.bf16.gmra.mrb[0].mxu0 %v3983
      %v4127 = vpop.f32.mrb[0].mxu0
      %v4128 = vadd.f32 %v3916, %v4127
      %v4129 = vpop.f32.mrb[0].mxu0
      %v4130 = vpop.f32.mrb[0].mxu0
      %v4131 = vadd.f32 %v3919, %v4130
      %v4132 = vpop.f32.mrb[0].mxu0
      %4133 = vmatprep.mubr.bf16.mxu0 0
      %4134 = vmatmul.mubr.bf16.gmra.mrb[0].mxu0 %v3986
      %v4135 = vpop.f32.mrb[0].mxu0
      %v4136 = vadd.f32 %v3924, %v4135
      %v4137 = vpop.f32.mrb[0].mxu0
      %v4138 = vpop.f32.mrb[0].mxu0
      %v4139 = vadd.f32 %v3927, %v4138
      %v4140 = vpop.f32.mrb[0].mxu0
      %4141 = vmatprep.mubr.bf16.mxu0 0
      %4142 = vmatmul.mubr.bf16.gmra.mrb[0].mxu0 %v3989
      %v4143 = vpop.f32.mrb[0].mxu0
      %v4144 = vadd.f32 %v3932, %v4143
      %v4145 = vpop.f32.mrb[0].mxu0
      %v4146 = vpop.f32.mrb[0].mxu0
      %v4147 = vadd.f32 %v3935, %v4146
      %v4148 = vpop.f32.mrb[0].mxu0
      %4149 = vmatprep.mubr.bf16.mxu0 0
      %4150 = vmatmul.mubr.bf16.gmra.mrb[0].mxu0 %v3992
      %v4151 = vpop.f32.mrb[0].mxu0
      %v4152 = vadd.f32 %v3940, %v4151
      %v4153 = vpop.f32.mrb[0].mxu0
      %v4154 = vpop.f32.mrb[0].mxu0
      %v4155 = vadd.f32 %v3943, %v4154
      %v4156 = vpop.f32.mrb[0].mxu0
      %4157 = vdwg.mxu0
      %v4158 = vld [vmem:[#allocation3 + $0x11] sm:$0xff]
      %v4159 = vld [vmem:[#allocation3 + $0x19] sm:$0xff]
      %v4160 = vld [vmem:[#allocation3 + $0x21] sm:$0xff]
      %v4161 = vld [vmem:[#allocation3 + $0x29] sm:$0xff]
      %v4162 = vld [vmem:[#allocation3 + $0x31] sm:$0xff]
      %v4163 = vld [vmem:[#allocation3 + $0x39] sm:$0xff]
      %v4164 = vld [vmem:[#allocation3 + $0x41] sm:$0xff]
      %v4165 = vld [vmem:[#allocation3 + $0x49] sm:$0xff]
      %v4166 = vld [vmem:[#allocation3 + $0x51] sm:$0xff]
      %v4167 = vld [vmem:[#allocation3 + $0x59] sm:$0xff]
      %v4168 = vld [vmem:[#allocation3 + $0x61] sm:$0xff]
      %v4169 = vld [vmem:[#allocation3 + $0x69] sm:$0xff]
      %v4170 = vld [vmem:[#allocation3 + $0x71] sm:$0xff]
      %v4171 = vld [vmem:[#allocation3 + $0x79] sm:$0xff]
      %v4172 = vld [vmem:[#allocation3 + $0x81] sm:$0xff]
      %v4173 = vld [vmem:[#allocation3 + $0x89] sm:$0xff]
      %v4174 = vld [vmem:[#allocation3 + $0x91] sm:$0xff]
      %v4175 = vld [vmem:[#allocation3 + $0x99] sm:$0xff]
      %v4176 = vld [vmem:[#allocation3 + $0xa1] sm:$0xff]
      %v4177 = vld [vmem:[#allocation3 + $0xa9] sm:$0xff]
      %v4178 = vld [vmem:[#allocation3 + $0xb1] sm:$0xff]
      %v4179 = vld [vmem:[#allocation3 + $0xb9] sm:$0xff]
      %v4180 = vld [vmem:[#allocation3 + $0xc1] sm:$0xff]
      %v4181 = vld [vmem:[#allocation3 + $0xc9] sm:$0xff]
      %v4182 = vld [vmem:[#allocation3 + $0xd1] sm:$0xff]
      %v4183 = vld [vmem:[#allocation3 + $0xd9] sm:$0xff]
      %v4184 = vld [vmem:[#allocation3 + $0xe1] sm:$0xff]
      %v4185 = vld [vmem:[#allocation3 + $0xe9] sm:$0xff]
      %v4186 = vld [vmem:[#allocation3 + $0xf1] sm:$0xff]
      %v4187 = vld [vmem:[#allocation3 + $0xf9] sm:$0xff]
      %v4188 = vld [vmem:[#allocation3 + $0x101] sm:$0xff]
      %v4189 = vld [vmem:[#allocation3 + $0x109] sm:$0xff]
      %v4190 = vmul.f32 %v4158, %v1113
      %v4191 = vmul.f32 %v4159, %v1117
      %v4192 = vmul.f32 %v4160, %v1121
      %v4193 = vmul.f32 %v4161, %v1125
      %v4194 = vmul.f32 %v4162, %v1129
      %v4195 = vmul.f32 %v4163, %v1133
      %v4196 = vmul.f32 %v4164, %v1137
      %v4197 = vmul.f32 %v4165, %v1141
      %v4198 = vmul.f32 %v4166, %v1145
      %v4199 = vmul.f32 %v4167, %v1149
      %v4200 = vmul.f32 %v4168, %v1153
      %v4201 = vmul.f32 %v4169, %v1157
      %v4202 = vmul.f32 %v4170, %v1161
      %v4203 = vmul.f32 %v4171, %v1165
      %v4204 = vmul.f32 %v4172, %v1169
      %v4205 = vmul.f32 %v4173, %v1173
      %v4206 = vmul.f32 %v4174, %v1177
      %v4207 = vmul.f32 %v4175, %v1181
      %v4208 = vmul.f32 %v4176, %v1185
      %v4209 = vmul.f32 %v4177, %v1189
      %v4210 = vmul.f32 %v4178, %v1193
      %v4211 = vmul.f32 %v4179, %v1197
      %v4212 = vmul.f32 %v4180, %v1201
      %v4213 = vmul.f32 %v4181, %v1205
      %v4214 = vmul.f32 %v4182, %v1209
      %v4215 = vmul.f32 %v4183, %v1213
      %v4216 = vmul.f32 %v4184, %v1217
      %v4217 = vmul.f32 %v4185, %v1221
      %v4218 = vmul.f32 %v4186, %v1225
      %v4219 = vmul.f32 %v4187, %v1229
      %v4220 = vmul.f32 %v4188, %v1233
      %v4221 = vmul.f32 %v4189, %v1237
      %v4222 = vpack.c.bf16 %v4191, %v4190
      %v4223 = vpack.c.bf16 %v4193, %v4192
      %v4224 = vpack.c.bf16 %v4195, %v4194
      %v4225 = vpack.c.bf16 %v4197, %v4196
      %v4226 = vpack.c.bf16 %v4199, %v4198
      %v4227 = vpack.c.bf16 %v4201, %v4200
      %v4228 = vpack.c.bf16 %v4203, %v4202
      %v4229 = vpack.c.bf16 %v4205, %v4204
      %v4230 = vpack.c.bf16 %v4207, %v4206
      %v4231 = vpack.c.bf16 %v4209, %v4208
      %v4232 = vpack.c.bf16 %v4211, %v4210
      %v4233 = vpack.c.bf16 %v4213, %v4212
      %v4234 = vpack.c.bf16 %v4215, %v4214
      %v4235 = vpack.c.bf16 %v4217, %v4216
      %v4236 = vpack.c.bf16 %v4219, %v4218
      %v4237 = vpack.c.bf16 %v4221, %v4220
      %s4238 = scalar_lea.vmem %s2, 4
      %v4239 = vld [vmem:[%s4238] sm:$0x3]
      %v4241 = vsel %vm258, %v4222, 0
      %v4244 = vsel %vm258, %v4223, 0
      %v4247 = vsel %vm258, %v4224, 0
      %v4250 = vsel %vm258, %v4225, 0
      %v4253 = vsel %vm258, %v4226, 0
      %v4256 = vsel %vm258, %v4227, 0
      %v4259 = vsel %vm258, %v4228, 0
      %v4262 = vsel %vm258, %v4229, 0
      %v4265 = vsel %vm258, %v4230, 0
      %v4268 = vsel %vm258, %v4231, 0
      %v4271 = vsel %vm258, %v4232, 0
      %v4274 = vsel %vm258, %v4233, 0
      %v4277 = vsel %vm258, %v4234, 0
      %v4280 = vsel %vm258, %v4235, 0
      %v4283 = vsel %vm258, %v4236, 0
      %v4286 = vsel %vm258, %v4237, 0
      %v4289 = vsel %vm702, %v4239, 0
      %4291 = vmatprep.subr.bf16.mxu0 0
      %4292 = vmatpush1.bf16.msra.mxu0 %v4289
      %4293 = vmatprep.subr.bf16.mxu0 0
      %4294 = vmatpush1.bf16.msra.mxu0 0
      %4295 = vmatprep.subr.bf16.mxu0 0
      %4296 = vmatpush1.bf16.msra.mxu0 0
      %4297 = vmatprep.subr.bf16.mxu0 0
      %4298 = vmatpush1.bf16.msra.mxu0 0
      %4299 = vmatprep.subr.bf16.mxu0 0
      %4300 = vmatpush1.bf16.msra.mxu0 0
      %4301 = vmatprep.subr.bf16.mxu0 0
      %4302 = vmatpush1.bf16.msra.mxu0 0
      %4303 = vmatprep.subr.bf16.mxu0 0
      %4304 = vmatpush1.bf16.msra.mxu0 0
      %4305 = vmatprep.subr.bf16.mxu0 0
      %4306 = vmatpush1.bf16.msra.mxu0 0
      %4307 = vmatprep.subr.bf16.mxu0 0
      %4308 = vmatpush1.bf16.msra.mxu0 0
      %4309 = vmatprep.subr.bf16.mxu0 0
      %4310 = vmatpush1.bf16.msra.mxu0 0
      %4311 = vmatprep.subr.bf16.mxu0 0
      %4312 = vmatpush1.bf16.msra.mxu0 0
      %4313 = vmatprep.subr.bf16.mxu0 0
      %4314 = vmatpush1.bf16.msra.mxu0 0
      %4315 = vmatprep.subr.bf16.mxu0 0
      %4316 = vmatpush1.bf16.msra.mxu0 0
      %4317 = vmatprep.subr.bf16.mxu0 0
      %4318 = vmatpush1.bf16.msra.mxu0 0
      %4319 = vmatprep.subr.bf16.mxu0 0
      %4320 = vmatpush1.bf16.msra.mxu0 0
      %4321 = vmatprep.subr.bf16.mxu0 0
      %4322 = vmatpush1.bf16.msra.mxu0 0
      %4323 = vmatprep.mubr.bf16.mxu0 0
      %4324 = vmatmul.mubr.bf16.gmra.mrb[0].mxu0 %v4241
      %v4325 = vpop.f32.mrb[0].mxu0
      %v4326 = vadd.f32 0.0, %v4325
      %v4327 = vpop.f32.mrb[0].mxu0
      %v4328 = vpop.f32.mrb[0].mxu0
      %v4329 = vadd.f32 0.0, %v4328
      %v4330 = vpop.f32.mrb[0].mxu0
      %4331 = vmatprep.mubr.bf16.mxu0 0
      %4332 = vmatmul.mubr.bf16.gmra.mrb[0].mxu0 %v4244
      %v4333 = vpop.f32.mrb[0].mxu0
      %v4334 = vadd.f32 0.0, %v4333
      %v4335 = vpop.f32.mrb[0].mxu0
      %v4336 = vpop.f32.mrb[0].mxu0
      %v4337 = vadd.f32 0.0, %v4336
      %v4338 = vpop.f32.mrb[0].mxu0
      %4339 = vmatprep.mubr.bf16.mxu0 0
      %4340 = vmatmul.mubr.bf16.gmra.mrb[0].mxu0 %v4247
      %v4341 = vpop.f32.mrb[0].mxu0
      %v4342 = vadd.f32 0.0, %v4341
      %v4343 = vpop.f32.mrb[0].mxu0
      %v4344 = vpop.f32.mrb[0].mxu0
      %v4345 = vadd.f32 0.0, %v4344
      %v4346 = vpop.f32.mrb[0].mxu0
      %4347 = vmatprep.mubr.bf16.mxu0 0
      %4348 = vmatmul.mubr.bf16.gmra.mrb[0].mxu0 %v4250
      %v4349 = vpop.f32.mrb[0].mxu0
      %v4350 = vadd.f32 0.0, %v4349
      %v4351 = vpop.f32.mrb[0].mxu0
      %v4352 = vpop.f32.mrb[0].mxu0
      %v4353 = vadd.f32 0.0, %v4352
      %v4354 = vpop.f32.mrb[0].mxu0
      %4355 = vmatprep.mubr.bf16.mxu0 0
      %4356 = vmatmul.mubr.bf16.gmra.mrb[0].mxu0 %v4253
      %v4357 = vpop.f32.mrb[0].mxu0
      %v4358 = vadd.f32 0.0, %v4357
      %v4359 = vpop.f32.mrb[0].mxu0
      %v4360 = vpop.f32.mrb[0].mxu0
      %v4361 = vadd.f32 0.0, %v4360
      %v4362 = vpop.f32.mrb[0].mxu0
      %4363 = vmatprep.mubr.bf16.mxu0 0
      %4364 = vmatmul.mubr.bf16.gmra.mrb[0].mxu0 %v4256
      %v4365 = vpop.f32.mrb[0].mxu0
      %v4366 = vadd.f32 0.0, %v4365
      %v4367 = vpop.f32.mrb[0].mxu0
      %v4368 = vpop.f32.mrb[0].mxu0
      %v4369 = vadd.f32 0.0, %v4368
      %v4370 = vpop.f32.mrb[0].mxu0
      %4371 = vmatprep.mubr.bf16.mxu0 0
      %4372 = vmatmul.mubr.bf16.gmra.mrb[0].mxu0 %v4259
      %v4373 = vpop.f32.mrb[0].mxu0
      %v4374 = vadd.f32 0.0, %v4373
      %v4375 = vpop.f32.mrb[0].mxu0
      %v4376 = vpop.f32.mrb[0].mxu0
      %v4377 = vadd.f32 0.0, %v4376
      %v4378 = vpop.f32.mrb[0].mxu0
      %4379 = vmatprep.mubr.bf16.mxu0 0
      %4380 = vmatmul.mubr.bf16.gmra.mrb[0].mxu0 %v4262
      %v4381 = vpop.f32.mrb[0].mxu0
      %v4382 = vadd.f32 0.0, %v4381
      %v4383 = vpop.f32.mrb[0].mxu0
      %v4384 = vpop.f32.mrb[0].mxu0
      %v4385 = vadd.f32 0.0, %v4384
      %v4386 = vpop.f32.mrb[0].mxu0
      %4387 = vmatprep.mubr.bf16.mxu0 0
      %4388 = vmatmul.mubr.bf16.gmra.mrb[0].mxu0 %v4265
      %v4389 = vpop.f32.mrb[0].mxu0
      %v4390 = vadd.f32 0.0, %v4389
      %v4391 = vpop.f32.mrb[0].mxu0
      %v4392 = vpop.f32.mrb[0].mxu0
      %v4393 = vadd.f32 0.0, %v4392
      %v4394 = vpop.f32.mrb[0].mxu0
      %4395 = vmatprep.mubr.bf16.mxu0 0
      %4396 = vmatmul.mubr.bf16.gmra.mrb[0].mxu0 %v4268
      %v4397 = vpop.f32.mrb[0].mxu0
      %v4398 = vadd.f32 0.0, %v4397
      %v4399 = vpop.f32.mrb[0].mxu0
      %v4400 = vpop.f32.mrb[0].mxu0
      %v4401 = vadd.f32 0.0, %v4400
      %v4402 = vpop.f32.mrb[0].mxu0
      %4403 = vmatprep.mubr.bf16.mxu0 0
      %4404 = vmatmul.mubr.bf16.gmra.mrb[0].mxu0 %v4271
      %v4405 = vpop.f32.mrb[0].mxu0
      %v4406 = vadd.f32 0.0, %v4405
      %v4407 = vpop.f32.mrb[0].mxu0
      %v4408 = vpop.f32.mrb[0].mxu0
      %v4409 = vadd.f32 0.0, %v4408
      %v4410 = vpop.f32.mrb[0].mxu0
      %4411 = vmatprep.mubr.bf16.mxu0 0
      %4412 = vmatmul.mubr.bf16.gmra.mrb[0].mxu0 %v4274
      %v4413 = vpop.f32.mrb[0].mxu0
      %v4414 = vadd.f32 0.0, %v4413
      %v4415 = vpop.f32.mrb[0].mxu0
      %v4416 = vpop.f32.mrb[0].mxu0
      %v4417 = vadd.f32 0.0, %v4416
      %v4418 = vpop.f32.mrb[0].mxu0
      %4419 = vmatprep.mubr.bf16.mxu0 0
      %4420 = vmatmul.mubr.bf16.gmra.mrb[0].mxu0 %v4277
      %v4421 = vpop.f32.mrb[0].mxu0
      %v4422 = vadd.f32 0.0, %v4421
      %v4423 = vpop.f32.mrb[0].mxu0
      %v4424 = vpop.f32.mrb[0].mxu0
      %v4425 = vadd.f32 0.0, %v4424
      %v4426 = vpop.f32.mrb[0].mxu0
      %4427 = vmatprep.mubr.bf16.mxu0 0
      %4428 = vmatmul.mubr.bf16.gmra.mrb[0].mxu0 %v4280
      %v4429 = vpop.f32.mrb[0].mxu0
      %v4430 = vadd.f32 0.0, %v4429
      %v4431 = vpop.f32.mrb[0].mxu0
      %v4432 = vpop.f32.mrb[0].mxu0
      %v4433 = vadd.f32 0.0, %v4432
      %v4434 = vpop.f32.mrb[0].mxu0
      %4435 = vmatprep.mubr.bf16.mxu0 0
      %4436 = vmatmul.mubr.bf16.gmra.mrb[0].mxu0 %v4283
      %v4437 = vpop.f32.mrb[0].mxu0
      %v4438 = vadd.f32 0.0, %v4437
      %v4439 = vpop.f32.mrb[0].mxu0
      %v4440 = vpop.f32.mrb[0].mxu0
      %v4441 = vadd.f32 0.0, %v4440
      %v4442 = vpop.f32.mrb[0].mxu0
      %4443 = vmatprep.mubr.bf16.mxu0 0
      %4444 = vmatmul.mubr.bf16.gmra.mrb[0].mxu0 %v4286
      %v4445 = vpop.f32.mrb[0].mxu0
      %v4446 = vadd.f32 0.0, %v4445
      %v4447 = vpop.f32.mrb[0].mxu0
      %v4448 = vpop.f32.mrb[0].mxu0
      %v4449 = vadd.f32 0.0, %v4448
      %v4450 = vpop.f32.mrb[0].mxu0
      %4451 = vdwg.mxu0
      %v4452 = vadd.f32 %v4032, %v4326
      %v4453 = vadd.f32 %v4035, %v4329
      %v4454 = vadd.f32 %v4040, %v4334
      %v4455 = vadd.f32 %v4043, %v4337
      %v4456 = vadd.f32 %v4048, %v4342
      %v4457 = vadd.f32 %v4051, %v4345
      %v4458 = vadd.f32 %v4056, %v4350
      %v4459 = vadd.f32 %v4059, %v4353
      %v4460 = vadd.f32 %v4064, %v4358
      %v4461 = vadd.f32 %v4067, %v4361
      %v4462 = vadd.f32 %v4072, %v4366
      %v4463 = vadd.f32 %v4075, %v4369
      %v4464 = vadd.f32 %v4080, %v4374
      %v4465 = vadd.f32 %v4083, %v4377
      %v4466 = vadd.f32 %v4088, %v4382
      %v4467 = vadd.f32 %v4091, %v4385
      %v4468 = vadd.f32 %v4096, %v4390
      %v4469 = vadd.f32 %v4099, %v4393
      %v4470 = vadd.f32 %v4104, %v4398
      %v4471 = vadd.f32 %v4107, %v4401
      %v4472 = vadd.f32 %v4112, %v4406
      %v4473 = vadd.f32 %v4115, %v4409
      %v4474 = vadd.f32 %v4120, %v4414
      %v4475 = vadd.f32 %v4123, %v4417
      %v4476 = vadd.f32 %v4128, %v4422
      %v4477 = vadd.f32 %v4131, %v4425
      %v4478 = vadd.f32 %v4136, %v4430
      %v4479 = vadd.f32 %v4139, %v4433
      %v4480 = vadd.f32 %v4144, %v4438
      %v4481 = vadd.f32 %v4147, %v4441
      %v4482 = vadd.f32 %v4152, %v4446
      %v4483 = vadd.f32 %v4155, %v4449
      %v4484 = vld [vmem:[#allocation3 + $0x1f] sm:$0xff]
      %v4485 = vld [vmem:[#allocation3 + $0x27] sm:$0xff]
      %v4486 = vld [vmem:[#allocation3 + $0x2f] sm:$0xff]
      %v4487 = vld [vmem:[#allocation3 + $0x37] sm:$0xff]
      %v4488 = vld [vmem:[#allocation3 + $0x3f] sm:$0xff]
      %v4489 = vld [vmem:[#allocation3 + $0x47] sm:$0xff]
      %v4490 = vld [vmem:[#allocation3 + $0x4f] sm:$0xff]
      %v4491 = vld [vmem:[#allocation3 + $0x57] sm:$0xff]
      %v4492 = vld [vmem:[#allocation3 + $0x5f] sm:$0xff]
      %v4493 = vld [vmem:[#allocation3 + $0x67] sm:$0xff]
      %v4494 = vld [vmem:[#allocation3 + $0x6f] sm:$0xff]
      %v4495 = vld [vmem:[#allocation3 + $0x77] sm:$0xff]
      %v4496 = vld [vmem:[#allocation3 + $0x7f] sm:$0xff]
      %v4497 = vld [vmem:[#allocation3 + $0x87] sm:$0xff]
      %v4498 = vld [vmem:[#allocation3 + $0x8f] sm:$0xff]
      %v4499 = vld [vmem:[#allocation3 + $0x97] sm:$0xff]
      %v4500 = vld [vmem:[#allocation3 + $0x9f] sm:$0xff]
      %v4501 = vld [vmem:[#allocation3 + $0xa7] sm:$0xff]
      %v4502 = vld [vmem:[#allocation3 + $0xaf] sm:$0xff]
      %v4503 = vld [vmem:[#allocation3 + $0xb7] sm:$0xff]
      %v4504 = vld [vmem:[#allocation3 + $0xbf] sm:$0xff]
      %v4505 = vld [vmem:[#allocation3 + $0xc7] sm:$0xff]
      %v4506 = vld [vmem:[#allocation3 + $0xcf] sm:$0xff]
      %v4507 = vld [vmem:[#allocation3 + $0xd7] sm:$0xff]
      %v4508 = vld [vmem:[#allocation3 + $0xdf] sm:$0xff]
      %v4509 = vld [vmem:[#allocation3 + $0xe7] sm:$0xff]
      %v4510 = vld [vmem:[#allocation3 + $0xef] sm:$0xff]
      %v4511 = vld [vmem:[#allocation3 + $0xf7] sm:$0xff]
      %v4512 = vld [vmem:[#allocation3 + $0xff] sm:$0xff]
      %v4513 = vld [vmem:[#allocation3 + $0x107] sm:$0xff]
      %v4514 = vld [vmem:[#allocation3 + $0x10f] sm:$0xff]
      %v4515 = vld [vmem:[#allocation3 + $0x117] sm:$0xff]
      %v4516 = vmul.f32 %v4484, %v398
      %v4517 = vmul.f32 %v4485, %v403
      %v4518 = vmul.f32 %v4486, %v408
      %v4519 = vmul.f32 %v4487, %v413
      %v4520 = vmul.f32 %v4488, %v418
      %v4521 = vmul.f32 %v4489, %v423
      %v4522 = vmul.f32 %v4490, %v428
      %v4523 = vmul.f32 %v4491, %v433
      %v4524 = vmul.f32 %v4492, %v438
      %v4525 = vmul.f32 %v4493, %v443
      %v4526 = vmul.f32 %v4494, %v448
      %v4527 = vmul.f32 %v4495, %v453
      %v4528 = vmul.f32 %v4496, %v458
      %v4529 = vmul.f32 %v4497, %v463
      %v4530 = vmul.f32 %v4498, %v468
      %v4531 = vmul.f32 %v4499, %v473
      %v4532 = vmul.f32 %v4500, %v478
      %v4533 = vmul.f32 %v4501, %v483
      %v4534 = vmul.f32 %v4502, %v488
      %v4535 = vmul.f32 %v4503, %v493
      %v4536 = vmul.f32 %v4504, %v498
      %v4537 = vmul.f32 %v4505, %v503
      %v4538 = vmul.f32 %v4506, %v508
      %v4539 = vmul.f32 %v4507, %v513
      %v4540 = vmul.f32 %v4508, %v518
      %v4541 = vmul.f32 %v4509, %v523
      %v4542 = vmul.f32 %v4510, %v528
      %v4543 = vmul.f32 %v4511, %v533
      %v4544 = vmul.f32 %v4512, %v538
      %v4545 = vmul.f32 %v4513, %v543
      %v4546 = vmul.f32 %v4514, %v548
      %v4547 = vmul.f32 %v4515, %v553
      %v4548 = vpack.c.bf16 %v4517, %v4516
      %v4549 = vpack.c.bf16 %v4519, %v4518
      %v4550 = vpack.c.bf16 %v4521, %v4520
      %v4551 = vpack.c.bf16 %v4523, %v4522
      %v4552 = vpack.c.bf16 %v4525, %v4524
      %v4553 = vpack.c.bf16 %v4527, %v4526
      %v4554 = vpack.c.bf16 %v4529, %v4528
      %v4555 = vpack.c.bf16 %v4531, %v4530
      %v4556 = vpack.c.bf16 %v4533, %v4532
      %v4557 = vpack.c.bf16 %v4535, %v4534
      %v4558 = vpack.c.bf16 %v4537, %v4536
      %v4559 = vpack.c.bf16 %v4539, %v4538
      %v4560 = vpack.c.bf16 %v4541, %v4540
      %v4561 = vpack.c.bf16 %v4543, %v4542
      %v4562 = vpack.c.bf16 %v4545, %v4544
      %v4563 = vpack.c.bf16 %v4547, %v4546
      %s4564 = scalar_lea.vmem %s2, 6
      %v4565 = vld [vmem:[%s4564] sm:$0x3]
      %v4567 = vsel %vm258, %v4548, 0
      %v4570 = vsel %vm258, %v4549, 0
      %v4573 = vsel %vm258, %v4550, 0
      %v4576 = vsel %vm258, %v4551, 0
      %v4579 = vsel %vm258, %v4552, 0
      %v4582 = vsel %vm258, %v4553, 0
      %v4585 = vsel %vm258, %v4554, 0
      %v4588 = vsel %vm258, %v4555, 0
      %v4591 = vsel %vm258, %v4556, 0
      %v4594 = vsel %vm258, %v4557, 0
      %v4597 = vsel %vm258, %v4558, 0
      %v4600 = vsel %vm258, %v4559, 0
      %v4603 = vsel %vm258, %v4560, 0
      %v4606 = vsel %vm258, %v4561, 0
      %v4609 = vsel %vm258, %v4562, 0
      %v4612 = vsel %vm258, %v4563, 0
      %v4615 = vsel %vm702, %v4565, 0
      %4617 = vmatprep.subr.bf16.mxu0 0
      %4618 = vmatpush1.bf16.msra.mxu0 %v4615
      %4619 = vmatprep.subr.bf16.mxu0 0
      %4620 = vmatpush1.bf16.msra.mxu0 0
      %4621 = vmatprep.subr.bf16.mxu0 0
      %4622 = vmatpush1.bf16.msra.mxu0 0
      %4623 = vmatprep.subr.bf16.mxu0 0
      %4624 = vmatpush1.bf16.msra.mxu0 0
      %4625 = vmatprep.subr.bf16.mxu0 0
      %4626 = vmatpush1.bf16.msra.mxu0 0
      %4627 = vmatprep.subr.bf16.mxu0 0
      %4628 = vmatpush1.bf16.msra.mxu0 0
      %4629 = vmatprep.subr.bf16.mxu0 0
      %4630 = vmatpush1.bf16.msra.mxu0 0
      %4631 = vmatprep.subr.bf16.mxu0 0
      %4632 = vmatpush1.bf16.msra.mxu0 0
      %4633 = vmatprep.subr.bf16.mxu0 0
      %4634 = vmatpush1.bf16.msra.mxu0 0
      %4635 = vmatprep.subr.bf16.mxu0 0
      %4636 = vmatpush1.bf16.msra.mxu0 0
      %4637 = vmatprep.subr.bf16.mxu0 0
      %4638 = vmatpush1.bf16.msra.mxu0 0
      %4639 = vmatprep.subr.bf16.mxu0 0
      %4640 = vmatpush1.bf16.msra.mxu0 0
      %4641 = vmatprep.subr.bf16.mxu0 0
      %4642 = vmatpush1.bf16.msra.mxu0 0
      %4643 = vmatprep.subr.bf16.mxu0 0
      %4644 = vmatpush1.bf16.msra.mxu0 0
      %4645 = vmatprep.subr.bf16.mxu0 0
      %4646 = vmatpush1.bf16.msra.mxu0 0
      %4647 = vmatprep.subr.bf16.mxu0 0
      %4648 = vmatpush1.bf16.msra.mxu0 0
      %4649 = vmatprep.mubr.bf16.mxu0 0
      %4650 = vmatmul.mubr.bf16.gmra.mrb[0].mxu0 %v4567
      %v4651 = vpop.f32.mrb[0].mxu0
      %v4652 = vadd.f32 0.0, %v4651
      %v4653 = vpop.f32.mrb[0].mxu0
      %v4654 = vpop.f32.mrb[0].mxu0
      %v4655 = vadd.f32 0.0, %v4654
      %v4656 = vpop.f32.mrb[0].mxu0
      %4657 = vmatprep.mubr.bf16.mxu0 0
      %4658 = vmatmul.mubr.bf16.gmra.mrb[0].mxu0 %v4570
      %v4659 = vpop.f32.mrb[0].mxu0
      %v4660 = vadd.f32 0.0, %v4659
      %v4661 = vpop.f32.mrb[0].mxu0
      %v4662 = vpop.f32.mrb[0].mxu0
      %v4663 = vadd.f32 0.0, %v4662
      %v4664 = vpop.f32.mrb[0].mxu0
      %4665 = vmatprep.mubr.bf16.mxu0 0
      %4666 = vmatmul.mubr.bf16.gmra.mrb[0].mxu0 %v4573
      %v4667 = vpop.f32.mrb[0].mxu0
      %v4668 = vadd.f32 0.0, %v4667
      %v4669 = vpop.f32.mrb[0].mxu0
      %v4670 = vpop.f32.mrb[0].mxu0
      %v4671 = vadd.f32 0.0, %v4670
      %v4672 = vpop.f32.mrb[0].mxu0
      %4673 = vmatprep.mubr.bf16.mxu0 0
      %4674 = vmatmul.mubr.bf16.gmra.mrb[0].mxu0 %v4576
      %v4675 = vpop.f32.mrb[0].mxu0
      %v4676 = vadd.f32 0.0, %v4675
      %v4677 = vpop.f32.mrb[0].mxu0
      %v4678 = vpop.f32.mrb[0].mxu0
      %v4679 = vadd.f32 0.0, %v4678
      %v4680 = vpop.f32.mrb[0].mxu0
      %4681 = vmatprep.mubr.bf16.mxu0 0
      %4682 = vmatmul.mubr.bf16.gmra.mrb[0].mxu0 %v4579
      %v4683 = vpop.f32.mrb[0].mxu0
      %v4684 = vadd.f32 0.0, %v4683
      %v4685 = vpop.f32.mrb[0].mxu0
      %v4686 = vpop.f32.mrb[0].mxu0
      %v4687 = vadd.f32 0.0, %v4686
      %v4688 = vpop.f32.mrb[0].mxu0
      %4689 = vmatprep.mubr.bf16.mxu0 0
      %4690 = vmatmul.mubr.bf16.gmra.mrb[0].mxu0 %v4582
      %v4691 = vpop.f32.mrb[0].mxu0
      %v4692 = vadd.f32 0.0, %v4691
      %v4693 = vpop.f32.mrb[0].mxu0
      %v4694 = vpop.f32.mrb[0].mxu0
      %v4695 = vadd.f32 0.0, %v4694
      %v4696 = vpop.f32.mrb[0].mxu0
      %4697 = vmatprep.mubr.bf16.mxu0 0
      %4698 = vmatmul.mubr.bf16.gmra.mrb[0].mxu0 %v4585
      %v4699 = vpop.f32.mrb[0].mxu0
      %v4700 = vadd.f32 0.0, %v4699
      %v4701 = vpop.f32.mrb[0].mxu0
      %v4702 = vpop.f32.mrb[0].mxu0
      %v4703 = vadd.f32 0.0, %v4702
      %v4704 = vpop.f32.mrb[0].mxu0
      %4705 = vmatprep.mubr.bf16.mxu0 0
      %4706 = vmatmul.mubr.bf16.gmra.mrb[0].mxu0 %v4588
      %v4707 = vpop.f32.mrb[0].mxu0
      %v4708 = vadd.f32 0.0, %v4707
      %v4709 = vpop.f32.mrb[0].mxu0
      %v4710 = vpop.f32.mrb[0].mxu0
      %v4711 = vadd.f32 0.0, %v4710
      %v4712 = vpop.f32.mrb[0].mxu0
      %4713 = vmatprep.mubr.bf16.mxu0 0
      %4714 = vmatmul.mubr.bf16.gmra.mrb[0].mxu0 %v4591
      %v4715 = vpop.f32.mrb[0].mxu0
      %v4716 = vadd.f32 0.0, %v4715
      %v4717 = vpop.f32.mrb[0].mxu0
      %v4718 = vpop.f32.mrb[0].mxu0
      %v4719 = vadd.f32 0.0, %v4718
      %v4720 = vpop.f32.mrb[0].mxu0
      %4721 = vmatprep.mubr.bf16.mxu0 0
      %4722 = vmatmul.mubr.bf16.gmra.mrb[0].mxu0 %v4594
      %v4723 = vpop.f32.mrb[0].mxu0
      %v4724 = vadd.f32 0.0, %v4723
      %v4725 = vpop.f32.mrb[0].mxu0
      %v4726 = vpop.f32.mrb[0].mxu0
      %v4727 = vadd.f32 0.0, %v4726
      %v4728 = vpop.f32.mrb[0].mxu0
      %4729 = vmatprep.mubr.bf16.mxu0 0
      %4730 = vmatmul.mubr.bf16.gmra.mrb[0].mxu0 %v4597
      %v4731 = vpop.f32.mrb[0].mxu0
      %v4732 = vadd.f32 0.0, %v4731
      %v4733 = vpop.f32.mrb[0].mxu0
      %v4734 = vpop.f32.mrb[0].mxu0
      %v4735 = vadd.f32 0.0, %v4734
      %v4736 = vpop.f32.mrb[0].mxu0
      %4737 = vmatprep.mubr.bf16.mxu0 0
      %4738 = vmatmul.mubr.bf16.gmra.mrb[0].mxu0 %v4600
      %v4739 = vpop.f32.mrb[0].mxu0
      %v4740 = vadd.f32 0.0, %v4739
      %v4741 = vpop.f32.mrb[0].mxu0
      %v4742 = vpop.f32.mrb[0].mxu0
      %v4743 = vadd.f32 0.0, %v4742
      %v4744 = vpop.f32.mrb[0].mxu0
      %4745 = vmatprep.mubr.bf16.mxu0 0
      %4746 = vmatmul.mubr.bf16.gmra.mrb[0].mxu0 %v4603
      %v4747 = vpop.f32.mrb[0].mxu0
      %v4748 = vadd.f32 0.0, %v4747
      %v4749 = vpop.f32.mrb[0].mxu0
      %v4750 = vpop.f32.mrb[0].mxu0
      %v4751 = vadd.f32 0.0, %v4750
      %v4752 = vpop.f32.mrb[0].mxu0
      %4753 = vmatprep.mubr.bf16.mxu0 0
      %4754 = vmatmul.mubr.bf16.gmra.mrb[0].mxu0 %v4606
      %v4755 = vpop.f32.mrb[0].mxu0
      %v4756 = vadd.f32 0.0, %v4755
      %v4757 = vpop.f32.mrb[0].mxu0
      %v4758 = vpop.f32.mrb[0].mxu0
      %v4759 = vadd.f32 0.0, %v4758
      %v4760 = vpop.f32.mrb[0].mxu0
      %4761 = vmatprep.mubr.bf16.mxu0 0
      %4762 = vmatmul.mubr.bf16.gmra.mrb[0].mxu0 %v4609
      %v4763 = vpop.f32.mrb[0].mxu0
      %v4764 = vadd.f32 0.0, %v4763
      %v4765 = vpop.f32.mrb[0].mxu0
      %v4766 = vpop.f32.mrb[0].mxu0
      %v4767 = vadd.f32 0.0, %v4766
      %v4768 = vpop.f32.mrb[0].mxu0
      %4769 = vmatprep.mubr.bf16.mxu0 0
      %4770 = vmatmul.mubr.bf16.gmra.mrb[0].mxu0 %v4612
      %v4771 = vpop.f32.mrb[0].mxu0
      %v4772 = vadd.f32 0.0, %v4771
      %v4773 = vpop.f32.mrb[0].mxu0
      %v4774 = vpop.f32.mrb[0].mxu0
      %v4775 = vadd.f32 0.0, %v4774
      %v4776 = vpop.f32.mrb[0].mxu0
      %4777 = vdwg.mxu0
      %v4778 = vadd.f32 %v4452, %v4652
      %v4779 = vadd.f32 %v4453, %v4655
      %v4780 = vadd.f32 %v4454, %v4660
      %v4781 = vadd.f32 %v4455, %v4663
      %v4782 = vadd.f32 %v4456, %v4668
      %v4783 = vadd.f32 %v4457, %v4671
      %v4784 = vadd.f32 %v4458, %v4676
      %v4785 = vadd.f32 %v4459, %v4679
      %v4786 = vadd.f32 %v4460, %v4684
      %v4787 = vadd.f32 %v4461, %v4687
      %v4788 = vadd.f32 %v4462, %v4692
      %v4789 = vadd.f32 %v4463, %v4695
      %v4790 = vadd.f32 %v4464, %v4700
      %v4791 = vadd.f32 %v4465, %v4703
      %v4792 = vadd.f32 %v4466, %v4708
      %v4793 = vadd.f32 %v4467, %v4711
      %v4794 = vadd.f32 %v4468, %v4716
      %v4795 = vadd.f32 %v4469, %v4719
      %v4796 = vadd.f32 %v4470, %v4724
      %v4797 = vadd.f32 %v4471, %v4727
      %v4798 = vadd.f32 %v4472, %v4732
      %v4799 = vadd.f32 %v4473, %v4735
      %v4800 = vadd.f32 %v4474, %v4740
      %v4801 = vadd.f32 %v4475, %v4743
      %v4802 = vadd.f32 %v4476, %v4748
      %v4803 = vadd.f32 %v4477, %v4751
      %v4804 = vadd.f32 %v4478, %v4756
      %v4805 = vadd.f32 %v4479, %v4759
      %v4806 = vadd.f32 %v4480, %v4764
      %v4807 = vadd.f32 %v4481, %v4767
      %v4808 = vadd.f32 %v4482, %v4772
      %v4809 = vadd.f32 %v4483, %v4775
      %v4810 = vld [vmem:[#allocation3 + $0x20] sm:$0xff]
      %v4811 = vld [vmem:[#allocation3 + $0x28] sm:$0xff]
      %v4812 = vld [vmem:[#allocation3 + $0x30] sm:$0xff]
      %v4813 = vld [vmem:[#allocation3 + $0x38] sm:$0xff]
      %v4814 = vld [vmem:[#allocation3 + $0x40] sm:$0xff]
      %v4815 = vld [vmem:[#allocation3 + $0x48] sm:$0xff]
      %v4816 = vld [vmem:[#allocation3 + $0x50] sm:$0xff]
      %v4817 = vld [vmem:[#allocation3 + $0x58] sm:$0xff]
      %v4818 = vld [vmem:[#allocation3 + $0x60] sm:$0xff]
      %v4819 = vld [vmem:[#allocation3 + $0x68] sm:$0xff]
      %v4820 = vld [vmem:[#allocation3 + $0x70] sm:$0xff]
      %v4821 = vld [vmem:[#allocation3 + $0x78] sm:$0xff]
      %v4822 = vld [vmem:[#allocation3 + $0x80] sm:$0xff]
      %v4823 = vld [vmem:[#allocation3 + $0x88] sm:$0xff]
      %v4824 = vld [vmem:[#allocation3 + $0x90] sm:$0xff]
      %v4825 = vld [vmem:[#allocation3 + $0x98] sm:$0xff]
      %v4826 = vld [vmem:[#allocation3 + $0xa0] sm:$0xff]
      %v4827 = vld [vmem:[#allocation3 + $0xa8] sm:$0xff]
      %v4828 = vld [vmem:[#allocation3 + $0xb0] sm:$0xff]
      %v4829 = vld [vmem:[#allocation3 + $0xb8] sm:$0xff]
      %v4830 = vld [vmem:[#allocation3 + $0xc0] sm:$0xff]
      %v4831 = vld [vmem:[#allocation3 + $0xc8] sm:$0xff]
      %v4832 = vld [vmem:[#allocation3 + $0xd0] sm:$0xff]
      %v4833 = vld [vmem:[#allocation3 + $0xd8] sm:$0xff]
      %v4834 = vld [vmem:[#allocation3 + $0xe0] sm:$0xff]
      %v4835 = vld [vmem:[#allocation3 + $0xe8] sm:$0xff]
      %v4836 = vld [vmem:[#allocation3 + $0xf0] sm:$0xff]
      %v4837 = vld [vmem:[#allocation3 + $0xf8] sm:$0xff]
      %v4838 = vld [vmem:[#allocation3 + $0x100] sm:$0xff]
      %v4839 = vld [vmem:[#allocation3 + $0x108] sm:$0xff]
      %v4840 = vld [vmem:[#allocation3 + $0x110] sm:$0xff]
      %v4841 = vld [vmem:[#allocation3 + $0x118] sm:$0xff]
      %v4842 = vpack.c.bf16 %v4811, %v4810
      %v4843 = vpack.c.bf16 %v4813, %v4812
      %v4844 = vpack.c.bf16 %v4815, %v4814
      %v4845 = vpack.c.bf16 %v4817, %v4816
      %v4846 = vpack.c.bf16 %v4819, %v4818
      %v4847 = vpack.c.bf16 %v4821, %v4820
      %v4848 = vpack.c.bf16 %v4823, %v4822
      %v4849 = vpack.c.bf16 %v4825, %v4824
      %v4850 = vpack.c.bf16 %v4827, %v4826
      %v4851 = vpack.c.bf16 %v4829, %v4828
      %v4852 = vpack.c.bf16 %v4831, %v4830
      %v4853 = vpack.c.bf16 %v4833, %v4832
      %v4854 = vpack.c.bf16 %v4835, %v4834
      %v4855 = vpack.c.bf16 %v4837, %v4836
      %v4856 = vpack.c.bf16 %v4839, %v4838
      %v4857 = vpack.c.bf16 %v4841, %v4840
      %s4858 = scalar_lea.vmem %s2, 8
      %v4859 = vld [vmem:[%s4858] sm:$0x3]
      %v4861 = vsel %vm258, %v4842, 0
      %v4864 = vsel %vm258, %v4843, 0
      %v4867 = vsel %vm258, %v4844, 0
      %v4870 = vsel %vm258, %v4845, 0
      %v4873 = vsel %vm258, %v4846, 0
      %v4876 = vsel %vm258, %v4847, 0
      %v4879 = vsel %vm258, %v4848, 0
      %v4882 = vsel %vm258, %v4849, 0
      %v4885 = vsel %vm258, %v4850, 0
      %v4888 = vsel %vm258, %v4851, 0
      %v4891 = vsel %vm258, %v4852, 0
      %v4894 = vsel %vm258, %v4853, 0
      %v4897 = vsel %vm258, %v4854, 0
      %v4900 = vsel %vm258, %v4855, 0
      %v4903 = vsel %vm258, %v4856, 0
      %v4906 = vsel %vm258, %v4857, 0
      %v4909 = vsel %vm702, %v4859, 0
      %4911 = vmatprep.subr.bf16.mxu0 0
      %4912 = vmatpush1.bf16.msra.mxu0 %v4909
      %4913 = vmatprep.subr.bf16.mxu0 0
      %4914 = vmatpush1.bf16.msra.mxu0 0
      %4915 = vmatprep.subr.bf16.mxu0 0
      %4916 = vmatpush1.bf16.msra.mxu0 0
      %4917 = vmatprep.subr.bf16.mxu0 0
      %4918 = vmatpush1.bf16.msra.mxu0 0
      %4919 = vmatprep.subr.bf16.mxu0 0
      %4920 = vmatpush1.bf16.msra.mxu0 0
      %4921 = vmatprep.subr.bf16.mxu0 0
      %4922 = vmatpush1.bf16.msra.mxu0 0
      %4923 = vmatprep.subr.bf16.mxu0 0
      %4924 = vmatpush1.bf16.msra.mxu0 0
      %4925 = vmatprep.subr.bf16.mxu0 0
      %4926 = vmatpush1.bf16.msra.mxu0 0
      %4927 = vmatprep.subr.bf16.mxu0 0
      %4928 = vmatpush1.bf16.msra.mxu0 0
      %4929 = vmatprep.subr.bf16.mxu0 0
      %4930 = vmatpush1.bf16.msra.mxu0 0
      %4931 = vmatprep.subr.bf16.mxu0 0
      %4932 = vmatpush1.bf16.msra.mxu0 0
      %4933 = vmatprep.subr.bf16.mxu0 0
      %4934 = vmatpush1.bf16.msra.mxu0 0
      %4935 = vmatprep.subr.bf16.mxu0 0
      %4936 = vmatpush1.bf16.msra.mxu0 0
      %4937 = vmatprep.subr.bf16.mxu0 0
      %4938 = vmatpush1.bf16.msra.mxu0 0
      %4939 = vmatprep.subr.bf16.mxu0 0
      %4940 = vmatpush1.bf16.msra.mxu0 0
      %4941 = vmatprep.subr.bf16.mxu0 0
      %4942 = vmatpush1.bf16.msra.mxu0 0
      %4943 = vmatprep.mubr.bf16.mxu0 0
      %4944 = vmatmul.mubr.bf16.gmra.mrb[0].mxu0 %v4861
      %v4945 = vpop.f32.mrb[0].mxu0
      %v4946 = vadd.f32 0.0, %v4945
      %v4947 = vpop.f32.mrb[0].mxu0
      %v4948 = vpop.f32.mrb[0].mxu0
      %v4949 = vadd.f32 0.0, %v4948
      %v4950 = vpop.f32.mrb[0].mxu0
      %4951 = vmatprep.mubr.bf16.mxu0 0
      %4952 = vmatmul.mubr.bf16.gmra.mrb[0].mxu0 %v4864
      %v4953 = vpop.f32.mrb[0].mxu0
      %v4954 = vadd.f32 0.0, %v4953
      %v4955 = vpop.f32.mrb[0].mxu0
      %v4956 = vpop.f32.mrb[0].mxu0
      %v4957 = vadd.f32 0.0, %v4956
      %v4958 = vpop.f32.mrb[0].mxu0
      %4959 = vmatprep.mubr.bf16.mxu0 0
      %4960 = vmatmul.mubr.bf16.gmra.mrb[0].mxu0 %v4867
      %v4961 = vpop.f32.mrb[0].mxu0
      %v4962 = vadd.f32 0.0, %v4961
      %v4963 = vpop.f32.mrb[0].mxu0
      %v4964 = vpop.f32.mrb[0].mxu0
      %v4965 = vadd.f32 0.0, %v4964
      %v4966 = vpop.f32.mrb[0].mxu0
      %4967 = vmatprep.mubr.bf16.mxu0 0
      %4968 = vmatmul.mubr.bf16.gmra.mrb[0].mxu0 %v4870
      %v4969 = vpop.f32.mrb[0].mxu0
      %v4970 = vadd.f32 0.0, %v4969
      %v4971 = vpop.f32.mrb[0].mxu0
      %v4972 = vpop.f32.mrb[0].mxu0
      %v4973 = vadd.f32 0.0, %v4972
      %v4974 = vpop.f32.mrb[0].mxu0
      %4975 = vmatprep.mubr.bf16.mxu0 0
      %4976 = vmatmul.mubr.bf16.gmra.mrb[0].mxu0 %v4873
      %v4977 = vpop.f32.mrb[0].mxu0
      %v4978 = vadd.f32 0.0, %v4977
      %v4979 = vpop.f32.mrb[0].mxu0
      %v4980 = vpop.f32.mrb[0].mxu0
      %v4981 = vadd.f32 0.0, %v4980
      %v4982 = vpop.f32.mrb[0].mxu0
      %4983 = vmatprep.mubr.bf16.mxu0 0
      %4984 = vmatmul.mubr.bf16.gmra.mrb[0].mxu0 %v4876
      %v4985 = vpop.f32.mrb[0].mxu0
      %v4986 = vadd.f32 0.0, %v4985
      %v4987 = vpop.f32.mrb[0].mxu0
      %v4988 = vpop.f32.mrb[0].mxu0
      %v4989 = vadd.f32 0.0, %v4988
      %v4990 = vpop.f32.mrb[0].mxu0
      %4991 = vmatprep.mubr.bf16.mxu0 0
      %4992 = vmatmul.mubr.bf16.gmra.mrb[0].mxu0 %v4879
      %v4993 = vpop.f32.mrb[0].mxu0
      %v4994 = vadd.f32 0.0, %v4993
      %v4995 = vpop.f32.mrb[0].mxu0
      %v4996 = vpop.f32.mrb[0].mxu0
      %v4997 = vadd.f32 0.0, %v4996
      %v4998 = vpop.f32.mrb[0].mxu0
      %4999 = vmatprep.mubr.bf16.mxu0 0
      %5000 = vmatmul.mubr.bf16.gmra.mrb[0].mxu0 %v4882
      %v5001 = vpop.f32.mrb[0].mxu0
      %v5002 = vadd.f32 0.0, %v5001
      %v5003 = vpop.f32.mrb[0].mxu0
      %v5004 = vpop.f32.mrb[0].mxu0
      %v5005 = vadd.f32 0.0, %v5004
      %v5006 = vpop.f32.mrb[0].mxu0
      %5007 = vmatprep.mubr.bf16.mxu0 0
      %5008 = vmatmul.mubr.bf16.gmra.mrb[0].mxu0 %v4885
      %v5009 = vpop.f32.mrb[0].mxu0
      %v5010 = vadd.f32 0.0, %v5009
      %v5011 = vpop.f32.mrb[0].mxu0
      %v5012 = vpop.f32.mrb[0].mxu0
      %v5013 = vadd.f32 0.0, %v5012
      %v5014 = vpop.f32.mrb[0].mxu0
      %5015 = vmatprep.mubr.bf16.mxu0 0
      %5016 = vmatmul.mubr.bf16.gmra.mrb[0].mxu0 %v4888
      %v5017 = vpop.f32.mrb[0].mxu0
      %v5018 = vadd.f32 0.0, %v5017
      %v5019 = vpop.f32.mrb[0].mxu0
      %v5020 = vpop.f32.mrb[0].mxu0
      %v5021 = vadd.f32 0.0, %v5020
      %v5022 = vpop.f32.mrb[0].mxu0
      %5023 = vmatprep.mubr.bf16.mxu0 0
      %5024 = vmatmul.mubr.bf16.gmra.mrb[0].mxu0 %v4891
      %v5025 = vpop.f32.mrb[0].mxu0
      %v5026 = vadd.f32 0.0, %v5025
      %v5027 = vpop.f32.mrb[0].mxu0
      %v5028 = vpop.f32.mrb[0].mxu0
      %v5029 = vadd.f32 0.0, %v5028
      %v5030 = vpop.f32.mrb[0].mxu0
      %5031 = vmatprep.mubr.bf16.mxu0 0
      %5032 = vmatmul.mubr.bf16.gmra.mrb[0].mxu0 %v4894
      %v5033 = vpop.f32.mrb[0].mxu0
      %v5034 = vadd.f32 0.0, %v5033
      %v5035 = vpop.f32.mrb[0].mxu0
      %v5036 = vpop.f32.mrb[0].mxu0
      %v5037 = vadd.f32 0.0, %v5036
      %v5038 = vpop.f32.mrb[0].mxu0
      %5039 = vmatprep.mubr.bf16.mxu0 0
      %5040 = vmatmul.mubr.bf16.gmra.mrb[0].mxu0 %v4897
      %v5041 = vpop.f32.mrb[0].mxu0
      %v5042 = vadd.f32 0.0, %v5041
      %v5043 = vpop.f32.mrb[0].mxu0
      %v5044 = vpop.f32.mrb[0].mxu0
      %v5045 = vadd.f32 0.0, %v5044
      %v5046 = vpop.f32.mrb[0].mxu0
      %5047 = vmatprep.mubr.bf16.mxu0 0
      %5048 = vmatmul.mubr.bf16.gmra.mrb[0].mxu0 %v4900
      %v5049 = vpop.f32.mrb[0].mxu0
      %v5050 = vadd.f32 0.0, %v5049
      %v5051 = vpop.f32.mrb[0].mxu0
      %v5052 = vpop.f32.mrb[0].mxu0
      %v5053 = vadd.f32 0.0, %v5052
      %v5054 = vpop.f32.mrb[0].mxu0
      %5055 = vmatprep.mubr.bf16.mxu0 0
      %5056 = vmatmul.mubr.bf16.gmra.mrb[0].mxu0 %v4903
      %v5057 = vpop.f32.mrb[0].mxu0
      %v5058 = vadd.f32 0.0, %v5057
      %v5059 = vpop.f32.mrb[0].mxu0
      %v5060 = vpop.f32.mrb[0].mxu0
      %v5061 = vadd.f32 0.0, %v5060
      %v5062 = vpop.f32.mrb[0].mxu0
      %5063 = vmatprep.mubr.bf16.mxu0 0
      %5064 = vmatmul.mubr.bf16.gmra.mrb[0].mxu0 %v4906
      %v5065 = vpop.f32.mrb[0].mxu0
      %v5066 = vadd.f32 0.0, %v5065
      %v5067 = vpop.f32.mrb[0].mxu0
      %v5068 = vpop.f32.mrb[0].mxu0
      %v5069 = vadd.f32 0.0, %v5068
      %v5070 = vpop.f32.mrb[0].mxu0
      %5071 = vdwg.mxu0
      %v5072 = vadd.f32 %v4778, %v4946
      %v5073 = vadd.f32 %v4779, %v4949
      %v5074 = vadd.f32 %v4780, %v4954
      %v5075 = vadd.f32 %v4781, %v4957
      %v5076 = vadd.f32 %v4782, %v4962
      %v5077 = vadd.f32 %v4783, %v4965
      %v5078 = vadd.f32 %v4784, %v4970
      %v5079 = vadd.f32 %v4785, %v4973
      %v5080 = vadd.f32 %v4786, %v4978
      %v5081 = vadd.f32 %v4787, %v4981
      %v5082 = vadd.f32 %v4788, %v4986
      %v5083 = vadd.f32 %v4789, %v4989
      %v5084 = vadd.f32 %v4790, %v4994
      %v5085 = vadd.f32 %v4791, %v4997
      %v5086 = vadd.f32 %v4792, %v5002
      %v5087 = vadd.f32 %v4793, %v5005
      %v5088 = vadd.f32 %v4794, %v5010
      %v5089 = vadd.f32 %v4795, %v5013
      %v5090 = vadd.f32 %v4796, %v5018
      %v5091 = vadd.f32 %v4797, %v5021
      %v5092 = vadd.f32 %v4798, %v5026
      %v5093 = vadd.f32 %v4799, %v5029
      %v5094 = vadd.f32 %v4800, %v5034
      %v5095 = vadd.f32 %v4801, %v5037
      %v5096 = vadd.f32 %v4802, %v5042
      %v5097 = vadd.f32 %v4803, %v5045
      %v5098 = vadd.f32 %v4804, %v5050
      %v5099 = vadd.f32 %v4805, %v5053
      %v5100 = vadd.f32 %v4806, %v5058
      %v5101 = vadd.f32 %v4807, %v5061
      %v5102 = vadd.f32 %v4808, %v5066
      %v5103 = vadd.f32 %v4809, %v5069
      %v5104 = vld [vmem:[#allocation3 + $0x21] sm:$0xff]
      %v5105 = vld [vmem:[#allocation3 + $0x29] sm:$0xff]
      %v5106 = vld [vmem:[#allocation3 + $0x31] sm:$0xff]
      %v5107 = vld [vmem:[#allocation3 + $0x39] sm:$0xff]
      %v5108 = vld [vmem:[#allocation3 + $0x41] sm:$0xff]
      %v5109 = vld [vmem:[#allocation3 + $0x49] sm:$0xff]
      %v5110 = vld [vmem:[#allocation3 + $0x51] sm:$0xff]
      %v5111 = vld [vmem:[#allocation3 + $0x59] sm:$0xff]
      %v5112 = vld [vmem:[#allocation3 + $0x61] sm:$0xff]
      %v5113 = vld [vmem:[#allocation3 + $0x69] sm:$0xff]
      %v5114 = vld [vmem:[#allocation3 + $0x71] sm:$0xff]
      %v5115 = vld [vmem:[#allocation3 + $0x79] sm:$0xff]
      %v5116 = vld [vmem:[#allocation3 + $0x81] sm:$0xff]
      %v5117 = vld [vmem:[#allocation3 + $0x89] sm:$0xff]
      %v5118 = vld [vmem:[#allocation3 + $0x91] sm:$0xff]
      %v5119 = vld [vmem:[#allocation3 + $0x99] sm:$0xff]
      %v5120 = vld [vmem:[#allocation3 + $0xa1] sm:$0xff]
      %v5121 = vld [vmem:[#allocation3 + $0xa9] sm:$0xff]
      %v5122 = vld [vmem:[#allocation3 + $0xb1] sm:$0xff]
      %v5123 = vld [vmem:[#allocation3 + $0xb9] sm:$0xff]
      %v5124 = vld [vmem:[#allocation3 + $0xc1] sm:$0xff]
      %v5125 = vld [vmem:[#allocation3 + $0xc9] sm:$0xff]
      %v5126 = vld [vmem:[#allocation3 + $0xd1] sm:$0xff]
      %v5127 = vld [vmem:[#allocation3 + $0xd9] sm:$0xff]
      %v5128 = vld [vmem:[#allocation3 + $0xe1] sm:$0xff]
      %v5129 = vld [vmem:[#allocation3 + $0xe9] sm:$0xff]
      %v5130 = vld [vmem:[#allocation3 + $0xf1] sm:$0xff]
      %v5131 = vld [vmem:[#allocation3 + $0xf9] sm:$0xff]
      %v5132 = vld [vmem:[#allocation3 + $0x101] sm:$0xff]
      %v5133 = vld [vmem:[#allocation3 + $0x109] sm:$0xff]
      %v5134 = vld [vmem:[#allocation3 + $0x111] sm:$0xff]
      %v5135 = vld [vmem:[#allocation3 + $0x119] sm:$0xff]
      %v5136 = vmul.f32 %v5104, %v1113
      %v5137 = vmul.f32 %v5105, %v1117
      %v5138 = vmul.f32 %v5106, %v1121
      %v5139 = vmul.f32 %v5107, %v1125
      %v5140 = vmul.f32 %v5108, %v1129
      %v5141 = vmul.f32 %v5109, %v1133
      %v5142 = vmul.f32 %v5110, %v1137
      %v5143 = vmul.f32 %v5111, %v1141
      %v5144 = vmul.f32 %v5112, %v1145
      %v5145 = vmul.f32 %v5113, %v1149
      %v5146 = vmul.f32 %v5114, %v1153
      %v5147 = vmul.f32 %v5115, %v1157
      %v5148 = vmul.f32 %v5116, %v1161
      %v5149 = vmul.f32 %v5117, %v1165
      %v5150 = vmul.f32 %v5118, %v1169
      %v5151 = vmul.f32 %v5119, %v1173
      %v5152 = vmul.f32 %v5120, %v1177
      %v5153 = vmul.f32 %v5121, %v1181
      %v5154 = vmul.f32 %v5122, %v1185
      %v5155 = vmul.f32 %v5123, %v1189
      %v5156 = vmul.f32 %v5124, %v1193
      %v5157 = vmul.f32 %v5125, %v1197
      %v5158 = vmul.f32 %v5126, %v1201
      %v5159 = vmul.f32 %v5127, %v1205
      %v5160 = vmul.f32 %v5128, %v1209
      %v5161 = vmul.f32 %v5129, %v1213
      %v5162 = vmul.f32 %v5130, %v1217
      %v5163 = vmul.f32 %v5131, %v1221
      %v5164 = vmul.f32 %v5132, %v1225
      %v5165 = vmul.f32 %v5133, %v1229
      %v5166 = vmul.f32 %v5134, %v1233
      %v5167 = vmul.f32 %v5135, %v1237
      %v5168 = vpack.c.bf16 %v5137, %v5136
      %v5169 = vpack.c.bf16 %v5139, %v5138
      %v5170 = vpack.c.bf16 %v5141, %v5140
      %v5171 = vpack.c.bf16 %v5143, %v5142
      %v5172 = vpack.c.bf16 %v5145, %v5144
      %v5173 = vpack.c.bf16 %v5147, %v5146
      %v5174 = vpack.c.bf16 %v5149, %v5148
      %v5175 = vpack.c.bf16 %v5151, %v5150
      %v5176 = vpack.c.bf16 %v5153, %v5152
      %v5177 = vpack.c.bf16 %v5155, %v5154
      %v5178 = vpack.c.bf16 %v5157, %v5156
      %v5179 = vpack.c.bf16 %v5159, %v5158
      %v5180 = vpack.c.bf16 %v5161, %v5160
      %v5181 = vpack.c.bf16 %v5163, %v5162
      %v5182 = vpack.c.bf16 %v5165, %v5164
      %v5183 = vpack.c.bf16 %v5167, %v5166
      %s5184 = scalar_lea.vmem %s2, 10
      %v5185 = vld [vmem:[%s5184] sm:$0x3]
      %v5187 = vsel %vm258, %v5168, 0
      %v5190 = vsel %vm258, %v5169, 0
      %v5193 = vsel %vm258, %v5170, 0
      %v5196 = vsel %vm258, %v5171, 0
      %v5199 = vsel %vm258, %v5172, 0
      %v5202 = vsel %vm258, %v5173, 0
      %v5205 = vsel %vm258, %v5174, 0
      %v5208 = vsel %vm258, %v5175, 0
      %v5211 = vsel %vm258, %v5176, 0
      %v5214 = vsel %vm258, %v5177, 0
      %v5217 = vsel %vm258, %v5178, 0
      %v5220 = vsel %vm258, %v5179, 0
      %v5223 = vsel %vm258, %v5180, 0
      %v5226 = vsel %vm258, %v5181, 0
      %v5229 = vsel %vm258, %v5182, 0
      %v5232 = vsel %vm258, %v5183, 0
      %v5235 = vsel %vm702, %v5185, 0
      %5237 = vmatprep.subr.bf16.mxu0 0
      %5238 = vmatpush1.bf16.msra.mxu0 %v5235
      %5239 = vmatprep.subr.bf16.mxu0 0
      %5240 = vmatpush1.bf16.msra.mxu0 0
      %5241 = vmatprep.subr.bf16.mxu0 0
      %5242 = vmatpush1.bf16.msra.mxu0 0
      %5243 = vmatprep.subr.bf16.mxu0 0
      %5244 = vmatpush1.bf16.msra.mxu0 0
      %5245 = vmatprep.subr.bf16.mxu0 0
      %5246 = vmatpush1.bf16.msra.mxu0 0
      %5247 = vmatprep.subr.bf16.mxu0 0
      %5248 = vmatpush1.bf16.msra.mxu0 0
      %5249 = vmatprep.subr.bf16.mxu0 0
      %5250 = vmatpush1.bf16.msra.mxu0 0
      %5251 = vmatprep.subr.bf16.mxu0 0
      %5252 = vmatpush1.bf16.msra.mxu0 0
      %5253 = vmatprep.subr.bf16.mxu0 0
      %5254 = vmatpush1.bf16.msra.mxu0 0
      %5255 = vmatprep.subr.bf16.mxu0 0
      %5256 = vmatpush1.bf16.msra.mxu0 0
      %5257 = vmatprep.subr.bf16.mxu0 0
      %5258 = vmatpush1.bf16.msra.mxu0 0
      %5259 = vmatprep.subr.bf16.mxu0 0
      %5260 = vmatpush1.bf16.msra.mxu0 0
      %5261 = vmatprep.subr.bf16.mxu0 0
      %5262 = vmatpush1.bf16.msra.mxu0 0
      %5263 = vmatprep.subr.bf16.mxu0 0
      %5264 = vmatpush1.bf16.msra.mxu0 0
      %5265 = vmatprep.subr.bf16.mxu0 0
      %5266 = vmatpush1.bf16.msra.mxu0 0
      %5267 = vmatprep.subr.bf16.mxu0 0
      %5268 = vmatpush1.bf16.msra.mxu0 0
      %5269 = vmatprep.mubr.bf16.mxu0 0
      %5270 = vmatmul.mubr.bf16.gmra.mrb[0].mxu0 %v5187
      %v5271 = vpop.f32.mrb[0].mxu0
      %v5272 = vadd.f32 0.0, %v5271
      %v5273 = vpop.f32.mrb[0].mxu0
      %v5274 = vpop.f32.mrb[0].mxu0
      %v5275 = vadd.f32 0.0, %v5274
      %v5276 = vpop.f32.mrb[0].mxu0
      %5277 = vmatprep.mubr.bf16.mxu0 0
      %5278 = vmatmul.mubr.bf16.gmra.mrb[0].mxu0 %v5190
      %v5279 = vpop.f32.mrb[0].mxu0
      %v5280 = vadd.f32 0.0, %v5279
      %v5281 = vpop.f32.mrb[0].mxu0
      %v5282 = vpop.f32.mrb[0].mxu0
      %v5283 = vadd.f32 0.0, %v5282
      %v5284 = vpop.f32.mrb[0].mxu0
      %5285 = vmatprep.mubr.bf16.mxu0 0
      %5286 = vmatmul.mubr.bf16.gmra.mrb[0].mxu0 %v5193
      %v5287 = vpop.f32.mrb[0].mxu0
      %v5288 = vadd.f32 0.0, %v5287
      %v5289 = vpop.f32.mrb[0].mxu0
      %v5290 = vpop.f32.mrb[0].mxu0
      %v5291 = vadd.f32 0.0, %v5290
      %v5292 = vpop.f32.mrb[0].mxu0
      %5293 = vmatprep.mubr.bf16.mxu0 0
      %5294 = vmatmul.mubr.bf16.gmra.mrb[0].mxu0 %v5196
      %v5295 = vpop.f32.mrb[0].mxu0
      %v5296 = vadd.f32 0.0, %v5295
      %v5297 = vpop.f32.mrb[0].mxu0
      %v5298 = vpop.f32.mrb[0].mxu0
      %v5299 = vadd.f32 0.0, %v5298
      %v5300 = vpop.f32.mrb[0].mxu0
      %5301 = vmatprep.mubr.bf16.mxu0 0
      %5302 = vmatmul.mubr.bf16.gmra.mrb[0].mxu0 %v5199
      %v5303 = vpop.f32.mrb[0].mxu0
      %v5304 = vadd.f32 0.0, %v5303
      %v5305 = vpop.f32.mrb[0].mxu0
      %v5306 = vpop.f32.mrb[0].mxu0
      %v5307 = vadd.f32 0.0, %v5306
      %v5308 = vpop.f32.mrb[0].mxu0
      %5309 = vmatprep.mubr.bf16.mxu0 0
      %5310 = vmatmul.mubr.bf16.gmra.mrb[0].mxu0 %v5202
      %v5311 = vpop.f32.mrb[0].mxu0
      %v5312 = vadd.f32 0.0, %v5311
      %v5313 = vpop.f32.mrb[0].mxu0
      %v5314 = vpop.f32.mrb[0].mxu0
      %v5315 = vadd.f32 0.0, %v5314
      %v5316 = vpop.f32.mrb[0].mxu0
      %5317 = vmatprep.mubr.bf16.mxu0 0
      %5318 = vmatmul.mubr.bf16.gmra.mrb[0].mxu0 %v5205
      %v5319 = vpop.f32.mrb[0].mxu0
      %v5320 = vadd.f32 0.0, %v5319
      %v5321 = vpop.f32.mrb[0].mxu0
      %v5322 = vpop.f32.mrb[0].mxu0
      %v5323 = vadd.f32 0.0, %v5322
      %v5324 = vpop.f32.mrb[0].mxu0
      %5325 = vmatprep.mubr.bf16.mxu0 0
      %5326 = vmatmul.mubr.bf16.gmra.mrb[0].mxu0 %v5208
      %v5327 = vpop.f32.mrb[0].mxu0
      %v5328 = vadd.f32 0.0, %v5327
      %v5329 = vpop.f32.mrb[0].mxu0
      %v5330 = vpop.f32.mrb[0].mxu0
      %v5331 = vadd.f32 0.0, %v5330
      %v5332 = vpop.f32.mrb[0].mxu0
      %5333 = vmatprep.mubr.bf16.mxu0 0
      %5334 = vmatmul.mubr.bf16.gmra.mrb[0].mxu0 %v5211
      %v5335 = vpop.f32.mrb[0].mxu0
      %v5336 = vadd.f32 0.0, %v5335
      %v5337 = vpop.f32.mrb[0].mxu0
      %v5338 = vpop.f32.mrb[0].mxu0
      %v5339 = vadd.f32 0.0, %v5338
      %v5340 = vpop.f32.mrb[0].mxu0
      %5341 = vmatprep.mubr.bf16.mxu0 0
      %5342 = vmatmul.mubr.bf16.gmra.mrb[0].mxu0 %v5214
      %v5343 = vpop.f32.mrb[0].mxu0
      %v5344 = vadd.f32 0.0, %v5343
      %v5345 = vpop.f32.mrb[0].mxu0
      %v5346 = vpop.f32.mrb[0].mxu0
      %v5347 = vadd.f32 0.0, %v5346
      %v5348 = vpop.f32.mrb[0].mxu0
      %5349 = vmatprep.mubr.bf16.mxu0 0
      %5350 = vmatmul.mubr.bf16.gmra.mrb[0].mxu0 %v5217
      %v5351 = vpop.f32.mrb[0].mxu0
      %v5352 = vadd.f32 0.0, %v5351
      %v5353 = vpop.f32.mrb[0].mxu0
      %v5354 = vpop.f32.mrb[0].mxu0
      %v5355 = vadd.f32 0.0, %v5354
      %v5356 = vpop.f32.mrb[0].mxu0
      %5357 = vmatprep.mubr.bf16.mxu0 0
      %5358 = vmatmul.mubr.bf16.gmra.mrb[0].mxu0 %v5220
      %v5359 = vpop.f32.mrb[0].mxu0
      %v5360 = vadd.f32 0.0, %v5359
      %v5361 = vpop.f32.mrb[0].mxu0
      %v5362 = vpop.f32.mrb[0].mxu0
      %v5363 = vadd.f32 0.0, %v5362
      %v5364 = vpop.f32.mrb[0].mxu0
      %5365 = vmatprep.mubr.bf16.mxu0 0
      %5366 = vmatmul.mubr.bf16.gmra.mrb[0].mxu0 %v5223
      %v5367 = vpop.f32.mrb[0].mxu0
      %v5368 = vadd.f32 0.0, %v5367
      %v5369 = vpop.f32.mrb[0].mxu0
      %v5370 = vpop.f32.mrb[0].mxu0
      %v5371 = vadd.f32 0.0, %v5370
      %v5372 = vpop.f32.mrb[0].mxu0
      %5373 = vmatprep.mubr.bf16.mxu0 0
      %5374 = vmatmul.mubr.bf16.gmra.mrb[0].mxu0 %v5226
      %v5375 = vpop.f32.mrb[0].mxu0
      %v5376 = vadd.f32 0.0, %v5375
      %v5377 = vpop.f32.mrb[0].mxu0
      %v5378 = vpop.f32.mrb[0].mxu0
      %v5379 = vadd.f32 0.0, %v5378
      %v5380 = vpop.f32.mrb[0].mxu0
      %5381 = vmatprep.mubr.bf16.mxu0 0
      %5382 = vmatmul.mubr.bf16.gmra.mrb[0].mxu0 %v5229
      %v5383 = vpop.f32.mrb[0].mxu0
      %v5384 = vadd.f32 0.0, %v5383
      %v5385 = vpop.f32.mrb[0].mxu0
      %v5386 = vpop.f32.mrb[0].mxu0
      %v5387 = vadd.f32 0.0, %v5386
      %v5388 = vpop.f32.mrb[0].mxu0
      %5389 = vmatprep.mubr.bf16.mxu0 0
      %5390 = vmatmul.mubr.bf16.gmra.mrb[0].mxu0 %v5232
      %v5391 = vpop.f32.mrb[0].mxu0
      %v5392 = vadd.f32 0.0, %v5391
      %v5393 = vpop.f32.mrb[0].mxu0
      %v5394 = vpop.f32.mrb[0].mxu0
      %v5395 = vadd.f32 0.0, %v5394
      %v5396 = vpop.f32.mrb[0].mxu0
      %5397 = vdwg.mxu0
      %v5398 = vadd.f32 %v5072, %v5272
      %v5399 = vadd.f32 %v5073, %v5275
      %v5400 = vadd.f32 %v5074, %v5280
      %v5401 = vadd.f32 %v5075, %v5283
      %v5402 = vadd.f32 %v5076, %v5288
      %v5403 = vadd.f32 %v5077, %v5291
      %v5404 = vadd.f32 %v5078, %v5296
      %v5405 = vadd.f32 %v5079, %v5299
      %v5406 = vadd.f32 %v5080, %v5304
      %v5407 = vadd.f32 %v5081, %v5307
      %v5408 = vadd.f32 %v5082, %v5312
      %v5409 = vadd.f32 %v5083, %v5315
      %v5410 = vadd.f32 %v5084, %v5320
      %v5411 = vadd.f32 %v5085, %v5323
      %v5412 = vadd.f32 %v5086, %v5328
      %v5413 = vadd.f32 %v5087, %v5331
      %v5414 = vadd.f32 %v5088, %v5336
      %v5415 = vadd.f32 %v5089, %v5339
      %v5416 = vadd.f32 %v5090, %v5344
      %v5417 = vadd.f32 %v5091, %v5347
      %v5418 = vadd.f32 %v5092, %v5352
      %v5419 = vadd.f32 %v5093, %v5355
      %v5420 = vadd.f32 %v5094, %v5360
      %v5421 = vadd.f32 %v5095, %v5363
      %v5422 = vadd.f32 %v5096, %v5368
      %v5423 = vadd.f32 %v5097, %v5371
      %v5424 = vadd.f32 %v5098, %v5376
      %v5425 = vadd.f32 %v5099, %v5379
      %v5426 = vadd.f32 %v5100, %v5384
      %v5427 = vadd.f32 %v5101, %v5387
      %v5428 = vadd.f32 %v5102, %v5392
      %v5429 = vadd.f32 %v5103, %v5395
      %v5430 = vld [vmem:[#allocation3 + $0x2f] sm:$0xff]
      %v5431 = vld [vmem:[#allocation3 + $0x37] sm:$0xff]
      %v5432 = vld [vmem:[#allocation3 + $0x3f] sm:$0xff]
      %v5433 = vld [vmem:[#allocation3 + $0x47] sm:$0xff]
      %v5434 = vld [vmem:[#allocation3 + $0x4f] sm:$0xff]
      %v5435 = vld [vmem:[#allocation3 + $0x57] sm:$0xff]
      %v5436 = vld [vmem:[#allocation3 + $0x5f] sm:$0xff]
      %v5437 = vld [vmem:[#allocation3 + $0x67] sm:$0xff]
      %v5438 = vld [vmem:[#allocation3 + $0x6f] sm:$0xff]
      %v5439 = vld [vmem:[#allocation3 + $0x77] sm:$0xff]
      %v5440 = vld [vmem:[#allocation3 + $0x7f] sm:$0xff]
      %v5441 = vld [vmem:[#allocation3 + $0x87] sm:$0xff]
      %v5442 = vld [vmem:[#allocation3 + $0x8f] sm:$0xff]
      %v5443 = vld [vmem:[#allocation3 + $0x97] sm:$0xff]
      %v5444 = vld [vmem:[#allocation3 + $0x9f] sm:$0xff]
      %v5445 = vld [vmem:[#allocation3 + $0xa7] sm:$0xff]
      %v5446 = vld [vmem:[#allocation3 + $0xaf] sm:$0xff]
      %v5447 = vld [vmem:[#allocation3 + $0xb7] sm:$0xff]
      %v5448 = vld [vmem:[#allocation3 + $0xbf] sm:$0xff]
      %v5449 = vld [vmem:[#allocation3 + $0xc7] sm:$0xff]
      %v5450 = vld [vmem:[#allocation3 + $0xcf] sm:$0xff]
      %v5451 = vld [vmem:[#allocation3 + $0xd7] sm:$0xff]
      %v5452 = vld [vmem:[#allocation3 + $0xdf] sm:$0xff]
      %v5453 = vld [vmem:[#allocation3 + $0xe7] sm:$0xff]
      %v5454 = vld [vmem:[#allocation3 + $0xef] sm:$0xff]
      %v5455 = vld [vmem:[#allocation3 + $0xf7] sm:$0xff]
      %v5456 = vld [vmem:[#allocation3 + $0xff] sm:$0xff]
      %v5457 = vld [vmem:[#allocation3 + $0x107] sm:$0xff]
      %v5458 = vld [vmem:[#allocation3 + $0x10f] sm:$0xff]
      %v5459 = vld [vmem:[#allocation3 + $0x117] sm:$0xff]
      %v5460 = vld [vmem:[#allocation3 + $0x11f] sm:$0xff]
      %v5461 = vld [vmem:[#allocation3 + $0x127] sm:$0xff]
      %v5462 = vmul.f32 %v5430, %v398
      %v5463 = vmul.f32 %v5431, %v403
      %v5464 = vmul.f32 %v5432, %v408
      %v5465 = vmul.f32 %v5433, %v413
      %v5466 = vmul.f32 %v5434, %v418
      %v5467 = vmul.f32 %v5435, %v423
      %v5468 = vmul.f32 %v5436, %v428
      %v5469 = vmul.f32 %v5437, %v433
      %v5470 = vmul.f32 %v5438, %v438
      %v5471 = vmul.f32 %v5439, %v443
      %v5472 = vmul.f32 %v5440, %v448
      %v5473 = vmul.f32 %v5441, %v453
      %v5474 = vmul.f32 %v5442, %v458
      %v5475 = vmul.f32 %v5443, %v463
      %v5476 = vmul.f32 %v5444, %v468
      %v5477 = vmul.f32 %v5445, %v473
      %v5478 = vmul.f32 %v5446, %v478
      %v5479 = vmul.f32 %v5447, %v483
      %v5480 = vmul.f32 %v5448, %v488
      %v5481 = vmul.f32 %v5449, %v493
      %v5482 = vmul.f32 %v5450, %v498
      %v5483 = vmul.f32 %v5451, %v503
      %v5484 = vmul.f32 %v5452, %v508
      %v5485 = vmul.f32 %v5453, %v513
      %v5486 = vmul.f32 %v5454, %v518
      %v5487 = vmul.f32 %v5455, %v523
      %v5488 = vmul.f32 %v5456, %v528
      %v5489 = vmul.f32 %v5457, %v533
      %v5490 = vmul.f32 %v5458, %v538
      %v5491 = vmul.f32 %v5459, %v543
      %v5492 = vmul.f32 %v5460, %v548
      %v5493 = vmul.f32 %v5461, %v553
      %v5494 = vpack.c.bf16 %v5463, %v5462
      %v5495 = vpack.c.bf16 %v5465, %v5464
      %v5496 = vpack.c.bf16 %v5467, %v5466
      %v5497 = vpack.c.bf16 %v5469, %v5468
      %v5498 = vpack.c.bf16 %v5471, %v5470
      %v5499 = vpack.c.bf16 %v5473, %v5472
      %v5500 = vpack.c.bf16 %v5475, %v5474
      %v5501 = vpack.c.bf16 %v5477, %v5476
      %v5502 = vpack.c.bf16 %v5479, %v5478
      %v5503 = vpack.c.bf16 %v5481, %v5480
      %v5504 = vpack.c.bf16 %v5483, %v5482
      %v5505 = vpack.c.bf16 %v5485, %v5484
      %v5506 = vpack.c.bf16 %v5487, %v5486
      %v5507 = vpack.c.bf16 %v5489, %v5488
      %v5508 = vpack.c.bf16 %v5491, %v5490
      %v5509 = vpack.c.bf16 %v5493, %v5492
      %s5510 = scalar_lea.vmem %s2, 12
      %v5511 = vld [vmem:[%s5510] sm:$0x3]
      %v5513 = vsel %vm258, %v5494, 0
      %v5516 = vsel %vm258, %v5495, 0
      %v5519 = vsel %vm258, %v5496, 0
      %v5522 = vsel %vm258, %v5497, 0
      %v5525 = vsel %vm258, %v5498, 0
      %v5528 = vsel %vm258, %v5499, 0
      %v5531 = vsel %vm258, %v5500, 0
      %v5534 = vsel %vm258, %v5501, 0
      %v5537 = vsel %vm258, %v5502, 0
      %v5540 = vsel %vm258, %v5503, 0
      %v5543 = vsel %vm258, %v5504, 0
      %v5546 = vsel %vm258, %v5505, 0
      %v5549 = vsel %vm258, %v5506, 0
      %v5552 = vsel %vm258, %v5507, 0
      %v5555 = vsel %vm258, %v5508, 0
      %v5558 = vsel %vm258, %v5509, 0
      %v5561 = vsel %vm702, %v5511, 0
      %5563 = vmatprep.subr.bf16.mxu0 0
      %5564 = vmatpush1.bf16.msra.mxu0 %v5561
      %5565 = vmatprep.subr.bf16.mxu0 0
      %5566 = vmatpush1.bf16.msra.mxu0 0
      %5567 = vmatprep.subr.bf16.mxu0 0
      %5568 = vmatpush1.bf16.msra.mxu0 0
      %5569 = vmatprep.subr.bf16.mxu0 0
      %5570 = vmatpush1.bf16.msra.mxu0 0
      %5571 = vmatprep.subr.bf16.mxu0 0
      %5572 = vmatpush1.bf16.msra.mxu0 0
      %5573 = vmatprep.subr.bf16.mxu0 0
      %5574 = vmatpush1.bf16.msra.mxu0 0
      %5575 = vmatprep.subr.bf16.mxu0 0
      %5576 = vmatpush1.bf16.msra.mxu0 0
      %5577 = vmatprep.subr.bf16.mxu0 0
      %5578 = vmatpush1.bf16.msra.mxu0 0
      %5579 = vmatprep.subr.bf16.mxu0 0
      %5580 = vmatpush1.bf16.msra.mxu0 0
      %5581 = vmatprep.subr.bf16.mxu0 0
      %5582 = vmatpush1.bf16.msra.mxu0 0
      %5583 = vmatprep.subr.bf16.mxu0 0
      %5584 = vmatpush1.bf16.msra.mxu0 0
      %5585 = vmatprep.subr.bf16.mxu0 0
      %5586 = vmatpush1.bf16.msra.mxu0 0
      %5587 = vmatprep.subr.bf16.mxu0 0
      %5588 = vmatpush1.bf16.msra.mxu0 0
      %5589 = vmatprep.subr.bf16.mxu0 0
      %5590 = vmatpush1.bf16.msra.mxu0 0
      %5591 = vmatprep.subr.bf16.mxu0 0
      %5592 = vmatpush1.bf16.msra.mxu0 0
      %5593 = vmatprep.subr.bf16.mxu0 0
      %5594 = vmatpush1.bf16.msra.mxu0 0
      %5595 = vmatprep.mubr.bf16.mxu0 0
      %5596 = vmatmul.mubr.bf16.gmra.mrb[0].mxu0 %v5513
      %v5597 = vpop.f32.mrb[0].mxu0
      %v5598 = vadd.f32 0.0, %v5597
      %v5599 = vpop.f32.mrb[0].mxu0
      %v5600 = vpop.f32.mrb[0].mxu0
      %v5601 = vadd.f32 0.0, %v5600
      %v5602 = vpop.f32.mrb[0].mxu0
      %5603 = vmatprep.mubr.bf16.mxu0 0
      %5604 = vmatmul.mubr.bf16.gmra.mrb[0].mxu0 %v5516
      %v5605 = vpop.f32.mrb[0].mxu0
      %v5606 = vadd.f32 0.0, %v5605
      %v5607 = vpop.f32.mrb[0].mxu0
      %v5608 = vpop.f32.mrb[0].mxu0
      %v5609 = vadd.f32 0.0, %v5608
      %v5610 = vpop.f32.mrb[0].mxu0
      %5611 = vmatprep.mubr.bf16.mxu0 0
      %5612 = vmatmul.mubr.bf16.gmra.mrb[0].mxu0 %v5519
      %v5613 = vpop.f32.mrb[0].mxu0
      %v5614 = vadd.f32 0.0, %v5613
      %v5615 = vpop.f32.mrb[0].mxu0
      %v5616 = vpop.f32.mrb[0].mxu0
      %v5617 = vadd.f32 0.0, %v5616
      %v5618 = vpop.f32.mrb[0].mxu0
      %5619 = vmatprep.mubr.bf16.mxu0 0
      %5620 = vmatmul.mubr.bf16.gmra.mrb[0].mxu0 %v5522
      %v5621 = vpop.f32.mrb[0].mxu0
      %v5622 = vadd.f32 0.0, %v5621
      %v5623 = vpop.f32.mrb[0].mxu0
      %v5624 = vpop.f32.mrb[0].mxu0
      %v5625 = vadd.f32 0.0, %v5624
      %v5626 = vpop.f32.mrb[0].mxu0
      %5627 = vmatprep.mubr.bf16.mxu0 0
      %5628 = vmatmul.mubr.bf16.gmra.mrb[0].mxu0 %v5525
      %v5629 = vpop.f32.mrb[0].mxu0
      %v5630 = vadd.f32 0.0, %v5629
      %v5631 = vpop.f32.mrb[0].mxu0
      %v5632 = vpop.f32.mrb[0].mxu0
      %v5633 = vadd.f32 0.0, %v5632
      %v5634 = vpop.f32.mrb[0].mxu0
      %5635 = vmatprep.mubr.bf16.mxu0 0
      %5636 = vmatmul.mubr.bf16.gmra.mrb[0].mxu0 %v5528
      %v5637 = vpop.f32.mrb[0].mxu0
      %v5638 = vadd.f32 0.0, %v5637
      %v5639 = vpop.f32.mrb[0].mxu0
      %v5640 = vpop.f32.mrb[0].mxu0
      %v5641 = vadd.f32 0.0, %v5640
      %v5642 = vpop.f32.mrb[0].mxu0
      %5643 = vmatprep.mubr.bf16.mxu0 0
      %5644 = vmatmul.mubr.bf16.gmra.mrb[0].mxu0 %v5531
      %v5645 = vpop.f32.mrb[0].mxu0
      %v5646 = vadd.f32 0.0, %v5645
      %v5647 = vpop.f32.mrb[0].mxu0
      %v5648 = vpop.f32.mrb[0].mxu0
      %v5649 = vadd.f32 0.0, %v5648
      %v5650 = vpop.f32.mrb[0].mxu0
      %5651 = vmatprep.mubr.bf16.mxu0 0
      %5652 = vmatmul.mubr.bf16.gmra.mrb[0].mxu0 %v5534
      %v5653 = vpop.f32.mrb[0].mxu0
      %v5654 = vadd.f32 0.0, %v5653
      %v5655 = vpop.f32.mrb[0].mxu0
      %v5656 = vpop.f32.mrb[0].mxu0
      %v5657 = vadd.f32 0.0, %v5656
      %v5658 = vpop.f32.mrb[0].mxu0
      %5659 = vmatprep.mubr.bf16.mxu0 0
      %5660 = vmatmul.mubr.bf16.gmra.mrb[0].mxu0 %v5537
      %v5661 = vpop.f32.mrb[0].mxu0
      %v5662 = vadd.f32 0.0, %v5661
      %v5663 = vpop.f32.mrb[0].mxu0
      %v5664 = vpop.f32.mrb[0].mxu0
      %v5665 = vadd.f32 0.0, %v5664
      %v5666 = vpop.f32.mrb[0].mxu0
      %5667 = vmatprep.mubr.bf16.mxu0 0
      %5668 = vmatmul.mubr.bf16.gmra.mrb[0].mxu0 %v5540
      %v5669 = vpop.f32.mrb[0].mxu0
      %v5670 = vadd.f32 0.0, %v5669
      %v5671 = vpop.f32.mrb[0].mxu0
      %v5672 = vpop.f32.mrb[0].mxu0
      %v5673 = vadd.f32 0.0, %v5672
      %v5674 = vpop.f32.mrb[0].mxu0
      %5675 = vmatprep.mubr.bf16.mxu0 0
      %5676 = vmatmul.mubr.bf16.gmra.mrb[0].mxu0 %v5543
      %v5677 = vpop.f32.mrb[0].mxu0
      %v5678 = vadd.f32 0.0, %v5677
      %v5679 = vpop.f32.mrb[0].mxu0
      %v5680 = vpop.f32.mrb[0].mxu0
      %v5681 = vadd.f32 0.0, %v5680
      %v5682 = vpop.f32.mrb[0].mxu0
      %5683 = vmatprep.mubr.bf16.mxu0 0
      %5684 = vmatmul.mubr.bf16.gmra.mrb[0].mxu0 %v5546
      %v5685 = vpop.f32.mrb[0].mxu0
      %v5686 = vadd.f32 0.0, %v5685
      %v5687 = vpop.f32.mrb[0].mxu0
      %v5688 = vpop.f32.mrb[0].mxu0
      %v5689 = vadd.f32 0.0, %v5688
      %v5690 = vpop.f32.mrb[0].mxu0
      %5691 = vmatprep.mubr.bf16.mxu0 0
      %5692 = vmatmul.mubr.bf16.gmra.mrb[0].mxu0 %v5549
      %v5693 = vpop.f32.mrb[0].mxu0
      %v5694 = vadd.f32 0.0, %v5693
      %v5695 = vpop.f32.mrb[0].mxu0
      %v5696 = vpop.f32.mrb[0].mxu0
      %v5697 = vadd.f32 0.0, %v5696
      %v5698 = vpop.f32.mrb[0].mxu0
      %5699 = vmatprep.mubr.bf16.mxu0 0
      %5700 = vmatmul.mubr.bf16.gmra.mrb[0].mxu0 %v5552
      %v5701 = vpop.f32.mrb[0].mxu0
      %v5702 = vadd.f32 0.0, %v5701
      %v5703 = vpop.f32.mrb[0].mxu0
      %v5704 = vpop.f32.mrb[0].mxu0
      %v5705 = vadd.f32 0.0, %v5704
      %v5706 = vpop.f32.mrb[0].mxu0
      %5707 = vmatprep.mubr.bf16.mxu0 0
      %5708 = vmatmul.mubr.bf16.gmra.mrb[0].mxu0 %v5555
      %v5709 = vpop.f32.mrb[0].mxu0
      %v5710 = vadd.f32 0.0, %v5709
      %v5711 = vpop.f32.mrb[0].mxu0
      %v5712 = vpop.f32.mrb[0].mxu0
      %v5713 = vadd.f32 0.0, %v5712
      %v5714 = vpop.f32.mrb[0].mxu0
      %5715 = vmatprep.mubr.bf16.mxu0 0
      %5716 = vmatmul.mubr.bf16.gmra.mrb[0].mxu0 %v5558
      %v5717 = vpop.f32.mrb[0].mxu0
      %v5718 = vadd.f32 0.0, %v5717
      %v5719 = vpop.f32.mrb[0].mxu0
      %v5720 = vpop.f32.mrb[0].mxu0
      %v5721 = vadd.f32 0.0, %v5720
      %v5722 = vpop.f32.mrb[0].mxu0
      %5723 = vdwg.mxu0
      %v5724 = vadd.f32 %v5398, %v5598
      %v5725 = vadd.f32 %v5399, %v5601
      %v5726 = vadd.f32 %v5400, %v5606
      %v5727 = vadd.f32 %v5401, %v5609
      %v5728 = vadd.f32 %v5402, %v5614
      %v5729 = vadd.f32 %v5403, %v5617
      %v5730 = vadd.f32 %v5404, %v5622
      %v5731 = vadd.f32 %v5405, %v5625
      %v5732 = vadd.f32 %v5406, %v5630
      %v5733 = vadd.f32 %v5407, %v5633
      %v5734 = vadd.f32 %v5408, %v5638
      %v5735 = vadd.f32 %v5409, %v5641
      %v5736 = vadd.f32 %v5410, %v5646
      %v5737 = vadd.f32 %v5411, %v5649
      %v5738 = vadd.f32 %v5412, %v5654
      %v5739 = vadd.f32 %v5413, %v5657
      %v5740 = vadd.f32 %v5414, %v5662
      %v5741 = vadd.f32 %v5415, %v5665
      %v5742 = vadd.f32 %v5416, %v5670
      %v5743 = vadd.f32 %v5417, %v5673
      %v5744 = vadd.f32 %v5418, %v5678
      %v5745 = vadd.f32 %v5419, %v5681
      %v5746 = vadd.f32 %v5420, %v5686
      %v5747 = vadd.f32 %v5421, %v5689
      %v5748 = vadd.f32 %v5422, %v5694
      %v5749 = vadd.f32 %v5423, %v5697
      %v5750 = vadd.f32 %v5424, %v5702
      %v5751 = vadd.f32 %v5425, %v5705
      %v5752 = vadd.f32 %v5426, %v5710
      %v5753 = vadd.f32 %v5427, %v5713
      %v5754 = vadd.f32 %v5428, %v5718
      %v5755 = vadd.f32 %v5429, %v5721
      %v5756 = vld [vmem:[#allocation3 + $0x30] sm:$0xff]
      %v5757 = vld [vmem:[#allocation3 + $0x38] sm:$0xff]
      %v5758 = vld [vmem:[#allocation3 + $0x40] sm:$0xff]
      %v5759 = vld [vmem:[#allocation3 + $0x48] sm:$0xff]
      %v5760 = vld [vmem:[#allocation3 + $0x50] sm:$0xff]
      %v5761 = vld [vmem:[#allocation3 + $0x58] sm:$0xff]
      %v5762 = vld [vmem:[#allocation3 + $0x60] sm:$0xff]
      %v5763 = vld [vmem:[#allocation3 + $0x68] sm:$0xff]
      %v5764 = vld [vmem:[#allocation3 + $0x70] sm:$0xff]
      %v5765 = vld [vmem:[#allocation3 + $0x78] sm:$0xff]
      %v5766 = vld [vmem:[#allocation3 + $0x80] sm:$0xff]
      %v5767 = vld [vmem:[#allocation3 + $0x88] sm:$0xff]
      %v5768 = vld [vmem:[#allocation3 + $0x90] sm:$0xff]
      %v5769 = vld [vmem:[#allocation3 + $0x98] sm:$0xff]
      %v5770 = vld [vmem:[#allocation3 + $0xa0] sm:$0xff]
      %v5771 = vld [vmem:[#allocation3 + $0xa8] sm:$0xff]
      %v5772 = vld [vmem:[#allocation3 + $0xb0] sm:$0xff]
      %v5773 = vld [vmem:[#allocation3 + $0xb8] sm:$0xff]
      %v5774 = vld [vmem:[#allocation3 + $0xc0] sm:$0xff]
      %v5775 = vld [vmem:[#allocation3 + $0xc8] sm:$0xff]
      %v5776 = vld [vmem:[#allocation3 + $0xd0] sm:$0xff]
      %v5777 = vld [vmem:[#allocation3 + $0xd8] sm:$0xff]
      %v5778 = vld [vmem:[#allocation3 + $0xe0] sm:$0xff]
      %v5779 = vld [vmem:[#allocation3 + $0xe8] sm:$0xff]
      %v5780 = vld [vmem:[#allocation3 + $0xf0] sm:$0xff]
      %v5781 = vld [vmem:[#allocation3 + $0xf8] sm:$0xff]
      %v5782 = vld [vmem:[#allocation3 + $0x100] sm:$0xff]
      %v5783 = vld [vmem:[#allocation3 + $0x108] sm:$0xff]
      %v5784 = vld [vmem:[#allocation3 + $0x110] sm:$0xff]
      %v5785 = vld [vmem:[#allocation3 + $0x118] sm:$0xff]
      %v5786 = vld [vmem:[#allocation3 + $0x120] sm:$0xff]
      %v5787 = vld [vmem:[#allocation3 + $0x128] sm:$0xff]
      %v5788 = vpack.c.bf16 %v5757, %v5756
      %v5789 = vpack.c.bf16 %v5759, %v5758
      %v5790 = vpack.c.bf16 %v5761, %v5760
      %v5791 = vpack.c.bf16 %v5763, %v5762
      %v5792 = vpack.c.bf16 %v5765, %v5764
      %v5793 = vpack.c.bf16 %v5767, %v5766
      %v5794 = vpack.c.bf16 %v5769, %v5768
      %v5795 = vpack.c.bf16 %v5771, %v5770
      %v5796 = vpack.c.bf16 %v5773, %v5772
      %v5797 = vpack.c.bf16 %v5775, %v5774
      %v5798 = vpack.c.bf16 %v5777, %v5776
      %v5799 = vpack.c.bf16 %v5779, %v5778
      %v5800 = vpack.c.bf16 %v5781, %v5780
      %v5801 = vpack.c.bf16 %v5783, %v5782
      %v5802 = vpack.c.bf16 %v5785, %v5784
      %v5803 = vpack.c.bf16 %v5787, %v5786
      %s5804 = scalar_lea.vmem %s2, 14
      %v5805 = vld [vmem:[%s5804] sm:$0x3]
      %v5807 = vsel %vm258, %v5788, 0
      %v5810 = vsel %vm258, %v5789, 0
      %v5813 = vsel %vm258, %v5790, 0
      %v5816 = vsel %vm258, %v5791, 0
      %v5819 = vsel %vm258, %v5792, 0
      %v5822 = vsel %vm258, %v5793, 0
      %v5825 = vsel %vm258, %v5794, 0
      %v5828 = vsel %vm258, %v5795, 0
      %v5831 = vsel %vm258, %v5796, 0
      %v5834 = vsel %vm258, %v5797, 0
      %v5837 = vsel %vm258, %v5798, 0
      %v5840 = vsel %vm258, %v5799, 0
      %v5843 = vsel %vm258, %v5800, 0
      %v5846 = vsel %vm258, %v5801, 0
      %v5849 = vsel %vm258, %v5802, 0
      %v5852 = vsel %vm258, %v5803, 0
      %v5855 = vsel %vm702, %v5805, 0
      %5857 = vmatprep.subr.bf16.mxu0 0
      %5858 = vmatpush1.bf16.msra.mxu0 %v5855
      %5859 = vmatprep.subr.bf16.mxu0 0
      %5860 = vmatpush1.bf16.msra.mxu0 0
      %5861 = vmatprep.subr.bf16.mxu0 0
      %5862 = vmatpush1.bf16.msra.mxu0 0
      %5863 = vmatprep.subr.bf16.mxu0 0
      %5864 = vmatpush1.bf16.msra.mxu0 0
      %5865 = vmatprep.subr.bf16.mxu0 0
      %5866 = vmatpush1.bf16.msra.mxu0 0
      %5867 = vmatprep.subr.bf16.mxu0 0
      %5868 = vmatpush1.bf16.msra.mxu0 0
      %5869 = vmatprep.subr.bf16.mxu0 0
      %5870 = vmatpush1.bf16.msra.mxu0 0
      %5871 = vmatprep.subr.bf16.mxu0 0
      %5872 = vmatpush1.bf16.msra.mxu0 0
      %5873 = vmatprep.subr.bf16.mxu0 0
      %5874 = vmatpush1.bf16.msra.mxu0 0
      %5875 = vmatprep.subr.bf16.mxu0 0
      %5876 = vmatpush1.bf16.msra.mxu0 0
      %5877 = vmatprep.subr.bf16.mxu0 0
      %5878 = vmatpush1.bf16.msra.mxu0 0
      %5879 = vmatprep.subr.bf16.mxu0 0
      %5880 = vmatpush1.bf16.msra.mxu0 0
      %5881 = vmatprep.subr.bf16.mxu0 0
      %5882 = vmatpush1.bf16.msra.mxu0 0
      %5883 = vmatprep.subr.bf16.mxu0 0
      %5884 = vmatpush1.bf16.msra.mxu0 0
      %5885 = vmatprep.subr.bf16.mxu0 0
      %5886 = vmatpush1.bf16.msra.mxu0 0
      %5887 = vmatprep.subr.bf16.mxu0 0
      %5888 = vmatpush1.bf16.msra.mxu0 0
      %5889 = vmatprep.mubr.bf16.mxu0 0
      %5890 = vmatmul.mubr.bf16.gmra.mrb[0].mxu0 %v5807
      %v5891 = vpop.f32.mrb[0].mxu0
      %v5892 = vadd.f32 0.0, %v5891
      %v5893 = vpop.f32.mrb[0].mxu0
      %v5894 = vpop.f32.mrb[0].mxu0
      %v5895 = vadd.f32 0.0, %v5894
      %v5896 = vpop.f32.mrb[0].mxu0
      %5897 = vmatprep.mubr.bf16.mxu0 0
      %5898 = vmatmul.mubr.bf16.gmra.mrb[0].mxu0 %v5810
      %v5899 = vpop.f32.mrb[0].mxu0
      %v5900 = vadd.f32 0.0, %v5899
      %v5901 = vpop.f32.mrb[0].mxu0
      %v5902 = vpop.f32.mrb[0].mxu0
      %v5903 = vadd.f32 0.0, %v5902
      %v5904 = vpop.f32.mrb[0].mxu0
      %5905 = vmatprep.mubr.bf16.mxu0 0
      %5906 = vmatmul.mubr.bf16.gmra.mrb[0].mxu0 %v5813
      %v5907 = vpop.f32.mrb[0].mxu0
      %v5908 = vadd.f32 0.0, %v5907
      %v5909 = vpop.f32.mrb[0].mxu0
      %v5910 = vpop.f32.mrb[0].mxu0
      %v5911 = vadd.f32 0.0, %v5910
      %v5912 = vpop.f32.mrb[0].mxu0
      %5913 = vmatprep.mubr.bf16.mxu0 0
      %5914 = vmatmul.mubr.bf16.gmra.mrb[0].mxu0 %v5816
      %v5915 = vpop.f32.mrb[0].mxu0
      %v5916 = vadd.f32 0.0, %v5915
      %v5917 = vpop.f32.mrb[0].mxu0
      %v5918 = vpop.f32.mrb[0].mxu0
      %v5919 = vadd.f32 0.0, %v5918
      %v5920 = vpop.f32.mrb[0].mxu0
      %5921 = vmatprep.mubr.bf16.mxu0 0
      %5922 = vmatmul.mubr.bf16.gmra.mrb[0].mxu0 %v5819
      %v5923 = vpop.f32.mrb[0].mxu0
      %v5924 = vadd.f32 0.0, %v5923
      %v5925 = vpop.f32.mrb[0].mxu0
      %v5926 = vpop.f32.mrb[0].mxu0
      %v5927 = vadd.f32 0.0, %v5926
      %v5928 = vpop.f32.mrb[0].mxu0
      %5929 = vmatprep.mubr.bf16.mxu0 0
      %5930 = vmatmul.mubr.bf16.gmra.mrb[0].mxu0 %v5822
      %v5931 = vpop.f32.mrb[0].mxu0
      %v5932 = vadd.f32 0.0, %v5931
      %v5933 = vpop.f32.mrb[0].mxu0
      %v5934 = vpop.f32.mrb[0].mxu0
      %v5935 = vadd.f32 0.0, %v5934
      %v5936 = vpop.f32.mrb[0].mxu0
      %5937 = vmatprep.mubr.bf16.mxu0 0
      %5938 = vmatmul.mubr.bf16.gmra.mrb[0].mxu0 %v5825
      %v5939 = vpop.f32.mrb[0].mxu0
      %v5940 = vadd.f32 0.0, %v5939
      %v5941 = vpop.f32.mrb[0].mxu0
      %v5942 = vpop.f32.mrb[0].mxu0
      %v5943 = vadd.f32 0.0, %v5942
      %v5944 = vpop.f32.mrb[0].mxu0
      %5945 = vmatprep.mubr.bf16.mxu0 0
      %5946 = vmatmul.mubr.bf16.gmra.mrb[0].mxu0 %v5828
      %v5947 = vpop.f32.mrb[0].mxu0
      %v5948 = vadd.f32 0.0, %v5947
      %v5949 = vpop.f32.mrb[0].mxu0
      %v5950 = vpop.f32.mrb[0].mxu0
      %v5951 = vadd.f32 0.0, %v5950
      %v5952 = vpop.f32.mrb[0].mxu0
      %5953 = vmatprep.mubr.bf16.mxu0 0
      %5954 = vmatmul.mubr.bf16.gmra.mrb[0].mxu0 %v5831
      %v5955 = vpop.f32.mrb[0].mxu0
      %v5956 = vadd.f32 0.0, %v5955
      %v5957 = vpop.f32.mrb[0].mxu0
      %v5958 = vpop.f32.mrb[0].mxu0
      %v5959 = vadd.f32 0.0, %v5958
      %v5960 = vpop.f32.mrb[0].mxu0
      %5961 = vmatprep.mubr.bf16.mxu0 0
      %5962 = vmatmul.mubr.bf16.gmra.mrb[0].mxu0 %v5834
      %v5963 = vpop.f32.mrb[0].mxu0
      %v5964 = vadd.f32 0.0, %v5963
      %v5965 = vpop.f32.mrb[0].mxu0
      %v5966 = vpop.f32.mrb[0].mxu0
      %v5967 = vadd.f32 0.0, %v5966
      %v5968 = vpop.f32.mrb[0].mxu0
      %5969 = vmatprep.mubr.bf16.mxu0 0
      %5970 = vmatmul.mubr.bf16.gmra.mrb[0].mxu0 %v5837
      %v5971 = vpop.f32.mrb[0].mxu0
      %v5972 = vadd.f32 0.0, %v5971
      %v5973 = vpop.f32.mrb[0].mxu0
      %v5974 = vpop.f32.mrb[0].mxu0
      %v5975 = vadd.f32 0.0, %v5974
      %v5976 = vpop.f32.mrb[0].mxu0
      %5977 = vmatprep.mubr.bf16.mxu0 0
      %5978 = vmatmul.mubr.bf16.gmra.mrb[0].mxu0 %v5840
      %v5979 = vpop.f32.mrb[0].mxu0
      %v5980 = vadd.f32 0.0, %v5979
      %v5981 = vpop.f32.mrb[0].mxu0
      %v5982 = vpop.f32.mrb[0].mxu0
      %v5983 = vadd.f32 0.0, %v5982
      %v5984 = vpop.f32.mrb[0].mxu0
      %5985 = vmatprep.mubr.bf16.mxu0 0
      %5986 = vmatmul.mubr.bf16.gmra.mrb[0].mxu0 %v5843
      %v5987 = vpop.f32.mrb[0].mxu0
      %v5988 = vadd.f32 0.0, %v5987
      %v5989 = vpop.f32.mrb[0].mxu0
      %v5990 = vpop.f32.mrb[0].mxu0
      %v5991 = vadd.f32 0.0, %v5990
      %v5992 = vpop.f32.mrb[0].mxu0
      %5993 = vmatprep.mubr.bf16.mxu0 0
      %5994 = vmatmul.mubr.bf16.gmra.mrb[0].mxu0 %v5846
      %v5995 = vpop.f32.mrb[0].mxu0
      %v5996 = vadd.f32 0.0, %v5995
      %v5997 = vpop.f32.mrb[0].mxu0
      %v5998 = vpop.f32.mrb[0].mxu0
      %v5999 = vadd.f32 0.0, %v5998
      %v6000 = vpop.f32.mrb[0].mxu0
      %6001 = vmatprep.mubr.bf16.mxu0 0
      %6002 = vmatmul.mubr.bf16.gmra.mrb[0].mxu0 %v5849
      %v6003 = vpop.f32.mrb[0].mxu0
      %v6004 = vadd.f32 0.0, %v6003
      %v6005 = vpop.f32.mrb[0].mxu0
      %v6006 = vpop.f32.mrb[0].mxu0
      %v6007 = vadd.f32 0.0, %v6006
      %v6008 = vpop.f32.mrb[0].mxu0
      %6009 = vmatprep.mubr.bf16.mxu0 0
      %6010 = vmatmul.mubr.bf16.gmra.mrb[0].mxu0 %v5852
      %v6011 = vpop.f32.mrb[0].mxu0
      %v6012 = vadd.f32 0.0, %v6011
      %v6013 = vpop.f32.mrb[0].mxu0
      %v6014 = vpop.f32.mrb[0].mxu0
      %v6015 = vadd.f32 0.0, %v6014
      %v6016 = vpop.f32.mrb[0].mxu0
      %6017 = vdwg.mxu0
      %v6018 = vadd.f32 %v5724, %v5892
      %v6019 = vadd.f32 %v5725, %v5895
      %v6020 = vadd.f32 %v5726, %v5900
      %v6021 = vadd.f32 %v5727, %v5903
      %v6022 = vadd.f32 %v5728, %v5908
      %v6023 = vadd.f32 %v5729, %v5911
      %v6024 = vadd.f32 %v5730, %v5916
      %v6025 = vadd.f32 %v5731, %v5919
      %v6026 = vadd.f32 %v5732, %v5924
      %v6027 = vadd.f32 %v5733, %v5927
      %v6028 = vadd.f32 %v5734, %v5932
      %v6029 = vadd.f32 %v5735, %v5935
      %v6030 = vadd.f32 %v5736, %v5940
      %v6031 = vadd.f32 %v5737, %v5943
      %v6032 = vadd.f32 %v5738, %v5948
      %v6033 = vadd.f32 %v5739, %v5951
      %v6034 = vadd.f32 %v5740, %v5956
      %v6035 = vadd.f32 %v5741, %v5959
      %v6036 = vadd.f32 %v5742, %v5964
      %v6037 = vadd.f32 %v5743, %v5967
      %v6038 = vadd.f32 %v5744, %v5972
      %v6039 = vadd.f32 %v5745, %v5975
      %v6040 = vadd.f32 %v5746, %v5980
      %v6041 = vadd.f32 %v5747, %v5983
      %v6042 = vadd.f32 %v5748, %v5988
      %v6043 = vadd.f32 %v5749, %v5991
      %v6044 = vadd.f32 %v5750, %v5996
      %v6045 = vadd.f32 %v5751, %v5999
      %v6046 = vadd.f32 %v5752, %v6004
      %v6047 = vadd.f32 %v5753, %v6007
      %v6048 = vadd.f32 %v5754, %v6012
      %v6049 = vadd.f32 %v5755, %v6015
      %v6050 = vld [vmem:[#allocation3 + $0x31] sm:$0xff]
      %v6051 = vld [vmem:[#allocation3 + $0x39] sm:$0xff]
      %v6052 = vld [vmem:[#allocation3 + $0x41] sm:$0xff]
      %v6053 = vld [vmem:[#allocation3 + $0x49] sm:$0xff]
      %v6054 = vld [vmem:[#allocation3 + $0x51] sm:$0xff]
      %v6055 = vld [vmem:[#allocation3 + $0x59] sm:$0xff]
      %v6056 = vld [vmem:[#allocation3 + $0x61] sm:$0xff]
      %v6057 = vld [vmem:[#allocation3 + $0x69] sm:$0xff]
      %v6058 = vld [vmem:[#allocation3 + $0x71] sm:$0xff]
      %v6059 = vld [vmem:[#allocation3 + $0x79] sm:$0xff]
      %v6060 = vld [vmem:[#allocation3 + $0x81] sm:$0xff]
      %v6061 = vld [vmem:[#allocation3 + $0x89] sm:$0xff]
      %v6062 = vld [vmem:[#allocation3 + $0x91] sm:$0xff]
      %v6063 = vld [vmem:[#allocation3 + $0x99] sm:$0xff]
      %v6064 = vld [vmem:[#allocation3 + $0xa1] sm:$0xff]
      %v6065 = vld [vmem:[#allocation3 + $0xa9] sm:$0xff]
      %v6066 = vld [vmem:[#allocation3 + $0xb1] sm:$0xff]
      %v6067 = vld [vmem:[#allocation3 + $0xb9] sm:$0xff]
      %v6068 = vld [vmem:[#allocation3 + $0xc1] sm:$0xff]
      %v6069 = vld [vmem:[#allocation3 + $0xc9] sm:$0xff]
      %v6070 = vld [vmem:[#allocation3 + $0xd1] sm:$0xff]
      %v6071 = vld [vmem:[#allocation3 + $0xd9] sm:$0xff]
      %v6072 = vld [vmem:[#allocation3 + $0xe1] sm:$0xff]
      %v6073 = vld [vmem:[#allocation3 + $0xe9] sm:$0xff]
      %v6074 = vld [vmem:[#allocation3 + $0xf1] sm:$0xff]
      %v6075 = vld [vmem:[#allocation3 + $0xf9] sm:$0xff]
      %v6076 = vld [vmem:[#allocation3 + $0x101] sm:$0xff]
      %v6077 = vld [vmem:[#allocation3 + $0x109] sm:$0xff]
      %v6078 = vld [vmem:[#allocation3 + $0x111] sm:$0xff]
      %v6079 = vld [vmem:[#allocation3 + $0x119] sm:$0xff]
      %v6080 = vld [vmem:[#allocation3 + $0x121] sm:$0xff]
      %v6081 = vld [vmem:[#allocation3 + $0x129] sm:$0xff]
      %v6082 = vmul.f32 %v6050, %v1113
      %v6083 = vmul.f32 %v6051, %v1117
      %v6084 = vmul.f32 %v6052, %v1121
      %v6085 = vmul.f32 %v6053, %v1125
      %v6086 = vmul.f32 %v6054, %v1129
      %v6087 = vmul.f32 %v6055, %v1133
      %v6088 = vmul.f32 %v6056, %v1137
      %v6089 = vmul.f32 %v6057, %v1141
      %v6090 = vmul.f32 %v6058, %v1145
      %v6091 = vmul.f32 %v6059, %v1149
      %v6092 = vmul.f32 %v6060, %v1153
      %v6093 = vmul.f32 %v6061, %v1157
      %v6094 = vmul.f32 %v6062, %v1161
      %v6095 = vmul.f32 %v6063, %v1165
      %v6096 = vmul.f32 %v6064, %v1169
      %v6097 = vmul.f32 %v6065, %v1173
      %v6098 = vmul.f32 %v6066, %v1177
      %v6099 = vmul.f32 %v6067, %v1181
      %v6100 = vmul.f32 %v6068, %v1185
      %v6101 = vmul.f32 %v6069, %v1189
      %v6102 = vmul.f32 %v6070, %v1193
      %v6103 = vmul.f32 %v6071, %v1197
      %v6104 = vmul.f32 %v6072, %v1201
      %v6105 = vmul.f32 %v6073, %v1205
      %v6106 = vmul.f32 %v6074, %v1209
      %v6107 = vmul.f32 %v6075, %v1213
      %v6108 = vmul.f32 %v6076, %v1217
      %v6109 = vmul.f32 %v6077, %v1221
      %v6110 = vmul.f32 %v6078, %v1225
      %v6111 = vmul.f32 %v6079, %v1229
      %v6112 = vmul.f32 %v6080, %v1233
      %v6113 = vmul.f32 %v6081, %v1237
      %v6114 = vpack.c.bf16 %v6083, %v6082
      %v6115 = vpack.c.bf16 %v6085, %v6084
      %v6116 = vpack.c.bf16 %v6087, %v6086
      %v6117 = vpack.c.bf16 %v6089, %v6088
      %v6118 = vpack.c.bf16 %v6091, %v6090
      %v6119 = vpack.c.bf16 %v6093, %v6092
      %v6120 = vpack.c.bf16 %v6095, %v6094
      %v6121 = vpack.c.bf16 %v6097, %v6096
      %v6122 = vpack.c.bf16 %v6099, %v6098
      %v6123 = vpack.c.bf16 %v6101, %v6100
      %v6124 = vpack.c.bf16 %v6103, %v6102
      %v6125 = vpack.c.bf16 %v6105, %v6104
      %v6126 = vpack.c.bf16 %v6107, %v6106
      %v6127 = vpack.c.bf16 %v6109, %v6108
      %v6128 = vpack.c.bf16 %v6111, %v6110
      %v6129 = vpack.c.bf16 %v6113, %v6112
      %s6130 = scalar_lea.vmem %s2, 16
      %v6131 = vld [vmem:[%s6130] sm:$0x3]
      %v6133 = vsel %vm258, %v6114, 0
      %v6136 = vsel %vm258, %v6115, 0
      %v6139 = vsel %vm258, %v6116, 0
      %v6142 = vsel %vm258, %v6117, 0
      %v6145 = vsel %vm258, %v6118, 0
      %v6148 = vsel %vm258, %v6119, 0
      %v6151 = vsel %vm258, %v6120, 0
      %v6154 = vsel %vm258, %v6121, 0
      %v6157 = vsel %vm258, %v6122, 0
      %v6160 = vsel %vm258, %v6123, 0
      %v6163 = vsel %vm258, %v6124, 0
      %v6166 = vsel %vm258, %v6125, 0
      %v6169 = vsel %vm258, %v6126, 0
      %v6172 = vsel %vm258, %v6127, 0
      %v6175 = vsel %vm258, %v6128, 0
      %v6178 = vsel %vm258, %v6129, 0
      %v6181 = vsel %vm702, %v6131, 0
      %6183 = vmatprep.subr.bf16.mxu0 0
      %6184 = vmatpush1.bf16.msra.mxu0 %v6181
      %6185 = vmatprep.subr.bf16.mxu0 0
      %6186 = vmatpush1.bf16.msra.mxu0 0
      %6187 = vmatprep.subr.bf16.mxu0 0
      %6188 = vmatpush1.bf16.msra.mxu0 0
      %6189 = vmatprep.subr.bf16.mxu0 0
      %6190 = vmatpush1.bf16.msra.mxu0 0
      %6191 = vmatprep.subr.bf16.mxu0 0
      %6192 = vmatpush1.bf16.msra.mxu0 0
      %6193 = vmatprep.subr.bf16.mxu0 0
      %6194 = vmatpush1.bf16.msra.mxu0 0
      %6195 = vmatprep.subr.bf16.mxu0 0
      %6196 = vmatpush1.bf16.msra.mxu0 0
      %6197 = vmatprep.subr.bf16.mxu0 0
      %6198 = vmatpush1.bf16.msra.mxu0 0
      %6199 = vmatprep.subr.bf16.mxu0 0
      %6200 = vmatpush1.bf16.msra.mxu0 0
      %6201 = vmatprep.subr.bf16.mxu0 0
      %6202 = vmatpush1.bf16.msra.mxu0 0
      %6203 = vmatprep.subr.bf16.mxu0 0
      %6204 = vmatpush1.bf16.msra.mxu0 0
      %6205 = vmatprep.subr.bf16.mxu0 0
      %6206 = vmatpush1.bf16.msra.mxu0 0
      %6207 = vmatprep.subr.bf16.mxu0 0
      %6208 = vmatpush1.bf16.msra.mxu0 0
      %6209 = vmatprep.subr.bf16.mxu0 0
      %6210 = vmatpush1.bf16.msra.mxu0 0
      %6211 = vmatprep.subr.bf16.mxu0 0
      %6212 = vmatpush1.bf16.msra.mxu0 0
      %6213 = vmatprep.subr.bf16.mxu0 0
      %6214 = vmatpush1.bf16.msra.mxu0 0
      %6215 = vmatprep.mubr.bf16.mxu0 0
      %6216 = vmatmul.mubr.bf16.gmra.mrb[0].mxu0 %v6133
      %v6217 = vpop.f32.mrb[0].mxu0
      %v6218 = vadd.f32 0.0, %v6217
      %v6219 = vpop.f32.mrb[0].mxu0
      %v6220 = vpop.f32.mrb[0].mxu0
      %v6221 = vadd.f32 0.0, %v6220
      %v6222 = vpop.f32.mrb[0].mxu0
      %6223 = vmatprep.mubr.bf16.mxu0 0
      %6224 = vmatmul.mubr.bf16.gmra.mrb[0].mxu0 %v6136
      %v6225 = vpop.f32.mrb[0].mxu0
      %v6226 = vadd.f32 0.0, %v6225
      %v6227 = vpop.f32.mrb[0].mxu0
      %v6228 = vpop.f32.mrb[0].mxu0
      %v6229 = vadd.f32 0.0, %v6228
      %v6230 = vpop.f32.mrb[0].mxu0
      %6231 = vmatprep.mubr.bf16.mxu0 0
      %6232 = vmatmul.mubr.bf16.gmra.mrb[0].mxu0 %v6139
      %v6233 = vpop.f32.mrb[0].mxu0
      %v6234 = vadd.f32 0.0, %v6233
      %v6235 = vpop.f32.mrb[0].mxu0
      %v6236 = vpop.f32.mrb[0].mxu0
      %v6237 = vadd.f32 0.0, %v6236
      %v6238 = vpop.f32.mrb[0].mxu0
      %6239 = vmatprep.mubr.bf16.mxu0 0
      %6240 = vmatmul.mubr.bf16.gmra.mrb[0].mxu0 %v6142
      %v6241 = vpop.f32.mrb[0].mxu0
      %v6242 = vadd.f32 0.0, %v6241
      %v6243 = vpop.f32.mrb[0].mxu0
      %v6244 = vpop.f32.mrb[0].mxu0
      %v6245 = vadd.f32 0.0, %v6244
      %v6246 = vpop.f32.mrb[0].mxu0
      %6247 = vmatprep.mubr.bf16.mxu0 0
      %6248 = vmatmul.mubr.bf16.gmra.mrb[0].mxu0 %v6145
      %v6249 = vpop.f32.mrb[0].mxu0
      %v6250 = vadd.f32 0.0, %v6249
      %v6251 = vpop.f32.mrb[0].mxu0
      %v6252 = vpop.f32.mrb[0].mxu0
      %v6253 = vadd.f32 0.0, %v6252
      %v6254 = vpop.f32.mrb[0].mxu0
      %6255 = vmatprep.mubr.bf16.mxu0 0
      %6256 = vmatmul.mubr.bf16.gmra.mrb[0].mxu0 %v6148
      %v6257 = vpop.f32.mrb[0].mxu0
      %v6258 = vadd.f32 0.0, %v6257
      %v6259 = vpop.f32.mrb[0].mxu0
      %v6260 = vpop.f32.mrb[0].mxu0
      %v6261 = vadd.f32 0.0, %v6260
      %v6262 = vpop.f32.mrb[0].mxu0
      %6263 = vmatprep.mubr.bf16.mxu0 0
      %6264 = vmatmul.mubr.bf16.gmra.mrb[0].mxu0 %v6151
      %v6265 = vpop.f32.mrb[0].mxu0
      %v6266 = vadd.f32 0.0, %v6265
      %v6267 = vpop.f32.mrb[0].mxu0
      %v6268 = vpop.f32.mrb[0].mxu0
      %v6269 = vadd.f32 0.0, %v6268
      %v6270 = vpop.f32.mrb[0].mxu0
      %6271 = vmatprep.mubr.bf16.mxu0 0
      %6272 = vmatmul.mubr.bf16.gmra.mrb[0].mxu0 %v6154
      %v6273 = vpop.f32.mrb[0].mxu0
      %v6274 = vadd.f32 0.0, %v6273
      %v6275 = vpop.f32.mrb[0].mxu0
      %v6276 = vpop.f32.mrb[0].mxu0
      %v6277 = vadd.f32 0.0, %v6276
      %v6278 = vpop.f32.mrb[0].mxu0
      %6279 = vmatprep.mubr.bf16.mxu0 0
      %6280 = vmatmul.mubr.bf16.gmra.mrb[0].mxu0 %v6157
      %v6281 = vpop.f32.mrb[0].mxu0
      %v6282 = vadd.f32 0.0, %v6281
      %v6283 = vpop.f32.mrb[0].mxu0
      %v6284 = vpop.f32.mrb[0].mxu0
      %v6285 = vadd.f32 0.0, %v6284
      %v6286 = vpop.f32.mrb[0].mxu0
      %6287 = vmatprep.mubr.bf16.mxu0 0
      %6288 = vmatmul.mubr.bf16.gmra.mrb[0].mxu0 %v6160
      %v6289 = vpop.f32.mrb[0].mxu0
      %v6290 = vadd.f32 0.0, %v6289
      %v6291 = vpop.f32.mrb[0].mxu0
      %v6292 = vpop.f32.mrb[0].mxu0
      %v6293 = vadd.f32 0.0, %v6292
      %v6294 = vpop.f32.mrb[0].mxu0
      %6295 = vmatprep.mubr.bf16.mxu0 0
      %6296 = vmatmul.mubr.bf16.gmra.mrb[0].mxu0 %v6163
      %v6297 = vpop.f32.mrb[0].mxu0
      %v6298 = vadd.f32 0.0, %v6297
      %v6299 = vpop.f32.mrb[0].mxu0
      %v6300 = vpop.f32.mrb[0].mxu0
      %v6301 = vadd.f32 0.0, %v6300
      %v6302 = vpop.f32.mrb[0].mxu0
      %6303 = vmatprep.mubr.bf16.mxu0 0
      %6304 = vmatmul.mubr.bf16.gmra.mrb[0].mxu0 %v6166
      %v6305 = vpop.f32.mrb[0].mxu0
      %v6306 = vadd.f32 0.0, %v6305
      %v6307 = vpop.f32.mrb[0].mxu0
      %v6308 = vpop.f32.mrb[0].mxu0
      %v6309 = vadd.f32 0.0, %v6308
      %v6310 = vpop.f32.mrb[0].mxu0
      %6311 = vmatprep.mubr.bf16.mxu0 0
      %6312 = vmatmul.mubr.bf16.gmra.mrb[0].mxu0 %v6169
      %v6313 = vpop.f32.mrb[0].mxu0
      %v6314 = vadd.f32 0.0, %v6313
      %v6315 = vpop.f32.mrb[0].mxu0
      %v6316 = vpop.f32.mrb[0].mxu0
      %v6317 = vadd.f32 0.0, %v6316
      %v6318 = vpop.f32.mrb[0].mxu0
      %6319 = vmatprep.mubr.bf16.mxu0 0
      %6320 = vmatmul.mubr.bf16.gmra.mrb[0].mxu0 %v6172
      %v6321 = vpop.f32.mrb[0].mxu0
      %v6322 = vadd.f32 0.0, %v6321
      %v6323 = vpop.f32.mrb[0].mxu0
      %v6324 = vpop.f32.mrb[0].mxu0
      %v6325 = vadd.f32 0.0, %v6324
      %v6326 = vpop.f32.mrb[0].mxu0
      %6327 = vmatprep.mubr.bf16.mxu0 0
      %6328 = vmatmul.mubr.bf16.gmra.mrb[0].mxu0 %v6175
      %v6329 = vpop.f32.mrb[0].mxu0
      %v6330 = vadd.f32 0.0, %v6329
      %v6331 = vpop.f32.mrb[0].mxu0
      %v6332 = vpop.f32.mrb[0].mxu0
      %v6333 = vadd.f32 0.0, %v6332
      %v6334 = vpop.f32.mrb[0].mxu0
      %6335 = vmatprep.mubr.bf16.mxu0 0
      %6336 = vmatmul.mubr.bf16.gmra.mrb[0].mxu0 %v6178
      %v6337 = vpop.f32.mrb[0].mxu0
      %v6338 = vadd.f32 0.0, %v6337
      %v6339 = vpop.f32.mrb[0].mxu0
      %v6340 = vpop.f32.mrb[0].mxu0
      %v6341 = vadd.f32 0.0, %v6340
      %v6342 = vpop.f32.mrb[0].mxu0
      %6343 = vdwg.mxu0
      %v6344 = vadd.f32 %v6018, %v6218
      %v6345 = vadd.f32 %v6019, %v6221
      %v6346 = vadd.f32 %v6020, %v6226
      %v6347 = vadd.f32 %v6021, %v6229
      %v6348 = vadd.f32 %v6022, %v6234
      %v6349 = vadd.f32 %v6023, %v6237
      %v6350 = vadd.f32 %v6024, %v6242
      %v6351 = vadd.f32 %v6025, %v6245
      %v6352 = vadd.f32 %v6026, %v6250
      %v6353 = vadd.f32 %v6027, %v6253
      %v6354 = vadd.f32 %v6028, %v6258
      %v6355 = vadd.f32 %v6029, %v6261
      %v6356 = vadd.f32 %v6030, %v6266
      %v6357 = vadd.f32 %v6031, %v6269
      %v6358 = vadd.f32 %v6032, %v6274
      %v6359 = vadd.f32 %v6033, %v6277
      %v6360 = vadd.f32 %v6034, %v6282
      %v6361 = vadd.f32 %v6035, %v6285
      %v6362 = vadd.f32 %v6036, %v6290
      %v6363 = vadd.f32 %v6037, %v6293
      %v6364 = vadd.f32 %v6038, %v6298
      %v6365 = vadd.f32 %v6039, %v6301
      %v6366 = vadd.f32 %v6040, %v6306
      %v6367 = vadd.f32 %v6041, %v6309
      %v6368 = vadd.f32 %v6042, %v6314
      %v6369 = vadd.f32 %v6043, %v6317
      %v6370 = vadd.f32 %v6044, %v6322
      %v6371 = vadd.f32 %v6045, %v6325
      %v6372 = vadd.f32 %v6046, %v6330
      %v6373 = vadd.f32 %v6047, %v6333
      %v6374 = vadd.f32 %v6048, %v6338
      %v6375 = vadd.f32 %v6049, %v6341
      %v6376 = vld [vmem:[%s3 + $0x2] sm:$0x1]
      %v6377 = vlaneseq
      %v6378 = vshrl.u32 %v6377, 7
      %v6379 = vsub.s32 0, %v6378
      %v6380 = vrot.slane %v6376, %v6379
      %v6381 = vmul.f32 %v6344, %v6380
      %v6382 = vmul.f32 %v6345, %v6380
      %v6383 = vmul.f32 %v6346, %v6380
      %v6384 = vmul.f32 %v6347, %v6380
      %v6385 = vmul.f32 %v6348, %v6380
      %v6386 = vmul.f32 %v6349, %v6380
      %v6387 = vmul.f32 %v6350, %v6380
      %v6388 = vmul.f32 %v6351, %v6380
      %v6389 = vmul.f32 %v6352, %v6380
      %v6390 = vmul.f32 %v6353, %v6380
      %v6391 = vmul.f32 %v6354, %v6380
      %v6392 = vmul.f32 %v6355, %v6380
      %v6393 = vmul.f32 %v6356, %v6380
      %v6394 = vmul.f32 %v6357, %v6380
      %v6395 = vmul.f32 %v6358, %v6380
      %v6396 = vmul.f32 %v6359, %v6380
      %v6397 = vmul.f32 %v6360, %v6380
      %v6398 = vmul.f32 %v6361, %v6380
      %v6399 = vmul.f32 %v6362, %v6380
      %v6400 = vmul.f32 %v6363, %v6380
      %v6401 = vmul.f32 %v6364, %v6380
      %v6402 = vmul.f32 %v6365, %v6380
      %v6403 = vmul.f32 %v6366, %v6380
      %v6404 = vmul.f32 %v6367, %v6380
      %v6405 = vmul.f32 %v6368, %v6380
      %v6406 = vmul.f32 %v6369, %v6380
      %v6407 = vmul.f32 %v6370, %v6380
      %v6408 = vmul.f32 %v6371, %v6380
      %v6409 = vmul.f32 %v6372, %v6380
      %v6410 = vmul.f32 %v6373, %v6380
      %v6411 = vmul.f32 %v6374, %v6380
      %v6412 = vmul.f32 %v6375, %v6380
      %v6413 = vld [vmem:[%s3 + $0x3] sm:$0x1]
      %v6414 = vlaneseq
      %v6415 = vshrl.u32 %v6414, 7
      %v6416 = vsub.s32 0, %v6415
      %v6417 = vrot.slane %v6413, %v6416
      %v6418 = vadd.f32 %v6381, %v6417
      %v6419 = vadd.f32 %v6382, %v6417
      %v6420 = vadd.f32 %v6383, %v6417
      %v6421 = vadd.f32 %v6384, %v6417
      %v6422 = vadd.f32 %v6385, %v6417
      %v6423 = vadd.f32 %v6386, %v6417
      %v6424 = vadd.f32 %v6387, %v6417
      %v6425 = vadd.f32 %v6388, %v6417
      %v6426 = vadd.f32 %v6389, %v6417
      %v6427 = vadd.f32 %v6390, %v6417
      %v6428 = vadd.f32 %v6391, %v6417
      %v6429 = vadd.f32 %v6392, %v6417
      %v6430 = vadd.f32 %v6393, %v6417
      %v6431 = vadd.f32 %v6394, %v6417
      %v6432 = vadd.f32 %v6395, %v6417
      %v6433 = vadd.f32 %v6396, %v6417
      %v6434 = vadd.f32 %v6397, %v6417
      %v6435 = vadd.f32 %v6398, %v6417
      %v6436 = vadd.f32 %v6399, %v6417
      %v6437 = vadd.f32 %v6400, %v6417
      %v6438 = vadd.f32 %v6401, %v6417
      %v6439 = vadd.f32 %v6402, %v6417
      %v6440 = vadd.f32 %v6403, %v6417
      %v6441 = vadd.f32 %v6404, %v6417
      %v6442 = vadd.f32 %v6405, %v6417
      %v6443 = vadd.f32 %v6406, %v6417
      %v6444 = vadd.f32 %v6407, %v6417
      %v6445 = vadd.f32 %v6408, %v6417
      %v6446 = vadd.f32 %v6409, %v6417
      %v6447 = vadd.f32 %v6410, %v6417
      %v6448 = vadd.f32 %v6411, %v6417
      %v6449 = vadd.f32 %v6412, %v6417
      %v6450 = vadd.f32 %v6418, %v226
      %v6451 = vadd.f32 %v6419, %v227
      %v6452 = vadd.f32 %v6420, %v228
      %v6453 = vadd.f32 %v6421, %v229
      %v6454 = vadd.f32 %v6422, %v230
      %v6455 = vadd.f32 %v6423, %v231
      %v6456 = vadd.f32 %v6424, %v232
      %v6457 = vadd.f32 %v6425, %v233
      %v6458 = vadd.f32 %v6426, %v234
      %v6459 = vadd.f32 %v6427, %v235
      %v6460 = vadd.f32 %v6428, %v236
      %v6461 = vadd.f32 %v6429, %v237
      %v6462 = vadd.f32 %v6430, %v238
      %v6463 = vadd.f32 %v6431, %v239
      %v6464 = vadd.f32 %v6432, %v240
      %v6465 = vadd.f32 %v6433, %v241
      %v6466 = vadd.f32 %v6434, %v242
      %v6467 = vadd.f32 %v6435, %v243
      %v6468 = vadd.f32 %v6436, %v244
      %v6469 = vadd.f32 %v6437, %v245
      %v6470 = vadd.f32 %v6438, %v246
      %v6471 = vadd.f32 %v6439, %v247
      %v6472 = vadd.f32 %v6440, %v248
      %v6473 = vadd.f32 %v6441, %v249
      %v6474 = vadd.f32 %v6442, %v250
      %v6475 = vadd.f32 %v6443, %v251
      %v6476 = vadd.f32 %v6444, %v252
      %v6477 = vadd.f32 %v6445, %v253
      %v6478 = vadd.f32 %v6446, %v254
      %v6479 = vadd.f32 %v6447, %v255
      %v6480 = vadd.f32 %v6448, %v256
      %v6481 = vadd.f32 %v6449, %v257
      %v6482 = vmax.f32 %v6450, 0.0
      %v6483 = vmax.f32 %v6451, 0.0
      %v6484 = vmax.f32 %v6452, 0.0
      %v6485 = vmax.f32 %v6453, 0.0
      %v6486 = vmax.f32 %v6454, 0.0
      %v6487 = vmax.f32 %v6455, 0.0
      %v6488 = vmax.f32 %v6456, 0.0
      %v6489 = vmax.f32 %v6457, 0.0
      %v6490 = vmax.f32 %v6458, 0.0
      %v6491 = vmax.f32 %v6459, 0.0
      %v6492 = vmax.f32 %v6460, 0.0
      %v6493 = vmax.f32 %v6461, 0.0
      %v6494 = vmax.f32 %v6462, 0.0
      %v6495 = vmax.f32 %v6463, 0.0
      %v6496 = vmax.f32 %v6464, 0.0
      %v6497 = vmax.f32 %v6465, 0.0
      %v6498 = vmax.f32 %v6466, 0.0
      %v6499 = vmax.f32 %v6467, 0.0
      %v6500 = vmax.f32 %v6468, 0.0
      %v6501 = vmax.f32 %v6469, 0.0
      %v6502 = vmax.f32 %v6470, 0.0
      %v6503 = vmax.f32 %v6471, 0.0
      %v6504 = vmax.f32 %v6472, 0.0
      %v6505 = vmax.f32 %v6473, 0.0
      %v6506 = vmax.f32 %v6474, 0.0
      %v6507 = vmax.f32 %v6475, 0.0
      %v6508 = vmax.f32 %v6476, 0.0
      %v6509 = vmax.f32 %v6477, 0.0
      %v6510 = vmax.f32 %v6478, 0.0
      %v6511 = vmax.f32 %v6479, 0.0
      %v6512 = vmax.f32 %v6480, 0.0
      %v6513 = vmax.f32 %v6481, 0.0
      %6514 = vst.msk [vmem:[%s224] sm:$0xff] %vm258, %v6482
      %6515 = vst.msk [vmem:[%s224 + $0x8] sm:$0xff] %vm258, %v6483
      %6516 = vst.msk [vmem:[%s224 + $0x10] sm:$0xff] %vm258, %v6484
      %6517 = vst.msk [vmem:[%s224 + $0x18] sm:$0xff] %vm258, %v6485
      %6518 = vst.msk [vmem:[%s224 + $0x20] sm:$0xff] %vm258, %v6486
      %6519 = vst.msk [vmem:[%s224 + $0x28] sm:$0xff] %vm258, %v6487
      %6520 = vst.msk [vmem:[%s224 + $0x30] sm:$0xff] %vm258, %v6488
      %6521 = vst.msk [vmem:[%s224 + $0x38] sm:$0xff] %vm258, %v6489
      %6522 = vst.msk [vmem:[%s224 + $0x40] sm:$0xff] %vm258, %v6490
      %6523 = vst.msk [vmem:[%s224 + $0x48] sm:$0xff] %vm258, %v6491
      %6524 = vst.msk [vmem:[%s224 + $0x50] sm:$0xff] %vm258, %v6492
      %6525 = vst.msk [vmem:[%s224 + $0x58] sm:$0xff] %vm258, %v6493
      %6526 = vst.msk [vmem:[%s224 + $0x60] sm:$0xff] %vm258, %v6494
      %6527 = vst.msk [vmem:[%s224 + $0x68] sm:$0xff] %vm258, %v6495
      %6528 = vst.msk [vmem:[%s224 + $0x70] sm:$0xff] %vm258, %v6496
      %6529 = vst.msk [vmem:[%s224 + $0x78] sm:$0xff] %vm258, %v6497
      %6530 = vst.msk [vmem:[%s224 + $0x80] sm:$0xff] %vm258, %v6498
      %6531 = vst.msk [vmem:[%s224 + $0x88] sm:$0xff] %vm258, %v6499
      %6532 = vst.msk [vmem:[%s224 + $0x90] sm:$0xff] %vm258, %v6500
      %6533 = vst.msk [vmem:[%s224 + $0x98] sm:$0xff] %vm258, %v6501
      %6534 = vst.msk [vmem:[%s224 + $0xa0] sm:$0xff] %vm258, %v6502
      %6535 = vst.msk [vmem:[%s224 + $0xa8] sm:$0xff] %vm258, %v6503
      %6536 = vst.msk [vmem:[%s224 + $0xb0] sm:$0xff] %vm258, %v6504
      %6537 = vst.msk [vmem:[%s224 + $0xb8] sm:$0xff] %vm258, %v6505
      %6538 = vst.msk [vmem:[%s224 + $0xc0] sm:$0xff] %vm258, %v6506
      %6539 = vst.msk [vmem:[%s224 + $0xc8] sm:$0xff] %vm258, %v6507
      %6540 = vst.msk [vmem:[%s224 + $0xd0] sm:$0xff] %vm258, %v6508
      %6541 = vst.msk [vmem:[%s224 + $0xd8] sm:$0xff] %vm258, %v6509
      %6542 = vst.msk [vmem:[%s224 + $0xe0] sm:$0xff] %vm258, %v6510
      %6543 = vst.msk [vmem:[%s224 + $0xe8] sm:$0xff] %vm258, %v6511
      %6544 = vst.msk [vmem:[%s224 + $0xf0] sm:$0xff] %vm258, %v6512
      %6545 = vst.msk [vmem:[%s224 + $0xf8] sm:$0xff] %vm258, %v6513
      %p6546 = scmp.lt.s32.totalorder %s16, 1
      %s6547 = scalar_select %p6546, %s16, 1
      %s6548 = smul.addr %s6547, 32
      %s6549 = smul.addr %s6548, 8
      %s6550 = scalar_lea.vmem %s5, %s6549
      // Predicated region
      $region41: #{tpu_custom_call.1} parent=39 // pred_check
        %p6551 = pneg %p144
      $region42: #{tpu_custom_call.1} parent=39 // pred_check_branch
        %6553 = sbr.rel (%p6551) target = $region44
      $region43: #{tpu_custom_call.1} parent=39 // pred_region
        _
      $region44: #{tpu_custom_call.1} parent=39 // pred_fallthru
        _
    $region40: #{tpu_custom_call.1} parent=5 // pred_fallthru
      _
    %p6554 = scmp.le.s32.totalorder 2, %s11
    // Predicated region
    $region45: #{tpu_custom_call.1} parent=5 // pred_check
      %p6555 = pneg %p6554
    $region46: #{tpu_custom_call.1} parent=5 // pred_check_branch
      %6557 = sbr.rel (%p6555) target = $region48
    $region47: #{tpu_custom_call.1} parent=5 // pred_region
      %s6558 = ssub.s32 %s11, 2
      // Predicated region
      $region49: #{tpu_custom_call.1} parent=47 // pred_check
        %p6559 = pneg %p150
      $region50: #{tpu_custom_call.1} parent=47 // pred_check_branch
        %6561 = sbr.rel (%p6559) target = $region52
      $region51: #{tpu_custom_call.1} parent=47 // pred_region
        %p6562 = scmp.lt.s32.totalorder %s17, 1
        %s6563 = scalar_select %p6562, %s17, 1
        %s6564 = smul.addr %s6563, 32
        %s6565 = smul.addr %s6564, 8
        %s6566 = scalar_lea.vmem %s5, %s6565
      $region52: #{tpu_custom_call.1} parent=47 // pred_fallthru
        _
    $region48: #{tpu_custom_call.1} parent=5 // pred_fallthru
      _
  $region6: #{tpu_custom_call.1} parent=0 // loop_footer
    %s15 = sadd.s32 1, %s11
  $region7: #{tpu_custom_call.1} parent=0 // loop_footer_branch
    %10 = sbr.rel target = $region3
  $region8: #{tpu_custom_call.1} parent=0 // loop_exit
    _

</llo_original>
